<compile_context>
chip_gen: v5e
topology: v5e:2x2
jax: 0.10.0
libtpu: 0.0.40
codegen_flags: <defaults>
</compile_context>

<pallas_src>
import functools

import jax
import jax.numpy as jnp
from jax.experimental import pallas as pl
from jax.experimental.pallas import tpu as pltpu

_BATCH_TILE = 128                      # images per tail-kernel grid step
_VMEM_FALLBACK = 32 * 1024 * 1024

_vmem_limit_cache = None


def _vmem_limit():
    """Scoped-VMEM limit: ~half of physical VMEM, capped at 64 MiB."""
    global _vmem_limit_cache
    if _vmem_limit_cache is None:
        limit = _VMEM_FALLBACK
        try:
            cap = int(pltpu.get_tpu_info().vmem_capacity_bytes)
            limit = min(max(cap // 2, _VMEM_FALLBACK), 64 * 1024 * 1024)
        except Exception:
            pass  # older jax / no device info -> conservative 32 MiB
        _vmem_limit_cache = limit
    return _vmem_limit_cache


def _round_up(x, m):
    return -(-x // m) * m


# ---------------------------------------------------------------------------
# Pallas kernels
# ---------------------------------------------------------------------------
def _conv_pool_kernel(p_ref, w_ref, b_ref, o_ref):
    """Fused conv(matmul over im2col patches) + 2x2/2 max-pool + bias + ReLU.

    p_ref: [4, K, Mt]  patches; leading dim = pool-window corner.
    w_ref: [Cout, K]   flattened conv weight (K zero-padded to %8).
    b_ref: [Cout, 1]   bias (float32).
    o_ref: [Cout, Mt]  pooled activation, lane-dense; columns = (oh, ow, n).
    """
    w = w_ref[...]
    z = jnp.dot(w, p_ref[0], preferred_element_type=jnp.float32)
    z = jnp.maximum(z, jnp.dot(w, p_ref[1], preferred_element_type=jnp.float32))
    z = jnp.maximum(z, jnp.dot(w, p_ref[2], preferred_element_type=jnp.float32))
    z = jnp.maximum(z, jnp.dot(w, p_ref[3], preferred_element_type=jnp.float32))
    o_ref[...] = jnp.maximum(z + b_ref[...], 0.0).astype(o_ref.dtype)


def _conv2_tail_kernel(p_ref, w2_ref, b2_ref, w3_ref, b3_ref, w4_ref, b4_ref,
                       w5_ref, b5_ref, o_ref, *, nb, n_pos):
    """conv2(+pool) + conv3 + ReLU + fc1 + tanh + fc2 for one batch tile.

    p_ref : [4, K2, n_pos*nb]  conv2 patches of `nb` images; within the block
                               columns are ordered (spatial position, image).
    w2_ref: [16, K2]           conv2 weight;       b2_ref: [16, 1]
    w3_ref: [n_pos, 120, 16]   conv3 weight grouped by spatial position.
    b3_ref: [120, 1]
    w4_ref: [84, 120]  b4_ref: [84, 1]   (fc1)
    w5_ref: [nc, 84]   b5_ref: [nc, 1]   (fc2)
    o_ref : [nc, nb]           logits, batch on the lane dim (lane-dense).
    """
    w2 = w2_ref[...]
    z = jnp.dot(w2, p_ref[0], preferred_element_type=jnp.float32)
    z = jnp.maximum(z, jnp.dot(w2, p_ref[1], preferred_element_type=jnp.float32))
    z = jnp.maximum(z, jnp.dot(w2, p_ref[2], preferred_element_type=jnp.float32))
    z = jnp.maximum(z, jnp.dot(w2, p_ref[3], preferred_element_type=jnp.float32))
    a2 = jnp.maximum(z + b2_ref[...], 0.0).astype(w3_ref.dtype)   # [16, n_pos*nb]

    # conv3 (5x5 kernel over the whole 5x5 map == dense 400->120), accumulated
    # per spatial position.  The lane slabs a2[:, p*nb:(p+1)*nb] are
    # 128-aligned because nb is a multiple of 128.
    h = jnp.dot(w3_ref[0], a2[:, :nb], preferred_element_type=jnp.float32)
    for p in range(1, n_pos):
        h = h + jnp.dot(w3_ref[p], a2[:, p * nb:(p + 1) * nb],
                        preferred_element_type=jnp.float32)
    h = jnp.maximum(h + b3_ref[...], 0.0).astype(w4_ref.dtype)    # [120, nb]

    h = jnp.tanh(jnp.dot(w4_ref[...], h, preferred_element_type=jnp.float32)
                 + b4_ref[...]).astype(w5_ref.dtype)              # [84, nb]
    o_ref[...] = (jnp.dot(w5_ref[...], h, preferred_element_type=jnp.float32)
                  + b5_ref[...]).astype(o_ref.dtype)


# ---------------------------------------------------------------------------
# pallas_call wrappers
# ---------------------------------------------------------------------------
def conv_relu_pool(patches, w_t, b_col):
    """patches [4, K, M] -> pooled activation [Cout, M], M = 14*14*Np."""
    four, K, M = patches.shape
    Cout, Kw = w_t.shape
    assert four == 4 and Kw == K and b_col.shape == (Cout, 1)
    tm = 1024 if M % 1024 == 0 else 512
    assert M % tm == 0, "batch must be padded to a multiple of the batch tile"
    return pl.pallas_call(
        _conv_pool_kernel,
        out_shape=jax.ShapeDtypeStruct((Cout, M), patches.dtype),
        grid=(M // tm,),
        in_specs=[
            pl.BlockSpec((4, K, tm), lambda i: (0, 0, i)),
            pl.BlockSpec((Cout, K), lambda i: (0, 0)),
            pl.BlockSpec((Cout, 1), lambda i: (0, 0)),
        ],
        out_specs=pl.BlockSpec((Cout, tm), lambda i: (0, i)),
        compiler_params=pltpu.CompilerParams(
            dimension_semantics=("parallel",),
            vmem_limit_bytes=_vmem_limit()),
    )(patches, w_t, b_col)


def conv2_tail(p2, w2t, b2, w3r, b3, w4, b4, w5, b5, *, nb):
    """conv2 patches [4, K2, 25*Np] -> logits [num_classes, Np] (transposed)."""
    four, K2, M2 = p2.shape
    n_pos = w3r.shape[0]                       # 25 spatial positions of conv3
    Np = M2 // n_pos
    nc = w5.shape[0]
    assert four == 4 and Np % nb == 0
    kern = functools.partial(_conv2_tail_kernel, nb=nb, n_pos=n_pos)
    consts = [w2t, b2, w3r, b3, w4, b4, w5, b5]

    def _const_spec(a):
        nd = a.ndim
        return pl.BlockSpec(a.shape, lambda i, _nd=nd: (0,) * _nd)

    return pl.pallas_call(
        kern,
        out_shape=jax.ShapeDtypeStruct((nc, Np), jnp.float32),
        grid=(Np // nb,),
        in_specs=[pl.BlockSpec((4, K2, n_pos * nb), lambda i: (0, 0, i))]
                 + [_const_spec(a) for a in consts],
        out_specs=pl.BlockSpec((nc, nb), lambda i: (0, i)),
        compiler_params=pltpu.CompilerParams(
            dimension_semantics=("parallel",),
            vmem_limit_bytes=_vmem_limit()),
    )(p2, *consts)


# ---------------------------------------------------------------------------
# XLA glue: corner-grouped im2col and one-time weight preparation
# ---------------------------------------------------------------------------
def _corner_patches_conv1(xp):
    """im2col for conv1, grouped by 2x2 pool corner.

    xp: [1, 32, 32, Np] zero-padded input, batch last.
    Returns [4, 32, 14*14*Np]; columns (oh, ow, n), rows (kh, kw), K 25->32.
    """
    C, _, _, Np = xp.shape
    k, Ho, Wo = 5, 14, 14
    corners = []
    for dh in (0, 1):
        for dw in (0, 1):
            taps = []
            for kh in range(k):
                for kw in range(k):
                    s0, s1 = dh + kh, dw + kw
                    win = xp[:, s0:s0 + 2 * Ho:2, s1:s1 + 2 * Wo:2, :]
                    taps.append(win.reshape(C, 1, Ho * Wo * Np))
            kk = jnp.concatenate(taps, axis=1)             # [C, 25, M1]
            corners.append(kk.reshape(C * k * k, -1))
    p = jnp.stack(corners, axis=0)                         # [4, 25, M1]
    kp = _round_up(C * k * k, 8)
    return jnp.pad(p, ((0, 0), (0, kp - C * k * k), (0, 0)))


def _corner_patches_conv2(a1, nb):
    """im2col for conv2, grouped by pool corner and batch tile.

    a1: [6, 14, 14, Np] conv1 activation, batch last (Np % nb == 0).
    Returns [4, 152, 25*Np]; column order (n_tile, oh, ow, n_in_tile), so each
    lane block of 25*nb columns holds all 25 positions of nb images; rows
    (cin, kh, kw), K 150->152.
    """
    C, _, _, Np = a1.shape
    k, Ho, Wo = 5, 5, 5
    nt = Np // nb
    corners = []
    for dh in (0, 1):
        for dw in (0, 1):
            taps = []
            for kh in range(k):
                for kw in range(k):
                    s0, s1 = dh + kh, dw + kw
                    win = a1[:, s0:s0 + 2 * Ho:2, s1:s1 + 2 * Wo:2, :]  # [C,5,5,Np]
                    win = win.reshape(C, Ho * Wo, nt, nb).transpose(0, 2, 1, 3)
                    taps.append(win.reshape(C, 1, Ho * Wo * Np))
            kk = jnp.concatenate(taps, axis=1)             # [C, 25, M2]
            corners.append(kk.reshape(C * k * k, -1))
    p = jnp.stack(corners, axis=0)                         # [4, 150, M2]
    kp = _round_up(C * k * k, 8)
    return jnp.pad(p, ((0, 0), (0, kp - C * k * k), (0, 0)))


def prepare_params(p, compute_dtype=jnp.bfloat16):
    """One-time (outside jit) weight flatten / reorder / cast.

    compute_dtype is used for matmul operands (weights, patches, activations);
    biases and all accumulation stay float32.
    """
    def flat_conv_w(w):
        cout = w.shape[0]
        kk = w.shape[1] * w.shape[2] * w.shape[3]
        wf = w.reshape(cout, kk)
        return jnp.pad(wf, ((0, 0), (0, _round_up(kk, 8) - kk))).astype(compute_dtype)

    c3 = p["conv3_w"]                                       # [120, 16, 5, 5]
    w3r = c3.reshape(120, 16, 25).transpose(2, 0, 1)        # [25, 120, 16]
    return {
        "w1t": flat_conv_w(p["conv1_w"]),
        "b1": p["conv1_b"].reshape(-1, 1).astype(jnp.float32),
        "w2t": flat_conv_w(p["conv2_w"]),
        "b2": p["conv2_b"].reshape(-1, 1).astype(jnp.float32),
        "w3r": w3r.astype(compute_dtype),
        "b3": p["conv3_b"].reshape(-1, 1).astype(jnp.float32),
        "w4": p["fc1_w"].astype(compute_dtype),
        "b4": p["fc1_b"].reshape(-1, 1).astype(jnp.float32),
        "w5": p["fc2_w"].astype(compute_dtype),
        "b5": p["fc2_b"].reshape(-1, 1).astype(jnp.float32),
    }


# ---------------------------------------------------------------------------
# LeNet-5 forward
# ---------------------------------------------------------------------------
def lenet5_forward(x, pp):
    """x: [N, 1, 28, 28] NCHW float32 -> logits [N, num_classes] float32."""
    N = x.shape[0]
    assert x.shape[1:] == (1, 28, 28), "LeNet-5 expects 1x28x28 inputs"
    nb = _BATCH_TILE
    Np = _round_up(N, nb)          # pad batch once; padded images ride along
    cdt = pp["w1t"].dtype

    # Batch-last, channels-first layout; conv1's padding=2 applied up front.
    xt = jnp.transpose(x.astype(cdt), (1, 2, 3, 0))                   # [1,28,28,N]
    xt = jnp.pad(xt, ((0, 0), (2, 2), (2, 2), (0, Np - N)))           # [1,32,32,Np]

    # TODO(synk): build these patches inside the kernels (manual DMA over the
    # compact activation) to remove the ~25x im2col HBM blowup at large batch.
    p1 = _corner_patches_conv1(xt)                                    # [4,32,196*Np]
    a1 = conv_relu_pool(p1, pp["w1t"], pp["b1"])                      # [6,196*Np]
    p2 = _corner_patches_conv2(a1.reshape(6, 14, 14, Np), nb)         # [4,152,25*Np]
    logits_t = conv2_tail(p2, pp["w2t"], pp["b2"], pp["w3r"], pp["b3"],
                          pp["w4"], pp["b4"], pp["w5"], pp["b5"], nb=nb)  # [nc,Np]
    return logits_t[:, :N].T                                          # [N, nc]


# ---------------------------------------------------------------------------
# Pure-JAX reference (correctness check only)
# ---------------------------------------------------------------------------
def _ref_forward(x, p):
    def conv(x, w, b, pad):
        y = jax.lax.conv_general_dilated(
            x, w, window_strides=(1, 1), padding=[(pad, pad), (pad, pad)],
            dimension_numbers=("NCHW", "OIHW", "NCHW"))
        return y + b.reshape(1, -1, 1, 1)

    def pool(x):
        N, C, H, W = x.shape
        return jnp.max(x.reshape(N, C, H // 2, 2, W // 2, 2), axis=(3, 5))

    x = pool(jax.nn.relu(conv(x, p["conv1_w"], p["conv1_b"], 2)))
    x = pool(jax.nn.relu(conv(x, p["conv2_w"], p["conv2_b"], 0)))
    x = jax.nn.relu(conv(x, p["conv3_w"], p["conv3_b"], 0))
    x = x.reshape(x.shape[0], -1)
    x = jnp.tanh(x @ p["fc1_w"].T + p["fc1_b"])
    x = x @ p["fc2_w"].T + p["fc2_b"]
    return x


def init_params(key, num_classes=10):
    ks = jax.random.split(key, 10)

    def u(k, shape, fan_in):
        bound = 1.0 / jnp.sqrt(fan_in)
        return jax.random.uniform(k, shape, jnp.float32, -bound, bound)

    return {
        "conv1_w": u(ks[0], (6, 1, 5, 5), 1 * 25),
        "conv1_b": u(ks[1], (6,), 1 * 25),
        "conv2_w": u(ks[2], (16, 6, 5, 5), 6 * 25),
        "conv2_b": u(ks[3], (16,), 6 * 25),
        "conv3_w": u(ks[4], (120, 16, 5, 5), 16 * 25),
        "conv3_b": u(ks[5], (120,), 16 * 25),
        "fc1_w": u(ks[6], (84, 120), 120),
        "fc1_b": u(ks[7], (84,), 120),
        "fc2_w": u(ks[8], (num_classes, 84), 84),
        "fc2_b": u(ks[9], (num_classes,), 84),
    }


if __name__ == "__main__":
    key = jax.random.PRNGKey(0)
    k_x, k_p = jax.random.split(key)
    # LeNet-5 requires 28x28 single-channel input (conv3 produces 1x1 spatial).
    x = jax.random.normal(k_x, (2, 1, 28, 28), jnp.float32)
    params = init_params(k_p)
    ref = jax.block_until_ready(_ref_forward(x, params))

    fwd = jax.jit(lenet5_forward)

    # float32 mode: tight tolerance, verifies the fused-kernel math.
    out_f32 = jax.block_until_ready(fwd(x, prepare_params(params, jnp.float32)))
    assert out_f32.shape == (2, 10) and out_f32.dtype == jnp.float32
    assert jnp.allclose(out_f32, ref, atol=1e-3, rtol=1e-3), "f32 mismatch vs reference"

    # bfloat16 mode (default for perf): halved HBM traffic, f32 accumulation.
    out_bf16 = jax.block_until_ready(fwd(x, prepare_params(params, jnp.bfloat16)))
    assert out_bf16.shape == (2, 10) and out_bf16.dtype == jnp.float32
    assert jnp.allclose(out_bf16, ref, atol=8e-2, rtol=8e-2), "bf16 mismatch vs reference"

    print("KERNEL_OK")
</pallas_src>

<mosaic_0001>
module attributes {stable_mosaic.version = 11 : i64} {
  func.func @_conv_pool_kernel(%arg0: i32, %arg1: memref<4x32x512xf32, #tpu.memory_space<vmem>>, %arg2: memref<6x32xf32, #tpu.memory_space<vmem>>, %arg3: memref<6x1xf32, #tpu.memory_space<vmem>>, %arg4: memref<6x512xf32, #tpu.memory_space<vmem>>) attributes {dimension_semantics = [#tpu.dimension_semantics<parallel>], iteration_bounds = array<i64: 49>, scalar_prefetch = 0 : i64, scratch_operands = 0 : i64, tpu.core_type = #tpu.core_type<tc>, window_params = [{transform_indices = @transform_0, window_bounds = array<i64: 4, 32, 512>}, {pipeline_mode = #tpu.pipeline_mode<synchronous>, transform_indices = @transform_1, window_bounds = array<i64: 6, 32>}, {pipeline_mode = #tpu.pipeline_mode<synchronous>, transform_indices = @transform_2, window_bounds = array<i64: 6, 1>}, {transform_indices = @transform_3, window_bounds = array<i64: 6, 512>}]} {
    %c0 = arith.constant 0 : index
    %c0_0 = arith.constant 0 : index
    %0 = vector.load %arg2[%c0, %c0_0] : memref<6x32xf32, #tpu.memory_space<vmem>>, vector<6x32xf32>
    %c0_1 = arith.constant 0 : index
    %c0_2 = arith.constant 0 : index
    %c0_3 = arith.constant 0 : index
    %1 = vector.load %arg1[%c0_1, %c0_2, %c0_3] : memref<4x32x512xf32, #tpu.memory_space<vmem>>, vector<1x32x512xf32>
    %2 = vector.shape_cast %1 : vector<1x32x512xf32> to vector<32x512xf32>
    %cst = arith.constant dense<0.000000e+00> : vector<6x512xf32>
    %3 = tpu.matmul %0, %2, %cst {dimension_numbers = #tpu.dot_dimension_numbers<[1], [0], [0], [1], [0, 0, 1, 1], [], []>} : vector<6x32xf32>, vector<32x512xf32>, vector<6x512xf32> -> vector<6x512xf32>
    %c1 = arith.constant 1 : index
    %c0_4 = arith.constant 0 : index
    %c0_5 = arith.constant 0 : index
    %4 = vector.load %arg1[%c1, %c0_4, %c0_5] : memref<4x32x512xf32, #tpu.memory_space<vmem>>, vector<1x32x512xf32>
    %5 = vector.shape_cast %4 : vector<1x32x512xf32> to vector<32x512xf32>
    %cst_6 = arith.constant dense<0.000000e+00> : vector<6x512xf32>
    %6 = tpu.matmul %0, %5, %cst_6 {dimension_numbers = #tpu.dot_dimension_numbers<[1], [0], [0], [1], [0, 0, 1, 1], [], []>} : vector<6x32xf32>, vector<32x512xf32>, vector<6x512xf32> -> vector<6x512xf32>
    %7 = arith.maximumf %3, %6 : vector<6x512xf32>
    %c2 = arith.constant 2 : index
    %c0_7 = arith.constant 0 : index
    %c0_8 = arith.constant 0 : index
    %8 = vector.load %arg1[%c2, %c0_7, %c0_8] : memref<4x32x512xf32, #tpu.memory_space<vmem>>, vector<1x32x512xf32>
    %9 = vector.shape_cast %8 : vector<1x32x512xf32> to vector<32x512xf32>
    %cst_9 = arith.constant dense<0.000000e+00> : vector<6x512xf32>
    %10 = tpu.matmul %0, %9, %cst_9 {dimension_numbers = #tpu.dot_dimension_numbers<[1], [0], [0], [1], [0, 0, 1, 1], [], []>} : vector<6x32xf32>, vector<32x512xf32>, vector<6x512xf32> -> vector<6x512xf32>
    %11 = arith.maximumf %7, %10 : vector<6x512xf32>
    %c3 = arith.constant 3 : index
    %c0_10 = arith.constant 0 : index
    %c0_11 = arith.constant 0 : index
    %12 = vector.load %arg1[%c3, %c0_10, %c0_11] : memref<4x32x512xf32, #tpu.memory_space<vmem>>, vector<1x32x512xf32>
    %13 = vector.shape_cast %12 : vector<1x32x512xf32> to vector<32x512xf32>
    %cst_12 = arith.constant dense<0.000000e+00> : vector<6x512xf32>
    %14 = tpu.matmul %0, %13, %cst_12 {dimension_numbers = #tpu.dot_dimension_numbers<[1], [0], [0], [1], [0, 0, 1, 1], [], []>} : vector<6x32xf32>, vector<32x512xf32>, vector<6x512xf32> -> vector<6x512xf32>
    %15 = arith.maximumf %11, %14 : vector<6x512xf32>
    %c0_13 = arith.constant 0 : index
    %c0_14 = arith.constant 0 : index
    %16 = vector.load %arg3[%c0_13, %c0_14] : memref<6x1xf32, #tpu.memory_space<vmem>>, vector<6x1xf32>
    %17 = vector.broadcast %16 : vector<6x1xf32> to vector<6x512xf32>
    %18 = arith.addf %15, %17 : vector<6x512xf32>
    %cst_15 = arith.constant 0.000000e+00 : f32
    %19 = vector.broadcast %cst_15 : f32 to vector<6x512xf32>
    %20 = arith.maximumf %18, %19 : vector<6x512xf32>
    %c0_16 = arith.constant 0 : index
    %c0_17 = arith.constant 0 : index
    %21 = vector.load %arg4[%c0_16, %c0_17] : memref<6x512xf32, #tpu.memory_space<vmem>>, vector<6x512xf32>
    tpu.vector_store %arg4[%c0_16, %c0_17], %20 {strides = array<i32>} : memref<6x512xf32, #tpu.memory_space<vmem>>, vector<6x512xf32>,
    return
  }
  func.func @transform_0(%arg0: i32) -> (i32, i32, i32) {
    %c0_i32 = arith.constant 0 : i32
    %c0_i32_0 = arith.constant 0 : i32
    %c0_i32_1 = arith.constant 0 : i32
    return %c0_i32, %c0_i32_0, %arg0 : i32, i32, i32
  }
  func.func @transform_1(%arg0: i32) -> (i32, i32) {
    %c0_i32 = arith.constant 0 : i32
    %c0_i32_0 = arith.constant 0 : i32
    %c0_i32_1 = arith.constant 0 : i32
    return %c0_i32, %c0_i32_0 : i32, i32
  }
  func.func @transform_2(%arg0: i32) -> (i32, i32) {
    %c0_i32 = arith.constant 0 : i32
    %c0_i32_0 = arith.constant 0 : i32
    %c0_i32_1 = arith.constant 0 : i32
    return %c0_i32, %c0_i32_0 : i32, i32
  }
  func.func @transform_3(%arg0: i32) -> (i32, i32) {
    %c0_i32 = arith.constant 0 : i32
    %c0_i32_0 = arith.constant 0 : i32
    return %c0_i32, %arg0 : i32, i32
  }
}

module attributes {stable_mosaic.version = 11 : i64} {
  func.func @_conv2_tail_kernel(%arg0: i32, %arg1: memref<4x152x3200xf32, #tpu.memory_space<vmem>>, %arg2: memref<16x152xf32, #tpu.memory_space<vmem>>, %arg3: memref<16x1xf32, #tpu.memory_space<vmem>>, %arg4: memref<25x120x16xf32, #tpu.memory_space<vmem>>, %arg5: memref<120x1xf32, #tpu.memory_space<vmem>>, %arg6: memref<84x120xf32, #tpu.memory_space<vmem>>, %arg7: memref<84x1xf32, #tpu.memory_space<vmem>>, %arg8: memref<10x84xf32, #tpu.memory_space<vmem>>, %arg9: memref<10x1xf32, #tpu.memory_space<vmem>>, %arg10: memref<10x128xf32, #tpu.memory_space<vmem>>) attributes {dimension_semantics = [#tpu.dimension_semantics<parallel>], iteration_bounds = array<i64: 1>, scalar_prefetch = 0 : i64, scratch_operands = 0 : i64, tpu.core_type = #tpu.core_type<tc>, window_params = [{transform_indices = @transform_0, window_bounds = array<i64: 4, 152, 3200>}, {pipeline_mode = #tpu.pipeline_mode<synchronous>, transform_indices = @transform_1, window_bounds = array<i64: 16, 152>}, {pipeline_mode = #tpu.pipeline_mode<synchronous>, transform_indices = @transform_2, window_bounds = array<i64: 16, 1>}, {pipeline_mode = #tpu.pipeline_mode<synchronous>, transform_indices = @transform_3, window_bounds = array<i64: 25, 120, 16>}, {pipeline_mode = #tpu.pipeline_mode<synchronous>, transform_indices = @transform_4, window_bounds = array<i64: 120, 1>}, {pipeline_mode = #tpu.pipeline_mode<synchronous>, transform_indices = @transform_5, window_bounds = array<i64: 84, 120>}, {pipeline_mode = #tpu.pipeline_mode<synchronous>, transform_indices = @transform_6, window_bounds = array<i64: 84, 1>}, {pipeline_mode = #tpu.pipeline_mode<synchronous>, transform_indices = @transform_7, window_bounds = array<i64: 10, 84>}, {pipeline_mode = #tpu.pipeline_mode<synchronous>, transform_indices = @transform_8, window_bounds = array<i64: 10, 1>}, {transform_indices = @transform_9, window_bounds = array<i64: 10, 128>}]} {
    %c0 = arith.constant 0 : index
    %c0_0 = arith.constant 0 : index
    %0 = vector.load %arg2[%c0, %c0_0] : memref<16x152xf32, #tpu.memory_space<vmem>>, vector<16x152xf32>
    %c0_1 = arith.constant 0 : index
    %c0_2 = arith.constant 0 : index
    %c0_3 = arith.constant 0 : index
    %1 = vector.load %arg1[%c0_1, %c0_2, %c0_3] : memref<4x152x3200xf32, #tpu.memory_space<vmem>>, vector<1x152x3200xf32>
    %2 = vector.shape_cast %1 : vector<1x152x3200xf32> to vector<152x3200xf32>
    %cst = arith.constant dense<0.000000e+00> : vector<16x3200xf32>
    %3 = tpu.matmul %0, %2, %cst {dimension_numbers = #tpu.dot_dimension_numbers<[1], [0], [0], [1], [0, 0, 1, 1], [], []>} : vector<16x152xf32>, vector<152x3200xf32>, vector<16x3200xf32> -> vector<16x3200xf32>
    %c1 = arith.constant 1 : index
    %c0_4 = arith.constant 0 : index
    %c0_5 = arith.constant 0 : index
    %4 = vector.load %arg1[%c1, %c0_4, %c0_5] : memref<4x152x3200xf32, #tpu.memory_space<vmem>>, vector<1x152x3200xf32>
    %5 = vector.shape_cast %4 : vector<1x152x3200xf32> to vector<152x3200xf32>
    %cst_6 = arith.constant dense<0.000000e+00> : vector<16x3200xf32>
    %6 = tpu.matmul %0, %5, %cst_6 {dimension_numbers = #tpu.dot_dimension_numbers<[1], [0], [0], [1], [0, 0, 1, 1], [], []>} : vector<16x152xf32>, vector<152x3200xf32>, vector<16x3200xf32> -> vector<16x3200xf32>
    %7 = arith.maximumf %3, %6 : vector<16x3200xf32>
    %c2 = arith.constant 2 : index
    %c0_7 = arith.constant 0 : index
    %c0_8 = arith.constant 0 : index
    %8 = vector.load %arg1[%c2, %c0_7, %c0_8] : memref<4x152x3200xf32, #tpu.memory_space<vmem>>, vector<1x152x3200xf32>
    %9 = vector.shape_cast %8 : vector<1x152x3200xf32> to vector<152x3200xf32>
    %cst_9 = arith.constant dense<0.000000e+00> : vector<16x3200xf32>
    %10 = tpu.matmul %0, %9, %cst_9 {dimension_numbers = #tpu.dot_dimension_numbers<[1], [0], [0], [1], [0, 0, 1, 1], [], []>} : vector<16x152xf32>, vector<152x3200xf32>, vector<16x3200xf32> -> vector<16x3200xf32>
    %11 = arith.maximumf %7, %10 : vector<16x3200xf32>
    %c3 = arith.constant 3 : index
    %c0_10 = arith.constant 0 : index
    %c0_11 = arith.constant 0 : index
    %12 = vector.load %arg1[%c3, %c0_10, %c0_11] : memref<4x152x3200xf32, #tpu.memory_space<vmem>>, vector<1x152x3200xf32>
    %13 = vector.shape_cast %12 : vector<1x152x3200xf32> to vector<152x3200xf32>
    %cst_12 = arith.constant dense<0.000000e+00> : vector<16x3200xf32>
    %14 = tpu.matmul %0, %13, %cst_12 {dimension_numbers = #tpu.dot_dimension_numbers<[1], [0], [0], [1], [0, 0, 1, 1], [], []>} : vector<16x152xf32>, vector<152x3200xf32>, vector<16x3200xf32> -> vector<16x3200xf32>
    %15 = arith.maximumf %11, %14 : vector<16x3200xf32>
    %c0_13 = arith.constant 0 : index
    %c0_14 = arith.constant 0 : index
    %16 = vector.load %arg3[%c0_13, %c0_14] : memref<16x1xf32, #tpu.memory_space<vmem>>, vector<16x1xf32>
    %17 = vector.broadcast %16 : vector<16x1xf32> to vector<16x3200xf32>
    %18 = arith.addf %15, %17 : vector<16x3200xf32>
    %cst_15 = arith.constant 0.000000e+00 : f32
    %19 = vector.broadcast %cst_15 : f32 to vector<16x3200xf32>
    %20 = arith.maximumf %18, %19 : vector<16x3200xf32>
    %c0_16 = arith.constant 0 : index
    %c0_17 = arith.constant 0 : index
    %c0_18 = arith.constant 0 : index
    %21 = vector.load %arg4[%c0_16, %c0_17, %c0_18] : memref<25x120x16xf32, #tpu.memory_space<vmem>>, vector<1x120x16xf32>
    %22 = vector.shape_cast %21 : vector<1x120x16xf32> to vector<120x16xf32>
    %23 = vector.extract_strided_slice %20 {offsets = [0, 0], sizes = [16, 128], strides = [1, 1]} : vector<16x3200xf32> to vector<16x128xf32>
    %cst_19 = arith.constant dense<0.000000e+00> : vector<120x128xf32>
    %24 = tpu.matmul %22, %23, %cst_19 {dimension_numbers = #tpu.dot_dimension_numbers<[1], [0], [0], [1], [0, 0, 1, 1], [], []>} : vector<120x16xf32>, vector<16x128xf32>, vector<120x128xf32> -> vector<120x128xf32>
    %c1_20 = arith.constant 1 : index
    %c0_21 = arith.constant 0 : index
    %c0_22 = arith.constant 0 : index
    %25 = vector.load %arg4[%c1_20, %c0_21, %c0_22] : memref<25x120x16xf32, #tpu.memory_space<vmem>>, vector<1x120x16xf32>
    %26 = vector.shape_cast %25 : vector<1x120x16xf32> to vector<120x16xf32>
    %27 = vector.extract_strided_slice %20 {offsets = [0, 128], sizes = [16, 128], strides = [1, 1]} : vector<16x3200xf32> to vector<16x128xf32>
    %cst_23 = arith.constant dense<0.000000e+00> : vector<120x128xf32>
    %28 = tpu.matmul %26, %27, %cst_23 {dimension_numbers = #tpu.dot_dimension_numbers<[1], [0], [0], [1], [0, 0, 1, 1], [], []>} : vector<120x16xf32>, vector<16x128xf32>, vector<120x128xf32> -> vector<120x128xf32>
    %29 = arith.addf %24, %28 : vector<120x128xf32>
    %c2_24 = arith.constant 2 : index
    %c0_25 = arith.constant 0 : index
    %c0_26 = arith.constant 0 : index
    %30 = vector.load %arg4[%c2_24, %c0_25, %c0_26] : memref<25x120x16xf32, #tpu.memory_space<vmem>>, vector<1x120x16xf32>
    %31 = vector.shape_cast %30 : vector<1x120x16xf32> to vector<120x16xf32>
    %32 = vector.extract_strided_slice %20 {offsets = [0, 256], sizes = [16, 128], strides = [1, 1]} : vector<16x3200xf32> to vector<16x128xf32>
    %cst_27 = arith.constant dense<0.000000e+00> : vector<120x128xf32>
    %33 = tpu.matmul %31, %32, %cst_27 {dimension_numbers = #tpu.dot_dimension_numbers<[1], [0], [0], [1], [0, 0, 1, 1], [], []>} : vector<120x16xf32>, vector<16x128xf32>, vector<120x128xf32> -> vector<120x128xf32>
    %34 = arith.addf %29, %33 : vector<120x128xf32>
    %c3_28 = arith.constant 3 : index
    %c0_29 = arith.constant 0 : index
    %c0_30 = arith.constant 0 : index
    %35 = vector.load %arg4[%c3_28, %c0_29, %c0_30] : memref<25x120x16xf32, #tpu.memory_space<vmem>>, vector<1x120x16xf32>
    %36 = vector.shape_cast %35 : vector<1x120x16xf32> to vector<120x16xf32>
    %37 = vector.extract_strided_slice %20 {offsets = [0, 384], sizes = [16, 128], strides = [1, 1]} : vector<16x3200xf32> to vector<16x128xf32>
    %cst_31 = arith.constant dense<0.000000e+00> : vector<120x128xf32>
    %38 = tpu.matmul %36, %37, %cst_31 {dimension_numbers = #tpu.dot_dimension_numbers<[1], [0], [0], [1], [0, 0, 1, 1], [], []>} : vector<120x16xf32>, vector<16x128xf32>, vector<120x128xf32> -> vector<120x128xf32>
    %39 = arith.addf %34, %38 : vector<120x128xf32>
    %c4 = arith.constant 4 : index
    %c0_32 = arith.constant 0 : index
    %c0_33 = arith.constant 0 : index
    %40 = vector.load %arg4[%c4, %c0_32, %c0_33] : memref<25x120x16xf32, #tpu.memory_space<vmem>>, vector<1x120x16xf32>
    %41 = vector.shape_cast %40 : vector<1x120x16xf32> to vector<120x16xf32>
    %42 = vector.extract_strided_slice %20 {offsets = [0, 512], sizes = [16, 128], strides = [1, 1]} : vector<16x3200xf32> to vector<16x128xf32>
    %cst_34 = arith.constant dense<0.000000e+00> : vector<120x128xf32>
    %43 = tpu.matmul %41, %42, %cst_34 {dimension_numbers = #tpu.dot_dimension_numbers<[1], [0], [0], [1], [0, 0, 1, 1], [], []>} : vector<120x16xf32>, vector<16x128xf32>, vector<120x128xf32> -> vector<120x128xf32>
    %44 = arith.addf %39, %43 : vector<120x128xf32>
    %c5 = arith.constant 5 : index
    %c0_35 = arith.constant 0 : index
    %c0_36 = arith.constant 0 : index
    %45 = vector.load %arg4[%c5, %c0_35, %c0_36] : memref<25x120x16xf32, #tpu.memory_space<vmem>>, vector<1x120x16xf32>
    %46 = vector.shape_cast %45 : vector<1x120x16xf32> to vector<120x16xf32>
    %47 = vector.extract_strided_slice %20 {offsets = [0, 640], sizes = [16, 128], strides = [1, 1]} : vector<16x3200xf32> to vector<16x128xf32>
    %cst_37 = arith.constant dense<0.000000e+00> : vector<120x128xf32>
    %48 = tpu.matmul %46, %47, %cst_37 {dimension_numbers = #tpu.dot_dimension_numbers<[1], [0], [0], [1], [0, 0, 1, 1], [], []>} : vector<120x16xf32>, vector<16x128xf32>, vector<120x128xf32> -> vector<120x128xf32>
    %49 = arith.addf %44, %48 : vector<120x128xf32>
    %c6 = arith.constant 6 : index
    %c0_38 = arith.constant 0 : index
    %c0_39 = arith.constant 0 : index
    %50 = vector.load %arg4[%c6, %c0_38, %c0_39] : memref<25x120x16xf32, #tpu.memory_space<vmem>>, vector<1x120x16xf32>
    %51 = vector.shape_cast %50 : vector<1x120x16xf32> to vector<120x16xf32>
    %52 = vector.extract_strided_slice %20 {offsets = [0, 768], sizes = [16, 128], strides = [1, 1]} : vector<16x3200xf32> to vector<16x128xf32>
    %cst_40 = arith.constant dense<0.000000e+00> : vector<120x128xf32>
    %53 = tpu.matmul %51, %52, %cst_40 {dimension_numbers = #tpu.dot_dimension_numbers<[1], [0], [0], [1], [0, 0, 1, 1], [], []>} : vector<120x16xf32>, vector<16x128xf32>, vector<120x128xf32> -> vector<120x128xf32>
    %54 = arith.addf %49, %53 : vector<120x128xf32>
    %c7 = arith.constant 7 : index
    %c0_41 = arith.constant 0 : index
    %c0_42 = arith.constant 0 : index
    %55 = vector.load %arg4[%c7, %c0_41, %c0_42] : memref<25x120x16xf32, #tpu.memory_space<vmem>>, vector<1x120x16xf32>
    %56 = vector.shape_cast %55 : vector<1x120x16xf32> to vector<120x16xf32>
    %57 = vector.extract_strided_slice %20 {offsets = [0, 896], sizes = [16, 128], strides = [1, 1]} : vector<16x3200xf32> to vector<16x128xf32>
    %cst_43 = arith.constant dense<0.000000e+00> : vector<120x128xf32>
    %58 = tpu.matmul %56, %57, %cst_43 {dimension_numbers = #tpu.dot_dimension_numbers<[1], [0], [0], [1], [0, 0, 1, 1], [], []>} : vector<120x16xf32>, vector<16x128xf32>, vector<120x128xf32> -> vector<120x128xf32>
    %59 = arith.addf %54, %58 : vector<120x128xf32>
    %c8 = arith.constant 8 : index
    %c0_44 = arith.constant 0 : index
    %c0_45 = arith.constant 0 : index
    %60 = vector.load %arg4[%c8, %c0_44, %c0_45] : memref<25x120x16xf32, #tpu.memory_space<vmem>>, vector<1x120x16xf32>
    %61 = vector.shape_cast %60 : vector<1x120x16xf32> to vector<120x16xf32>
    %62 = vector.extract_strided_slice %20 {offsets = [0, 1024], sizes = [16, 128], strides = [1, 1]} : vector<16x3200xf32> to vector<16x128xf32>
    %cst_46 = arith.constant dense<0.000000e+00> : vector<120x128xf32>
    %63 = tpu.matmul %61, %62, %cst_46 {dimension_numbers = #tpu.dot_dimension_numbers<[1], [0], [0], [1], [0, 0, 1, 1], [], []>} : vector<120x16xf32>, vector<16x128xf32>, vector<120x128xf32> -> vector<120x128xf32>
    %64 = arith.addf %59, %63 : vector<120x128xf32>
    %c9 = arith.constant 9 : index
    %c0_47 = arith.constant 0 : index
    %c0_48 = arith.constant 0 : index
    %65 = vector.load %arg4[%c9, %c0_47, %c0_48] : memref<25x120x16xf32, #tpu.memory_space<vmem>>, vector<1x120x16xf32>
    %66 = vector.shape_cast %65 : vector<1x120x16xf32> to vector<120x16xf32>
    %67 = vector.extract_strided_slice %20 {offsets = [0, 1152], sizes = [16, 128], strides = [1, 1]} : vector<16x3200xf32> to vector<16x128xf32>
    %cst_49 = arith.constant dense<0.000000e+00> : vector<120x128xf32>
    %68 = tpu.matmul %66, %67, %cst_49 {dimension_numbers = #tpu.dot_dimension_numbers<[1], [0], [0], [1], [0, 0, 1, 1], [], []>} : vector<120x16xf32>, vector<16x128xf32>, vector<120x128xf32> -> vector<120x128xf32>
    %69 = arith.addf %64, %68 : vector<120x128xf32>
    %c10 = arith.constant 10 : index
    %c0_50 = arith.constant 0 : index
    %c0_51 = arith.constant 0 : index
    %70 = vector.load %arg4[%c10, %c0_50, %c0_51] : memref<25x120x16xf32, #tpu.memory_space<vmem>>, vector<1x120x16xf32>
    %71 = vector.shape_cast %70 : vector<1x120x16xf32> to vector<120x16xf32>
    %72 = vector.extract_strided_slice %20 {offsets = [0, 1280], sizes = [16, 128], strides = [1, 1]} : vector<16x3200xf32> to vector<16x128xf32>
    %cst_52 = arith.constant dense<0.000000e+00> : vector<120x128xf32>
    %73 = tpu.matmul %71, %72, %cst_52 {dimension_numbers = #tpu.dot_dimension_numbers<[1], [0], [0], [1], [0, 0, 1, 1], [], []>} : vector<120x16xf32>, vector<16x128xf32>, vector<120x128xf32> -> vector<120x128xf32>
    %74 = arith.addf %69, %73 : vector<120x128xf32>
    %c11 = arith.constant 11 : index
    %c0_53 = arith.constant 0 : index
    %c0_54 = arith.constant 0 : index
    %75 = vector.load %arg4[%c11, %c0_53, %c0_54] : memref<25x120x16xf32, #tpu.memory_space<vmem>>, vector<1x120x16xf32>
    %76 = vector.shape_cast %75 : vector<1x120x16xf32> to vector<120x16xf32>
    %77 = vector.extract_strided_slice %20 {offsets = [0, 1408], sizes = [16, 128], strides = [1, 1]} : vector<16x3200xf32> to vector<16x128xf32>
    %cst_55 = arith.constant dense<0.000000e+00> : vector<120x128xf32>
    %78 = tpu.matmul %76, %77, %cst_55 {dimension_numbers = #tpu.dot_dimension_numbers<[1], [0], [0], [1], [0, 0, 1, 1], [], []>} : vector<120x16xf32>, vector<16x128xf32>, vector<120x128xf32> -> vector<120x128xf32>
    %79 = arith.addf %74, %78 : vector<120x128xf32>
    %c12 = arith.constant 12 : index
    %c0_56 = arith.constant 0 : index
    %c0_57 = arith.constant 0 : index
    %80 = vector.load %arg4[%c12, %c0_56, %c0_57] : memref<25x120x16xf32, #tpu.memory_space<vmem>>, vector<1x120x16xf32>
    %81 = vector.shape_cast %80 : vector<1x120x16xf32> to vector<120x16xf32>
    %82 = vector.extract_strided_slice %20 {offsets = [0, 1536], sizes = [16, 128], strides = [1, 1]} : vector<16x3200xf32> to vector<16x128xf32>
    %cst_58 = arith.constant dense<0.000000e+00> : vector<120x128xf32>
    %83 = tpu.matmul %81, %82, %cst_58 {dimension_numbers = #tpu.dot_dimension_numbers<[1], [0], [0], [1], [0, 0, 1, 1], [], []>} : vector<120x16xf32>, vector<16x128xf32>, vector<120x128xf32> -> vector<120x128xf32>
    %84 = arith.addf %79, %83 : vector<120x128xf32>
    %c13 = arith.constant 13 : index
    %c0_59 = arith.constant 0 : index
    %c0_60 = arith.constant 0 : index
    %85 = vector.load %arg4[%c13, %c0_59, %c0_60] : memref<25x120x16xf32, #tpu.memory_space<vmem>>, vector<1x120x16xf32>
    %86 = vector.shape_cast %85 : vector<1x120x16xf32> to vector<120x16xf32>
    %87 = vector.extract_strided_slice %20 {offsets = [0, 1664], sizes = [16, 128], strides = [1, 1]} : vector<16x3200xf32> to vector<16x128xf32>
    %cst_61 = arith.constant dense<0.000000e+00> : vector<120x128xf32>
    %88 = tpu.matmul %86, %87, %cst_61 {dimension_numbers = #tpu.dot_dimension_numbers<[1], [0], [0], [1], [0, 0, 1, 1], [], []>} : vector<120x16xf32>, vector<16x128xf32>, vector<120x128xf32> -> vector<120x128xf32>
    %89 = arith.addf %84, %88 : vector<120x128xf32>
    %c14 = arith.constant 14 : index
    %c0_62 = arith.constant 0 : index
    %c0_63 = arith.constant 0 : index
    %90 = vector.load %arg4[%c14, %c0_62, %c0_63] : memref<25x120x16xf32, #tpu.memory_space<vmem>>, vector<1x120x16xf32>
    %91 = vector.shape_cast %90 : vector<1x120x16xf32> to vector<120x16xf32>
    %92 = vector.extract_strided_slice %20 {offsets = [0, 1792], sizes = [16, 128], strides = [1, 1]} : vector<16x3200xf32> to vector<16x128xf32>
    %cst_64 = arith.constant dense<0.000000e+00> : vector<120x128xf32>
    %93 = tpu.matmul %91, %92, %cst_64 {dimension_numbers = #tpu.dot_dimension_numbers<[1], [0], [0], [1], [0, 0, 1, 1], [], []>} : vector<120x16xf32>, vector<16x128xf32>, vector<120x128xf32> -> vector<120x128xf32>
    %94 = arith.addf %89, %93 : vector<120x128xf32>
    %c15 = arith.constant 15 : index
    %c0_65 = arith.constant 0 : index
    %c0_66 = arith.constant 0 : index
    %95 = vector.load %arg4[%c15, %c0_65, %c0_66] : memref<25x120x16xf32, #tpu.memory_space<vmem>>, vector<1x120x16xf32>
    %96 = vector.shape_cast %95 : vector<1x120x16xf32> to vector<120x16xf32>
    %97 = vector.extract_strided_slice %20 {offsets = [0, 1920], sizes = [16, 128], strides = [1, 1]} : vector<16x3200xf32> to vector<16x128xf32>
    %cst_67 = arith.constant dense<0.000000e+00> : vector<120x128xf32>
    %98 = tpu.matmul %96, %97, %cst_67 {dimension_numbers = #tpu.dot_dimension_numbers<[1], [0], [0], [1], [0, 0, 1, 1], [], []>} : vector<120x16xf32>, vector<16x128xf32>, vector<120x128xf32> -> vector<120x128xf32>
    %99 = arith.addf %94, %98 : vector<120x128xf32>
    %c16 = arith.constant 16 : index
    %c0_68 = arith.constant 0 : index
    %c0_69 = arith.constant 0 : index
    %100 = vector.load %arg4[%c16, %c0_68, %c0_69] : memref<25x120x16xf32, #tpu.memory_space<vmem>>, vector<1x120x16xf32>
    %101 = vector.shape_cast %100 : vector<1x120x16xf32> to vector<120x16xf32>
    %102 = vector.extract_strided_slice %20 {offsets = [0, 2048], sizes = [16, 128], strides = [1, 1]} : vector<16x3200xf32> to vector<16x128xf32>
    %cst_70 = arith.constant dense<0.000000e+00> : vector<120x128xf32>
    %103 = tpu.matmul %101, %102, %cst_70 {dimension_numbers = #tpu.dot_dimension_numbers<[1], [0], [0], [1], [0, 0, 1, 1], [], []>} : vector<120x16xf32>, vector<16x128xf32>, vector<120x128xf32> -> vector<120x128xf32>
    %104 = arith.addf %99, %103 : vector<120x128xf32>
    %c17 = arith.constant 17 : index
    %c0_71 = arith.constant 0 : index
    %c0_72 = arith.constant 0 : index
    %105 = vector.load %arg4[%c17, %c0_71, %c0_72] : memref<25x120x16xf32, #tpu.memory_space<vmem>>, vector<1x120x16xf32>
    %106 = vector.shape_cast %105 : vector<1x120x16xf32> to vector<120x16xf32>
    %107 = vector.extract_strided_slice %20 {offsets = [0, 2176], sizes = [16, 128], strides = [1, 1]} : vector<16x3200xf32> to vector<16x128xf32>
    %cst_73 = arith.constant dense<0.000000e+00> : vector<120x128xf32>
    %108 = tpu.matmul %106, %107, %cst_73 {dimension_numbers = #tpu.dot_dimension_numbers<[1], [0], [0], [1], [0, 0, 1, 1], [], []>} : vector<120x16xf32>, vector<16x128xf32>, vector<120x128xf32> -> vector<120x128xf32>
    %109 = arith.addf %104, %108 : vector<120x128xf32>
    %c18 = arith.constant 18 : index
    %c0_74 = arith.constant 0 : index
    %c0_75 = arith.constant 0 : index
    %110 = vector.load %arg4[%c18, %c0_74, %c0_75] : memref<25x120x16xf32, #tpu.memory_space<vmem>>, vector<1x120x16xf32>
    %111 = vector.shape_cast %110 : vector<1x120x16xf32> to vector<120x16xf32>
    %112 = vector.extract_strided_slice %20 {offsets = [0, 2304], sizes = [16, 128], strides = [1, 1]} : vector<16x3200xf32> to vector<16x128xf32>
    %cst_76 = arith.constant dense<0.000000e+00> : vector<120x128xf32>
    %113 = tpu.matmul %111, %112, %cst_76 {dimension_numbers = #tpu.dot_dimension_numbers<[1], [0], [0], [1], [0, 0, 1, 1], [], []>} : vector<120x16xf32>, vector<16x128xf32>, vector<120x128xf32> -> vector<120x128xf32>
    %114 = arith.addf %109, %113 : vector<120x128xf32>
    %c19 = arith.constant 19 : index
    %c0_77 = arith.constant 0 : index
    %c0_78 = arith.constant 0 : index
    %115 = vector.load %arg4[%c19, %c0_77, %c0_78] : memref<25x120x16xf32, #tpu.memory_space<vmem>>, vector<1x120x16xf32>
    %116 = vector.shape_cast %115 : vector<1x120x16xf32> to vector<120x16xf32>
    %117 = vector.extract_strided_slice %20 {offsets = [0, 2432], sizes = [16, 128], strides = [1, 1]} : vector<16x3200xf32> to vector<16x128xf32>
    %cst_79 = arith.constant dense<0.000000e+00> : vector<120x128xf32>
    %118 = tpu.matmul %116, %117, %cst_79 {dimension_numbers = #tpu.dot_dimension_numbers<[1], [0], [0], [1], [0, 0, 1, 1], [], []>} : vector<120x16xf32>, vector<16x128xf32>, vector<120x128xf32> -> vector<120x128xf32>
    %119 = arith.addf %114, %118 : vector<120x128xf32>
    %c20 = arith.constant 20 : index
    %c0_80 = arith.constant 0 : index
    %c0_81 = arith.constant 0 : index
    %120 = vector.load %arg4[%c20, %c0_80, %c0_81] : memref<25x120x16xf32, #tpu.memory_space<vmem>>, vector<1x120x16xf32>
    %121 = vector.shape_cast %120 : vector<1x120x16xf32> to vector<120x16xf32>
    %122 = vector.extract_strided_slice %20 {offsets = [0, 2560], sizes = [16, 128], strides = [1, 1]} : vector<16x3200xf32> to vector<16x128xf32>
    %cst_82 = arith.constant dense<0.000000e+00> : vector<120x128xf32>
    %123 = tpu.matmul %121, %122, %cst_82 {dimension_numbers = #tpu.dot_dimension_numbers<[1], [0], [0], [1], [0, 0, 1, 1], [], []>} : vector<120x16xf32>, vector<16x128xf32>, vector<120x128xf32> -> vector<120x128xf32>
    %124 = arith.addf %119, %123 : vector<120x128xf32>
    %c21 = arith.constant 21 : index
    %c0_83 = arith.constant 0 : index
    %c0_84 = arith.constant 0 : index
    %125 = vector.load %arg4[%c21, %c0_83, %c0_84] : memref<25x120x16xf32, #tpu.memory_space<vmem>>, vector<1x120x16xf32>
    %126 = vector.shape_cast %125 : vector<1x120x16xf32> to vector<120x16xf32>
    %127 = vector.extract_strided_slice %20 {offsets = [0, 2688], sizes = [16, 128], strides = [1, 1]} : vector<16x3200xf32> to vector<16x128xf32>
    %cst_85 = arith.constant dense<0.000000e+00> : vector<120x128xf32>
    %128 = tpu.matmul %126, %127, %cst_85 {dimension_numbers = #tpu.dot_dimension_numbers<[1], [0], [0], [1], [0, 0, 1, 1], [], []>} : vector<120x16xf32>, vector<16x128xf32>, vector<120x128xf32> -> vector<120x128xf32>
    %129 = arith.addf %124, %128 : vector<120x128xf32>
    %c22 = arith.constant 22 : index
    %c0_86 = arith.constant 0 : index
    %c0_87 = arith.constant 0 : index
    %130 = vector.load %arg4[%c22, %c0_86, %c0_87] : memref<25x120x16xf32, #tpu.memory_space<vmem>>, vector<1x120x16xf32>
    %131 = vector.shape_cast %130 : vector<1x120x16xf32> to vector<120x16xf32>
    %132 = vector.extract_strided_slice %20 {offsets = [0, 2816], sizes = [16, 128], strides = [1, 1]} : vector<16x3200xf32> to vector<16x128xf32>
    %cst_88 = arith.constant dense<0.000000e+00> : vector<120x128xf32>
    %133 = tpu.matmul %131, %132, %cst_88 {dimension_numbers = #tpu.dot_dimension_numbers<[1], [0], [0], [1], [0, 0, 1, 1], [], []>} : vector<120x16xf32>, vector<16x128xf32>, vector<120x128xf32> -> vector<120x128xf32>
    %134 = arith.addf %129, %133 : vector<120x128xf32>
    %c23 = arith.constant 23 : index
    %c0_89 = arith.constant 0 : index
    %c0_90 = arith.constant 0 : index
    %135 = vector.load %arg4[%c23, %c0_89, %c0_90] : memref<25x120x16xf32, #tpu.memory_space<vmem>>, vector<1x120x16xf32>
    %136 = vector.shape_cast %135 : vector<1x120x16xf32> to vector<120x16xf32>
    %137 = vector.extract_strided_slice %20 {offsets = [0, 2944], sizes = [16, 128], strides = [1, 1]} : vector<16x3200xf32> to vector<16x128xf32>
    %cst_91 = arith.constant dense<0.000000e+00> : vector<120x128xf32>
    %138 = tpu.matmul %136, %137, %cst_91 {dimension_numbers = #tpu.dot_dimension_numbers<[1], [0], [0], [1], [0, 0, 1, 1], [], []>} : vector<120x16xf32>, vector<16x128xf32>, vector<120x128xf32> -> vector<120x128xf32>
    %139 = arith.addf %134, %138 : vector<120x128xf32>
    %c24 = arith.constant 24 : index
    %c0_92 = arith.constant 0 : index
    %c0_93 = arith.constant 0 : index
    %140 = vector.load %arg4[%c24, %c0_92, %c0_93] : memref<25x120x16xf32, #tpu.memory_space<vmem>>, vector<1x120x16xf32>
    %141 = vector.shape_cast %140 : vector<1x120x16xf32> to vector<120x16xf32>
    %142 = vector.extract_strided_slice %20 {offsets = [0, 3072], sizes = [16, 128], strides = [1, 1]} : vector<16x3200xf32> to vector<16x128xf32>
    %cst_94 = arith.constant dense<0.000000e+00> : vector<120x128xf32>
    %143 = tpu.matmul %141, %142, %cst_94 {dimension_numbers = #tpu.dot_dimension_numbers<[1], [0], [0], [1], [0, 0, 1, 1], [], []>} : vector<120x16xf32>, vector<16x128xf32>, vector<120x128xf32> -> vector<120x128xf32>
    %144 = arith.addf %139, %143 : vector<120x128xf32>
    %c0_95 = arith.constant 0 : index
    %c0_96 = arith.constant 0 : index
    %145 = vector.load %arg5[%c0_95, %c0_96] : memref<120x1xf32, #tpu.memory_space<vmem>>, vector<120x1xf32>
    %146 = vector.broadcast %145 : vector<120x1xf32> to vector<120x128xf32>
    %147 = arith.addf %144, %146 : vector<120x128xf32>
    %cst_97 = arith.constant 0.000000e+00 : f32
    %148 = vector.broadcast %cst_97 : f32 to vector<120x128xf32>
    %149 = arith.maximumf %147, %148 : vector<120x128xf32>
    %c0_98 = arith.constant 0 : index
    %c0_99 = arith.constant 0 : index
    %150 = vector.load %arg6[%c0_98, %c0_99] : memref<84x120xf32, #tpu.memory_space<vmem>>, vector<84x120xf32>
    %cst_100 = arith.constant dense<0.000000e+00> : vector<84x128xf32>
    %151 = tpu.matmul %150, %149, %cst_100 {dimension_numbers = #tpu.dot_dimension_numbers<[1], [0], [0], [1], [0, 0, 1, 1], [], []>} : vector<84x120xf32>, vector<120x128xf32>, vector<84x128xf32> -> vector<84x128xf32>
    %c0_101 = arith.constant 0 : index
    %c0_102 = arith.constant 0 : index
    %152 = vector.load %arg7[%c0_101, %c0_102] : memref<84x1xf32, #tpu.memory_space<vmem>>, vector<84x1xf32>
    %153 = vector.broadcast %152 : vector<84x1xf32> to vector<84x128xf32>
    %154 = arith.addf %151, %153 : vector<84x128xf32>
    %155 = math.tanh %154 : vector<84x128xf32>
    %c0_103 = arith.constant 0 : index
    %c0_104 = arith.constant 0 : index
    %156 = vector.load %arg8[%c0_103, %c0_104] : memref<10x84xf32, #tpu.memory_space<vmem>>, vector<10x84xf32>
    %cst_105 = arith.constant dense<0.000000e+00> : vector<10x128xf32>
    %157 = tpu.matmul %156, %155, %cst_105 {dimension_numbers = #tpu.dot_dimension_numbers<[1], [0], [0], [1], [0, 0, 1, 1], [], []>} : vector<10x84xf32>, vector<84x128xf32>, vector<10x128xf32> -> vector<10x128xf32>
    %c0_106 = arith.constant 0 : index
    %c0_107 = arith.constant 0 : index
    %158 = vector.load %arg9[%c0_106, %c0_107] : memref<10x1xf32, #tpu.memory_space<vmem>>, vector<10x1xf32>
    %159 = vector.broadcast %158 : vector<10x1xf32> to vector<10x128xf32>
    %160 = arith.addf %157, %159 : vector<10x128xf32>
    %c0_108 = arith.constant 0 : index
    %c0_109 = arith.constant 0 : index
    %161 = vector.load %arg10[%c0_108, %c0_109] : memref<10x128xf32, #tpu.memory_space<vmem>>, vector<10x128xf32>
    tpu.vector_store %arg10[%c0_108, %c0_109], %160 {strides = array<i32>} : memref<10x128xf32, #tpu.memory_space<vmem>>, vector<10x128xf32>,
    return
  }
  func.func @transform_0(%arg0: i32) -> (i32, i32, i32) {
    %c0_i32 = arith.constant 0 : i32
    %c0_i32_0 = arith.constant 0 : i32
    %c0_i32_1 = arith.constant 0 : i32
    return %c0_i32, %c0_i32_0, %arg0 : i32, i32, i32
  }
  func.func @transform_1(%arg0: i32) -> (i32, i32) {
    %c0_i32 = arith.constant 0 : i32
    %c0_i32_0 = arith.constant 0 : i32
    %c0_i32_1 = arith.constant 0 : i32
    return %c0_i32, %c0_i32_0 : i32, i32
  }
  func.func @transform_2(%arg0: i32) -> (i32, i32) {
    %c0_i32 = arith.constant 0 : i32
    %c0_i32_0 = arith.constant 0 : i32
    %c0_i32_1 = arith.constant 0 : i32
    return %c0_i32, %c0_i32_0 : i32, i32
  }
  func.func @transform_3(%arg0: i32) -> (i32, i32, i32) {
    %c0_i32 = arith.constant 0 : i32
    %c0_i32_0 = arith.constant 0 : i32
    %c0_i32_1 = arith.constant 0 : i32
    %c0_i32_2 = arith.constant 0 : i32
    return %c0_i32, %c0_i32_0, %c0_i32_1 : i32, i32, i32
  }
  func.func @transform_4(%arg0: i32) -> (i32, i32) {
    %c0_i32 = arith.constant 0 : i32
    %c0_i32_0 = arith.constant 0 : i32
    %c0_i32_1 = arith.constant 0 : i32
    return %c0_i32, %c0_i32_0 : i32, i32
  }
  func.func @transform_5(%arg0: i32) -> (i32, i32) {
    %c0_i32 = arith.constant 0 : i32
    %c0_i32_0 = arith.constant 0 : i32
    %c0_i32_1 = arith.constant 0 : i32
    return %c0_i32, %c0_i32_0 : i32, i32
  }
  func.func @transform_6(%arg0: i32) -> (i32, i32) {
    %c0_i32 = arith.constant 0 : i32
    %c0_i32_0 = arith.constant 0 : i32
    %c0_i32_1 = arith.constant 0 : i32
    return %c0_i32, %c0_i32_0 : i32, i32
  }
  func.func @transform_7(%arg0: i32) -> (i32, i32) {
    %c0_i32 = arith.constant 0 : i32
    %c0_i32_0 = arith.constant 0 : i32
    %c0_i32_1 = arith.constant 0 : i32
    return %c0_i32, %c0_i32_0 : i32, i32
  }
  func.func @transform_8(%arg0: i32) -> (i32, i32) {
    %c0_i32 = arith.constant 0 : i32
    %c0_i32_0 = arith.constant 0 : i32
    %c0_i32_1 = arith.constant 0 : i32
    return %c0_i32, %c0_i32_0 : i32, i32
  }
  func.func @transform_9(%arg0: i32) -> (i32, i32) {
    %c0_i32 = arith.constant 0 : i32
    %c0_i32_0 = arith.constant 0 : i32
    return %c0_i32, %arg0 : i32, i32
  }
}

</mosaic_0001>

<llo_original>
// kernel: lenet5_forward.2
$region0: #{lenet5_forward.2}
  #allocation0 [shape = 'u32[]', space=smem, size = 0x4, offset = 0x4, fixed_abs, tag = 'smem constant byte address 0x4 - core index']
  #allocation1 [shape = 'u32[72,128]{1,0:T(1,128)}', space=vmem, size = 0x9000, scoped, tag = 'internal scratch']
  %s0 = inlined_call_operand.vmem [shape: f32[4,32,25088], index: 0, kind: input, shape index: {}]
  %s1 = inlined_call_operand.vmem [shape: f32[6,32], index: 1, kind: input, shape index: {}]
  %s2 = inlined_call_operand.vmem [shape: f32[6,1], index: 2, kind: input, shape index: {}]
  %s3 = inlined_call_operand.vmem [shape: f32[6,25088], index: 3, kind: output, shape index: {}]
  %s4 = sld [smem:[#allocation0]]
  $region68: #{lenet5_forward.2} parent=0
    _
  %s6 = ssub.s32 1, %s4
  %s7 = scalar_select 0, %s6, %s4
  $region1: #{lenet5_forward.2} parent=0
    #allocation2 [shape = 'u8[524288]{0}', space=vmem, size = 0x80000, scoped, tag = 'input window, operand 0']
    loop: start=0, step=1, limit=51
    $region2: #{lenet5_forward.2} parent=1 // loop_pre_header
      _
    $region3: #{lenet5_forward.2} parent=1 // loop_header
      %s9 = sphi 0, %s13
      %p10 = scmp.ge.s32.totalorder %s9, 51
      %s19 = sphi 0, %s21
      %s22 = sphi 0, %s19
      %s23 = sphi 0, %s22
      %s39 = sphi 0, %s23
      %s43 = sphi 0, %s43
      %s45 = sphi 0, %s43
      %s46 = sphi 0, %s45
      %s60 = sphi 0, %s46
      %s64 = sphi 0, %s64
      %s66 = sphi 0, %s64
      %s67 = sphi 0, %s66
      %s81 = sphi 0, %s67
      %s87 = sphi 0, %s89
      %s90 = sphi 0, %s87
      %s91 = sphi 0, %s90
      %s107 = sphi 0, %s91
    $region4: #{lenet5_forward.2} parent=1 // loop_header_branch
      %12 = sbr.rel (%p10) target = $region8
    $region5: #{lenet5_forward.2} parent=1 // loop_body
      %s14 = ssub.s32 %s9, 1
      %s15 = ssub.s32 %s9, 2
      %s16 = sadd.s32 %s9, 1
      %s17 = ssub.s32 %s9, %s16
      %p18 = scmp.eq.s32.totalorder %s17, 0
      %s20 = sadd.s32 %s19, 1
      %s21 = scalar_select %p18, %s19, %s20
      %p24 = pneg %p18
      %p25 = scmp.eq.s32.totalorder %s9, 48
      %p26 = por %p24, %p25
      %p27 = scmp.ne.s32.totalorder %s19, %s22
      %p28 = scmp.eq.s32.totalorder %s9, 0
      %p29 = por %p27, %p28
      %p30 = scmp.ne.s32.totalorder %s19, %s22
      %p31 = scmp.eq.s32.totalorder %s14, 48
      %p32 = por %p30, %p31
      %p33 = scmp.ne.s32.totalorder %s22, %s23
      %p34 = scmp.eq.s32.totalorder %s14, 0
      %p35 = por %p33, %p34
      %p36 = scmp.ne.s32.totalorder %s22, %s23
      %p37 = scmp.eq.s32.totalorder %s15, 48
      %p38 = por %p36, %p37
      %p40 = scmp.ne.s32.totalorder %s23, %s39
      %p41 = scmp.eq.s32.totalorder %s15, 0
      %p42 = por %p40, %p41
      %s44 = sadd.s32 %s43, 1
      %p47 = scmp.eq.s32.totalorder %s9, 48
      %p48 = scmp.ne.s32.totalorder %s43, %s45
      %p49 = scmp.eq.s32.totalorder %s9, 0
      %p50 = por %p48, %p49
      %p51 = scmp.ne.s32.totalorder %s43, %s45
      %p52 = scmp.eq.s32.totalorder %s14, 48
      %p53 = por %p51, %p52
      %p54 = scmp.ne.s32.totalorder %s45, %s46
      %p55 = scmp.eq.s32.totalorder %s14, 0
      %p56 = por %p54, %p55
      %p57 = scmp.ne.s32.totalorder %s45, %s46
      %p58 = scmp.eq.s32.totalorder %s15, 48
      %p59 = por %p57, %p58
      %p61 = scmp.ne.s32.totalorder %s46, %s60
      %p62 = scmp.eq.s32.totalorder %s15, 0
      %p63 = por %p61, %p62
      %s65 = sadd.s32 %s64, 1
      %p68 = scmp.eq.s32.totalorder %s9, 48
      %p69 = scmp.ne.s32.totalorder %s64, %s66
      %p70 = scmp.eq.s32.totalorder %s9, 0
      %p71 = por %p69, %p70
      %p72 = scmp.ne.s32.totalorder %s64, %s66
      %p73 = scmp.eq.s32.totalorder %s14, 48
      %p74 = por %p72, %p73
      %p75 = scmp.ne.s32.totalorder %s66, %s67
      %p76 = scmp.eq.s32.totalorder %s14, 0
      %p77 = por %p75, %p76
      %p78 = scmp.ne.s32.totalorder %s66, %s67
      %p79 = scmp.eq.s32.totalorder %s15, 48
      %p80 = por %p78, %p79
      %p82 = scmp.ne.s32.totalorder %s67, %s81
      %p83 = scmp.eq.s32.totalorder %s15, 0
      %p84 = por %p82, %p83
      %s85 = ssub.s32 %s9, %s16
      %p86 = scmp.eq.s32.totalorder %s85, 0
      %s88 = sadd.s32 %s87, 1
      %s89 = scalar_select %p86, %s87, %s88
      %p92 = pneg %p86
      %p93 = scmp.eq.s32.totalorder %s9, 48
      %p94 = por %p92, %p93
      %p95 = scmp.ne.s32.totalorder %s87, %s90
      %p96 = scmp.eq.s32.totalorder %s9, 0
      %p97 = por %p95, %p96
      %p98 = scmp.ne.s32.totalorder %s87, %s90
      %p99 = scmp.eq.s32.totalorder %s14, 48
      %p100 = por %p98, %p99
      %p101 = scmp.ne.s32.totalorder %s90, %s91
      %p102 = scmp.eq.s32.totalorder %s14, 0
      %p103 = por %p101, %p102
      %p104 = scmp.ne.s32.totalorder %s90, %s91
      %p105 = scmp.eq.s32.totalorder %s15, 48
      %p106 = por %p104, %p105
      %p108 = scmp.ne.s32.totalorder %s91, %s107
      %p109 = scmp.eq.s32.totalorder %s15, 0
      %p110 = por %p108, %p109
      %p111 = scmp.le.s32.totalorder 1, %s9
      %p112 = scmp.lt.s32.totalorder %s9, 50
      %p113 = pnand %p111, %p112
      %p114 = pneg %p113
      // Predicated region
      $region9: #{lenet5_forward.2} parent=5 // pred_check
        _
      $region10: #{lenet5_forward.2} parent=5 // pred_check_branch
        %116 = sbr.rel (%p113) target = $region12
      $region11: #{lenet5_forward.2} parent=5 // pred_region
        %s117 = ssub.s32 %s9, 1
        // Predicated region
        $region13: #{lenet5_forward.2} parent=11 // pred_check
          %p118 = pneg %p56
        $region14: #{lenet5_forward.2} parent=11 // pred_check_branch
          %120 = sbr.rel (%p118) target = $region16
        $region15: #{lenet5_forward.2} parent=11 // pred_region
          _
        $region16: #{lenet5_forward.2} parent=11 // pred_fallthru
          _
        // Predicated region
        $region17: #{lenet5_forward.2} parent=11 // pred_check
          %p121 = pneg %p77
        $region18: #{lenet5_forward.2} parent=11 // pred_check_branch
          %123 = sbr.rel (%p121) target = $region20
        $region19: #{lenet5_forward.2} parent=11 // pred_region
          _
        $region20: #{lenet5_forward.2} parent=11 // pred_fallthru
          _
      $region12: #{lenet5_forward.2} parent=5 // pred_fallthru
        _
      %p124 = scmp.lt.s32.totalorder %s9, 49
      // Predicated region
      $region21: #{lenet5_forward.2} parent=5 // pred_check
        %p125 = pneg %p124
      $region22: #{lenet5_forward.2} parent=5 // pred_check_branch
        %127 = sbr.rel (%p125) target = $region24
      $region23: #{lenet5_forward.2} parent=5 // pred_region
        // Predicated region
        $region25: #{lenet5_forward.2} parent=23 // pred_check
          %p128 = pneg %p29
        $region26: #{lenet5_forward.2} parent=23 // pred_check_branch
          %130 = sbr.rel (%p128) target = $region28
        $region27: #{lenet5_forward.2} parent=23 // pred_region
          %s131 = sand.u32 %s19, 1
          %s132 = sand.u32 %s19, 1
          %s133 = smul.addr %s132, 512
          %s134 = scalar_lea.vmem [#allocation2], %s133
          %s135 = smul.u32 4, %s9
          %s136 = smul.addr %s135, 8
          %s137 = scalar_lea.vmem %s0, %s136
          // Predicated region
          $region29: #{lenet5_forward.2} parent=27 // pred_check
            _
          $region30: #{lenet5_forward.2} parent=27 // pred_check_branch
            %139 = sbr.rel (0) target = $region32
          $region31: #{lenet5_forward.2} parent=27 // pred_region
            // Predicated region
            $region33: #{lenet5_forward.2} parent=31 // pred_check
              _
            $region34: #{lenet5_forward.2} parent=31 // pred_check_branch
              %141 = sbr.rel (0) target = $region36
            $region35: #{lenet5_forward.2} parent=31 // pred_region
              loop: start=0, step=1, limit=1
              $region37: #{lenet5_forward.2} parent=35 // loop_pre_header
                _
              $region38: #{lenet5_forward.2} parent=35 // loop_header
                %s143 = sphi 0, %s147
                %p144 = scmp.ge.s32.totalorder %s143, 1
                %s148 = sphi %s137, %s137
                %s149 = sphi %s134, %s134
              $region39: #{lenet5_forward.2} parent=35 // loop_header_branch
                %146 = sbr.rel (%p144) target = $region43
              $region40: #{lenet5_forward.2} parent=35 // loop_body
                %v150 = vld [vmem:[%s148] sm:$0xff]
                %151 = vst [vmem:[%s149] sm:$0xff] %v150
                %v152 = vld [vmem:[%s148 + $0x8] sm:$0xff]
                %153 = vst [vmem:[%s149 + $0x8] sm:$0xff] %v152
                %v154 = vld [vmem:[%s148 + $0x10] sm:$0xff]
                %155 = vst [vmem:[%s149 + $0x10] sm:$0xff] %v154
                %v156 = vld [vmem:[%s148 + $0x18] sm:$0xff]
                %157 = vst [vmem:[%s149 + $0x18] sm:$0xff] %v156
                %v158 = vld [vmem:[%s148 + $0x620] sm:$0xff]
                %159 = vst [vmem:[%s149 + $0x20] sm:$0xff] %v158
                %v160 = vld [vmem:[%s148 + $0x628] sm:$0xff]
                %161 = vst [vmem:[%s149 + $0x28] sm:$0xff] %v160
                %v162 = vld [vmem:[%s148 + $0x630] sm:$0xff]
                %163 = vst [vmem:[%s149 + $0x30] sm:$0xff] %v162
                %v164 = vld [vmem:[%s148 + $0x638] sm:$0xff]
                %165 = vst [vmem:[%s149 + $0x38] sm:$0xff] %v164
                %v166 = vld [vmem:[%s148 + $0xc40] sm:$0xff]
                %167 = vst [vmem:[%s149 + $0x40] sm:$0xff] %v166
                %v168 = vld [vmem:[%s148 + $0xc48] sm:$0xff]
                %169 = vst [vmem:[%s149 + $0x48] sm:$0xff] %v168
                %v170 = vld [vmem:[%s148 + $0xc50] sm:$0xff]
                %171 = vst [vmem:[%s149 + $0x50] sm:$0xff] %v170
                %v172 = vld [vmem:[%s148 + $0xc58] sm:$0xff]
                %173 = vst [vmem:[%s149 + $0x58] sm:$0xff] %v172
                %v174 = vld [vmem:[%s148 + $0x1260] sm:$0xff]
                %175 = vst [vmem:[%s149 + $0x60] sm:$0xff] %v174
                %v176 = vld [vmem:[%s148 + $0x1268] sm:$0xff]
                %177 = vst [vmem:[%s149 + $0x68] sm:$0xff] %v176
                %v178 = vld [vmem:[%s148 + $0x1270] sm:$0xff]
                %179 = vst [vmem:[%s149 + $0x70] sm:$0xff] %v178
                %v180 = vld [vmem:[%s148 + $0x1278] sm:$0xff]
                %181 = vst [vmem:[%s149 + $0x78] sm:$0xff] %v180
                %v182 = vld [vmem:[%s148 + $0x1880] sm:$0xff]
                %183 = vst [vmem:[%s149 + $0x80] sm:$0xff] %v182
                %v184 = vld [vmem:[%s148 + $0x1888] sm:$0xff]
                %185 = vst [vmem:[%s149 + $0x88] sm:$0xff] %v184
                %v186 = vld [vmem:[%s148 + $0x1890] sm:$0xff]
                %187 = vst [vmem:[%s149 + $0x90] sm:$0xff] %v186
                %v188 = vld [vmem:[%s148 + $0x1898] sm:$0xff]
                %189 = vst [vmem:[%s149 + $0x98] sm:$0xff] %v188
                %v190 = vld [vmem:[%s148 + $0x1ea0] sm:$0xff]
                %191 = vst [vmem:[%s149 + $0xa0] sm:$0xff] %v190
                %v192 = vld [vmem:[%s148 + $0x1ea8] sm:$0xff]
                %193 = vst [vmem:[%s149 + $0xa8] sm:$0xff] %v192
                %v194 = vld [vmem:[%s148 + $0x1eb0] sm:$0xff]
                %195 = vst [vmem:[%s149 + $0xb0] sm:$0xff] %v194
                %v196 = vld [vmem:[%s148 + $0x1eb8] sm:$0xff]
                %197 = vst [vmem:[%s149 + $0xb8] sm:$0xff] %v196
                %v198 = vld [vmem:[%s148 + $0x24c0] sm:$0xff]
                %199 = vst [vmem:[%s149 + $0xc0] sm:$0xff] %v198
                %v200 = vld [vmem:[%s148 + $0x24c8] sm:$0xff]
                %201 = vst [vmem:[%s149 + $0xc8] sm:$0xff] %v200
                %v202 = vld [vmem:[%s148 + $0x24d0] sm:$0xff]
                %203 = vst [vmem:[%s149 + $0xd0] sm:$0xff] %v202
                %v204 = vld [vmem:[%s148 + $0x24d8] sm:$0xff]
                %205 = vst [vmem:[%s149 + $0xd8] sm:$0xff] %v204
                %v206 = vld [vmem:[%s148 + $0x2ae0] sm:$0xff]
                %207 = vst [vmem:[%s149 + $0xe0] sm:$0xff] %v206
                %v208 = vld [vmem:[%s148 + $0x2ae8] sm:$0xff]
                %209 = vst [vmem:[%s149 + $0xe8] sm:$0xff] %v208
                %v210 = vld [vmem:[%s148 + $0x2af0] sm:$0xff]
                %211 = vst [vmem:[%s149 + $0xf0] sm:$0xff] %v210
                %v212 = vld [vmem:[%s148 + $0x2af8] sm:$0xff]
                %213 = vst [vmem:[%s149 + $0xf8] sm:$0xff] %v212
                %v214 = vld [vmem:[%s148 + $0x3100] sm:$0xff]
                %215 = vst [vmem:[%s149 + $0x100] sm:$0xff] %v214
                %v216 = vld [vmem:[%s148 + $0x3108] sm:$0xff]
                %217 = vst [vmem:[%s149 + $0x108] sm:$0xff] %v216
                %v218 = vld [vmem:[%s148 + $0x3110] sm:$0xff]
                %219 = vst [vmem:[%s149 + $0x110] sm:$0xff] %v218
                %v220 = vld [vmem:[%s148 + $0x3118] sm:$0xff]
                %221 = vst [vmem:[%s149 + $0x118] sm:$0xff] %v220
                %v222 = vld [vmem:[%s148 + $0x3720] sm:$0xff]
                %223 = vst [vmem:[%s149 + $0x120] sm:$0xff] %v222
                %v224 = vld [vmem:[%s148 + $0x3728] sm:$0xff]
                %225 = vst [vmem:[%s149 + $0x128] sm:$0xff] %v224
                %v226 = vld [vmem:[%s148 + $0x3730] sm:$0xff]
                %227 = vst [vmem:[%s149 + $0x130] sm:$0xff] %v226
                %v228 = vld [vmem:[%s148 + $0x3738] sm:$0xff]
                %229 = vst [vmem:[%s149 + $0x138] sm:$0xff] %v228
                %v230 = vld [vmem:[%s148 + $0x3d40] sm:$0xff]
                %231 = vst [vmem:[%s149 + $0x140] sm:$0xff] %v230
                %v232 = vld [vmem:[%s148 + $0x3d48] sm:$0xff]
                %233 = vst [vmem:[%s149 + $0x148] sm:$0xff] %v232
                %v234 = vld [vmem:[%s148 + $0x3d50] sm:$0xff]
                %235 = vst [vmem:[%s149 + $0x150] sm:$0xff] %v234
                %v236 = vld [vmem:[%s148 + $0x3d58] sm:$0xff]
                %237 = vst [vmem:[%s149 + $0x158] sm:$0xff] %v236
                %v238 = vld [vmem:[%s148 + $0x4360] sm:$0xff]
                %239 = vst [vmem:[%s149 + $0x160] sm:$0xff] %v238
                %v240 = vld [vmem:[%s148 + $0x4368] sm:$0xff]
                %241 = vst [vmem:[%s149 + $0x168] sm:$0xff] %v240
                %v242 = vld [vmem:[%s148 + $0x4370] sm:$0xff]
                %243 = vst [vmem:[%s149 + $0x170] sm:$0xff] %v242
                %v244 = vld [vmem:[%s148 + $0x4378] sm:$0xff]
                %245 = vst [vmem:[%s149 + $0x178] sm:$0xff] %v244
                %v246 = vld [vmem:[%s148 + $0x4980] sm:$0xff]
                %247 = vst [vmem:[%s149 + $0x180] sm:$0xff] %v246
                %v248 = vld [vmem:[%s148 + $0x4988] sm:$0xff]
                %249 = vst [vmem:[%s149 + $0x188] sm:$0xff] %v248
                %v250 = vld [vmem:[%s148 + $0x4990] sm:$0xff]
                %251 = vst [vmem:[%s149 + $0x190] sm:$0xff] %v250
                %v252 = vld [vmem:[%s148 + $0x4998] sm:$0xff]
                %253 = vst [vmem:[%s149 + $0x198] sm:$0xff] %v252
                %v254 = vld [vmem:[%s148 + $0x4fa0] sm:$0xff]
                %255 = vst [vmem:[%s149 + $0x1a0] sm:$0xff] %v254
                %v256 = vld [vmem:[%s148 + $0x4fa8] sm:$0xff]
                %257 = vst [vmem:[%s149 + $0x1a8] sm:$0xff] %v256
                %v258 = vld [vmem:[%s148 + $0x4fb0] sm:$0xff]
                %259 = vst [vmem:[%s149 + $0x1b0] sm:$0xff] %v258
                %v260 = vld [vmem:[%s148 + $0x4fb8] sm:$0xff]
                %261 = vst [vmem:[%s149 + $0x1b8] sm:$0xff] %v260
                %v262 = vld [vmem:[%s148 + $0x55c0] sm:$0xff]
                %263 = vst [vmem:[%s149 + $0x1c0] sm:$0xff] %v262
                %v264 = vld [vmem:[%s148 + $0x55c8] sm:$0xff]
                %265 = vst [vmem:[%s149 + $0x1c8] sm:$0xff] %v264
                %v266 = vld [vmem:[%s148 + $0x55d0] sm:$0xff]
                %267 = vst [vmem:[%s149 + $0x1d0] sm:$0xff] %v266
                %v268 = vld [vmem:[%s148 + $0x55d8] sm:$0xff]
                %269 = vst [vmem:[%s149 + $0x1d8] sm:$0xff] %v268
                %v270 = vld [vmem:[%s148 + $0x5be0] sm:$0xff]
                %271 = vst [vmem:[%s149 + $0x1e0] sm:$0xff] %v270
                %v272 = vld [vmem:[%s148 + $0x5be8] sm:$0xff]
                %273 = vst [vmem:[%s149 + $0x1e8] sm:$0xff] %v272
                %v274 = vld [vmem:[%s148 + $0x5bf0] sm:$0xff]
                %275 = vst [vmem:[%s149 + $0x1f0] sm:$0xff] %v274
                %v276 = vld [vmem:[%s148 + $0x5bf8] sm:$0xff]
                %277 = vst [vmem:[%s149 + $0x1f8] sm:$0xff] %v276
              $region41: #{lenet5_forward.2} parent=35 // loop_footer
                %s147 = sadd.s32 1, %s143
              $region42: #{lenet5_forward.2} parent=35 // loop_footer_branch
                %142 = sbr.rel target = $region38
              $region43: #{lenet5_forward.2} parent=35 // loop_exit
                _
            $region36: #{lenet5_forward.2} parent=31 // pred_fallthru
              _
            // Predicated region
            $region44: #{lenet5_forward.2} parent=31 // pred_check
              _
            $region45: #{lenet5_forward.2} parent=31 // pred_check_branch
              %279 = sbr.rel target = $region47
            $region46: #{lenet5_forward.2} parent=31 // pred_region
              _
            $region47: #{lenet5_forward.2} parent=31 // pred_fallthru
              _
          $region32: #{lenet5_forward.2} parent=27 // pred_fallthru
            _
          %280 = vnop
        $region28: #{lenet5_forward.2} parent=23 // pred_fallthru
          _
      $region24: #{lenet5_forward.2} parent=5 // pred_fallthru
        _
      %p281 = scmp.le.s32.totalorder 1, %s9
      %p282 = scmp.lt.s32.totalorder %s9, 50
      %p283 = pnand %p281, %p282
      %p284 = pneg %p283
      // Predicated region
      $region48: #{lenet5_forward.2} parent=5 // pred_check
        _
      $region49: #{lenet5_forward.2} parent=5 // pred_check_branch
        %286 = sbr.rel (%p283) target = $region51
      $region50: #{lenet5_forward.2} parent=5 // pred_region
        %s287 = ssub.s32 %s9, 1
        %s288 = sand.u32 %s22, 1
        %s289 = sand.u32 %s22, 1
        %s290 = smul.addr %s289, 512
        %s291 = scalar_lea.vmem [#allocation2], %s290
        // Predicated region
        $region52: #{lenet5_forward.2} parent=50 // pred_check
          %p292 = pneg %p35
        $region53: #{lenet5_forward.2} parent=50 // pred_check_branch
          %294 = sbr.rel (%p292) target = $region55
        $region54: #{lenet5_forward.2} parent=50 // pred_region
          _
        $region55: #{lenet5_forward.2} parent=50 // pred_fallthru
          _
        %s295 = sand.u32 %s22, 1
        %s296 = sand.u32 %s22, 1
        %s297 = smul.addr %s296, 512
        %s298 = scalar_lea.vmem [#allocation2], %s297
        %p299 = pneg %p35
        %p300 = pneg %p32
        %p301 = pneg %p56
        %p302 = pneg %p53
        %p303 = pneg %p77
        %p304 = pneg %p74
        %p305 = pneg %p103
        %p306 = pneg %p100
        %s307 = smul.u32 4, %s14
        %p308 = scmp.lt.s32.totalorder %s307, 195
        %s309 = scalar_select %p308, %s307, 195
        %s310 = smul.addr %s309, 8
        %s311 = scalar_lea.vmem %s3, %s310
        %s312 = smul.u32 4, %s14
        %s313 = smul.u32 4, %s14
        %p314 = scmp.lt.s32.totalorder %s313, 195
        %s315 = scalar_select %p314, %s313, 195
        %s316 = smul.addr %s315, 8
        %s317 = scalar_lea.vmem %s3, %s316
        %s318 = smul.u32 4, %s14
        %v319 = vld [vmem:[%s1] sm:$0x3f]
        %v320 = vld [vmem:[%s291] sm:$0xff]
        %v321 = vld [vmem:[%s291 + $0x8] sm:$0xff]
        %v322 = vld [vmem:[%s291 + $0x10] sm:$0xff]
        %v323 = vld [vmem:[%s291 + $0x18] sm:$0xff]
        %v324 = vld [vmem:[%s291 + $0x20] sm:$0xff]
        %v325 = vld [vmem:[%s291 + $0x28] sm:$0xff]
        %v326 = vld [vmem:[%s291 + $0x30] sm:$0xff]
        %v327 = vld [vmem:[%s291 + $0x38] sm:$0xff]
        %v328 = vld [vmem:[%s291 + $0x40] sm:$0xff]
        %v329 = vld [vmem:[%s291 + $0x48] sm:$0xff]
        %v330 = vld [vmem:[%s291 + $0x50] sm:$0xff]
        %v331 = vld [vmem:[%s291 + $0x58] sm:$0xff]
        %v332 = vld [vmem:[%s291 + $0x60] sm:$0xff]
        %v333 = vld [vmem:[%s291 + $0x68] sm:$0xff]
        %v334 = vld [vmem:[%s291 + $0x70] sm:$0xff]
        %v335 = vld [vmem:[%s291 + $0x78] sm:$0xff]
        %vm336 = vcmask 261120
        %v338 = vsel %vm336, %v319, 0
        %340 = vmatpush.msra.mxu0 0.0
        %341 = vmatpush.msra.mxu0 0.0
        %342 = vmatpush.msra.mxu0 0.0
        %343 = vmatpush.msra.mxu0 0.0
        %344 = vmatpush.msra.mxu0 0.0
        %345 = vmatpush.msra.mxu0 0.0
        %346 = vmatpush.msra.mxu0 0.0
        %347 = vmatpush.msra.mxu0 0.0
        %348 = vmatpush.msra.mxu0 0.0
        %349 = vmatpush.msra.mxu0 0.0
        %350 = vmatpush.msra.mxu0 0.0
        %351 = vmatpush.msra.mxu0 0.0
        %352 = vmatpush.msra.mxu0 %v332
        %353 = vmatpush.msra.mxu0 %v328
        %354 = vmatpush.msra.mxu0 %v324
        %355 = vmatpush.msra.mxu0 %v320
        %356 = vmatmul.f32.gmra.mxu0 %v338
        %v357 = vpop.f32.mrf.mxu0
        %v358 = vadd.f32 0.0, %v357
        %359 = vdwg.mxu0
        %360 = vmatpush.msra.mxu0 0.0
        %361 = vmatpush.msra.mxu0 0.0
        %362 = vmatpush.msra.mxu0 0.0
        %363 = vmatpush.msra.mxu0 0.0
        %364 = vmatpush.msra.mxu0 0.0
        %365 = vmatpush.msra.mxu0 0.0
        %366 = vmatpush.msra.mxu0 0.0
        %367 = vmatpush.msra.mxu0 0.0
        %368 = vmatpush.msra.mxu0 0.0
        %369 = vmatpush.msra.mxu0 0.0
        %370 = vmatpush.msra.mxu0 0.0
        %371 = vmatpush.msra.mxu0 0.0
        %372 = vmatpush.msra.mxu0 %v333
        %373 = vmatpush.msra.mxu0 %v329
        %374 = vmatpush.msra.mxu0 %v325
        %375 = vmatpush.msra.mxu0 %v321
        %376 = vmatmul.f32.gmra.mxu0 %v338
        %v377 = vpop.f32.mrf.mxu0
        %v378 = vadd.f32 0.0, %v377
        %379 = vdwg.mxu0
        %380 = vmatpush.msra.mxu0 0.0
        %381 = vmatpush.msra.mxu0 0.0
        %382 = vmatpush.msra.mxu0 0.0
        %383 = vmatpush.msra.mxu0 0.0
        %384 = vmatpush.msra.mxu0 0.0
        %385 = vmatpush.msra.mxu0 0.0
        %386 = vmatpush.msra.mxu0 0.0
        %387 = vmatpush.msra.mxu0 0.0
        %388 = vmatpush.msra.mxu0 0.0
        %389 = vmatpush.msra.mxu0 0.0
        %390 = vmatpush.msra.mxu0 0.0
        %391 = vmatpush.msra.mxu0 0.0
        %392 = vmatpush.msra.mxu0 %v334
        %393 = vmatpush.msra.mxu0 %v330
        %394 = vmatpush.msra.mxu0 %v326
        %395 = vmatpush.msra.mxu0 %v322
        %396 = vmatmul.f32.gmra.mxu0 %v338
        %v397 = vpop.f32.mrf.mxu0
        %v398 = vadd.f32 0.0, %v397
        %399 = vdwg.mxu0
        %400 = vmatpush.msra.mxu0 0.0
        %401 = vmatpush.msra.mxu0 0.0
        %402 = vmatpush.msra.mxu0 0.0
        %403 = vmatpush.msra.mxu0 0.0
        %404 = vmatpush.msra.mxu0 0.0
        %405 = vmatpush.msra.mxu0 0.0
        %406 = vmatpush.msra.mxu0 0.0
        %407 = vmatpush.msra.mxu0 0.0
        %408 = vmatpush.msra.mxu0 0.0
        %409 = vmatpush.msra.mxu0 0.0
        %410 = vmatpush.msra.mxu0 0.0
        %411 = vmatpush.msra.mxu0 0.0
        %412 = vmatpush.msra.mxu0 %v335
        %413 = vmatpush.msra.mxu0 %v331
        %414 = vmatpush.msra.mxu0 %v327
        %415 = vmatpush.msra.mxu0 %v323
        %416 = vmatmul.f32.gmra.mxu0 %v338
        %v417 = vpop.f32.mrf.mxu0
        %v418 = vadd.f32 0.0, %v417
        %419 = vdwg.mxu0
        %s420 = scalar_lea.vmem %s291, 128 [#allocation2]
        %v421 = vld [vmem:[%s420] sm:$0xff]
        %v422 = vld [vmem:[%s420 + $0x8] sm:$0xff]
        %v423 = vld [vmem:[%s420 + $0x10] sm:$0xff]
        %v424 = vld [vmem:[%s420 + $0x18] sm:$0xff]
        %v425 = vld [vmem:[%s420 + $0x20] sm:$0xff]
        %v426 = vld [vmem:[%s420 + $0x28] sm:$0xff]
        %v427 = vld [vmem:[%s420 + $0x30] sm:$0xff]
        %v428 = vld [vmem:[%s420 + $0x38] sm:$0xff]
        %v429 = vld [vmem:[%s420 + $0x40] sm:$0xff]
        %v430 = vld [vmem:[%s420 + $0x48] sm:$0xff]
        %v431 = vld [vmem:[%s420 + $0x50] sm:$0xff]
        %v432 = vld [vmem:[%s420 + $0x58] sm:$0xff]
        %v433 = vld [vmem:[%s420 + $0x60] sm:$0xff]
        %v434 = vld [vmem:[%s420 + $0x68] sm:$0xff]
        %v435 = vld [vmem:[%s420 + $0x70] sm:$0xff]
        %v436 = vld [vmem:[%s420 + $0x78] sm:$0xff]
        %437 = vmatpush.msra.mxu0 0.0
        %438 = vmatpush.msra.mxu0 0.0
        %439 = vmatpush.msra.mxu0 0.0
        %440 = vmatpush.msra.mxu0 0.0
        %441 = vmatpush.msra.mxu0 0.0
        %442 = vmatpush.msra.mxu0 0.0
        %443 = vmatpush.msra.mxu0 0.0
        %444 = vmatpush.msra.mxu0 0.0
        %445 = vmatpush.msra.mxu0 0.0
        %446 = vmatpush.msra.mxu0 0.0
        %447 = vmatpush.msra.mxu0 0.0
        %448 = vmatpush.msra.mxu0 0.0
        %449 = vmatpush.msra.mxu0 %v433
        %450 = vmatpush.msra.mxu0 %v429
        %451 = vmatpush.msra.mxu0 %v425
        %452 = vmatpush.msra.mxu0 %v421
        %453 = vmatmul.f32.gmra.mxu0 %v338
        %v454 = vpop.f32.mrf.mxu0
        %v455 = vadd.f32 0.0, %v454
        %456 = vdwg.mxu0
        %457 = vmatpush.msra.mxu0 0.0
        %458 = vmatpush.msra.mxu0 0.0
        %459 = vmatpush.msra.mxu0 0.0
        %460 = vmatpush.msra.mxu0 0.0
        %461 = vmatpush.msra.mxu0 0.0
        %462 = vmatpush.msra.mxu0 0.0
        %463 = vmatpush.msra.mxu0 0.0
        %464 = vmatpush.msra.mxu0 0.0
        %465 = vmatpush.msra.mxu0 0.0
        %466 = vmatpush.msra.mxu0 0.0
        %467 = vmatpush.msra.mxu0 0.0
        %468 = vmatpush.msra.mxu0 0.0
        %469 = vmatpush.msra.mxu0 %v434
        %470 = vmatpush.msra.mxu0 %v430
        %471 = vmatpush.msra.mxu0 %v426
        %472 = vmatpush.msra.mxu0 %v422
        %473 = vmatmul.f32.gmra.mxu0 %v338
        %v474 = vpop.f32.mrf.mxu0
        %v475 = vadd.f32 0.0, %v474
        %476 = vdwg.mxu0
        %477 = vmatpush.msra.mxu0 0.0
        %478 = vmatpush.msra.mxu0 0.0
        %479 = vmatpush.msra.mxu0 0.0
        %480 = vmatpush.msra.mxu0 0.0
        %481 = vmatpush.msra.mxu0 0.0
        %482 = vmatpush.msra.mxu0 0.0
        %483 = vmatpush.msra.mxu0 0.0
        %484 = vmatpush.msra.mxu0 0.0
        %485 = vmatpush.msra.mxu0 0.0
        %486 = vmatpush.msra.mxu0 0.0
        %487 = vmatpush.msra.mxu0 0.0
        %488 = vmatpush.msra.mxu0 0.0
        %489 = vmatpush.msra.mxu0 %v435
        %490 = vmatpush.msra.mxu0 %v431
        %491 = vmatpush.msra.mxu0 %v427
        %492 = vmatpush.msra.mxu0 %v423
        %493 = vmatmul.f32.gmra.mxu0 %v338
        %v494 = vpop.f32.mrf.mxu0
        %v495 = vadd.f32 0.0, %v494
        %496 = vdwg.mxu0
        %497 = vmatpush.msra.mxu0 0.0
        %498 = vmatpush.msra.mxu0 0.0
        %499 = vmatpush.msra.mxu0 0.0
        %500 = vmatpush.msra.mxu0 0.0
        %501 = vmatpush.msra.mxu0 0.0
        %502 = vmatpush.msra.mxu0 0.0
        %503 = vmatpush.msra.mxu0 0.0
        %504 = vmatpush.msra.mxu0 0.0
        %505 = vmatpush.msra.mxu0 0.0
        %506 = vmatpush.msra.mxu0 0.0
        %507 = vmatpush.msra.mxu0 0.0
        %508 = vmatpush.msra.mxu0 0.0
        %509 = vmatpush.msra.mxu0 %v436
        %510 = vmatpush.msra.mxu0 %v432
        %511 = vmatpush.msra.mxu0 %v428
        %512 = vmatpush.msra.mxu0 %v424
        %513 = vmatmul.f32.gmra.mxu0 %v338
        %v514 = vpop.f32.mrf.mxu0
        %v515 = vadd.f32 0.0, %v514
        %516 = vdwg.mxu0
        %v517 = vmax.f32 %v358, %v455
        %v518 = vmax.f32 %v378, %v475
        %v519 = vmax.f32 %v398, %v495
        %v520 = vmax.f32 %v418, %v515
        %s521 = scalar_lea.vmem %s291, 256 [#allocation2]
        %v522 = vld [vmem:[%s521] sm:$0xff]
        %v523 = vld [vmem:[%s521 + $0x8] sm:$0xff]
        %v524 = vld [vmem:[%s521 + $0x10] sm:$0xff]
        %v525 = vld [vmem:[%s521 + $0x18] sm:$0xff]
        %v526 = vld [vmem:[%s521 + $0x20] sm:$0xff]
        %v527 = vld [vmem:[%s521 + $0x28] sm:$0xff]
        %v528 = vld [vmem:[%s521 + $0x30] sm:$0xff]
        %v529 = vld [vmem:[%s521 + $0x38] sm:$0xff]
        %v530 = vld [vmem:[%s521 + $0x40] sm:$0xff]
        %v531 = vld [vmem:[%s521 + $0x48] sm:$0xff]
        %v532 = vld [vmem:[%s521 + $0x50] sm:$0xff]
        %v533 = vld [vmem:[%s521 + $0x58] sm:$0xff]
        %v534 = vld [vmem:[%s521 + $0x60] sm:$0xff]
        %v535 = vld [vmem:[%s521 + $0x68] sm:$0xff]
        %v536 = vld [vmem:[%s521 + $0x70] sm:$0xff]
        %v537 = vld [vmem:[%s521 + $0x78] sm:$0xff]
        %538 = vmatpush.msra.mxu0 0.0
        %539 = vmatpush.msra.mxu0 0.0
        %540 = vmatpush.msra.mxu0 0.0
        %541 = vmatpush.msra.mxu0 0.0
        %542 = vmatpush.msra.mxu0 0.0
        %543 = vmatpush.msra.mxu0 0.0
        %544 = vmatpush.msra.mxu0 0.0
        %545 = vmatpush.msra.mxu0 0.0
        %546 = vmatpush.msra.mxu0 0.0
        %547 = vmatpush.msra.mxu0 0.0
        %548 = vmatpush.msra.mxu0 0.0
        %549 = vmatpush.msra.mxu0 0.0
        %550 = vmatpush.msra.mxu0 %v534
        %551 = vmatpush.msra.mxu0 %v530
        %552 = vmatpush.msra.mxu0 %v526
        %553 = vmatpush.msra.mxu0 %v522
        %554 = vmatmul.f32.gmra.mxu0 %v338
        %v555 = vpop.f32.mrf.mxu0
        %v556 = vadd.f32 0.0, %v555
        %557 = vdwg.mxu0
        %558 = vmatpush.msra.mxu0 0.0
        %559 = vmatpush.msra.mxu0 0.0
        %560 = vmatpush.msra.mxu0 0.0
        %561 = vmatpush.msra.mxu0 0.0
        %562 = vmatpush.msra.mxu0 0.0
        %563 = vmatpush.msra.mxu0 0.0
        %564 = vmatpush.msra.mxu0 0.0
        %565 = vmatpush.msra.mxu0 0.0
        %566 = vmatpush.msra.mxu0 0.0
        %567 = vmatpush.msra.mxu0 0.0
        %568 = vmatpush.msra.mxu0 0.0
        %569 = vmatpush.msra.mxu0 0.0
        %570 = vmatpush.msra.mxu0 %v535
        %571 = vmatpush.msra.mxu0 %v531
        %572 = vmatpush.msra.mxu0 %v527
        %573 = vmatpush.msra.mxu0 %v523
        %574 = vmatmul.f32.gmra.mxu0 %v338
        %v575 = vpop.f32.mrf.mxu0
        %v576 = vadd.f32 0.0, %v575
        %577 = vdwg.mxu0
        %578 = vmatpush.msra.mxu0 0.0
        %579 = vmatpush.msra.mxu0 0.0
        %580 = vmatpush.msra.mxu0 0.0
        %581 = vmatpush.msra.mxu0 0.0
        %582 = vmatpush.msra.mxu0 0.0
        %583 = vmatpush.msra.mxu0 0.0
        %584 = vmatpush.msra.mxu0 0.0
        %585 = vmatpush.msra.mxu0 0.0
        %586 = vmatpush.msra.mxu0 0.0
        %587 = vmatpush.msra.mxu0 0.0
        %588 = vmatpush.msra.mxu0 0.0
        %589 = vmatpush.msra.mxu0 0.0
        %590 = vmatpush.msra.mxu0 %v536
        %591 = vmatpush.msra.mxu0 %v532
        %592 = vmatpush.msra.mxu0 %v528
        %593 = vmatpush.msra.mxu0 %v524
        %594 = vmatmul.f32.gmra.mxu0 %v338
        %v595 = vpop.f32.mrf.mxu0
        %v596 = vadd.f32 0.0, %v595
        %597 = vdwg.mxu0
        %598 = vmatpush.msra.mxu0 0.0
        %599 = vmatpush.msra.mxu0 0.0
        %600 = vmatpush.msra.mxu0 0.0
        %601 = vmatpush.msra.mxu0 0.0
        %602 = vmatpush.msra.mxu0 0.0
        %603 = vmatpush.msra.mxu0 0.0
        %604 = vmatpush.msra.mxu0 0.0
        %605 = vmatpush.msra.mxu0 0.0
        %606 = vmatpush.msra.mxu0 0.0
        %607 = vmatpush.msra.mxu0 0.0
        %608 = vmatpush.msra.mxu0 0.0
        %609 = vmatpush.msra.mxu0 0.0
        %610 = vmatpush.msra.mxu0 %v537
        %611 = vmatpush.msra.mxu0 %v533
        %612 = vmatpush.msra.mxu0 %v529
        %613 = vmatpush.msra.mxu0 %v525
        %614 = vmatmul.f32.gmra.mxu0 %v338
        %v615 = vpop.f32.mrf.mxu0
        %v616 = vadd.f32 0.0, %v615
        %617 = vdwg.mxu0
        %v618 = vmax.f32 %v517, %v556
        %v619 = vmax.f32 %v518, %v576
        %v620 = vmax.f32 %v519, %v596
        %v621 = vmax.f32 %v520, %v616
        %s622 = scalar_lea.vmem %s291, 384 [#allocation2]
        %v623 = vld [vmem:[%s622] sm:$0xff]
        %v624 = vld [vmem:[%s622 + $0x8] sm:$0xff]
        %v625 = vld [vmem:[%s622 + $0x10] sm:$0xff]
        %v626 = vld [vmem:[%s622 + $0x18] sm:$0xff]
        %v627 = vld [vmem:[%s622 + $0x20] sm:$0xff]
        %v628 = vld [vmem:[%s622 + $0x28] sm:$0xff]
        %v629 = vld [vmem:[%s622 + $0x30] sm:$0xff]
        %v630 = vld [vmem:[%s622 + $0x38] sm:$0xff]
        %v631 = vld [vmem:[%s622 + $0x40] sm:$0xff]
        %v632 = vld [vmem:[%s622 + $0x48] sm:$0xff]
        %v633 = vld [vmem:[%s622 + $0x50] sm:$0xff]
        %v634 = vld [vmem:[%s622 + $0x58] sm:$0xff]
        %v635 = vld [vmem:[%s622 + $0x60] sm:$0xff]
        %v636 = vld [vmem:[%s622 + $0x68] sm:$0xff]
        %v637 = vld [vmem:[%s622 + $0x70] sm:$0xff]
        %v638 = vld [vmem:[%s622 + $0x78] sm:$0xff]
        %639 = vmatpush.msra.mxu0 0.0
        %640 = vmatpush.msra.mxu0 0.0
        %641 = vmatpush.msra.mxu0 0.0
        %642 = vmatpush.msra.mxu0 0.0
        %643 = vmatpush.msra.mxu0 0.0
        %644 = vmatpush.msra.mxu0 0.0
        %645 = vmatpush.msra.mxu0 0.0
        %646 = vmatpush.msra.mxu0 0.0
        %647 = vmatpush.msra.mxu0 0.0
        %648 = vmatpush.msra.mxu0 0.0
        %649 = vmatpush.msra.mxu0 0.0
        %650 = vmatpush.msra.mxu0 0.0
        %651 = vmatpush.msra.mxu0 %v635
        %652 = vmatpush.msra.mxu0 %v631
        %653 = vmatpush.msra.mxu0 %v627
        %654 = vmatpush.msra.mxu0 %v623
        %655 = vmatmul.f32.gmra.mxu0 %v338
        %v656 = vpop.f32.mrf.mxu0
        %v657 = vadd.f32 0.0, %v656
        %658 = vdwg.mxu0
        %659 = vmatpush.msra.mxu0 0.0
        %660 = vmatpush.msra.mxu0 0.0
        %661 = vmatpush.msra.mxu0 0.0
        %662 = vmatpush.msra.mxu0 0.0
        %663 = vmatpush.msra.mxu0 0.0
        %664 = vmatpush.msra.mxu0 0.0
        %665 = vmatpush.msra.mxu0 0.0
        %666 = vmatpush.msra.mxu0 0.0
        %667 = vmatpush.msra.mxu0 0.0
        %668 = vmatpush.msra.mxu0 0.0
        %669 = vmatpush.msra.mxu0 0.0
        %670 = vmatpush.msra.mxu0 0.0
        %671 = vmatpush.msra.mxu0 %v636
        %672 = vmatpush.msra.mxu0 %v632
        %673 = vmatpush.msra.mxu0 %v628
        %674 = vmatpush.msra.mxu0 %v624
        %675 = vmatmul.f32.gmra.mxu0 %v338
        %v676 = vpop.f32.mrf.mxu0
        %v677 = vadd.f32 0.0, %v676
        %678 = vdwg.mxu0
        %679 = vmatpush.msra.mxu0 0.0
        %680 = vmatpush.msra.mxu0 0.0
        %681 = vmatpush.msra.mxu0 0.0
        %682 = vmatpush.msra.mxu0 0.0
        %683 = vmatpush.msra.mxu0 0.0
        %684 = vmatpush.msra.mxu0 0.0
        %685 = vmatpush.msra.mxu0 0.0
        %686 = vmatpush.msra.mxu0 0.0
        %687 = vmatpush.msra.mxu0 0.0
        %688 = vmatpush.msra.mxu0 0.0
        %689 = vmatpush.msra.mxu0 0.0
        %690 = vmatpush.msra.mxu0 0.0
        %691 = vmatpush.msra.mxu0 %v637
        %692 = vmatpush.msra.mxu0 %v633
        %693 = vmatpush.msra.mxu0 %v629
        %694 = vmatpush.msra.mxu0 %v625
        %695 = vmatmul.f32.gmra.mxu0 %v338
        %v696 = vpop.f32.mrf.mxu0
        %v697 = vadd.f32 0.0, %v696
        %698 = vdwg.mxu0
        %699 = vmatpush.msra.mxu0 0.0
        %700 = vmatpush.msra.mxu0 0.0
        %701 = vmatpush.msra.mxu0 0.0
        %702 = vmatpush.msra.mxu0 0.0
        %703 = vmatpush.msra.mxu0 0.0
        %704 = vmatpush.msra.mxu0 0.0
        %705 = vmatpush.msra.mxu0 0.0
        %706 = vmatpush.msra.mxu0 0.0
        %707 = vmatpush.msra.mxu0 0.0
        %708 = vmatpush.msra.mxu0 0.0
        %709 = vmatpush.msra.mxu0 0.0
        %710 = vmatpush.msra.mxu0 0.0
        %711 = vmatpush.msra.mxu0 %v638
        %712 = vmatpush.msra.mxu0 %v634
        %713 = vmatpush.msra.mxu0 %v630
        %714 = vmatpush.msra.mxu0 %v626
        %715 = vmatmul.f32.gmra.mxu0 %v338
        %v716 = vpop.f32.mrf.mxu0
        %v717 = vadd.f32 0.0, %v716
        %718 = vdwg.mxu0
        %v719 = vmax.f32 %v618, %v657
        %v720 = vmax.f32 %v619, %v677
        %v721 = vmax.f32 %v620, %v697
        %v722 = vmax.f32 %v621, %v717
        %v723 = vld [vmem:[%s2] sm:$0x3f]
        %725 = vset.pattern.permute.xlu0 0
        %726 = vperm.xlu0 %725, %v723
        %v727 = vpop.permute.xlu0 %726
        %v729 = vadd.f32 %v719, %v727
        %v730 = vadd.f32 %v720, %v727
        %v731 = vadd.f32 %v721, %v727
        %v732 = vadd.f32 %v722, %v727
        %v733 = vmax.f32 %v729, 0.0
        %v734 = vmax.f32 %v730, 0.0
        %v735 = vmax.f32 %v731, 0.0
        %v736 = vmax.f32 %v732, 0.0
        %737 = vst [vmem:[%s317] sm:$0x3f] %v733
        %738 = vst [vmem:[%s317 + $0x8] sm:$0x3f] %v734
        %739 = vst [vmem:[%s317 + $0x10] sm:$0x3f] %v735
        %740 = vst [vmem:[%s317 + $0x18] sm:$0x3f] %v736
        %s741 = smul.u32 4, %s14
        %p742 = scmp.lt.s32.totalorder %s741, 195
        %s743 = scalar_select %p742, %s741, 195
        %s744 = smul.addr %s743, 8
        %s745 = scalar_lea.vmem %s3, %s744
        // Predicated region
        $region56: #{lenet5_forward.2} parent=50 // pred_check
          %p746 = pneg %p100
        $region57: #{lenet5_forward.2} parent=50 // pred_check_branch
          %748 = sbr.rel (%p746) target = $region59
        $region58: #{lenet5_forward.2} parent=50 // pred_region
          %s749 = smul.u32 4, %s14
        $region59: #{lenet5_forward.2} parent=50 // pred_fallthru
          _
      $region51: #{lenet5_forward.2} parent=5 // pred_fallthru
        _
      %p750 = scmp.le.s32.totalorder 2, %s9
      // Predicated region
      $region60: #{lenet5_forward.2} parent=5 // pred_check
        %p751 = pneg %p750
      $region61: #{lenet5_forward.2} parent=5 // pred_check_branch
        %753 = sbr.rel (%p751) target = $region63
      $region62: #{lenet5_forward.2} parent=5 // pred_region
        %s754 = ssub.s32 %s9, 2
        // Predicated region
        $region64: #{lenet5_forward.2} parent=62 // pred_check
          %p755 = pneg %p106
        $region65: #{lenet5_forward.2} parent=62 // pred_check_branch
          %757 = sbr.rel (%p755) target = $region67
        $region66: #{lenet5_forward.2} parent=62 // pred_region
          %s758 = smul.u32 4, %s15
          %p759 = scmp.lt.s32.totalorder %s758, 195
          %s760 = scalar_select %p759, %s758, 195
          %s761 = smul.addr %s760, 8
          %s762 = scalar_lea.vmem %s3, %s761
        $region67: #{lenet5_forward.2} parent=62 // pred_fallthru
          _
      $region63: #{lenet5_forward.2} parent=5 // pred_fallthru
        _
    $region6: #{lenet5_forward.2} parent=1 // loop_footer
      %s13 = sadd.s32 1, %s9
    $region7: #{lenet5_forward.2} parent=1 // loop_footer_branch
      %8 = sbr.rel target = $region3
    $region8: #{lenet5_forward.2} parent=1 // loop_exit
      _

// kernel: lenet5_forward.3
$region0: #{lenet5_forward.3}
  #allocation0 [shape = 'u32[]', space=smem, size = 0x4, offset = 0x4, fixed_abs, tag = 'smem constant byte address 0x4 - core index']
  #allocation1 [shape = 'u32[72,128]{1,0:T(1,128)}', space=vmem, size = 0x9000, scoped, tag = 'internal scratch']
  %s0 = inlined_call_operand.vmem [shape: f32[4,152,3200], index: 0, kind: input, shape index: {}]
  %s1 = inlined_call_operand.vmem [shape: f32[16,152], index: 1, kind: input, shape index: {}]
  %s2 = inlined_call_operand.vmem [shape: f32[16,1], index: 2, kind: input, shape index: {}]
  %s3 = inlined_call_operand.vmem [shape: f32[25,120,16], index: 3, kind: input, shape index: {}]
  %s4 = inlined_call_operand.vmem [shape: f32[120,1], index: 4, kind: input, shape index: {}]
  %s5 = inlined_call_operand.vmem [shape: f32[84,120], index: 5, kind: input, shape index: {}]
  %s6 = inlined_call_operand.vmem [shape: f32[84,1], index: 6, kind: input, shape index: {}]
  %s7 = inlined_call_operand.vmem [shape: f32[10,84], index: 7, kind: input, shape index: {}]
  %s8 = inlined_call_operand.vmem [shape: f32[10,1], index: 8, kind: input, shape index: {}]
  %s9 = inlined_call_operand.vmem [shape: f32[10,128], index: 9, kind: output, shape index: {}]
  %s10 = sld [smem:[#allocation0]]
  $region46: #{lenet5_forward.3} parent=0
    _
  %s12 = ssub.s32 1, %s10
  %s13 = scalar_select 0, %s12, %s10
  // Predicated region
  $region2: #{lenet5_forward.3} parent=0 // pred_check
    _
  $region3: #{lenet5_forward.3} parent=0 // pred_check_branch
    %15 = sbr.rel (0) target = $region5
  $region4: #{lenet5_forward.3} parent=0 // pred_region
    _
  $region5: #{lenet5_forward.3} parent=0 // pred_fallthru
    _
  // Predicated region
  $region6: #{lenet5_forward.3} parent=0 // pred_check
    _
  $region7: #{lenet5_forward.3} parent=0 // pred_check_branch
    %17 = sbr.rel (0) target = $region9
  $region8: #{lenet5_forward.3} parent=0 // pred_region
    _
  $region9: #{lenet5_forward.3} parent=0 // pred_fallthru
    _
  // Predicated region
  $region10: #{lenet5_forward.3} parent=0 // pred_check
    _
  $region11: #{lenet5_forward.3} parent=0 // pred_check_branch
    %19 = sbr.rel (0) target = $region13
  $region12: #{lenet5_forward.3} parent=0 // pred_region
    _
  $region13: #{lenet5_forward.3} parent=0 // pred_fallthru
    _
  // Predicated region
  $region14: #{lenet5_forward.3} parent=0 // pred_check
    _
  $region15: #{lenet5_forward.3} parent=0 // pred_check_branch
    %21 = sbr.rel (0) target = $region17
  $region16: #{lenet5_forward.3} parent=0 // pred_region
    _
  $region17: #{lenet5_forward.3} parent=0 // pred_fallthru
    _
  // Predicated region
  $region18: #{lenet5_forward.3} parent=0 // pred_check
    _
  $region19: #{lenet5_forward.3} parent=0 // pred_check_branch
    %23 = sbr.rel (0) target = $region21
  $region20: #{lenet5_forward.3} parent=0 // pred_region
    _
  $region21: #{lenet5_forward.3} parent=0 // pred_fallthru
    _
  // Predicated region
  $region22: #{lenet5_forward.3} parent=0 // pred_check
    _
  $region23: #{lenet5_forward.3} parent=0 // pred_check_branch
    %25 = sbr.rel (0) target = $region25
  $region24: #{lenet5_forward.3} parent=0 // pred_region
    _
  $region25: #{lenet5_forward.3} parent=0 // pred_fallthru
    _
  // Predicated region
  $region26: #{lenet5_forward.3} parent=0 // pred_check
    _
  $region27: #{lenet5_forward.3} parent=0 // pred_check_branch
    %27 = sbr.rel (0) target = $region29
  $region28: #{lenet5_forward.3} parent=0 // pred_region
    _
  $region29: #{lenet5_forward.3} parent=0 // pred_fallthru
    _
  // Predicated region
  $region30: #{lenet5_forward.3} parent=0 // pred_check
    _
  $region31: #{lenet5_forward.3} parent=0 // pred_check_branch
    %29 = sbr.rel (0) target = $region33
  $region32: #{lenet5_forward.3} parent=0 // pred_region
    _
  $region33: #{lenet5_forward.3} parent=0 // pred_fallthru
    _
  // Predicated region
  $region34: #{lenet5_forward.3} parent=0 // pred_check
    _
  $region35: #{lenet5_forward.3} parent=0 // pred_check_branch
    %31 = sbr.rel (0) target = $region37
  $region36: #{lenet5_forward.3} parent=0 // pred_region
    _
  $region37: #{lenet5_forward.3} parent=0 // pred_fallthru
    _
  %v32 = vld [vmem:[%s1] sm:$0xff]
  %v33 = vld [vmem:[%s1 + $0x8] sm:$0xff]
  %v34 = vld [vmem:[%s1 + $0x10] sm:$0xff]
  %v35 = vld [vmem:[%s1 + $0x18] sm:$0xff]
  %v36 = vld [vmem:[%s0] sm:$0xff]
  %v37 = vld [vmem:[%s0 + $0x8] sm:$0xff]
  %v38 = vld [vmem:[%s0 + $0x10] sm:$0xff]
  %v39 = vld [vmem:[%s0 + $0x18] sm:$0xff]
  %v40 = vld [vmem:[%s0 + $0x20] sm:$0xff]
  %v41 = vld [vmem:[%s0 + $0x28] sm:$0xff]
  %v42 = vld [vmem:[%s0 + $0x30] sm:$0xff]
  %v43 = vld [vmem:[%s0 + $0x38] sm:$0xff]
  %v44 = vld [vmem:[%s0 + $0x40] sm:$0xff]
  %v45 = vld [vmem:[%s0 + $0x48] sm:$0xff]
  %v46 = vld [vmem:[%s0 + $0x50] sm:$0xff]
  %v47 = vld [vmem:[%s0 + $0x58] sm:$0xff]
  %v48 = vld [vmem:[%s0 + $0x60] sm:$0xff]
  %v49 = vld [vmem:[%s0 + $0x68] sm:$0xff]
  %v50 = vld [vmem:[%s0 + $0x70] sm:$0xff]
  %v51 = vld [vmem:[%s0 + $0x78] sm:$0xff]
  %v52 = vld [vmem:[%s0 + $0x80] sm:$0xff]
  %v53 = vld [vmem:[%s0 + $0x88] sm:$0xff]
  %v54 = vld [vmem:[%s0 + $0x90] sm:$0xff]
  %v55 = vld [vmem:[%s0 + $0x98] sm:$0xff]
  %v56 = vld [vmem:[%s0 + $0xa0] sm:$0xff]
  %v57 = vld [vmem:[%s0 + $0xa8] sm:$0xff]
  %v58 = vld [vmem:[%s0 + $0xb0] sm:$0xff]
  %v59 = vld [vmem:[%s0 + $0xb8] sm:$0xff]
  %v60 = vld [vmem:[%s0 + $0xc0] sm:$0xff]
  %v61 = vld [vmem:[%s0 + $0xc8] sm:$0xff]
  %v62 = vld [vmem:[%s0 + $0xd0] sm:$0xff]
  %v63 = vld [vmem:[%s0 + $0xd8] sm:$0xff]
  %v64 = vld [vmem:[%s0 + $0xe0] sm:$0xff]
  %v65 = vld [vmem:[%s0 + $0xe8] sm:$0xff]
  %v66 = vld [vmem:[%s0 + $0xf0] sm:$0xff]
  %v67 = vld [vmem:[%s0 + $0xf8] sm:$0xff]
  %v68 = vld [vmem:[%s0 + $0x100] sm:$0xff]
  %v69 = vld [vmem:[%s0 + $0x108] sm:$0xff]
  %v70 = vld [vmem:[%s0 + $0x110] sm:$0xff]
  %v71 = vld [vmem:[%s0 + $0x118] sm:$0xff]
  %v72 = vld [vmem:[%s0 + $0x120] sm:$0xff]
  %v73 = vld [vmem:[%s0 + $0x128] sm:$0xff]
  %v74 = vld [vmem:[%s0 + $0x130] sm:$0xff]
  %v75 = vld [vmem:[%s0 + $0x138] sm:$0xff]
  %v76 = vld [vmem:[%s0 + $0x140] sm:$0xff]
  %v77 = vld [vmem:[%s0 + $0x148] sm:$0xff]
  %v78 = vld [vmem:[%s0 + $0x150] sm:$0xff]
  %v79 = vld [vmem:[%s0 + $0x158] sm:$0xff]
  %v80 = vld [vmem:[%s0 + $0x160] sm:$0xff]
  %v81 = vld [vmem:[%s0 + $0x168] sm:$0xff]
  %v82 = vld [vmem:[%s0 + $0x170] sm:$0xff]
  %v83 = vld [vmem:[%s0 + $0x178] sm:$0xff]
  %v84 = vld [vmem:[%s0 + $0x180] sm:$0xff]
  %v85 = vld [vmem:[%s0 + $0x188] sm:$0xff]
  %v86 = vld [vmem:[%s0 + $0x190] sm:$0xff]
  %v87 = vld [vmem:[%s0 + $0x198] sm:$0xff]
  %v88 = vld [vmem:[%s0 + $0x1a0] sm:$0xff]
  %v89 = vld [vmem:[%s0 + $0x1a8] sm:$0xff]
  %v90 = vld [vmem:[%s0 + $0x1b0] sm:$0xff]
  %v91 = vld [vmem:[%s0 + $0x1b8] sm:$0xff]
  %v92 = vld [vmem:[%s0 + $0x1c0] sm:$0xff]
  %v93 = vld [vmem:[%s0 + $0x1c8] sm:$0xff]
  %v94 = vld [vmem:[%s0 + $0x1d0] sm:$0xff]
  %v95 = vld [vmem:[%s0 + $0x1d8] sm:$0xff]
  %v96 = vld [vmem:[%s0 + $0x1e0] sm:$0xff]
  %v97 = vld [vmem:[%s0 + $0x1e8] sm:$0xff]
  %v98 = vld [vmem:[%s0 + $0x1f0] sm:$0xff]
  %v99 = vld [vmem:[%s0 + $0x1f8] sm:$0xff]
  %v100 = vld [vmem:[%s0 + $0x200] sm:$0xff]
  %v101 = vld [vmem:[%s0 + $0x208] sm:$0xff]
  %v102 = vld [vmem:[%s0 + $0x210] sm:$0xff]
  %v103 = vld [vmem:[%s0 + $0x218] sm:$0xff]
  %v104 = vld [vmem:[%s0 + $0x220] sm:$0xff]
  %v105 = vld [vmem:[%s0 + $0x228] sm:$0xff]
  %v106 = vld [vmem:[%s0 + $0x230] sm:$0xff]
  %v107 = vld [vmem:[%s0 + $0x238] sm:$0xff]
  %v108 = vld [vmem:[%s0 + $0x240] sm:$0xff]
  %v109 = vld [vmem:[%s0 + $0x248] sm:$0xff]
  %v110 = vld [vmem:[%s0 + $0x250] sm:$0xff]
  %v111 = vld [vmem:[%s0 + $0x258] sm:$0xff]
  %v112 = vld [vmem:[%s0 + $0x260] sm:$0xff]
  %v113 = vld [vmem:[%s0 + $0x268] sm:$0xff]
  %v114 = vld [vmem:[%s0 + $0x270] sm:$0xff]
  %v115 = vld [vmem:[%s0 + $0x278] sm:$0xff]
  %v116 = vld [vmem:[%s0 + $0x280] sm:$0xff]
  %v117 = vld [vmem:[%s0 + $0x288] sm:$0xff]
  %v118 = vld [vmem:[%s0 + $0x290] sm:$0xff]
  %v119 = vld [vmem:[%s0 + $0x298] sm:$0xff]
  %v120 = vld [vmem:[%s0 + $0x2a0] sm:$0xff]
  %v121 = vld [vmem:[%s0 + $0x2a8] sm:$0xff]
  %v122 = vld [vmem:[%s0 + $0x2b0] sm:$0xff]
  %v123 = vld [vmem:[%s0 + $0x2b8] sm:$0xff]
  %v124 = vld [vmem:[%s0 + $0x2c0] sm:$0xff]
  %v125 = vld [vmem:[%s0 + $0x2c8] sm:$0xff]
  %v126 = vld [vmem:[%s0 + $0x2d0] sm:$0xff]
  %v127 = vld [vmem:[%s0 + $0x2d8] sm:$0xff]
  %v128 = vld [vmem:[%s0 + $0x2e0] sm:$0xff]
  %v129 = vld [vmem:[%s0 + $0x2e8] sm:$0xff]
  %v130 = vld [vmem:[%s0 + $0x2f0] sm:$0xff]
  %v131 = vld [vmem:[%s0 + $0x2f8] sm:$0xff]
  %v132 = vld [vmem:[%s0 + $0x300] sm:$0xff]
  %v133 = vld [vmem:[%s0 + $0x308] sm:$0xff]
  %v134 = vld [vmem:[%s0 + $0x310] sm:$0xff]
  %v135 = vld [vmem:[%s0 + $0x318] sm:$0xff]
  %v136 = vld [vmem:[%s0 + $0x320] sm:$0xff]
  %v137 = vld [vmem:[%s0 + $0x328] sm:$0xff]
  %v138 = vld [vmem:[%s0 + $0x330] sm:$0xff]
  %v139 = vld [vmem:[%s0 + $0x338] sm:$0xff]
  %v140 = vld [vmem:[%s0 + $0x340] sm:$0xff]
  %v141 = vld [vmem:[%s0 + $0x348] sm:$0xff]
  %v142 = vld [vmem:[%s0 + $0x350] sm:$0xff]
  %v143 = vld [vmem:[%s0 + $0x358] sm:$0xff]
  %v144 = vld [vmem:[%s0 + $0x360] sm:$0xff]
  %v145 = vld [vmem:[%s0 + $0x368] sm:$0xff]
  %v146 = vld [vmem:[%s0 + $0x370] sm:$0xff]
  %v147 = vld [vmem:[%s0 + $0x378] sm:$0xff]
  %v148 = vld [vmem:[%s0 + $0x380] sm:$0xff]
  %v149 = vld [vmem:[%s0 + $0x388] sm:$0xff]
  %v150 = vld [vmem:[%s0 + $0x390] sm:$0xff]
  %v151 = vld [vmem:[%s0 + $0x398] sm:$0xff]
  %v152 = vld [vmem:[%s0 + $0x3a0] sm:$0xff]
  %v153 = vld [vmem:[%s0 + $0x3a8] sm:$0xff]
  %v154 = vld [vmem:[%s0 + $0x3b0] sm:$0xff]
  %v155 = vld [vmem:[%s0 + $0x3b8] sm:$0xff]
  %v156 = vld [vmem:[%s0 + $0x3c0] sm:$0xff]
  %v157 = vld [vmem:[%s0 + $0x3c8] sm:$0xff]
  %v158 = vld [vmem:[%s0 + $0x3d0] sm:$0xff]
  %v159 = vld [vmem:[%s0 + $0x3d8] sm:$0xff]
  %v160 = vld [vmem:[%s0 + $0x3e0] sm:$0xff]
  %v161 = vld [vmem:[%s0 + $0x3e8] sm:$0xff]
  %v162 = vld [vmem:[%s0 + $0x3f0] sm:$0xff]
  %v163 = vld [vmem:[%s0 + $0x3f8] sm:$0xff]
  %v164 = vld [vmem:[%s0 + $0x400] sm:$0xff]
  %v165 = vld [vmem:[%s0 + $0x408] sm:$0xff]
  %v166 = vld [vmem:[%s0 + $0x410] sm:$0xff]
  %v167 = vld [vmem:[%s0 + $0x418] sm:$0xff]
  %v168 = vld [vmem:[%s0 + $0x420] sm:$0xff]
  %v169 = vld [vmem:[%s0 + $0x428] sm:$0xff]
  %v170 = vld [vmem:[%s0 + $0x430] sm:$0xff]
  %v171 = vld [vmem:[%s0 + $0x438] sm:$0xff]
  %v172 = vld [vmem:[%s0 + $0x440] sm:$0xff]
  %v173 = vld [vmem:[%s0 + $0x448] sm:$0xff]
  %v174 = vld [vmem:[%s0 + $0x450] sm:$0xff]
  %v175 = vld [vmem:[%s0 + $0x458] sm:$0xff]
  %v176 = vld [vmem:[%s0 + $0x460] sm:$0xff]
  %v177 = vld [vmem:[%s0 + $0x468] sm:$0xff]
  %v178 = vld [vmem:[%s0 + $0x470] sm:$0xff]
  %v179 = vld [vmem:[%s0 + $0x478] sm:$0xff]
  %v180 = vld [vmem:[%s0 + $0x480] sm:$0xff]
  %v181 = vld [vmem:[%s0 + $0x488] sm:$0xff]
  %v182 = vld [vmem:[%s0 + $0x490] sm:$0xff]
  %v183 = vld [vmem:[%s0 + $0x498] sm:$0xff]
  %v184 = vld [vmem:[%s0 + $0x4a0] sm:$0xff]
  %v185 = vld [vmem:[%s0 + $0x4a8] sm:$0xff]
  %v186 = vld [vmem:[%s0 + $0x4b0] sm:$0xff]
  %v187 = vld [vmem:[%s0 + $0x4b8] sm:$0xff]
  %v188 = vld [vmem:[%s0 + $0x4c0] sm:$0xff]
  %v189 = vld [vmem:[%s0 + $0x4c8] sm:$0xff]
  %v190 = vld [vmem:[%s0 + $0x4d0] sm:$0xff]
  %v191 = vld [vmem:[%s0 + $0x4d8] sm:$0xff]
  %v192 = vld [vmem:[%s0 + $0x4e0] sm:$0xff]
  %v193 = vld [vmem:[%s0 + $0x4e8] sm:$0xff]
  %v194 = vld [vmem:[%s0 + $0x4f0] sm:$0xff]
  %v195 = vld [vmem:[%s0 + $0x4f8] sm:$0xff]
  %v196 = vld [vmem:[%s0 + $0x500] sm:$0xff]
  %v197 = vld [vmem:[%s0 + $0x508] sm:$0xff]
  %v198 = vld [vmem:[%s0 + $0x510] sm:$0xff]
  %v199 = vld [vmem:[%s0 + $0x518] sm:$0xff]
  %v200 = vld [vmem:[%s0 + $0x520] sm:$0xff]
  %v201 = vld [vmem:[%s0 + $0x528] sm:$0xff]
  %v202 = vld [vmem:[%s0 + $0x530] sm:$0xff]
  %v203 = vld [vmem:[%s0 + $0x538] sm:$0xff]
  %v204 = vld [vmem:[%s0 + $0x540] sm:$0xff]
  %v205 = vld [vmem:[%s0 + $0x548] sm:$0xff]
  %v206 = vld [vmem:[%s0 + $0x550] sm:$0xff]
  %v207 = vld [vmem:[%s0 + $0x558] sm:$0xff]
  %v208 = vld [vmem:[%s0 + $0x560] sm:$0xff]
  %v209 = vld [vmem:[%s0 + $0x568] sm:$0xff]
  %v210 = vld [vmem:[%s0 + $0x570] sm:$0xff]
  %v211 = vld [vmem:[%s0 + $0x578] sm:$0xff]
  %v212 = vld [vmem:[%s0 + $0x580] sm:$0xff]
  %v213 = vld [vmem:[%s0 + $0x588] sm:$0xff]
  %v214 = vld [vmem:[%s0 + $0x590] sm:$0xff]
  %v215 = vld [vmem:[%s0 + $0x598] sm:$0xff]
  %v216 = vld [vmem:[%s0 + $0x5a0] sm:$0xff]
  %v217 = vld [vmem:[%s0 + $0x5a8] sm:$0xff]
  %v218 = vld [vmem:[%s0 + $0x5b0] sm:$0xff]
  %v219 = vld [vmem:[%s0 + $0x5b8] sm:$0xff]
  %v220 = vld [vmem:[%s0 + $0x5c0] sm:$0xff]
  %v221 = vld [vmem:[%s0 + $0x5c8] sm:$0xff]
  %v222 = vld [vmem:[%s0 + $0x5d0] sm:$0xff]
  %v223 = vld [vmem:[%s0 + $0x5d8] sm:$0xff]
  %v224 = vld [vmem:[%s0 + $0x5e0] sm:$0xff]
  %v225 = vld [vmem:[%s0 + $0x5e8] sm:$0xff]
  %v226 = vld [vmem:[%s0 + $0x5f0] sm:$0xff]
  %v227 = vld [vmem:[%s0 + $0x5f8] sm:$0xff]
  %v228 = vld [vmem:[%s0 + $0x600] sm:$0xff]
  %v229 = vld [vmem:[%s0 + $0x608] sm:$0xff]
  %v230 = vld [vmem:[%s0 + $0x610] sm:$0xff]
  %v231 = vld [vmem:[%s0 + $0x618] sm:$0xff]
  %v232 = vld [vmem:[%s0 + $0x620] sm:$0xff]
  %v233 = vld [vmem:[%s0 + $0x628] sm:$0xff]
  %v234 = vld [vmem:[%s0 + $0x630] sm:$0xff]
  %v235 = vld [vmem:[%s0 + $0x638] sm:$0xff]
  %v236 = vld [vmem:[%s0 + $0x640] sm:$0xff]
  %v237 = vld [vmem:[%s0 + $0x648] sm:$0xff]
  %v238 = vld [vmem:[%s0 + $0x650] sm:$0xff]
  %v239 = vld [vmem:[%s0 + $0x658] sm:$0xff]
  %v240 = vld [vmem:[%s0 + $0x660] sm:$0xff]
  %v241 = vld [vmem:[%s0 + $0x668] sm:$0xff]
  %v242 = vld [vmem:[%s0 + $0x670] sm:$0xff]
  %v243 = vld [vmem:[%s0 + $0x678] sm:$0xff]
  %v244 = vld [vmem:[%s0 + $0x680] sm:$0xff]
  %v245 = vld [vmem:[%s0 + $0x688] sm:$0xff]
  %v246 = vld [vmem:[%s0 + $0x690] sm:$0xff]
  %v247 = vld [vmem:[%s0 + $0x698] sm:$0xff]
  %v248 = vld [vmem:[%s0 + $0x6a0] sm:$0xff]
  %v249 = vld [vmem:[%s0 + $0x6a8] sm:$0xff]
  %v250 = vld [vmem:[%s0 + $0x6b0] sm:$0xff]
  %v251 = vld [vmem:[%s0 + $0x6b8] sm:$0xff]
  %v252 = vld [vmem:[%s0 + $0x6c0] sm:$0xff]
  %v253 = vld [vmem:[%s0 + $0x6c8] sm:$0xff]
  %v254 = vld [vmem:[%s0 + $0x6d0] sm:$0xff]
  %v255 = vld [vmem:[%s0 + $0x6d8] sm:$0xff]
  %v256 = vld [vmem:[%s0 + $0x6e0] sm:$0xff]
  %v257 = vld [vmem:[%s0 + $0x6e8] sm:$0xff]
  %v258 = vld [vmem:[%s0 + $0x6f0] sm:$0xff]
  %v259 = vld [vmem:[%s0 + $0x6f8] sm:$0xff]
  %v260 = vld [vmem:[%s0 + $0x700] sm:$0xff]
  %v261 = vld [vmem:[%s0 + $0x708] sm:$0xff]
  %v262 = vld [vmem:[%s0 + $0x710] sm:$0xff]
  %v263 = vld [vmem:[%s0 + $0x718] sm:$0xff]
  %v264 = vld [vmem:[%s0 + $0x720] sm:$0xff]
  %v265 = vld [vmem:[%s0 + $0x728] sm:$0xff]
  %v266 = vld [vmem:[%s0 + $0x730] sm:$0xff]
  %v267 = vld [vmem:[%s0 + $0x738] sm:$0xff]
  %v268 = vld [vmem:[%s0 + $0x740] sm:$0xff]
  %v269 = vld [vmem:[%s0 + $0x748] sm:$0xff]
  %v270 = vld [vmem:[%s0 + $0x750] sm:$0xff]
  %v271 = vld [vmem:[%s0 + $0x758] sm:$0xff]
  %v272 = vld [vmem:[%s0 + $0x760] sm:$0xff]
  %v273 = vld [vmem:[%s0 + $0x768] sm:$0xff]
  %v274 = vld [vmem:[%s0 + $0x770] sm:$0xff]
  %v275 = vld [vmem:[%s0 + $0x778] sm:$0xff]
  %v276 = vld [vmem:[%s0 + $0x780] sm:$0xff]
  %v277 = vld [vmem:[%s0 + $0x788] sm:$0xff]
  %v278 = vld [vmem:[%s0 + $0x790] sm:$0xff]
  %v279 = vld [vmem:[%s0 + $0x798] sm:$0xff]
  %v280 = vld [vmem:[%s0 + $0x7a0] sm:$0xff]
  %v281 = vld [vmem:[%s0 + $0x7a8] sm:$0xff]
  %v282 = vld [vmem:[%s0 + $0x7b0] sm:$0xff]
  %v283 = vld [vmem:[%s0 + $0x7b8] sm:$0xff]
  %v284 = vld [vmem:[%s0 + $0x7c0] sm:$0xff]
  %v285 = vld [vmem:[%s0 + $0x7c8] sm:$0xff]
  %v286 = vld [vmem:[%s0 + $0x7d0] sm:$0xff]
  %v287 = vld [vmem:[%s0 + $0x7d8] sm:$0xff]
  %v288 = vld [vmem:[%s0 + $0x7e0] sm:$0xff]
  %v289 = vld [vmem:[%s0 + $0x7e8] sm:$0xff]
  %v290 = vld [vmem:[%s0 + $0x7f0] sm:$0xff]
  %v291 = vld [vmem:[%s0 + $0x7f8] sm:$0xff]
  %v292 = vld [vmem:[%s0 + $0x800] sm:$0xff]
  %v293 = vld [vmem:[%s0 + $0x808] sm:$0xff]
  %v294 = vld [vmem:[%s0 + $0x810] sm:$0xff]
  %v295 = vld [vmem:[%s0 + $0x818] sm:$0xff]
  %v296 = vld [vmem:[%s0 + $0x820] sm:$0xff]
  %v297 = vld [vmem:[%s0 + $0x828] sm:$0xff]
  %v298 = vld [vmem:[%s0 + $0x830] sm:$0xff]
  %v299 = vld [vmem:[%s0 + $0x838] sm:$0xff]
  %v300 = vld [vmem:[%s0 + $0x840] sm:$0xff]
  %v301 = vld [vmem:[%s0 + $0x848] sm:$0xff]
  %v302 = vld [vmem:[%s0 + $0x850] sm:$0xff]
  %v303 = vld [vmem:[%s0 + $0x858] sm:$0xff]
  %v304 = vld [vmem:[%s0 + $0x860] sm:$0xff]
  %v305 = vld [vmem:[%s0 + $0x868] sm:$0xff]
  %v306 = vld [vmem:[%s0 + $0x870] sm:$0xff]
  %v307 = vld [vmem:[%s0 + $0x878] sm:$0xff]
  %v308 = vld [vmem:[%s0 + $0x880] sm:$0xff]
  %v309 = vld [vmem:[%s0 + $0x888] sm:$0xff]
  %v310 = vld [vmem:[%s0 + $0x890] sm:$0xff]
  %v311 = vld [vmem:[%s0 + $0x898] sm:$0xff]
  %v312 = vld [vmem:[%s0 + $0x8a0] sm:$0xff]
  %v313 = vld [vmem:[%s0 + $0x8a8] sm:$0xff]
  %v314 = vld [vmem:[%s0 + $0x8b0] sm:$0xff]
  %v315 = vld [vmem:[%s0 + $0x8b8] sm:$0xff]
  %v316 = vld [vmem:[%s0 + $0x8c0] sm:$0xff]
  %v317 = vld [vmem:[%s0 + $0x8c8] sm:$0xff]
  %v318 = vld [vmem:[%s0 + $0x8d0] sm:$0xff]
  %v319 = vld [vmem:[%s0 + $0x8d8] sm:$0xff]
  %v320 = vld [vmem:[%s0 + $0x8e0] sm:$0xff]
  %v321 = vld [vmem:[%s0 + $0x8e8] sm:$0xff]
  %v322 = vld [vmem:[%s0 + $0x8f0] sm:$0xff]
  %v323 = vld [vmem:[%s0 + $0x8f8] sm:$0xff]
  %v324 = vld [vmem:[%s0 + $0x900] sm:$0xff]
  %v325 = vld [vmem:[%s0 + $0x908] sm:$0xff]
  %v326 = vld [vmem:[%s0 + $0x910] sm:$0xff]
  %v327 = vld [vmem:[%s0 + $0x918] sm:$0xff]
  %v328 = vld [vmem:[%s0 + $0x920] sm:$0xff]
  %v329 = vld [vmem:[%s0 + $0x928] sm:$0xff]
  %v330 = vld [vmem:[%s0 + $0x930] sm:$0xff]
  %v331 = vld [vmem:[%s0 + $0x938] sm:$0xff]
  %v332 = vld [vmem:[%s0 + $0x940] sm:$0xff]
  %v333 = vld [vmem:[%s0 + $0x948] sm:$0xff]
  %v334 = vld [vmem:[%s0 + $0x950] sm:$0xff]
  %v335 = vld [vmem:[%s0 + $0x958] sm:$0xff]
  %v336 = vld [vmem:[%s0 + $0x960] sm:$0xff]
  %v337 = vld [vmem:[%s0 + $0x968] sm:$0xff]
  %v338 = vld [vmem:[%s0 + $0x970] sm:$0xff]
  %v339 = vld [vmem:[%s0 + $0x978] sm:$0xff]
  %v340 = vld [vmem:[%s0 + $0x980] sm:$0xff]
  %v341 = vld [vmem:[%s0 + $0x988] sm:$0xff]
  %v342 = vld [vmem:[%s0 + $0x990] sm:$0xff]
  %v343 = vld [vmem:[%s0 + $0x998] sm:$0xff]
  %v344 = vld [vmem:[%s0 + $0x9a0] sm:$0xff]
  %v345 = vld [vmem:[%s0 + $0x9a8] sm:$0xff]
  %v346 = vld [vmem:[%s0 + $0x9b0] sm:$0xff]
  %v347 = vld [vmem:[%s0 + $0x9b8] sm:$0xff]
  %v348 = vld [vmem:[%s0 + $0x9c0] sm:$0xff]
  %v349 = vld [vmem:[%s0 + $0x9c8] sm:$0xff]
  %v350 = vld [vmem:[%s0 + $0x9d0] sm:$0xff]
  %v351 = vld [vmem:[%s0 + $0x9d8] sm:$0xff]
  %v352 = vld [vmem:[%s0 + $0x9e0] sm:$0xff]
  %v353 = vld [vmem:[%s0 + $0x9e8] sm:$0xff]
  %v354 = vld [vmem:[%s0 + $0x9f0] sm:$0xff]
  %v355 = vld [vmem:[%s0 + $0x9f8] sm:$0xff]
  %v356 = vld [vmem:[%s0 + $0xa00] sm:$0xff]
  %v357 = vld [vmem:[%s0 + $0xa08] sm:$0xff]
  %v358 = vld [vmem:[%s0 + $0xa10] sm:$0xff]
  %v359 = vld [vmem:[%s0 + $0xa18] sm:$0xff]
  %v360 = vld [vmem:[%s0 + $0xa20] sm:$0xff]
  %v361 = vld [vmem:[%s0 + $0xa28] sm:$0xff]
  %v362 = vld [vmem:[%s0 + $0xa30] sm:$0xff]
  %v363 = vld [vmem:[%s0 + $0xa38] sm:$0xff]
  %v364 = vld [vmem:[%s0 + $0xa40] sm:$0xff]
  %v365 = vld [vmem:[%s0 + $0xa48] sm:$0xff]
  %v366 = vld [vmem:[%s0 + $0xa50] sm:$0xff]
  %v367 = vld [vmem:[%s0 + $0xa58] sm:$0xff]
  %v368 = vld [vmem:[%s0 + $0xa60] sm:$0xff]
  %v369 = vld [vmem:[%s0 + $0xa68] sm:$0xff]
  %v370 = vld [vmem:[%s0 + $0xa70] sm:$0xff]
  %v371 = vld [vmem:[%s0 + $0xa78] sm:$0xff]
  %v372 = vld [vmem:[%s0 + $0xa80] sm:$0xff]
  %v373 = vld [vmem:[%s0 + $0xa88] sm:$0xff]
  %v374 = vld [vmem:[%s0 + $0xa90] sm:$0xff]
  %v375 = vld [vmem:[%s0 + $0xa98] sm:$0xff]
  %v376 = vld [vmem:[%s0 + $0xaa0] sm:$0xff]
  %v377 = vld [vmem:[%s0 + $0xaa8] sm:$0xff]
  %v378 = vld [vmem:[%s0 + $0xab0] sm:$0xff]
  %v379 = vld [vmem:[%s0 + $0xab8] sm:$0xff]
  %v380 = vld [vmem:[%s0 + $0xac0] sm:$0xff]
  %v381 = vld [vmem:[%s0 + $0xac8] sm:$0xff]
  %v382 = vld [vmem:[%s0 + $0xad0] sm:$0xff]
  %v383 = vld [vmem:[%s0 + $0xad8] sm:$0xff]
  %v384 = vld [vmem:[%s0 + $0xae0] sm:$0xff]
  %v385 = vld [vmem:[%s0 + $0xae8] sm:$0xff]
  %v386 = vld [vmem:[%s0 + $0xaf0] sm:$0xff]
  %v387 = vld [vmem:[%s0 + $0xaf8] sm:$0xff]
  %v388 = vld [vmem:[%s0 + $0xb00] sm:$0xff]
  %v389 = vld [vmem:[%s0 + $0xb08] sm:$0xff]
  %v390 = vld [vmem:[%s0 + $0xb10] sm:$0xff]
  %v391 = vld [vmem:[%s0 + $0xb18] sm:$0xff]
  %v392 = vld [vmem:[%s0 + $0xb20] sm:$0xff]
  %v393 = vld [vmem:[%s0 + $0xb28] sm:$0xff]
  %v394 = vld [vmem:[%s0 + $0xb30] sm:$0xff]
  %v395 = vld [vmem:[%s0 + $0xb38] sm:$0xff]
  %v396 = vld [vmem:[%s0 + $0xb40] sm:$0xff]
  %v397 = vld [vmem:[%s0 + $0xb48] sm:$0xff]
  %v398 = vld [vmem:[%s0 + $0xb50] sm:$0xff]
  %v399 = vld [vmem:[%s0 + $0xb58] sm:$0xff]
  %v400 = vld [vmem:[%s0 + $0xb60] sm:$0xff]
  %v401 = vld [vmem:[%s0 + $0xb68] sm:$0xff]
  %v402 = vld [vmem:[%s0 + $0xb70] sm:$0xff]
  %v403 = vld [vmem:[%s0 + $0xb78] sm:$0xff]
  %v404 = vld [vmem:[%s0 + $0xb80] sm:$0xff]
  %v405 = vld [vmem:[%s0 + $0xb88] sm:$0xff]
  %v406 = vld [vmem:[%s0 + $0xb90] sm:$0xff]
  %v407 = vld [vmem:[%s0 + $0xb98] sm:$0xff]
  %v408 = vld [vmem:[%s0 + $0xba0] sm:$0xff]
  %v409 = vld [vmem:[%s0 + $0xba8] sm:$0xff]
  %v410 = vld [vmem:[%s0 + $0xbb0] sm:$0xff]
  %v411 = vld [vmem:[%s0 + $0xbb8] sm:$0xff]
  %v412 = vld [vmem:[%s0 + $0xbc0] sm:$0xff]
  %v413 = vld [vmem:[%s0 + $0xbc8] sm:$0xff]
  %v414 = vld [vmem:[%s0 + $0xbd0] sm:$0xff]
  %v415 = vld [vmem:[%s0 + $0xbd8] sm:$0xff]
  %v416 = vld [vmem:[%s0 + $0xbe0] sm:$0xff]
  %v417 = vld [vmem:[%s0 + $0xbe8] sm:$0xff]
  %v418 = vld [vmem:[%s0 + $0xbf0] sm:$0xff]
  %v419 = vld [vmem:[%s0 + $0xbf8] sm:$0xff]
  %v420 = vld [vmem:[%s0 + $0xc00] sm:$0xff]
  %v421 = vld [vmem:[%s0 + $0xc08] sm:$0xff]
  %v422 = vld [vmem:[%s0 + $0xc10] sm:$0xff]
  %v423 = vld [vmem:[%s0 + $0xc18] sm:$0xff]
  %v424 = vld [vmem:[%s0 + $0xc20] sm:$0xff]
  %v425 = vld [vmem:[%s0 + $0xc28] sm:$0xff]
  %v426 = vld [vmem:[%s0 + $0xc30] sm:$0xff]
  %v427 = vld [vmem:[%s0 + $0xc38] sm:$0xff]
  %v428 = vld [vmem:[%s0 + $0xc40] sm:$0xff]
  %v429 = vld [vmem:[%s0 + $0xc48] sm:$0xff]
  %v430 = vld [vmem:[%s0 + $0xc50] sm:$0xff]
  %v431 = vld [vmem:[%s0 + $0xc58] sm:$0xff]
  %v432 = vld [vmem:[%s0 + $0xc60] sm:$0xff]
  %v433 = vld [vmem:[%s0 + $0xc68] sm:$0xff]
  %v434 = vld [vmem:[%s0 + $0xc70] sm:$0xff]
  %v435 = vld [vmem:[%s0 + $0xc78] sm:$0xff]
  %v436 = vld [vmem:[%s0 + $0xc80] sm:$0xff]
  %v437 = vld [vmem:[%s0 + $0xc88] sm:$0xff]
  %v438 = vld [vmem:[%s0 + $0xc90] sm:$0xff]
  %v439 = vld [vmem:[%s0 + $0xc98] sm:$0xff]
  %v440 = vld [vmem:[%s0 + $0xca0] sm:$0xff]
  %v441 = vld [vmem:[%s0 + $0xca8] sm:$0xff]
  %v442 = vld [vmem:[%s0 + $0xcb0] sm:$0xff]
  %v443 = vld [vmem:[%s0 + $0xcb8] sm:$0xff]
  %v444 = vld [vmem:[%s0 + $0xcc0] sm:$0xff]
  %v445 = vld [vmem:[%s0 + $0xcc8] sm:$0xff]
  %v446 = vld [vmem:[%s0 + $0xcd0] sm:$0xff]
  %v447 = vld [vmem:[%s0 + $0xcd8] sm:$0xff]
  %v448 = vld [vmem:[%s0 + $0xce0] sm:$0xff]
  %v449 = vld [vmem:[%s0 + $0xce8] sm:$0xff]
  %v450 = vld [vmem:[%s0 + $0xcf0] sm:$0xff]
  %v451 = vld [vmem:[%s0 + $0xcf8] sm:$0xff]
  %v452 = vld [vmem:[%s0 + $0xd00] sm:$0xff]
  %v453 = vld [vmem:[%s0 + $0xd08] sm:$0xff]
  %v454 = vld [vmem:[%s0 + $0xd10] sm:$0xff]
  %v455 = vld [vmem:[%s0 + $0xd18] sm:$0xff]
  %v456 = vld [vmem:[%s0 + $0xd20] sm:$0xff]
  %v457 = vld [vmem:[%s0 + $0xd28] sm:$0xff]
  %v458 = vld [vmem:[%s0 + $0xd30] sm:$0xff]
  %v459 = vld [vmem:[%s0 + $0xd38] sm:$0xff]
  %v460 = vld [vmem:[%s0 + $0xd40] sm:$0xff]
  %v461 = vld [vmem:[%s0 + $0xd48] sm:$0xff]
  %v462 = vld [vmem:[%s0 + $0xd50] sm:$0xff]
  %v463 = vld [vmem:[%s0 + $0xd58] sm:$0xff]
  %v464 = vld [vmem:[%s0 + $0xd60] sm:$0xff]
  %v465 = vld [vmem:[%s0 + $0xd68] sm:$0xff]
  %v466 = vld [vmem:[%s0 + $0xd70] sm:$0xff]
  %v467 = vld [vmem:[%s0 + $0xd78] sm:$0xff]
  %v468 = vld [vmem:[%s0 + $0xd80] sm:$0xff]
  %v469 = vld [vmem:[%s0 + $0xd88] sm:$0xff]
  %v470 = vld [vmem:[%s0 + $0xd90] sm:$0xff]
  %v471 = vld [vmem:[%s0 + $0xd98] sm:$0xff]
  %v472 = vld [vmem:[%s0 + $0xda0] sm:$0xff]
  %v473 = vld [vmem:[%s0 + $0xda8] sm:$0xff]
  %v474 = vld [vmem:[%s0 + $0xdb0] sm:$0xff]
  %v475 = vld [vmem:[%s0 + $0xdb8] sm:$0xff]
  %v476 = vld [vmem:[%s0 + $0xdc0] sm:$0xff]
  %v477 = vld [vmem:[%s0 + $0xdc8] sm:$0xff]
  %v478 = vld [vmem:[%s0 + $0xdd0] sm:$0xff]
  %v479 = vld [vmem:[%s0 + $0xdd8] sm:$0xff]
  %v480 = vld [vmem:[%s0 + $0xde0] sm:$0xff]
  %v481 = vld [vmem:[%s0 + $0xde8] sm:$0xff]
  %v482 = vld [vmem:[%s0 + $0xdf0] sm:$0xff]
  %v483 = vld [vmem:[%s0 + $0xdf8] sm:$0xff]
  %v484 = vld [vmem:[%s0 + $0xe00] sm:$0xff]
  %v485 = vld [vmem:[%s0 + $0xe08] sm:$0xff]
  %v486 = vld [vmem:[%s0 + $0xe10] sm:$0xff]
  %v487 = vld [vmem:[%s0 + $0xe18] sm:$0xff]
  %v488 = vld [vmem:[%s0 + $0xe20] sm:$0xff]
  %v489 = vld [vmem:[%s0 + $0xe28] sm:$0xff]
  %v490 = vld [vmem:[%s0 + $0xe30] sm:$0xff]
  %v491 = vld [vmem:[%s0 + $0xe38] sm:$0xff]
  %v492 = vld [vmem:[%s0 + $0xe40] sm:$0xff]
  %v493 = vld [vmem:[%s0 + $0xe48] sm:$0xff]
  %v494 = vld [vmem:[%s0 + $0xe50] sm:$0xff]
  %v495 = vld [vmem:[%s0 + $0xe58] sm:$0xff]
  %v496 = vld [vmem:[%s0 + $0xe60] sm:$0xff]
  %v497 = vld [vmem:[%s0 + $0xe68] sm:$0xff]
  %v498 = vld [vmem:[%s0 + $0xe70] sm:$0xff]
  %v499 = vld [vmem:[%s0 + $0xe78] sm:$0xff]
  %v500 = vld [vmem:[%s0 + $0xe80] sm:$0xff]
  %v501 = vld [vmem:[%s0 + $0xe88] sm:$0xff]
  %v502 = vld [vmem:[%s0 + $0xe90] sm:$0xff]
  %v503 = vld [vmem:[%s0 + $0xe98] sm:$0xff]
  %v504 = vld [vmem:[%s0 + $0xea0] sm:$0xff]
  %v505 = vld [vmem:[%s0 + $0xea8] sm:$0xff]
  %v506 = vld [vmem:[%s0 + $0xeb0] sm:$0xff]
  %v507 = vld [vmem:[%s0 + $0xeb8] sm:$0xff]
  %v508 = vld [vmem:[%s0 + $0xec0] sm:$0xff]
  %v509 = vld [vmem:[%s0 + $0xec8] sm:$0xff]
  %v510 = vld [vmem:[%s0 + $0xed0] sm:$0xff]
  %vm511 = vcmask 195584
  %v513 = vsel %vm511, %v33, 0
  %v516 = vsel %vm511, %v35, 0
  %518 = vmatpush.msra.mxu0 %v411
  %519 = vmatpush.msra.mxu0 %v386
  %520 = vmatpush.msra.mxu0 %v361
  %521 = vmatpush.msra.mxu0 %v336
  %522 = vmatpush.msra.mxu0 %v311
  %523 = vmatpush.msra.mxu0 %v286
  %524 = vmatpush.msra.mxu0 %v261
  %525 = vmatpush.msra.mxu0 %v236
  %526 = vmatpush.msra.mxu0 %v211
  %527 = vmatpush.msra.mxu0 %v186
  %528 = vmatpush.msra.mxu0 %v161
  %529 = vmatpush.msra.mxu0 %v136
  %530 = vmatpush.msra.mxu0 %v111
  %531 = vmatpush.msra.mxu0 %v86
  %532 = vmatpush.msra.mxu0 %v61
  %533 = vmatpush.msra.mxu0 %v36
  %534 = vmatmul.f32.gmra.mxu0 %v32
  %v535 = vpop.f32.mrf.mxu0
  %v536 = vadd.f32 0.0, %v535
  %537 = vmatmul.f32.gmra.mxu0 %v34
  %v538 = vpop.f32.mrf.mxu0
  %v539 = vadd.f32 0.0, %v538
  %540 = vdwg.mxu0
  %541 = vmatpush.msra.mxu0 0.0
  %542 = vmatpush.msra.mxu0 0.0
  %543 = vmatpush.msra.mxu0 0.0
  %544 = vmatpush.msra.mxu0 0.0
  %545 = vmatpush.msra.mxu0 0.0
  %546 = vmatpush.msra.mxu0 0.0
  %547 = vmatpush.msra.mxu0 0.0
  %548 = vmatpush.msra.mxu0 0.0
  %549 = vmatpush.msra.mxu0 0.0
  %550 = vmatpush.msra.mxu0 0.0
  %551 = vmatpush.msra.mxu0 0.0
  %552 = vmatpush.msra.mxu0 0.0
  %553 = vmatpush.msra.mxu0 0.0
  %554 = vmatpush.msra.mxu0 %v486
  %555 = vmatpush.msra.mxu0 %v461
  %556 = vmatpush.msra.mxu0 %v436
  %557 = vmatmul.f32.gmra.mxu0 %v513
  %v558 = vpop.f32.mrf.mxu0
  %v559 = vadd.f32 %v536, %v558
  %560 = vmatmul.f32.gmra.mxu0 %v516
  %v561 = vpop.f32.mrf.mxu0
  %v562 = vadd.f32 %v539, %v561
  %563 = vdwg.mxu0
  %564 = vmatpush.msra.mxu0 %v412
  %565 = vmatpush.msra.mxu0 %v387
  %566 = vmatpush.msra.mxu0 %v362
  %567 = vmatpush.msra.mxu0 %v337
  %568 = vmatpush.msra.mxu0 %v312
  %569 = vmatpush.msra.mxu0 %v287
  %570 = vmatpush.msra.mxu0 %v262
  %571 = vmatpush.msra.mxu0 %v237
  %572 = vmatpush.msra.mxu0 %v212
  %573 = vmatpush.msra.mxu0 %v187
  %574 = vmatpush.msra.mxu0 %v162
  %575 = vmatpush.msra.mxu0 %v137
  %576 = vmatpush.msra.mxu0 %v112
  %577 = vmatpush.msra.mxu0 %v87
  %578 = vmatpush.msra.mxu0 %v62
  %579 = vmatpush.msra.mxu0 %v37
  %580 = vmatmul.f32.gmra.mxu0 %v32
  %v581 = vpop.f32.mrf.mxu0
  %v582 = vadd.f32 0.0, %v581
  %583 = vmatmul.f32.gmra.mxu0 %v34
  %v584 = vpop.f32.mrf.mxu0
  %v585 = vadd.f32 0.0, %v584
  %586 = vdwg.mxu0
  %587 = vmatpush.msra.mxu0 0.0
  %588 = vmatpush.msra.mxu0 0.0
  %589 = vmatpush.msra.mxu0 0.0
  %590 = vmatpush.msra.mxu0 0.0
  %591 = vmatpush.msra.mxu0 0.0
  %592 = vmatpush.msra.mxu0 0.0
  %593 = vmatpush.msra.mxu0 0.0
  %594 = vmatpush.msra.mxu0 0.0
  %595 = vmatpush.msra.mxu0 0.0
  %596 = vmatpush.msra.mxu0 0.0
  %597 = vmatpush.msra.mxu0 0.0
  %598 = vmatpush.msra.mxu0 0.0
  %599 = vmatpush.msra.mxu0 0.0
  %600 = vmatpush.msra.mxu0 %v487
  %601 = vmatpush.msra.mxu0 %v462
  %602 = vmatpush.msra.mxu0 %v437
  %603 = vmatmul.f32.gmra.mxu0 %v513
  %v604 = vpop.f32.mrf.mxu0
  %v605 = vadd.f32 %v582, %v604
  %606 = vmatmul.f32.gmra.mxu0 %v516
  %v607 = vpop.f32.mrf.mxu0
  %v608 = vadd.f32 %v585, %v607
  %609 = vdwg.mxu0
  %610 = vmatpush.msra.mxu0 %v413
  %611 = vmatpush.msra.mxu0 %v388
  %612 = vmatpush.msra.mxu0 %v363
  %613 = vmatpush.msra.mxu0 %v338
  %614 = vmatpush.msra.mxu0 %v313
  %615 = vmatpush.msra.mxu0 %v288
  %616 = vmatpush.msra.mxu0 %v263
  %617 = vmatpush.msra.mxu0 %v238
  %618 = vmatpush.msra.mxu0 %v213
  %619 = vmatpush.msra.mxu0 %v188
  %620 = vmatpush.msra.mxu0 %v163
  %621 = vmatpush.msra.mxu0 %v138
  %622 = vmatpush.msra.mxu0 %v113
  %623 = vmatpush.msra.mxu0 %v88
  %624 = vmatpush.msra.mxu0 %v63
  %625 = vmatpush.msra.mxu0 %v38
  %626 = vmatmul.f32.gmra.mxu0 %v32
  %v627 = vpop.f32.mrf.mxu0
  %v628 = vadd.f32 0.0, %v627
  %629 = vmatmul.f32.gmra.mxu0 %v34
  %v630 = vpop.f32.mrf.mxu0
  %v631 = vadd.f32 0.0, %v630
  %632 = vdwg.mxu0
  %633 = vmatpush.msra.mxu0 0.0
  %634 = vmatpush.msra.mxu0 0.0
  %635 = vmatpush.msra.mxu0 0.0
  %636 = vmatpush.msra.mxu0 0.0
  %637 = vmatpush.msra.mxu0 0.0
  %638 = vmatpush.msra.mxu0 0.0
  %639 = vmatpush.msra.mxu0 0.0
  %640 = vmatpush.msra.mxu0 0.0
  %641 = vmatpush.msra.mxu0 0.0
  %642 = vmatpush.msra.mxu0 0.0
  %643 = vmatpush.msra.mxu0 0.0
  %644 = vmatpush.msra.mxu0 0.0
  %645 = vmatpush.msra.mxu0 0.0
  %646 = vmatpush.msra.mxu0 %v488
  %647 = vmatpush.msra.mxu0 %v463
  %648 = vmatpush.msra.mxu0 %v438
  %649 = vmatmul.f32.gmra.mxu0 %v513
  %v650 = vpop.f32.mrf.mxu0
  %v651 = vadd.f32 %v628, %v650
  %652 = vmatmul.f32.gmra.mxu0 %v516
  %v653 = vpop.f32.mrf.mxu0
  %v654 = vadd.f32 %v631, %v653
  %655 = vdwg.mxu0
  %656 = vmatpush.msra.mxu0 %v414
  %657 = vmatpush.msra.mxu0 %v389
  %658 = vmatpush.msra.mxu0 %v364
  %659 = vmatpush.msra.mxu0 %v339
  %660 = vmatpush.msra.mxu0 %v314
  %661 = vmatpush.msra.mxu0 %v289
  %662 = vmatpush.msra.mxu0 %v264
  %663 = vmatpush.msra.mxu0 %v239
  %664 = vmatpush.msra.mxu0 %v214
  %665 = vmatpush.msra.mxu0 %v189
  %666 = vmatpush.msra.mxu0 %v164
  %667 = vmatpush.msra.mxu0 %v139
  %668 = vmatpush.msra.mxu0 %v114
  %669 = vmatpush.msra.mxu0 %v89
  %670 = vmatpush.msra.mxu0 %v64
  %671 = vmatpush.msra.mxu0 %v39
  %672 = vmatmul.f32.gmra.mxu0 %v32
  %v673 = vpop.f32.mrf.mxu0
  %v674 = vadd.f32 0.0, %v673
  %675 = vmatmul.f32.gmra.mxu0 %v34
  %v676 = vpop.f32.mrf.mxu0
  %v677 = vadd.f32 0.0, %v676
  %678 = vdwg.mxu0
  %679 = vmatpush.msra.mxu0 0.0
  %680 = vmatpush.msra.mxu0 0.0
  %681 = vmatpush.msra.mxu0 0.0
  %682 = vmatpush.msra.mxu0 0.0
  %683 = vmatpush.msra.mxu0 0.0
  %684 = vmatpush.msra.mxu0 0.0
  %685 = vmatpush.msra.mxu0 0.0
  %686 = vmatpush.msra.mxu0 0.0
  %687 = vmatpush.msra.mxu0 0.0
  %688 = vmatpush.msra.mxu0 0.0
  %689 = vmatpush.msra.mxu0 0.0
  %690 = vmatpush.msra.mxu0 0.0
  %691 = vmatpush.msra.mxu0 0.0
  %692 = vmatpush.msra.mxu0 %v489
  %693 = vmatpush.msra.mxu0 %v464
  %694 = vmatpush.msra.mxu0 %v439
  %695 = vmatmul.f32.gmra.mxu0 %v513
  %v696 = vpop.f32.mrf.mxu0
  %v697 = vadd.f32 %v674, %v696
  %698 = vmatmul.f32.gmra.mxu0 %v516
  %v699 = vpop.f32.mrf.mxu0
  %v700 = vadd.f32 %v677, %v699
  %701 = vdwg.mxu0
  %702 = vmatpush.msra.mxu0 %v415
  %703 = vmatpush.msra.mxu0 %v390
  %704 = vmatpush.msra.mxu0 %v365
  %705 = vmatpush.msra.mxu0 %v340
  %706 = vmatpush.msra.mxu0 %v315
  %707 = vmatpush.msra.mxu0 %v290
  %708 = vmatpush.msra.mxu0 %v265
  %709 = vmatpush.msra.mxu0 %v240
  %710 = vmatpush.msra.mxu0 %v215
  %711 = vmatpush.msra.mxu0 %v190
  %712 = vmatpush.msra.mxu0 %v165
  %713 = vmatpush.msra.mxu0 %v140
  %714 = vmatpush.msra.mxu0 %v115
  %715 = vmatpush.msra.mxu0 %v90
  %716 = vmatpush.msra.mxu0 %v65
  %717 = vmatpush.msra.mxu0 %v40
  %718 = vmatmul.f32.gmra.mxu0 %v32
  %v719 = vpop.f32.mrf.mxu0
  %v720 = vadd.f32 0.0, %v719
  %721 = vmatmul.f32.gmra.mxu0 %v34
  %v722 = vpop.f32.mrf.mxu0
  %v723 = vadd.f32 0.0, %v722
  %724 = vdwg.mxu0
  %725 = vmatpush.msra.mxu0 0.0
  %726 = vmatpush.msra.mxu0 0.0
  %727 = vmatpush.msra.mxu0 0.0
  %728 = vmatpush.msra.mxu0 0.0
  %729 = vmatpush.msra.mxu0 0.0
  %730 = vmatpush.msra.mxu0 0.0
  %731 = vmatpush.msra.mxu0 0.0
  %732 = vmatpush.msra.mxu0 0.0
  %733 = vmatpush.msra.mxu0 0.0
  %734 = vmatpush.msra.mxu0 0.0
  %735 = vmatpush.msra.mxu0 0.0
  %736 = vmatpush.msra.mxu0 0.0
  %737 = vmatpush.msra.mxu0 0.0
  %738 = vmatpush.msra.mxu0 %v490
  %739 = vmatpush.msra.mxu0 %v465
  %740 = vmatpush.msra.mxu0 %v440
  %741 = vmatmul.f32.gmra.mxu0 %v513
  %v742 = vpop.f32.mrf.mxu0
  %v743 = vadd.f32 %v720, %v742
  %744 = vmatmul.f32.gmra.mxu0 %v516
  %v745 = vpop.f32.mrf.mxu0
  %v746 = vadd.f32 %v723, %v745
  %747 = vdwg.mxu0
  %748 = vmatpush.msra.mxu0 %v416
  %749 = vmatpush.msra.mxu0 %v391
  %750 = vmatpush.msra.mxu0 %v366
  %751 = vmatpush.msra.mxu0 %v341
  %752 = vmatpush.msra.mxu0 %v316
  %753 = vmatpush.msra.mxu0 %v291
  %754 = vmatpush.msra.mxu0 %v266
  %755 = vmatpush.msra.mxu0 %v241
  %756 = vmatpush.msra.mxu0 %v216
  %757 = vmatpush.msra.mxu0 %v191
  %758 = vmatpush.msra.mxu0 %v166
  %759 = vmatpush.msra.mxu0 %v141
  %760 = vmatpush.msra.mxu0 %v116
  %761 = vmatpush.msra.mxu0 %v91
  %762 = vmatpush.msra.mxu0 %v66
  %763 = vmatpush.msra.mxu0 %v41
  %764 = vmatmul.f32.gmra.mxu0 %v32
  %v765 = vpop.f32.mrf.mxu0
  %v766 = vadd.f32 0.0, %v765
  %767 = vmatmul.f32.gmra.mxu0 %v34
  %v768 = vpop.f32.mrf.mxu0
  %v769 = vadd.f32 0.0, %v768
  %770 = vdwg.mxu0
  %771 = vmatpush.msra.mxu0 0.0
  %772 = vmatpush.msra.mxu0 0.0
  %773 = vmatpush.msra.mxu0 0.0
  %774 = vmatpush.msra.mxu0 0.0
  %775 = vmatpush.msra.mxu0 0.0
  %776 = vmatpush.msra.mxu0 0.0
  %777 = vmatpush.msra.mxu0 0.0
  %778 = vmatpush.msra.mxu0 0.0
  %779 = vmatpush.msra.mxu0 0.0
  %780 = vmatpush.msra.mxu0 0.0
  %781 = vmatpush.msra.mxu0 0.0
  %782 = vmatpush.msra.mxu0 0.0
  %783 = vmatpush.msra.mxu0 0.0
  %784 = vmatpush.msra.mxu0 %v491
  %785 = vmatpush.msra.mxu0 %v466
  %786 = vmatpush.msra.mxu0 %v441
  %787 = vmatmul.f32.gmra.mxu0 %v513
  %v788 = vpop.f32.mrf.mxu0
  %v789 = vadd.f32 %v766, %v788
  %790 = vmatmul.f32.gmra.mxu0 %v516
  %v791 = vpop.f32.mrf.mxu0
  %v792 = vadd.f32 %v769, %v791
  %793 = vdwg.mxu0
  %794 = vmatpush.msra.mxu0 %v417
  %795 = vmatpush.msra.mxu0 %v392
  %796 = vmatpush.msra.mxu0 %v367
  %797 = vmatpush.msra.mxu0 %v342
  %798 = vmatpush.msra.mxu0 %v317
  %799 = vmatpush.msra.mxu0 %v292
  %800 = vmatpush.msra.mxu0 %v267
  %801 = vmatpush.msra.mxu0 %v242
  %802 = vmatpush.msra.mxu0 %v217
  %803 = vmatpush.msra.mxu0 %v192
  %804 = vmatpush.msra.mxu0 %v167
  %805 = vmatpush.msra.mxu0 %v142
  %806 = vmatpush.msra.mxu0 %v117
  %807 = vmatpush.msra.mxu0 %v92
  %808 = vmatpush.msra.mxu0 %v67
  %809 = vmatpush.msra.mxu0 %v42
  %810 = vmatmul.f32.gmra.mxu0 %v32
  %v811 = vpop.f32.mrf.mxu0
  %v812 = vadd.f32 0.0, %v811
  %813 = vmatmul.f32.gmra.mxu0 %v34
  %v814 = vpop.f32.mrf.mxu0
  %v815 = vadd.f32 0.0, %v814
  %816 = vdwg.mxu0
  %817 = vmatpush.msra.mxu0 0.0
  %818 = vmatpush.msra.mxu0 0.0
  %819 = vmatpush.msra.mxu0 0.0
  %820 = vmatpush.msra.mxu0 0.0
  %821 = vmatpush.msra.mxu0 0.0
  %822 = vmatpush.msra.mxu0 0.0
  %823 = vmatpush.msra.mxu0 0.0
  %824 = vmatpush.msra.mxu0 0.0
  %825 = vmatpush.msra.mxu0 0.0
  %826 = vmatpush.msra.mxu0 0.0
  %827 = vmatpush.msra.mxu0 0.0
  %828 = vmatpush.msra.mxu0 0.0
  %829 = vmatpush.msra.mxu0 0.0
  %830 = vmatpush.msra.mxu0 %v492
  %831 = vmatpush.msra.mxu0 %v467
  %832 = vmatpush.msra.mxu0 %v442
  %833 = vmatmul.f32.gmra.mxu0 %v513
  %v834 = vpop.f32.mrf.mxu0
  %v835 = vadd.f32 %v812, %v834
  %836 = vmatmul.f32.gmra.mxu0 %v516
  %v837 = vpop.f32.mrf.mxu0
  %v838 = vadd.f32 %v815, %v837
  %839 = vdwg.mxu0
  %840 = vmatpush.msra.mxu0 %v418
  %841 = vmatpush.msra.mxu0 %v393
  %842 = vmatpush.msra.mxu0 %v368
  %843 = vmatpush.msra.mxu0 %v343
  %844 = vmatpush.msra.mxu0 %v318
  %845 = vmatpush.msra.mxu0 %v293
  %846 = vmatpush.msra.mxu0 %v268
  %847 = vmatpush.msra.mxu0 %v243
  %848 = vmatpush.msra.mxu0 %v218
  %849 = vmatpush.msra.mxu0 %v193
  %850 = vmatpush.msra.mxu0 %v168
  %851 = vmatpush.msra.mxu0 %v143
  %852 = vmatpush.msra.mxu0 %v118
  %853 = vmatpush.msra.mxu0 %v93
  %854 = vmatpush.msra.mxu0 %v68
  %855 = vmatpush.msra.mxu0 %v43
  %856 = vmatmul.f32.gmra.mxu0 %v32
  %v857 = vpop.f32.mrf.mxu0
  %v858 = vadd.f32 0.0, %v857
  %859 = vmatmul.f32.gmra.mxu0 %v34
  %v860 = vpop.f32.mrf.mxu0
  %v861 = vadd.f32 0.0, %v860
  %862 = vdwg.mxu0
  %863 = vmatpush.msra.mxu0 0.0
  %864 = vmatpush.msra.mxu0 0.0
  %865 = vmatpush.msra.mxu0 0.0
  %866 = vmatpush.msra.mxu0 0.0
  %867 = vmatpush.msra.mxu0 0.0
  %868 = vmatpush.msra.mxu0 0.0
  %869 = vmatpush.msra.mxu0 0.0
  %870 = vmatpush.msra.mxu0 0.0
  %871 = vmatpush.msra.mxu0 0.0
  %872 = vmatpush.msra.mxu0 0.0
  %873 = vmatpush.msra.mxu0 0.0
  %874 = vmatpush.msra.mxu0 0.0
  %875 = vmatpush.msra.mxu0 0.0
  %876 = vmatpush.msra.mxu0 %v493
  %877 = vmatpush.msra.mxu0 %v468
  %878 = vmatpush.msra.mxu0 %v443
  %879 = vmatmul.f32.gmra.mxu0 %v513
  %v880 = vpop.f32.mrf.mxu0
  %v881 = vadd.f32 %v858, %v880
  %882 = vmatmul.f32.gmra.mxu0 %v516
  %v883 = vpop.f32.mrf.mxu0
  %v884 = vadd.f32 %v861, %v883
  %885 = vdwg.mxu0
  %886 = vmatpush.msra.mxu0 %v419
  %887 = vmatpush.msra.mxu0 %v394
  %888 = vmatpush.msra.mxu0 %v369
  %889 = vmatpush.msra.mxu0 %v344
  %890 = vmatpush.msra.mxu0 %v319
  %891 = vmatpush.msra.mxu0 %v294
  %892 = vmatpush.msra.mxu0 %v269
  %893 = vmatpush.msra.mxu0 %v244
  %894 = vmatpush.msra.mxu0 %v219
  %895 = vmatpush.msra.mxu0 %v194
  %896 = vmatpush.msra.mxu0 %v169
  %897 = vmatpush.msra.mxu0 %v144
  %898 = vmatpush.msra.mxu0 %v119
  %899 = vmatpush.msra.mxu0 %v94
  %900 = vmatpush.msra.mxu0 %v69
  %901 = vmatpush.msra.mxu0 %v44
  %902 = vmatmul.f32.gmra.mxu0 %v32
  %v903 = vpop.f32.mrf.mxu0
  %v904 = vadd.f32 0.0, %v903
  %905 = vmatmul.f32.gmra.mxu0 %v34
  %v906 = vpop.f32.mrf.mxu0
  %v907 = vadd.f32 0.0, %v906
  %908 = vdwg.mxu0
  %909 = vmatpush.msra.mxu0 0.0
  %910 = vmatpush.msra.mxu0 0.0
  %911 = vmatpush.msra.mxu0 0.0
  %912 = vmatpush.msra.mxu0 0.0
  %913 = vmatpush.msra.mxu0 0.0
  %914 = vmatpush.msra.mxu0 0.0
  %915 = vmatpush.msra.mxu0 0.0
  %916 = vmatpush.msra.mxu0 0.0
  %917 = vmatpush.msra.mxu0 0.0
  %918 = vmatpush.msra.mxu0 0.0
  %919 = vmatpush.msra.mxu0 0.0
  %920 = vmatpush.msra.mxu0 0.0
  %921 = vmatpush.msra.mxu0 0.0
  %922 = vmatpush.msra.mxu0 %v494
  %923 = vmatpush.msra.mxu0 %v469
  %924 = vmatpush.msra.mxu0 %v444
  %925 = vmatmul.f32.gmra.mxu0 %v513
  %v926 = vpop.f32.mrf.mxu0
  %v927 = vadd.f32 %v904, %v926
  %928 = vmatmul.f32.gmra.mxu0 %v516
  %v929 = vpop.f32.mrf.mxu0
  %v930 = vadd.f32 %v907, %v929
  %931 = vdwg.mxu0
  %932 = vmatpush.msra.mxu0 %v420
  %933 = vmatpush.msra.mxu0 %v395
  %934 = vmatpush.msra.mxu0 %v370
  %935 = vmatpush.msra.mxu0 %v345
  %936 = vmatpush.msra.mxu0 %v320
  %937 = vmatpush.msra.mxu0 %v295
  %938 = vmatpush.msra.mxu0 %v270
  %939 = vmatpush.msra.mxu0 %v245
  %940 = vmatpush.msra.mxu0 %v220
  %941 = vmatpush.msra.mxu0 %v195
  %942 = vmatpush.msra.mxu0 %v170
  %943 = vmatpush.msra.mxu0 %v145
  %944 = vmatpush.msra.mxu0 %v120
  %945 = vmatpush.msra.mxu0 %v95
  %946 = vmatpush.msra.mxu0 %v70
  %947 = vmatpush.msra.mxu0 %v45
  %948 = vmatmul.f32.gmra.mxu0 %v32
  %v949 = vpop.f32.mrf.mxu0
  %v950 = vadd.f32 0.0, %v949
  %951 = vmatmul.f32.gmra.mxu0 %v34
  %v952 = vpop.f32.mrf.mxu0
  %v953 = vadd.f32 0.0, %v952
  %954 = vdwg.mxu0
  %955 = vmatpush.msra.mxu0 0.0
  %956 = vmatpush.msra.mxu0 0.0
  %957 = vmatpush.msra.mxu0 0.0
  %958 = vmatpush.msra.mxu0 0.0
  %959 = vmatpush.msra.mxu0 0.0
  %960 = vmatpush.msra.mxu0 0.0
  %961 = vmatpush.msra.mxu0 0.0
  %962 = vmatpush.msra.mxu0 0.0
  %963 = vmatpush.msra.mxu0 0.0
  %964 = vmatpush.msra.mxu0 0.0
  %965 = vmatpush.msra.mxu0 0.0
  %966 = vmatpush.msra.mxu0 0.0
  %967 = vmatpush.msra.mxu0 0.0
  %968 = vmatpush.msra.mxu0 %v495
  %969 = vmatpush.msra.mxu0 %v470
  %970 = vmatpush.msra.mxu0 %v445
  %971 = vmatmul.f32.gmra.mxu0 %v513
  %v972 = vpop.f32.mrf.mxu0
  %v973 = vadd.f32 %v950, %v972
  %974 = vmatmul.f32.gmra.mxu0 %v516
  %v975 = vpop.f32.mrf.mxu0
  %v976 = vadd.f32 %v953, %v975
  %977 = vdwg.mxu0
  %978 = vmatpush.msra.mxu0 %v421
  %979 = vmatpush.msra.mxu0 %v396
  %980 = vmatpush.msra.mxu0 %v371
  %981 = vmatpush.msra.mxu0 %v346
  %982 = vmatpush.msra.mxu0 %v321
  %983 = vmatpush.msra.mxu0 %v296
  %984 = vmatpush.msra.mxu0 %v271
  %985 = vmatpush.msra.mxu0 %v246
  %986 = vmatpush.msra.mxu0 %v221
  %987 = vmatpush.msra.mxu0 %v196
  %988 = vmatpush.msra.mxu0 %v171
  %989 = vmatpush.msra.mxu0 %v146
  %990 = vmatpush.msra.mxu0 %v121
  %991 = vmatpush.msra.mxu0 %v96
  %992 = vmatpush.msra.mxu0 %v71
  %993 = vmatpush.msra.mxu0 %v46
  %994 = vmatmul.f32.gmra.mxu0 %v32
  %v995 = vpop.f32.mrf.mxu0
  %v996 = vadd.f32 0.0, %v995
  %997 = vmatmul.f32.gmra.mxu0 %v34
  %v998 = vpop.f32.mrf.mxu0
  %v999 = vadd.f32 0.0, %v998
  %1000 = vdwg.mxu0
  %1001 = vmatpush.msra.mxu0 0.0
  %1002 = vmatpush.msra.mxu0 0.0
  %1003 = vmatpush.msra.mxu0 0.0
  %1004 = vmatpush.msra.mxu0 0.0
  %1005 = vmatpush.msra.mxu0 0.0
  %1006 = vmatpush.msra.mxu0 0.0
  %1007 = vmatpush.msra.mxu0 0.0
  %1008 = vmatpush.msra.mxu0 0.0
  %1009 = vmatpush.msra.mxu0 0.0
  %1010 = vmatpush.msra.mxu0 0.0
  %1011 = vmatpush.msra.mxu0 0.0
  %1012 = vmatpush.msra.mxu0 0.0
  %1013 = vmatpush.msra.mxu0 0.0
  %1014 = vmatpush.msra.mxu0 %v496
  %1015 = vmatpush.msra.mxu0 %v471
  %1016 = vmatpush.msra.mxu0 %v446
  %1017 = vmatmul.f32.gmra.mxu0 %v513
  %v1018 = vpop.f32.mrf.mxu0
  %v1019 = vadd.f32 %v996, %v1018
  %1020 = vmatmul.f32.gmra.mxu0 %v516
  %v1021 = vpop.f32.mrf.mxu0
  %v1022 = vadd.f32 %v999, %v1021
  %1023 = vdwg.mxu0
  %1024 = vmatpush.msra.mxu0 %v422
  %1025 = vmatpush.msra.mxu0 %v397
  %1026 = vmatpush.msra.mxu0 %v372
  %1027 = vmatpush.msra.mxu0 %v347
  %1028 = vmatpush.msra.mxu0 %v322
  %1029 = vmatpush.msra.mxu0 %v297
  %1030 = vmatpush.msra.mxu0 %v272
  %1031 = vmatpush.msra.mxu0 %v247
  %1032 = vmatpush.msra.mxu0 %v222
  %1033 = vmatpush.msra.mxu0 %v197
  %1034 = vmatpush.msra.mxu0 %v172
  %1035 = vmatpush.msra.mxu0 %v147
  %1036 = vmatpush.msra.mxu0 %v122
  %1037 = vmatpush.msra.mxu0 %v97
  %1038 = vmatpush.msra.mxu0 %v72
  %1039 = vmatpush.msra.mxu0 %v47
  %1040 = vmatmul.f32.gmra.mxu0 %v32
  %v1041 = vpop.f32.mrf.mxu0
  %v1042 = vadd.f32 0.0, %v1041
  %1043 = vmatmul.f32.gmra.mxu0 %v34
  %v1044 = vpop.f32.mrf.mxu0
  %v1045 = vadd.f32 0.0, %v1044
  %1046 = vdwg.mxu0
  %1047 = vmatpush.msra.mxu0 0.0
  %1048 = vmatpush.msra.mxu0 0.0
  %1049 = vmatpush.msra.mxu0 0.0
  %1050 = vmatpush.msra.mxu0 0.0
  %1051 = vmatpush.msra.mxu0 0.0
  %1052 = vmatpush.msra.mxu0 0.0
  %1053 = vmatpush.msra.mxu0 0.0
  %1054 = vmatpush.msra.mxu0 0.0
  %1055 = vmatpush.msra.mxu0 0.0
  %1056 = vmatpush.msra.mxu0 0.0
  %1057 = vmatpush.msra.mxu0 0.0
  %1058 = vmatpush.msra.mxu0 0.0
  %1059 = vmatpush.msra.mxu0 0.0
  %1060 = vmatpush.msra.mxu0 %v497
  %1061 = vmatpush.msra.mxu0 %v472
  %1062 = vmatpush.msra.mxu0 %v447
  %1063 = vmatmul.f32.gmra.mxu0 %v513
  %v1064 = vpop.f32.mrf.mxu0
  %v1065 = vadd.f32 %v1042, %v1064
  %1066 = vmatmul.f32.gmra.mxu0 %v516
  %v1067 = vpop.f32.mrf.mxu0
  %v1068 = vadd.f32 %v1045, %v1067
  %1069 = vdwg.mxu0
  %1070 = vmatpush.msra.mxu0 %v423
  %1071 = vmatpush.msra.mxu0 %v398
  %1072 = vmatpush.msra.mxu0 %v373
  %1073 = vmatpush.msra.mxu0 %v348
  %1074 = vmatpush.msra.mxu0 %v323
  %1075 = vmatpush.msra.mxu0 %v298
  %1076 = vmatpush.msra.mxu0 %v273
  %1077 = vmatpush.msra.mxu0 %v248
  %1078 = vmatpush.msra.mxu0 %v223
  %1079 = vmatpush.msra.mxu0 %v198
  %1080 = vmatpush.msra.mxu0 %v173
  %1081 = vmatpush.msra.mxu0 %v148
  %1082 = vmatpush.msra.mxu0 %v123
  %1083 = vmatpush.msra.mxu0 %v98
  %1084 = vmatpush.msra.mxu0 %v73
  %1085 = vmatpush.msra.mxu0 %v48
  %1086 = vmatmul.f32.gmra.mxu0 %v32
  %v1087 = vpop.f32.mrf.mxu0
  %v1088 = vadd.f32 0.0, %v1087
  %1089 = vmatmul.f32.gmra.mxu0 %v34
  %v1090 = vpop.f32.mrf.mxu0
  %v1091 = vadd.f32 0.0, %v1090
  %1092 = vdwg.mxu0
  %1093 = vmatpush.msra.mxu0 0.0
  %1094 = vmatpush.msra.mxu0 0.0
  %1095 = vmatpush.msra.mxu0 0.0
  %1096 = vmatpush.msra.mxu0 0.0
  %1097 = vmatpush.msra.mxu0 0.0
  %1098 = vmatpush.msra.mxu0 0.0
  %1099 = vmatpush.msra.mxu0 0.0
  %1100 = vmatpush.msra.mxu0 0.0
  %1101 = vmatpush.msra.mxu0 0.0
  %1102 = vmatpush.msra.mxu0 0.0
  %1103 = vmatpush.msra.mxu0 0.0
  %1104 = vmatpush.msra.mxu0 0.0
  %1105 = vmatpush.msra.mxu0 0.0
  %1106 = vmatpush.msra.mxu0 %v498
  %1107 = vmatpush.msra.mxu0 %v473
  %1108 = vmatpush.msra.mxu0 %v448
  %1109 = vmatmul.f32.gmra.mxu0 %v513
  %v1110 = vpop.f32.mrf.mxu0
  %v1111 = vadd.f32 %v1088, %v1110
  %1112 = vmatmul.f32.gmra.mxu0 %v516
  %v1113 = vpop.f32.mrf.mxu0
  %v1114 = vadd.f32 %v1091, %v1113
  %1115 = vdwg.mxu0
  %1116 = vmatpush.msra.mxu0 %v424
  %1117 = vmatpush.msra.mxu0 %v399
  %1118 = vmatpush.msra.mxu0 %v374
  %1119 = vmatpush.msra.mxu0 %v349
  %1120 = vmatpush.msra.mxu0 %v324
  %1121 = vmatpush.msra.mxu0 %v299
  %1122 = vmatpush.msra.mxu0 %v274
  %1123 = vmatpush.msra.mxu0 %v249
  %1124 = vmatpush.msra.mxu0 %v224
  %1125 = vmatpush.msra.mxu0 %v199
  %1126 = vmatpush.msra.mxu0 %v174
  %1127 = vmatpush.msra.mxu0 %v149
  %1128 = vmatpush.msra.mxu0 %v124
  %1129 = vmatpush.msra.mxu0 %v99
  %1130 = vmatpush.msra.mxu0 %v74
  %1131 = vmatpush.msra.mxu0 %v49
  %1132 = vmatmul.f32.gmra.mxu0 %v32
  %v1133 = vpop.f32.mrf.mxu0
  %v1134 = vadd.f32 0.0, %v1133
  %1135 = vmatmul.f32.gmra.mxu0 %v34
  %v1136 = vpop.f32.mrf.mxu0
  %v1137 = vadd.f32 0.0, %v1136
  %1138 = vdwg.mxu0
  %1139 = vmatpush.msra.mxu0 0.0
  %1140 = vmatpush.msra.mxu0 0.0
  %1141 = vmatpush.msra.mxu0 0.0
  %1142 = vmatpush.msra.mxu0 0.0
  %1143 = vmatpush.msra.mxu0 0.0
  %1144 = vmatpush.msra.mxu0 0.0
  %1145 = vmatpush.msra.mxu0 0.0
  %1146 = vmatpush.msra.mxu0 0.0
  %1147 = vmatpush.msra.mxu0 0.0
  %1148 = vmatpush.msra.mxu0 0.0
  %1149 = vmatpush.msra.mxu0 0.0
  %1150 = vmatpush.msra.mxu0 0.0
  %1151 = vmatpush.msra.mxu0 0.0
  %1152 = vmatpush.msra.mxu0 %v499
  %1153 = vmatpush.msra.mxu0 %v474
  %1154 = vmatpush.msra.mxu0 %v449
  %1155 = vmatmul.f32.gmra.mxu0 %v513
  %v1156 = vpop.f32.mrf.mxu0
  %v1157 = vadd.f32 %v1134, %v1156
  %1158 = vmatmul.f32.gmra.mxu0 %v516
  %v1159 = vpop.f32.mrf.mxu0
  %v1160 = vadd.f32 %v1137, %v1159
  %1161 = vdwg.mxu0
  %1162 = vmatpush.msra.mxu0 %v425
  %1163 = vmatpush.msra.mxu0 %v400
  %1164 = vmatpush.msra.mxu0 %v375
  %1165 = vmatpush.msra.mxu0 %v350
  %1166 = vmatpush.msra.mxu0 %v325
  %1167 = vmatpush.msra.mxu0 %v300
  %1168 = vmatpush.msra.mxu0 %v275
  %1169 = vmatpush.msra.mxu0 %v250
  %1170 = vmatpush.msra.mxu0 %v225
  %1171 = vmatpush.msra.mxu0 %v200
  %1172 = vmatpush.msra.mxu0 %v175
  %1173 = vmatpush.msra.mxu0 %v150
  %1174 = vmatpush.msra.mxu0 %v125
  %1175 = vmatpush.msra.mxu0 %v100
  %1176 = vmatpush.msra.mxu0 %v75
  %1177 = vmatpush.msra.mxu0 %v50
  %1178 = vmatmul.f32.gmra.mxu0 %v32
  %v1179 = vpop.f32.mrf.mxu0
  %v1180 = vadd.f32 0.0, %v1179
  %1181 = vmatmul.f32.gmra.mxu0 %v34
  %v1182 = vpop.f32.mrf.mxu0
  %v1183 = vadd.f32 0.0, %v1182
  %1184 = vdwg.mxu0
  %1185 = vmatpush.msra.mxu0 0.0
  %1186 = vmatpush.msra.mxu0 0.0
  %1187 = vmatpush.msra.mxu0 0.0
  %1188 = vmatpush.msra.mxu0 0.0
  %1189 = vmatpush.msra.mxu0 0.0
  %1190 = vmatpush.msra.mxu0 0.0
  %1191 = vmatpush.msra.mxu0 0.0
  %1192 = vmatpush.msra.mxu0 0.0
  %1193 = vmatpush.msra.mxu0 0.0
  %1194 = vmatpush.msra.mxu0 0.0
  %1195 = vmatpush.msra.mxu0 0.0
  %1196 = vmatpush.msra.mxu0 0.0
  %1197 = vmatpush.msra.mxu0 0.0
  %1198 = vmatpush.msra.mxu0 %v500
  %1199 = vmatpush.msra.mxu0 %v475
  %1200 = vmatpush.msra.mxu0 %v450
  %1201 = vmatmul.f32.gmra.mxu0 %v513
  %v1202 = vpop.f32.mrf.mxu0
  %v1203 = vadd.f32 %v1180, %v1202
  %1204 = vmatmul.f32.gmra.mxu0 %v516
  %v1205 = vpop.f32.mrf.mxu0
  %v1206 = vadd.f32 %v1183, %v1205
  %1207 = vdwg.mxu0
  %1208 = vmatpush.msra.mxu0 %v426
  %1209 = vmatpush.msra.mxu0 %v401
  %1210 = vmatpush.msra.mxu0 %v376
  %1211 = vmatpush.msra.mxu0 %v351
  %1212 = vmatpush.msra.mxu0 %v326
  %1213 = vmatpush.msra.mxu0 %v301
  %1214 = vmatpush.msra.mxu0 %v276
  %1215 = vmatpush.msra.mxu0 %v251
  %1216 = vmatpush.msra.mxu0 %v226
  %1217 = vmatpush.msra.mxu0 %v201
  %1218 = vmatpush.msra.mxu0 %v176
  %1219 = vmatpush.msra.mxu0 %v151
  %1220 = vmatpush.msra.mxu0 %v126
  %1221 = vmatpush.msra.mxu0 %v101
  %1222 = vmatpush.msra.mxu0 %v76
  %1223 = vmatpush.msra.mxu0 %v51
  %1224 = vmatmul.f32.gmra.mxu0 %v32
  %v1225 = vpop.f32.mrf.mxu0
  %v1226 = vadd.f32 0.0, %v1225
  %1227 = vmatmul.f32.gmra.mxu0 %v34
  %v1228 = vpop.f32.mrf.mxu0
  %v1229 = vadd.f32 0.0, %v1228
  %1230 = vdwg.mxu0
  %1231 = vmatpush.msra.mxu0 0.0
  %1232 = vmatpush.msra.mxu0 0.0
  %1233 = vmatpush.msra.mxu0 0.0
  %1234 = vmatpush.msra.mxu0 0.0
  %1235 = vmatpush.msra.mxu0 0.0
  %1236 = vmatpush.msra.mxu0 0.0
  %1237 = vmatpush.msra.mxu0 0.0
  %1238 = vmatpush.msra.mxu0 0.0
  %1239 = vmatpush.msra.mxu0 0.0
  %1240 = vmatpush.msra.mxu0 0.0
  %1241 = vmatpush.msra.mxu0 0.0
  %1242 = vmatpush.msra.mxu0 0.0
  %1243 = vmatpush.msra.mxu0 0.0
  %1244 = vmatpush.msra.mxu0 %v501
  %1245 = vmatpush.msra.mxu0 %v476
  %1246 = vmatpush.msra.mxu0 %v451
  %1247 = vmatmul.f32.gmra.mxu0 %v513
  %v1248 = vpop.f32.mrf.mxu0
  %v1249 = vadd.f32 %v1226, %v1248
  %1250 = vmatmul.f32.gmra.mxu0 %v516
  %v1251 = vpop.f32.mrf.mxu0
  %v1252 = vadd.f32 %v1229, %v1251
  %1253 = vdwg.mxu0
  %1254 = vmatpush.msra.mxu0 %v427
  %1255 = vmatpush.msra.mxu0 %v402
  %1256 = vmatpush.msra.mxu0 %v377
  %1257 = vmatpush.msra.mxu0 %v352
  %1258 = vmatpush.msra.mxu0 %v327
  %1259 = vmatpush.msra.mxu0 %v302
  %1260 = vmatpush.msra.mxu0 %v277
  %1261 = vmatpush.msra.mxu0 %v252
  %1262 = vmatpush.msra.mxu0 %v227
  %1263 = vmatpush.msra.mxu0 %v202
  %1264 = vmatpush.msra.mxu0 %v177
  %1265 = vmatpush.msra.mxu0 %v152
  %1266 = vmatpush.msra.mxu0 %v127
  %1267 = vmatpush.msra.mxu0 %v102
  %1268 = vmatpush.msra.mxu0 %v77
  %1269 = vmatpush.msra.mxu0 %v52
  %1270 = vmatmul.f32.gmra.mxu0 %v32
  %v1271 = vpop.f32.mrf.mxu0
  %v1272 = vadd.f32 0.0, %v1271
  %1273 = vmatmul.f32.gmra.mxu0 %v34
  %v1274 = vpop.f32.mrf.mxu0
  %v1275 = vadd.f32 0.0, %v1274
  %1276 = vdwg.mxu0
  %1277 = vmatpush.msra.mxu0 0.0
  %1278 = vmatpush.msra.mxu0 0.0
  %1279 = vmatpush.msra.mxu0 0.0
  %1280 = vmatpush.msra.mxu0 0.0
  %1281 = vmatpush.msra.mxu0 0.0
  %1282 = vmatpush.msra.mxu0 0.0
  %1283 = vmatpush.msra.mxu0 0.0
  %1284 = vmatpush.msra.mxu0 0.0
  %1285 = vmatpush.msra.mxu0 0.0
  %1286 = vmatpush.msra.mxu0 0.0
  %1287 = vmatpush.msra.mxu0 0.0
  %1288 = vmatpush.msra.mxu0 0.0
  %1289 = vmatpush.msra.mxu0 0.0
  %1290 = vmatpush.msra.mxu0 %v502
  %1291 = vmatpush.msra.mxu0 %v477
  %1292 = vmatpush.msra.mxu0 %v452
  %1293 = vmatmul.f32.gmra.mxu0 %v513
  %v1294 = vpop.f32.mrf.mxu0
  %v1295 = vadd.f32 %v1272, %v1294
  %1296 = vmatmul.f32.gmra.mxu0 %v516
  %v1297 = vpop.f32.mrf.mxu0
  %v1298 = vadd.f32 %v1275, %v1297
  %1299 = vdwg.mxu0
  %1300 = vmatpush.msra.mxu0 %v428
  %1301 = vmatpush.msra.mxu0 %v403
  %1302 = vmatpush.msra.mxu0 %v378
  %1303 = vmatpush.msra.mxu0 %v353
  %1304 = vmatpush.msra.mxu0 %v328
  %1305 = vmatpush.msra.mxu0 %v303
  %1306 = vmatpush.msra.mxu0 %v278
  %1307 = vmatpush.msra.mxu0 %v253
  %1308 = vmatpush.msra.mxu0 %v228
  %1309 = vmatpush.msra.mxu0 %v203
  %1310 = vmatpush.msra.mxu0 %v178
  %1311 = vmatpush.msra.mxu0 %v153
  %1312 = vmatpush.msra.mxu0 %v128
  %1313 = vmatpush.msra.mxu0 %v103
  %1314 = vmatpush.msra.mxu0 %v78
  %1315 = vmatpush.msra.mxu0 %v53
  %1316 = vmatmul.f32.gmra.mxu0 %v32
  %v1317 = vpop.f32.mrf.mxu0
  %v1318 = vadd.f32 0.0, %v1317
  %1319 = vmatmul.f32.gmra.mxu0 %v34
  %v1320 = vpop.f32.mrf.mxu0
  %v1321 = vadd.f32 0.0, %v1320
  %1322 = vdwg.mxu0
  %1323 = vmatpush.msra.mxu0 0.0
  %1324 = vmatpush.msra.mxu0 0.0
  %1325 = vmatpush.msra.mxu0 0.0
  %1326 = vmatpush.msra.mxu0 0.0
  %1327 = vmatpush.msra.mxu0 0.0
  %1328 = vmatpush.msra.mxu0 0.0
  %1329 = vmatpush.msra.mxu0 0.0
  %1330 = vmatpush.msra.mxu0 0.0
  %1331 = vmatpush.msra.mxu0 0.0
  %1332 = vmatpush.msra.mxu0 0.0
  %1333 = vmatpush.msra.mxu0 0.0
  %1334 = vmatpush.msra.mxu0 0.0
  %1335 = vmatpush.msra.mxu0 0.0
  %1336 = vmatpush.msra.mxu0 %v503
  %1337 = vmatpush.msra.mxu0 %v478
  %1338 = vmatpush.msra.mxu0 %v453
  %1339 = vmatmul.f32.gmra.mxu0 %v513
  %v1340 = vpop.f32.mrf.mxu0
  %v1341 = vadd.f32 %v1318, %v1340
  %1342 = vmatmul.f32.gmra.mxu0 %v516
  %v1343 = vpop.f32.mrf.mxu0
  %v1344 = vadd.f32 %v1321, %v1343
  %1345 = vdwg.mxu0
  %1346 = vmatpush.msra.mxu0 %v429
  %1347 = vmatpush.msra.mxu0 %v404
  %1348 = vmatpush.msra.mxu0 %v379
  %1349 = vmatpush.msra.mxu0 %v354
  %1350 = vmatpush.msra.mxu0 %v329
  %1351 = vmatpush.msra.mxu0 %v304
  %1352 = vmatpush.msra.mxu0 %v279
  %1353 = vmatpush.msra.mxu0 %v254
  %1354 = vmatpush.msra.mxu0 %v229
  %1355 = vmatpush.msra.mxu0 %v204
  %1356 = vmatpush.msra.mxu0 %v179
  %1357 = vmatpush.msra.mxu0 %v154
  %1358 = vmatpush.msra.mxu0 %v129
  %1359 = vmatpush.msra.mxu0 %v104
  %1360 = vmatpush.msra.mxu0 %v79
  %1361 = vmatpush.msra.mxu0 %v54
  %1362 = vmatmul.f32.gmra.mxu0 %v32
  %v1363 = vpop.f32.mrf.mxu0
  %v1364 = vadd.f32 0.0, %v1363
  %1365 = vmatmul.f32.gmra.mxu0 %v34
  %v1366 = vpop.f32.mrf.mxu0
  %v1367 = vadd.f32 0.0, %v1366
  %1368 = vdwg.mxu0
  %1369 = vmatpush.msra.mxu0 0.0
  %1370 = vmatpush.msra.mxu0 0.0
  %1371 = vmatpush.msra.mxu0 0.0
  %1372 = vmatpush.msra.mxu0 0.0
  %1373 = vmatpush.msra.mxu0 0.0
  %1374 = vmatpush.msra.mxu0 0.0
  %1375 = vmatpush.msra.mxu0 0.0
  %1376 = vmatpush.msra.mxu0 0.0
  %1377 = vmatpush.msra.mxu0 0.0
  %1378 = vmatpush.msra.mxu0 0.0
  %1379 = vmatpush.msra.mxu0 0.0
  %1380 = vmatpush.msra.mxu0 0.0
  %1381 = vmatpush.msra.mxu0 0.0
  %1382 = vmatpush.msra.mxu0 %v504
  %1383 = vmatpush.msra.mxu0 %v479
  %1384 = vmatpush.msra.mxu0 %v454
  %1385 = vmatmul.f32.gmra.mxu0 %v513
  %v1386 = vpop.f32.mrf.mxu0
  %v1387 = vadd.f32 %v1364, %v1386
  %1388 = vmatmul.f32.gmra.mxu0 %v516
  %v1389 = vpop.f32.mrf.mxu0
  %v1390 = vadd.f32 %v1367, %v1389
  %1391 = vdwg.mxu0
  %1392 = vmatpush.msra.mxu0 %v430
  %1393 = vmatpush.msra.mxu0 %v405
  %1394 = vmatpush.msra.mxu0 %v380
  %1395 = vmatpush.msra.mxu0 %v355
  %1396 = vmatpush.msra.mxu0 %v330
  %1397 = vmatpush.msra.mxu0 %v305
  %1398 = vmatpush.msra.mxu0 %v280
  %1399 = vmatpush.msra.mxu0 %v255
  %1400 = vmatpush.msra.mxu0 %v230
  %1401 = vmatpush.msra.mxu0 %v205
  %1402 = vmatpush.msra.mxu0 %v180
  %1403 = vmatpush.msra.mxu0 %v155
  %1404 = vmatpush.msra.mxu0 %v130
  %1405 = vmatpush.msra.mxu0 %v105
  %1406 = vmatpush.msra.mxu0 %v80
  %1407 = vmatpush.msra.mxu0 %v55
  %1408 = vmatmul.f32.gmra.mxu0 %v32
  %v1409 = vpop.f32.mrf.mxu0
  %v1410 = vadd.f32 0.0, %v1409
  %1411 = vmatmul.f32.gmra.mxu0 %v34
  %v1412 = vpop.f32.mrf.mxu0
  %v1413 = vadd.f32 0.0, %v1412
  %1414 = vdwg.mxu0
  %1415 = vmatpush.msra.mxu0 0.0
  %1416 = vmatpush.msra.mxu0 0.0
  %1417 = vmatpush.msra.mxu0 0.0
  %1418 = vmatpush.msra.mxu0 0.0
  %1419 = vmatpush.msra.mxu0 0.0
  %1420 = vmatpush.msra.mxu0 0.0
  %1421 = vmatpush.msra.mxu0 0.0
  %1422 = vmatpush.msra.mxu0 0.0
  %1423 = vmatpush.msra.mxu0 0.0
  %1424 = vmatpush.msra.mxu0 0.0
  %1425 = vmatpush.msra.mxu0 0.0
  %1426 = vmatpush.msra.mxu0 0.0
  %1427 = vmatpush.msra.mxu0 0.0
  %1428 = vmatpush.msra.mxu0 %v505
  %1429 = vmatpush.msra.mxu0 %v480
  %1430 = vmatpush.msra.mxu0 %v455
  %1431 = vmatmul.f32.gmra.mxu0 %v513
  %v1432 = vpop.f32.mrf.mxu0
  %v1433 = vadd.f32 %v1410, %v1432
  %1434 = vmatmul.f32.gmra.mxu0 %v516
  %v1435 = vpop.f32.mrf.mxu0
  %v1436 = vadd.f32 %v1413, %v1435
  %1437 = vdwg.mxu0
  %1438 = vmatpush.msra.mxu0 %v431
  %1439 = vmatpush.msra.mxu0 %v406
  %1440 = vmatpush.msra.mxu0 %v381
  %1441 = vmatpush.msra.mxu0 %v356
  %1442 = vmatpush.msra.mxu0 %v331
  %1443 = vmatpush.msra.mxu0 %v306
  %1444 = vmatpush.msra.mxu0 %v281
  %1445 = vmatpush.msra.mxu0 %v256
  %1446 = vmatpush.msra.mxu0 %v231
  %1447 = vmatpush.msra.mxu0 %v206
  %1448 = vmatpush.msra.mxu0 %v181
  %1449 = vmatpush.msra.mxu0 %v156
  %1450 = vmatpush.msra.mxu0 %v131
  %1451 = vmatpush.msra.mxu0 %v106
  %1452 = vmatpush.msra.mxu0 %v81
  %1453 = vmatpush.msra.mxu0 %v56
  %1454 = vmatmul.f32.gmra.mxu0 %v32
  %v1455 = vpop.f32.mrf.mxu0
  %v1456 = vadd.f32 0.0, %v1455
  %1457 = vmatmul.f32.gmra.mxu0 %v34
  %v1458 = vpop.f32.mrf.mxu0
  %v1459 = vadd.f32 0.0, %v1458
  %1460 = vdwg.mxu0
  %1461 = vmatpush.msra.mxu0 0.0
  %1462 = vmatpush.msra.mxu0 0.0
  %1463 = vmatpush.msra.mxu0 0.0
  %1464 = vmatpush.msra.mxu0 0.0
  %1465 = vmatpush.msra.mxu0 0.0
  %1466 = vmatpush.msra.mxu0 0.0
  %1467 = vmatpush.msra.mxu0 0.0
  %1468 = vmatpush.msra.mxu0 0.0
  %1469 = vmatpush.msra.mxu0 0.0
  %1470 = vmatpush.msra.mxu0 0.0
  %1471 = vmatpush.msra.mxu0 0.0
  %1472 = vmatpush.msra.mxu0 0.0
  %1473 = vmatpush.msra.mxu0 0.0
  %1474 = vmatpush.msra.mxu0 %v506
  %1475 = vmatpush.msra.mxu0 %v481
  %1476 = vmatpush.msra.mxu0 %v456
  %1477 = vmatmul.f32.gmra.mxu0 %v513
  %v1478 = vpop.f32.mrf.mxu0
  %v1479 = vadd.f32 %v1456, %v1478
  %1480 = vmatmul.f32.gmra.mxu0 %v516
  %v1481 = vpop.f32.mrf.mxu0
  %v1482 = vadd.f32 %v1459, %v1481
  %1483 = vdwg.mxu0
  %1484 = vmatpush.msra.mxu0 %v432
  %1485 = vmatpush.msra.mxu0 %v407
  %1486 = vmatpush.msra.mxu0 %v382
  %1487 = vmatpush.msra.mxu0 %v357
  %1488 = vmatpush.msra.mxu0 %v332
  %1489 = vmatpush.msra.mxu0 %v307
  %1490 = vmatpush.msra.mxu0 %v282
  %1491 = vmatpush.msra.mxu0 %v257
  %1492 = vmatpush.msra.mxu0 %v232
  %1493 = vmatpush.msra.mxu0 %v207
  %1494 = vmatpush.msra.mxu0 %v182
  %1495 = vmatpush.msra.mxu0 %v157
  %1496 = vmatpush.msra.mxu0 %v132
  %1497 = vmatpush.msra.mxu0 %v107
  %1498 = vmatpush.msra.mxu0 %v82
  %1499 = vmatpush.msra.mxu0 %v57
  %1500 = vmatmul.f32.gmra.mxu0 %v32
  %v1501 = vpop.f32.mrf.mxu0
  %v1502 = vadd.f32 0.0, %v1501
  %1503 = vmatmul.f32.gmra.mxu0 %v34
  %v1504 = vpop.f32.mrf.mxu0
  %v1505 = vadd.f32 0.0, %v1504
  %1506 = vdwg.mxu0
  %1507 = vmatpush.msra.mxu0 0.0
  %1508 = vmatpush.msra.mxu0 0.0
  %1509 = vmatpush.msra.mxu0 0.0
  %1510 = vmatpush.msra.mxu0 0.0
  %1511 = vmatpush.msra.mxu0 0.0
  %1512 = vmatpush.msra.mxu0 0.0
  %1513 = vmatpush.msra.mxu0 0.0
  %1514 = vmatpush.msra.mxu0 0.0
  %1515 = vmatpush.msra.mxu0 0.0
  %1516 = vmatpush.msra.mxu0 0.0
  %1517 = vmatpush.msra.mxu0 0.0
  %1518 = vmatpush.msra.mxu0 0.0
  %1519 = vmatpush.msra.mxu0 0.0
  %1520 = vmatpush.msra.mxu0 %v507
  %1521 = vmatpush.msra.mxu0 %v482
  %1522 = vmatpush.msra.mxu0 %v457
  %1523 = vmatmul.f32.gmra.mxu0 %v513
  %v1524 = vpop.f32.mrf.mxu0
  %v1525 = vadd.f32 %v1502, %v1524
  %1526 = vmatmul.f32.gmra.mxu0 %v516
  %v1527 = vpop.f32.mrf.mxu0
  %v1528 = vadd.f32 %v1505, %v1527
  %1529 = vdwg.mxu0
  %1530 = vmatpush.msra.mxu0 %v433
  %1531 = vmatpush.msra.mxu0 %v408
  %1532 = vmatpush.msra.mxu0 %v383
  %1533 = vmatpush.msra.mxu0 %v358
  %1534 = vmatpush.msra.mxu0 %v333
  %1535 = vmatpush.msra.mxu0 %v308
  %1536 = vmatpush.msra.mxu0 %v283
  %1537 = vmatpush.msra.mxu0 %v258
  %1538 = vmatpush.msra.mxu0 %v233
  %1539 = vmatpush.msra.mxu0 %v208
  %1540 = vmatpush.msra.mxu0 %v183
  %1541 = vmatpush.msra.mxu0 %v158
  %1542 = vmatpush.msra.mxu0 %v133
  %1543 = vmatpush.msra.mxu0 %v108
  %1544 = vmatpush.msra.mxu0 %v83
  %1545 = vmatpush.msra.mxu0 %v58
  %1546 = vmatmul.f32.gmra.mxu0 %v32
  %v1547 = vpop.f32.mrf.mxu0
  %v1548 = vadd.f32 0.0, %v1547
  %1549 = vmatmul.f32.gmra.mxu0 %v34
  %v1550 = vpop.f32.mrf.mxu0
  %v1551 = vadd.f32 0.0, %v1550
  %1552 = vdwg.mxu0
  %1553 = vmatpush.msra.mxu0 0.0
  %1554 = vmatpush.msra.mxu0 0.0
  %1555 = vmatpush.msra.mxu0 0.0
  %1556 = vmatpush.msra.mxu0 0.0
  %1557 = vmatpush.msra.mxu0 0.0
  %1558 = vmatpush.msra.mxu0 0.0
  %1559 = vmatpush.msra.mxu0 0.0
  %1560 = vmatpush.msra.mxu0 0.0
  %1561 = vmatpush.msra.mxu0 0.0
  %1562 = vmatpush.msra.mxu0 0.0
  %1563 = vmatpush.msra.mxu0 0.0
  %1564 = vmatpush.msra.mxu0 0.0
  %1565 = vmatpush.msra.mxu0 0.0
  %1566 = vmatpush.msra.mxu0 %v508
  %1567 = vmatpush.msra.mxu0 %v483
  %1568 = vmatpush.msra.mxu0 %v458
  %1569 = vmatmul.f32.gmra.mxu0 %v513
  %v1570 = vpop.f32.mrf.mxu0
  %v1571 = vadd.f32 %v1548, %v1570
  %1572 = vmatmul.f32.gmra.mxu0 %v516
  %v1573 = vpop.f32.mrf.mxu0
  %v1574 = vadd.f32 %v1551, %v1573
  %1575 = vdwg.mxu0
  %1576 = vmatpush.msra.mxu0 %v434
  %1577 = vmatpush.msra.mxu0 %v409
  %1578 = vmatpush.msra.mxu0 %v384
  %1579 = vmatpush.msra.mxu0 %v359
  %1580 = vmatpush.msra.mxu0 %v334
  %1581 = vmatpush.msra.mxu0 %v309
  %1582 = vmatpush.msra.mxu0 %v284
  %1583 = vmatpush.msra.mxu0 %v259
  %1584 = vmatpush.msra.mxu0 %v234
  %1585 = vmatpush.msra.mxu0 %v209
  %1586 = vmatpush.msra.mxu0 %v184
  %1587 = vmatpush.msra.mxu0 %v159
  %1588 = vmatpush.msra.mxu0 %v134
  %1589 = vmatpush.msra.mxu0 %v109
  %1590 = vmatpush.msra.mxu0 %v84
  %1591 = vmatpush.msra.mxu0 %v59
  %1592 = vmatmul.f32.gmra.mxu0 %v32
  %v1593 = vpop.f32.mrf.mxu0
  %v1594 = vadd.f32 0.0, %v1593
  %1595 = vmatmul.f32.gmra.mxu0 %v34
  %v1596 = vpop.f32.mrf.mxu0
  %v1597 = vadd.f32 0.0, %v1596
  %1598 = vdwg.mxu0
  %1599 = vmatpush.msra.mxu0 0.0
  %1600 = vmatpush.msra.mxu0 0.0
  %1601 = vmatpush.msra.mxu0 0.0
  %1602 = vmatpush.msra.mxu0 0.0
  %1603 = vmatpush.msra.mxu0 0.0
  %1604 = vmatpush.msra.mxu0 0.0
  %1605 = vmatpush.msra.mxu0 0.0
  %1606 = vmatpush.msra.mxu0 0.0
  %1607 = vmatpush.msra.mxu0 0.0
  %1608 = vmatpush.msra.mxu0 0.0
  %1609 = vmatpush.msra.mxu0 0.0
  %1610 = vmatpush.msra.mxu0 0.0
  %1611 = vmatpush.msra.mxu0 0.0
  %1612 = vmatpush.msra.mxu0 %v509
  %1613 = vmatpush.msra.mxu0 %v484
  %1614 = vmatpush.msra.mxu0 %v459
  %1615 = vmatmul.f32.gmra.mxu0 %v513
  %v1616 = vpop.f32.mrf.mxu0
  %v1617 = vadd.f32 %v1594, %v1616
  %1618 = vmatmul.f32.gmra.mxu0 %v516
  %v1619 = vpop.f32.mrf.mxu0
  %v1620 = vadd.f32 %v1597, %v1619
  %1621 = vdwg.mxu0
  %1622 = vmatpush.msra.mxu0 %v435
  %1623 = vmatpush.msra.mxu0 %v410
  %1624 = vmatpush.msra.mxu0 %v385
  %1625 = vmatpush.msra.mxu0 %v360
  %1626 = vmatpush.msra.mxu0 %v335
  %1627 = vmatpush.msra.mxu0 %v310
  %1628 = vmatpush.msra.mxu0 %v285
  %1629 = vmatpush.msra.mxu0 %v260
  %1630 = vmatpush.msra.mxu0 %v235
  %1631 = vmatpush.msra.mxu0 %v210
  %1632 = vmatpush.msra.mxu0 %v185
  %1633 = vmatpush.msra.mxu0 %v160
  %1634 = vmatpush.msra.mxu0 %v135
  %1635 = vmatpush.msra.mxu0 %v110
  %1636 = vmatpush.msra.mxu0 %v85
  %1637 = vmatpush.msra.mxu0 %v60
  %1638 = vmatmul.f32.gmra.mxu0 %v32
  %v1639 = vpop.f32.mrf.mxu0
  %v1640 = vadd.f32 0.0, %v1639
  %1641 = vmatmul.f32.gmra.mxu0 %v34
  %v1642 = vpop.f32.mrf.mxu0
  %v1643 = vadd.f32 0.0, %v1642
  %1644 = vdwg.mxu0
  %1645 = vmatpush.msra.mxu0 0.0
  %1646 = vmatpush.msra.mxu0 0.0
  %1647 = vmatpush.msra.mxu0 0.0
  %1648 = vmatpush.msra.mxu0 0.0
  %1649 = vmatpush.msra.mxu0 0.0
  %1650 = vmatpush.msra.mxu0 0.0
  %1651 = vmatpush.msra.mxu0 0.0
  %1652 = vmatpush.msra.mxu0 0.0
  %1653 = vmatpush.msra.mxu0 0.0
  %1654 = vmatpush.msra.mxu0 0.0
  %1655 = vmatpush.msra.mxu0 0.0
  %1656 = vmatpush.msra.mxu0 0.0
  %1657 = vmatpush.msra.mxu0 0.0
  %1658 = vmatpush.msra.mxu0 %v510
  %1659 = vmatpush.msra.mxu0 %v485
  %1660 = vmatpush.msra.mxu0 %v460
  %1661 = vmatmul.f32.gmra.mxu0 %v513
  %v1662 = vpop.f32.mrf.mxu0
  %v1663 = vadd.f32 %v1640, %v1662
  %1664 = vmatmul.f32.gmra.mxu0 %v516
  %v1665 = vpop.f32.mrf.mxu0
  %v1666 = vadd.f32 %v1643, %v1665
  %1667 = vdwg.mxu0
  %s1668 = scalar_lea.vmem %s0, 3800
  %v1669 = vld [vmem:[%s1668] sm:$0xff]
  %v1670 = vld [vmem:[%s1668 + $0x8] sm:$0xff]
  %v1671 = vld [vmem:[%s1668 + $0x10] sm:$0xff]
  %v1672 = vld [vmem:[%s1668 + $0x18] sm:$0xff]
  %v1673 = vld [vmem:[%s1668 + $0x20] sm:$0xff]
  %v1674 = vld [vmem:[%s1668 + $0x28] sm:$0xff]
  %v1675 = vld [vmem:[%s1668 + $0x30] sm:$0xff]
  %v1676 = vld [vmem:[%s1668 + $0x38] sm:$0xff]
  %v1677 = vld [vmem:[%s1668 + $0x40] sm:$0xff]
  %v1678 = vld [vmem:[%s1668 + $0x48] sm:$0xff]
  %v1679 = vld [vmem:[%s1668 + $0x50] sm:$0xff]
  %v1680 = vld [vmem:[%s1668 + $0x58] sm:$0xff]
  %v1681 = vld [vmem:[%s1668 + $0x60] sm:$0xff]
  %v1682 = vld [vmem:[%s1668 + $0x68] sm:$0xff]
  %v1683 = vld [vmem:[%s1668 + $0x70] sm:$0xff]
  %v1684 = vld [vmem:[%s1668 + $0x78] sm:$0xff]
  %v1685 = vld [vmem:[%s1668 + $0x80] sm:$0xff]
  %v1686 = vld [vmem:[%s1668 + $0x88] sm:$0xff]
  %v1687 = vld [vmem:[%s1668 + $0x90] sm:$0xff]
  %v1688 = vld [vmem:[%s1668 + $0x98] sm:$0xff]
  %v1689 = vld [vmem:[%s1668 + $0xa0] sm:$0xff]
  %v1690 = vld [vmem:[%s1668 + $0xa8] sm:$0xff]
  %v1691 = vld [vmem:[%s1668 + $0xb0] sm:$0xff]
  %v1692 = vld [vmem:[%s1668 + $0xb8] sm:$0xff]
  %v1693 = vld [vmem:[%s1668 + $0xc0] sm:$0xff]
  %v1694 = vld [vmem:[%s1668 + $0xc8] sm:$0xff]
  %v1695 = vld [vmem:[%s1668 + $0xd0] sm:$0xff]
  %v1696 = vld [vmem:[%s1668 + $0xd8] sm:$0xff]
  %v1697 = vld [vmem:[%s1668 + $0xe0] sm:$0xff]
  %v1698 = vld [vmem:[%s1668 + $0xe8] sm:$0xff]
  %v1699 = vld [vmem:[%s1668 + $0xf0] sm:$0xff]
  %v1700 = vld [vmem:[%s1668 + $0xf8] sm:$0xff]
  %v1701 = vld [vmem:[%s1668 + $0x100] sm:$0xff]
  %v1702 = vld [vmem:[%s1668 + $0x108] sm:$0xff]
  %v1703 = vld [vmem:[%s1668 + $0x110] sm:$0xff]
  %v1704 = vld [vmem:[%s1668 + $0x118] sm:$0xff]
  %v1705 = vld [vmem:[%s1668 + $0x120] sm:$0xff]
  %v1706 = vld [vmem:[%s1668 + $0x128] sm:$0xff]
  %v1707 = vld [vmem:[%s1668 + $0x130] sm:$0xff]
  %v1708 = vld [vmem:[%s1668 + $0x138] sm:$0xff]
  %v1709 = vld [vmem:[%s1668 + $0x140] sm:$0xff]
  %v1710 = vld [vmem:[%s1668 + $0x148] sm:$0xff]
  %v1711 = vld [vmem:[%s1668 + $0x150] sm:$0xff]
  %v1712 = vld [vmem:[%s1668 + $0x158] sm:$0xff]
  %v1713 = vld [vmem:[%s1668 + $0x160] sm:$0xff]
  %v1714 = vld [vmem:[%s1668 + $0x168] sm:$0xff]
  %v1715 = vld [vmem:[%s1668 + $0x170] sm:$0xff]
  %v1716 = vld [vmem:[%s1668 + $0x178] sm:$0xff]
  %v1717 = vld [vmem:[%s1668 + $0x180] sm:$0xff]
  %v1718 = vld [vmem:[%s1668 + $0x188] sm:$0xff]
  %v1719 = vld [vmem:[%s1668 + $0x190] sm:$0xff]
  %v1720 = vld [vmem:[%s1668 + $0x198] sm:$0xff]
  %v1721 = vld [vmem:[%s1668 + $0x1a0] sm:$0xff]
  %v1722 = vld [vmem:[%s1668 + $0x1a8] sm:$0xff]
  %v1723 = vld [vmem:[%s1668 + $0x1b0] sm:$0xff]
  %v1724 = vld [vmem:[%s1668 + $0x1b8] sm:$0xff]
  %v1725 = vld [vmem:[%s1668 + $0x1c0] sm:$0xff]
  %v1726 = vld [vmem:[%s1668 + $0x1c8] sm:$0xff]
  %v1727 = vld [vmem:[%s1668 + $0x1d0] sm:$0xff]
  %v1728 = vld [vmem:[%s1668 + $0x1d8] sm:$0xff]
  %v1729 = vld [vmem:[%s1668 + $0x1e0] sm:$0xff]
  %v1730 = vld [vmem:[%s1668 + $0x1e8] sm:$0xff]
  %v1731 = vld [vmem:[%s1668 + $0x1f0] sm:$0xff]
  %v1732 = vld [vmem:[%s1668 + $0x1f8] sm:$0xff]
  %v1733 = vld [vmem:[%s1668 + $0x200] sm:$0xff]
  %v1734 = vld [vmem:[%s1668 + $0x208] sm:$0xff]
  %v1735 = vld [vmem:[%s1668 + $0x210] sm:$0xff]
  %v1736 = vld [vmem:[%s1668 + $0x218] sm:$0xff]
  %v1737 = vld [vmem:[%s1668 + $0x220] sm:$0xff]
  %v1738 = vld [vmem:[%s1668 + $0x228] sm:$0xff]
  %v1739 = vld [vmem:[%s1668 + $0x230] sm:$0xff]
  %v1740 = vld [vmem:[%s1668 + $0x238] sm:$0xff]
  %v1741 = vld [vmem:[%s1668 + $0x240] sm:$0xff]
  %v1742 = vld [vmem:[%s1668 + $0x248] sm:$0xff]
  %v1743 = vld [vmem:[%s1668 + $0x250] sm:$0xff]
  %v1744 = vld [vmem:[%s1668 + $0x258] sm:$0xff]
  %v1745 = vld [vmem:[%s1668 + $0x260] sm:$0xff]
  %v1746 = vld [vmem:[%s1668 + $0x268] sm:$0xff]
  %v1747 = vld [vmem:[%s1668 + $0x270] sm:$0xff]
  %v1748 = vld [vmem:[%s1668 + $0x278] sm:$0xff]
  %v1749 = vld [vmem:[%s1668 + $0x280] sm:$0xff]
  %v1750 = vld [vmem:[%s1668 + $0x288] sm:$0xff]
  %v1751 = vld [vmem:[%s1668 + $0x290] sm:$0xff]
  %v1752 = vld [vmem:[%s1668 + $0x298] sm:$0xff]
  %v1753 = vld [vmem:[%s1668 + $0x2a0] sm:$0xff]
  %v1754 = vld [vmem:[%s1668 + $0x2a8] sm:$0xff]
  %v1755 = vld [vmem:[%s1668 + $0x2b0] sm:$0xff]
  %v1756 = vld [vmem:[%s1668 + $0x2b8] sm:$0xff]
  %v1757 = vld [vmem:[%s1668 + $0x2c0] sm:$0xff]
  %v1758 = vld [vmem:[%s1668 + $0x2c8] sm:$0xff]
  %v1759 = vld [vmem:[%s1668 + $0x2d0] sm:$0xff]
  %v1760 = vld [vmem:[%s1668 + $0x2d8] sm:$0xff]
  %v1761 = vld [vmem:[%s1668 + $0x2e0] sm:$0xff]
  %v1762 = vld [vmem:[%s1668 + $0x2e8] sm:$0xff]
  %v1763 = vld [vmem:[%s1668 + $0x2f0] sm:$0xff]
  %v1764 = vld [vmem:[%s1668 + $0x2f8] sm:$0xff]
  %v1765 = vld [vmem:[%s1668 + $0x300] sm:$0xff]
  %v1766 = vld [vmem:[%s1668 + $0x308] sm:$0xff]
  %v1767 = vld [vmem:[%s1668 + $0x310] sm:$0xff]
  %v1768 = vld [vmem:[%s1668 + $0x318] sm:$0xff]
  %v1769 = vld [vmem:[%s1668 + $0x320] sm:$0xff]
  %v1770 = vld [vmem:[%s1668 + $0x328] sm:$0xff]
  %v1771 = vld [vmem:[%s1668 + $0x330] sm:$0xff]
  %v1772 = vld [vmem:[%s1668 + $0x338] sm:$0xff]
  %v1773 = vld [vmem:[%s1668 + $0x340] sm:$0xff]
  %v1774 = vld [vmem:[%s1668 + $0x348] sm:$0xff]
  %v1775 = vld [vmem:[%s1668 + $0x350] sm:$0xff]
  %v1776 = vld [vmem:[%s1668 + $0x358] sm:$0xff]
  %v1777 = vld [vmem:[%s1668 + $0x360] sm:$0xff]
  %v1778 = vld [vmem:[%s1668 + $0x368] sm:$0xff]
  %v1779 = vld [vmem:[%s1668 + $0x370] sm:$0xff]
  %v1780 = vld [vmem:[%s1668 + $0x378] sm:$0xff]
  %v1781 = vld [vmem:[%s1668 + $0x380] sm:$0xff]
  %v1782 = vld [vmem:[%s1668 + $0x388] sm:$0xff]
  %v1783 = vld [vmem:[%s1668 + $0x390] sm:$0xff]
  %v1784 = vld [vmem:[%s1668 + $0x398] sm:$0xff]
  %v1785 = vld [vmem:[%s1668 + $0x3a0] sm:$0xff]
  %v1786 = vld [vmem:[%s1668 + $0x3a8] sm:$0xff]
  %v1787 = vld [vmem:[%s1668 + $0x3b0] sm:$0xff]
  %v1788 = vld [vmem:[%s1668 + $0x3b8] sm:$0xff]
  %v1789 = vld [vmem:[%s1668 + $0x3c0] sm:$0xff]
  %v1790 = vld [vmem:[%s1668 + $0x3c8] sm:$0xff]
  %v1791 = vld [vmem:[%s1668 + $0x3d0] sm:$0xff]
  %v1792 = vld [vmem:[%s1668 + $0x3d8] sm:$0xff]
  %v1793 = vld [vmem:[%s1668 + $0x3e0] sm:$0xff]
  %v1794 = vld [vmem:[%s1668 + $0x3e8] sm:$0xff]
  %v1795 = vld [vmem:[%s1668 + $0x3f0] sm:$0xff]
  %v1796 = vld [vmem:[%s1668 + $0x3f8] sm:$0xff]
  %v1797 = vld [vmem:[%s1668 + $0x400] sm:$0xff]
  %v1798 = vld [vmem:[%s1668 + $0x408] sm:$0xff]
  %v1799 = vld [vmem:[%s1668 + $0x410] sm:$0xff]
  %v1800 = vld [vmem:[%s1668 + $0x418] sm:$0xff]
  %v1801 = vld [vmem:[%s1668 + $0x420] sm:$0xff]
  %v1802 = vld [vmem:[%s1668 + $0x428] sm:$0xff]
  %v1803 = vld [vmem:[%s1668 + $0x430] sm:$0xff]
  %v1804 = vld [vmem:[%s1668 + $0x438] sm:$0xff]
  %v1805 = vld [vmem:[%s1668 + $0x440] sm:$0xff]
  %v1806 = vld [vmem:[%s1668 + $0x448] sm:$0xff]
  %v1807 = vld [vmem:[%s1668 + $0x450] sm:$0xff]
  %v1808 = vld [vmem:[%s1668 + $0x458] sm:$0xff]
  %v1809 = vld [vmem:[%s1668 + $0x460] sm:$0xff]
  %v1810 = vld [vmem:[%s1668 + $0x468] sm:$0xff]
  %v1811 = vld [vmem:[%s1668 + $0x470] sm:$0xff]
  %v1812 = vld [vmem:[%s1668 + $0x478] sm:$0xff]
  %v1813 = vld [vmem:[%s1668 + $0x480] sm:$0xff]
  %v1814 = vld [vmem:[%s1668 + $0x488] sm:$0xff]
  %v1815 = vld [vmem:[%s1668 + $0x490] sm:$0xff]
  %v1816 = vld [vmem:[%s1668 + $0x498] sm:$0xff]
  %v1817 = vld [vmem:[%s1668 + $0x4a0] sm:$0xff]
  %v1818 = vld [vmem:[%s1668 + $0x4a8] sm:$0xff]
  %v1819 = vld [vmem:[%s1668 + $0x4b0] sm:$0xff]
  %v1820 = vld [vmem:[%s1668 + $0x4b8] sm:$0xff]
  %v1821 = vld [vmem:[%s1668 + $0x4c0] sm:$0xff]
  %v1822 = vld [vmem:[%s1668 + $0x4c8] sm:$0xff]
  %v1823 = vld [vmem:[%s1668 + $0x4d0] sm:$0xff]
  %v1824 = vld [vmem:[%s1668 + $0x4d8] sm:$0xff]
  %v1825 = vld [vmem:[%s1668 + $0x4e0] sm:$0xff]
  %v1826 = vld [vmem:[%s1668 + $0x4e8] sm:$0xff]
  %v1827 = vld [vmem:[%s1668 + $0x4f0] sm:$0xff]
  %v1828 = vld [vmem:[%s1668 + $0x4f8] sm:$0xff]
  %v1829 = vld [vmem:[%s1668 + $0x500] sm:$0xff]
  %v1830 = vld [vmem:[%s1668 + $0x508] sm:$0xff]
  %v1831 = vld [vmem:[%s1668 + $0x510] sm:$0xff]
  %v1832 = vld [vmem:[%s1668 + $0x518] sm:$0xff]
  %v1833 = vld [vmem:[%s1668 + $0x520] sm:$0xff]
  %v1834 = vld [vmem:[%s1668 + $0x528] sm:$0xff]
  %v1835 = vld [vmem:[%s1668 + $0x530] sm:$0xff]
  %v1836 = vld [vmem:[%s1668 + $0x538] sm:$0xff]
  %v1837 = vld [vmem:[%s1668 + $0x540] sm:$0xff]
  %v1838 = vld [vmem:[%s1668 + $0x548] sm:$0xff]
  %v1839 = vld [vmem:[%s1668 + $0x550] sm:$0xff]
  %v1840 = vld [vmem:[%s1668 + $0x558] sm:$0xff]
  %v1841 = vld [vmem:[%s1668 + $0x560] sm:$0xff]
  %v1842 = vld [vmem:[%s1668 + $0x568] sm:$0xff]
  %v1843 = vld [vmem:[%s1668 + $0x570] sm:$0xff]
  %v1844 = vld [vmem:[%s1668 + $0x578] sm:$0xff]
  %v1845 = vld [vmem:[%s1668 + $0x580] sm:$0xff]
  %v1846 = vld [vmem:[%s1668 + $0x588] sm:$0xff]
  %v1847 = vld [vmem:[%s1668 + $0x590] sm:$0xff]
  %v1848 = vld [vmem:[%s1668 + $0x598] sm:$0xff]
  %v1849 = vld [vmem:[%s1668 + $0x5a0] sm:$0xff]
  %v1850 = vld [vmem:[%s1668 + $0x5a8] sm:$0xff]
  %v1851 = vld [vmem:[%s1668 + $0x5b0] sm:$0xff]
  %v1852 = vld [vmem:[%s1668 + $0x5b8] sm:$0xff]
  %v1853 = vld [vmem:[%s1668 + $0x5c0] sm:$0xff]
  %v1854 = vld [vmem:[%s1668 + $0x5c8] sm:$0xff]
  %v1855 = vld [vmem:[%s1668 + $0x5d0] sm:$0xff]
  %v1856 = vld [vmem:[%s1668 + $0x5d8] sm:$0xff]
  %v1857 = vld [vmem:[%s1668 + $0x5e0] sm:$0xff]
  %v1858 = vld [vmem:[%s1668 + $0x5e8] sm:$0xff]
  %v1859 = vld [vmem:[%s1668 + $0x5f0] sm:$0xff]
  %v1860 = vld [vmem:[%s1668 + $0x5f8] sm:$0xff]
  %v1861 = vld [vmem:[%s1668 + $0x600] sm:$0xff]
  %v1862 = vld [vmem:[%s1668 + $0x608] sm:$0xff]
  %v1863 = vld [vmem:[%s1668 + $0x610] sm:$0xff]
  %v1864 = vld [vmem:[%s1668 + $0x618] sm:$0xff]
  %v1865 = vld [vmem:[%s1668 + $0x620] sm:$0xff]
  %v1866 = vld [vmem:[%s1668 + $0x628] sm:$0xff]
  %v1867 = vld [vmem:[%s1668 + $0x630] sm:$0xff]
  %v1868 = vld [vmem:[%s1668 + $0x638] sm:$0xff]
  %v1869 = vld [vmem:[%s1668 + $0x640] sm:$0xff]
  %v1870 = vld [vmem:[%s1668 + $0x648] sm:$0xff]
  %v1871 = vld [vmem:[%s1668 + $0x650] sm:$0xff]
  %v1872 = vld [vmem:[%s1668 + $0x658] sm:$0xff]
  %v1873 = vld [vmem:[%s1668 + $0x660] sm:$0xff]
  %v1874 = vld [vmem:[%s1668 + $0x668] sm:$0xff]
  %v1875 = vld [vmem:[%s1668 + $0x670] sm:$0xff]
  %v1876 = vld [vmem:[%s1668 + $0x678] sm:$0xff]
  %v1877 = vld [vmem:[%s1668 + $0x680] sm:$0xff]
  %v1878 = vld [vmem:[%s1668 + $0x688] sm:$0xff]
  %v1879 = vld [vmem:[%s1668 + $0x690] sm:$0xff]
  %v1880 = vld [vmem:[%s1668 + $0x698] sm:$0xff]
  %v1881 = vld [vmem:[%s1668 + $0x6a0] sm:$0xff]
  %v1882 = vld [vmem:[%s1668 + $0x6a8] sm:$0xff]
  %v1883 = vld [vmem:[%s1668 + $0x6b0] sm:$0xff]
  %v1884 = vld [vmem:[%s1668 + $0x6b8] sm:$0xff]
  %v1885 = vld [vmem:[%s1668 + $0x6c0] sm:$0xff]
  %v1886 = vld [vmem:[%s1668 + $0x6c8] sm:$0xff]
  %v1887 = vld [vmem:[%s1668 + $0x6d0] sm:$0xff]
  %v1888 = vld [vmem:[%s1668 + $0x6d8] sm:$0xff]
  %v1889 = vld [vmem:[%s1668 + $0x6e0] sm:$0xff]
  %v1890 = vld [vmem:[%s1668 + $0x6e8] sm:$0xff]
  %v1891 = vld [vmem:[%s1668 + $0x6f0] sm:$0xff]
  %v1892 = vld [vmem:[%s1668 + $0x6f8] sm:$0xff]
  %v1893 = vld [vmem:[%s1668 + $0x700] sm:$0xff]
  %v1894 = vld [vmem:[%s1668 + $0x708] sm:$0xff]
  %v1895 = vld [vmem:[%s1668 + $0x710] sm:$0xff]
  %v1896 = vld [vmem:[%s1668 + $0x718] sm:$0xff]
  %v1897 = vld [vmem:[%s1668 + $0x720] sm:$0xff]
  %v1898 = vld [vmem:[%s1668 + $0x728] sm:$0xff]
  %v1899 = vld [vmem:[%s1668 + $0x730] sm:$0xff]
  %v1900 = vld [vmem:[%s1668 + $0x738] sm:$0xff]
  %v1901 = vld [vmem:[%s1668 + $0x740] sm:$0xff]
  %v1902 = vld [vmem:[%s1668 + $0x748] sm:$0xff]
  %v1903 = vld [vmem:[%s1668 + $0x750] sm:$0xff]
  %v1904 = vld [vmem:[%s1668 + $0x758] sm:$0xff]
  %v1905 = vld [vmem:[%s1668 + $0x760] sm:$0xff]
  %v1906 = vld [vmem:[%s1668 + $0x768] sm:$0xff]
  %v1907 = vld [vmem:[%s1668 + $0x770] sm:$0xff]
  %v1908 = vld [vmem:[%s1668 + $0x778] sm:$0xff]
  %v1909 = vld [vmem:[%s1668 + $0x780] sm:$0xff]
  %v1910 = vld [vmem:[%s1668 + $0x788] sm:$0xff]
  %v1911 = vld [vmem:[%s1668 + $0x790] sm:$0xff]
  %v1912 = vld [vmem:[%s1668 + $0x798] sm:$0xff]
  %v1913 = vld [vmem:[%s1668 + $0x7a0] sm:$0xff]
  %v1914 = vld [vmem:[%s1668 + $0x7a8] sm:$0xff]
  %v1915 = vld [vmem:[%s1668 + $0x7b0] sm:$0xff]
  %v1916 = vld [vmem:[%s1668 + $0x7b8] sm:$0xff]
  %v1917 = vld [vmem:[%s1668 + $0x7c0] sm:$0xff]
  %v1918 = vld [vmem:[%s1668 + $0x7c8] sm:$0xff]
  %v1919 = vld [vmem:[%s1668 + $0x7d0] sm:$0xff]
  %v1920 = vld [vmem:[%s1668 + $0x7d8] sm:$0xff]
  %v1921 = vld [vmem:[%s1668 + $0x7e0] sm:$0xff]
  %v1922 = vld [vmem:[%s1668 + $0x7e8] sm:$0xff]
  %v1923 = vld [vmem:[%s1668 + $0x7f0] sm:$0xff]
  %v1924 = vld [vmem:[%s1668 + $0x7f8] sm:$0xff]
  %v1925 = vld [vmem:[%s1668 + $0x800] sm:$0xff]
  %v1926 = vld [vmem:[%s1668 + $0x808] sm:$0xff]
  %v1927 = vld [vmem:[%s1668 + $0x810] sm:$0xff]
  %v1928 = vld [vmem:[%s1668 + $0x818] sm:$0xff]
  %v1929 = vld [vmem:[%s1668 + $0x820] sm:$0xff]
  %v1930 = vld [vmem:[%s1668 + $0x828] sm:$0xff]
  %v1931 = vld [vmem:[%s1668 + $0x830] sm:$0xff]
  %v1932 = vld [vmem:[%s1668 + $0x838] sm:$0xff]
  %v1933 = vld [vmem:[%s1668 + $0x840] sm:$0xff]
  %v1934 = vld [vmem:[%s1668 + $0x848] sm:$0xff]
  %v1935 = vld [vmem:[%s1668 + $0x850] sm:$0xff]
  %v1936 = vld [vmem:[%s1668 + $0x858] sm:$0xff]
  %v1937 = vld [vmem:[%s1668 + $0x860] sm:$0xff]
  %v1938 = vld [vmem:[%s1668 + $0x868] sm:$0xff]
  %v1939 = vld [vmem:[%s1668 + $0x870] sm:$0xff]
  %v1940 = vld [vmem:[%s1668 + $0x878] sm:$0xff]
  %v1941 = vld [vmem:[%s1668 + $0x880] sm:$0xff]
  %v1942 = vld [vmem:[%s1668 + $0x888] sm:$0xff]
  %v1943 = vld [vmem:[%s1668 + $0x890] sm:$0xff]
  %v1944 = vld [vmem:[%s1668 + $0x898] sm:$0xff]
  %v1945 = vld [vmem:[%s1668 + $0x8a0] sm:$0xff]
  %v1946 = vld [vmem:[%s1668 + $0x8a8] sm:$0xff]
  %v1947 = vld [vmem:[%s1668 + $0x8b0] sm:$0xff]
  %v1948 = vld [vmem:[%s1668 + $0x8b8] sm:$0xff]
  %v1949 = vld [vmem:[%s1668 + $0x8c0] sm:$0xff]
  %v1950 = vld [vmem:[%s1668 + $0x8c8] sm:$0xff]
  %v1951 = vld [vmem:[%s1668 + $0x8d0] sm:$0xff]
  %v1952 = vld [vmem:[%s1668 + $0x8d8] sm:$0xff]
  %v1953 = vld [vmem:[%s1668 + $0x8e0] sm:$0xff]
  %v1954 = vld [vmem:[%s1668 + $0x8e8] sm:$0xff]
  %v1955 = vld [vmem:[%s1668 + $0x8f0] sm:$0xff]
  %v1956 = vld [vmem:[%s1668 + $0x8f8] sm:$0xff]
  %v1957 = vld [vmem:[%s1668 + $0x900] sm:$0xff]
  %v1958 = vld [vmem:[%s1668 + $0x908] sm:$0xff]
  %v1959 = vld [vmem:[%s1668 + $0x910] sm:$0xff]
  %v1960 = vld [vmem:[%s1668 + $0x918] sm:$0xff]
  %v1961 = vld [vmem:[%s1668 + $0x920] sm:$0xff]
  %v1962 = vld [vmem:[%s1668 + $0x928] sm:$0xff]
  %v1963 = vld [vmem:[%s1668 + $0x930] sm:$0xff]
  %v1964 = vld [vmem:[%s1668 + $0x938] sm:$0xff]
  %v1965 = vld [vmem:[%s1668 + $0x940] sm:$0xff]
  %v1966 = vld [vmem:[%s1668 + $0x948] sm:$0xff]
  %v1967 = vld [vmem:[%s1668 + $0x950] sm:$0xff]
  %v1968 = vld [vmem:[%s1668 + $0x958] sm:$0xff]
  %v1969 = vld [vmem:[%s1668 + $0x960] sm:$0xff]
  %v1970 = vld [vmem:[%s1668 + $0x968] sm:$0xff]
  %v1971 = vld [vmem:[%s1668 + $0x970] sm:$0xff]
  %v1972 = vld [vmem:[%s1668 + $0x978] sm:$0xff]
  %v1973 = vld [vmem:[%s1668 + $0x980] sm:$0xff]
  %v1974 = vld [vmem:[%s1668 + $0x988] sm:$0xff]
  %v1975 = vld [vmem:[%s1668 + $0x990] sm:$0xff]
  %v1976 = vld [vmem:[%s1668 + $0x998] sm:$0xff]
  %v1977 = vld [vmem:[%s1668 + $0x9a0] sm:$0xff]
  %v1978 = vld [vmem:[%s1668 + $0x9a8] sm:$0xff]
  %v1979 = vld [vmem:[%s1668 + $0x9b0] sm:$0xff]
  %v1980 = vld [vmem:[%s1668 + $0x9b8] sm:$0xff]
  %v1981 = vld [vmem:[%s1668 + $0x9c0] sm:$0xff]
  %v1982 = vld [vmem:[%s1668 + $0x9c8] sm:$0xff]
  %v1983 = vld [vmem:[%s1668 + $0x9d0] sm:$0xff]
  %v1984 = vld [vmem:[%s1668 + $0x9d8] sm:$0xff]
  %v1985 = vld [vmem:[%s1668 + $0x9e0] sm:$0xff]
  %v1986 = vld [vmem:[%s1668 + $0x9e8] sm:$0xff]
  %v1987 = vld [vmem:[%s1668 + $0x9f0] sm:$0xff]
  %v1988 = vld [vmem:[%s1668 + $0x9f8] sm:$0xff]
  %v1989 = vld [vmem:[%s1668 + $0xa00] sm:$0xff]
  %v1990 = vld [vmem:[%s1668 + $0xa08] sm:$0xff]
  %v1991 = vld [vmem:[%s1668 + $0xa10] sm:$0xff]
  %v1992 = vld [vmem:[%s1668 + $0xa18] sm:$0xff]
  %v1993 = vld [vmem:[%s1668 + $0xa20] sm:$0xff]
  %v1994 = vld [vmem:[%s1668 + $0xa28] sm:$0xff]
  %v1995 = vld [vmem:[%s1668 + $0xa30] sm:$0xff]
  %v1996 = vld [vmem:[%s1668 + $0xa38] sm:$0xff]
  %v1997 = vld [vmem:[%s1668 + $0xa40] sm:$0xff]
  %v1998 = vld [vmem:[%s1668 + $0xa48] sm:$0xff]
  %v1999 = vld [vmem:[%s1668 + $0xa50] sm:$0xff]
  %v2000 = vld [vmem:[%s1668 + $0xa58] sm:$0xff]
  %v2001 = vld [vmem:[%s1668 + $0xa60] sm:$0xff]
  %v2002 = vld [vmem:[%s1668 + $0xa68] sm:$0xff]
  %v2003 = vld [vmem:[%s1668 + $0xa70] sm:$0xff]
  %v2004 = vld [vmem:[%s1668 + $0xa78] sm:$0xff]
  %v2005 = vld [vmem:[%s1668 + $0xa80] sm:$0xff]
  %v2006 = vld [vmem:[%s1668 + $0xa88] sm:$0xff]
  %v2007 = vld [vmem:[%s1668 + $0xa90] sm:$0xff]
  %v2008 = vld [vmem:[%s1668 + $0xa98] sm:$0xff]
  %v2009 = vld [vmem:[%s1668 + $0xaa0] sm:$0xff]
  %v2010 = vld [vmem:[%s1668 + $0xaa8] sm:$0xff]
  %v2011 = vld [vmem:[%s1668 + $0xab0] sm:$0xff]
  %v2012 = vld [vmem:[%s1668 + $0xab8] sm:$0xff]
  %v2013 = vld [vmem:[%s1668 + $0xac0] sm:$0xff]
  %v2014 = vld [vmem:[%s1668 + $0xac8] sm:$0xff]
  %v2015 = vld [vmem:[%s1668 + $0xad0] sm:$0xff]
  %v2016 = vld [vmem:[%s1668 + $0xad8] sm:$0xff]
  %v2017 = vld [vmem:[%s1668 + $0xae0] sm:$0xff]
  %v2018 = vld [vmem:[%s1668 + $0xae8] sm:$0xff]
  %v2019 = vld [vmem:[%s1668 + $0xaf0] sm:$0xff]
  %v2020 = vld [vmem:[%s1668 + $0xaf8] sm:$0xff]
  %v2021 = vld [vmem:[%s1668 + $0xb00] sm:$0xff]
  %v2022 = vld [vmem:[%s1668 + $0xb08] sm:$0xff]
  %v2023 = vld [vmem:[%s1668 + $0xb10] sm:$0xff]
  %v2024 = vld [vmem:[%s1668 + $0xb18] sm:$0xff]
  %v2025 = vld [vmem:[%s1668 + $0xb20] sm:$0xff]
  %v2026 = vld [vmem:[%s1668 + $0xb28] sm:$0xff]
  %v2027 = vld [vmem:[%s1668 + $0xb30] sm:$0xff]
  %v2028 = vld [vmem:[%s1668 + $0xb38] sm:$0xff]
  %v2029 = vld [vmem:[%s1668 + $0xb40] sm:$0xff]
  %v2030 = vld [vmem:[%s1668 + $0xb48] sm:$0xff]
  %v2031 = vld [vmem:[%s1668 + $0xb50] sm:$0xff]
  %v2032 = vld [vmem:[%s1668 + $0xb58] sm:$0xff]
  %v2033 = vld [vmem:[%s1668 + $0xb60] sm:$0xff]
  %v2034 = vld [vmem:[%s1668 + $0xb68] sm:$0xff]
  %v2035 = vld [vmem:[%s1668 + $0xb70] sm:$0xff]
  %v2036 = vld [vmem:[%s1668 + $0xb78] sm:$0xff]
  %v2037 = vld [vmem:[%s1668 + $0xb80] sm:$0xff]
  %v2038 = vld [vmem:[%s1668 + $0xb88] sm:$0xff]
  %v2039 = vld [vmem:[%s1668 + $0xb90] sm:$0xff]
  %v2040 = vld [vmem:[%s1668 + $0xb98] sm:$0xff]
  %v2041 = vld [vmem:[%s1668 + $0xba0] sm:$0xff]
  %v2042 = vld [vmem:[%s1668 + $0xba8] sm:$0xff]
  %v2043 = vld [vmem:[%s1668 + $0xbb0] sm:$0xff]
  %v2044 = vld [vmem:[%s1668 + $0xbb8] sm:$0xff]
  %v2045 = vld [vmem:[%s1668 + $0xbc0] sm:$0xff]
  %v2046 = vld [vmem:[%s1668 + $0xbc8] sm:$0xff]
  %v2047 = vld [vmem:[%s1668 + $0xbd0] sm:$0xff]
  %v2048 = vld [vmem:[%s1668 + $0xbd8] sm:$0xff]
  %v2049 = vld [vmem:[%s1668 + $0xbe0] sm:$0xff]
  %v2050 = vld [vmem:[%s1668 + $0xbe8] sm:$0xff]
  %v2051 = vld [vmem:[%s1668 + $0xbf0] sm:$0xff]
  %v2052 = vld [vmem:[%s1668 + $0xbf8] sm:$0xff]
  %v2053 = vld [vmem:[%s1668 + $0xc00] sm:$0xff]
  %v2054 = vld [vmem:[%s1668 + $0xc08] sm:$0xff]
  %v2055 = vld [vmem:[%s1668 + $0xc10] sm:$0xff]
  %v2056 = vld [vmem:[%s1668 + $0xc18] sm:$0xff]
  %v2057 = vld [vmem:[%s1668 + $0xc20] sm:$0xff]
  %v2058 = vld [vmem:[%s1668 + $0xc28] sm:$0xff]
  %v2059 = vld [vmem:[%s1668 + $0xc30] sm:$0xff]
  %v2060 = vld [vmem:[%s1668 + $0xc38] sm:$0xff]
  %v2061 = vld [vmem:[%s1668 + $0xc40] sm:$0xff]
  %v2062 = vld [vmem:[%s1668 + $0xc48] sm:$0xff]
  %v2063 = vld [vmem:[%s1668 + $0xc50] sm:$0xff]
  %v2064 = vld [vmem:[%s1668 + $0xc58] sm:$0xff]
  %v2065 = vld [vmem:[%s1668 + $0xc60] sm:$0xff]
  %v2066 = vld [vmem:[%s1668 + $0xc68] sm:$0xff]
  %v2067 = vld [vmem:[%s1668 + $0xc70] sm:$0xff]
  %v2068 = vld [vmem:[%s1668 + $0xc78] sm:$0xff]
  %v2069 = vld [vmem:[%s1668 + $0xc80] sm:$0xff]
  %v2070 = vld [vmem:[%s1668 + $0xc88] sm:$0xff]
  %v2071 = vld [vmem:[%s1668 + $0xc90] sm:$0xff]
  %v2072 = vld [vmem:[%s1668 + $0xc98] sm:$0xff]
  %v2073 = vld [vmem:[%s1668 + $0xca0] sm:$0xff]
  %v2074 = vld [vmem:[%s1668 + $0xca8] sm:$0xff]
  %v2075 = vld [vmem:[%s1668 + $0xcb0] sm:$0xff]
  %v2076 = vld [vmem:[%s1668 + $0xcb8] sm:$0xff]
  %v2077 = vld [vmem:[%s1668 + $0xcc0] sm:$0xff]
  %v2078 = vld [vmem:[%s1668 + $0xcc8] sm:$0xff]
  %v2079 = vld [vmem:[%s1668 + $0xcd0] sm:$0xff]
  %v2080 = vld [vmem:[%s1668 + $0xcd8] sm:$0xff]
  %v2081 = vld [vmem:[%s1668 + $0xce0] sm:$0xff]
  %v2082 = vld [vmem:[%s1668 + $0xce8] sm:$0xff]
  %v2083 = vld [vmem:[%s1668 + $0xcf0] sm:$0xff]
  %v2084 = vld [vmem:[%s1668 + $0xcf8] sm:$0xff]
  %v2085 = vld [vmem:[%s1668 + $0xd00] sm:$0xff]
  %v2086 = vld [vmem:[%s1668 + $0xd08] sm:$0xff]
  %v2087 = vld [vmem:[%s1668 + $0xd10] sm:$0xff]
  %v2088 = vld [vmem:[%s1668 + $0xd18] sm:$0xff]
  %v2089 = vld [vmem:[%s1668 + $0xd20] sm:$0xff]
  %v2090 = vld [vmem:[%s1668 + $0xd28] sm:$0xff]
  %v2091 = vld [vmem:[%s1668 + $0xd30] sm:$0xff]
  %v2092 = vld [vmem:[%s1668 + $0xd38] sm:$0xff]
  %v2093 = vld [vmem:[%s1668 + $0xd40] sm:$0xff]
  %v2094 = vld [vmem:[%s1668 + $0xd48] sm:$0xff]
  %v2095 = vld [vmem:[%s1668 + $0xd50] sm:$0xff]
  %v2096 = vld [vmem:[%s1668 + $0xd58] sm:$0xff]
  %v2097 = vld [vmem:[%s1668 + $0xd60] sm:$0xff]
  %v2098 = vld [vmem:[%s1668 + $0xd68] sm:$0xff]
  %v2099 = vld [vmem:[%s1668 + $0xd70] sm:$0xff]
  %v2100 = vld [vmem:[%s1668 + $0xd78] sm:$0xff]
  %v2101 = vld [vmem:[%s1668 + $0xd80] sm:$0xff]
  %v2102 = vld [vmem:[%s1668 + $0xd88] sm:$0xff]
  %v2103 = vld [vmem:[%s1668 + $0xd90] sm:$0xff]
  %v2104 = vld [vmem:[%s1668 + $0xd98] sm:$0xff]
  %v2105 = vld [vmem:[%s1668 + $0xda0] sm:$0xff]
  %v2106 = vld [vmem:[%s1668 + $0xda8] sm:$0xff]
  %v2107 = vld [vmem:[%s1668 + $0xdb0] sm:$0xff]
  %v2108 = vld [vmem:[%s1668 + $0xdb8] sm:$0xff]
  %v2109 = vld [vmem:[%s1668 + $0xdc0] sm:$0xff]
  %v2110 = vld [vmem:[%s1668 + $0xdc8] sm:$0xff]
  %v2111 = vld [vmem:[%s1668 + $0xdd0] sm:$0xff]
  %v2112 = vld [vmem:[%s1668 + $0xdd8] sm:$0xff]
  %v2113 = vld [vmem:[%s1668 + $0xde0] sm:$0xff]
  %v2114 = vld [vmem:[%s1668 + $0xde8] sm:$0xff]
  %v2115 = vld [vmem:[%s1668 + $0xdf0] sm:$0xff]
  %v2116 = vld [vmem:[%s1668 + $0xdf8] sm:$0xff]
  %v2117 = vld [vmem:[%s1668 + $0xe00] sm:$0xff]
  %v2118 = vld [vmem:[%s1668 + $0xe08] sm:$0xff]
  %v2119 = vld [vmem:[%s1668 + $0xe10] sm:$0xff]
  %v2120 = vld [vmem:[%s1668 + $0xe18] sm:$0xff]
  %v2121 = vld [vmem:[%s1668 + $0xe20] sm:$0xff]
  %v2122 = vld [vmem:[%s1668 + $0xe28] sm:$0xff]
  %v2123 = vld [vmem:[%s1668 + $0xe30] sm:$0xff]
  %v2124 = vld [vmem:[%s1668 + $0xe38] sm:$0xff]
  %v2125 = vld [vmem:[%s1668 + $0xe40] sm:$0xff]
  %v2126 = vld [vmem:[%s1668 + $0xe48] sm:$0xff]
  %v2127 = vld [vmem:[%s1668 + $0xe50] sm:$0xff]
  %v2128 = vld [vmem:[%s1668 + $0xe58] sm:$0xff]
  %v2129 = vld [vmem:[%s1668 + $0xe60] sm:$0xff]
  %v2130 = vld [vmem:[%s1668 + $0xe68] sm:$0xff]
  %v2131 = vld [vmem:[%s1668 + $0xe70] sm:$0xff]
  %v2132 = vld [vmem:[%s1668 + $0xe78] sm:$0xff]
  %v2133 = vld [vmem:[%s1668 + $0xe80] sm:$0xff]
  %v2134 = vld [vmem:[%s1668 + $0xe88] sm:$0xff]
  %v2135 = vld [vmem:[%s1668 + $0xe90] sm:$0xff]
  %v2136 = vld [vmem:[%s1668 + $0xe98] sm:$0xff]
  %v2137 = vld [vmem:[%s1668 + $0xea0] sm:$0xff]
  %v2138 = vld [vmem:[%s1668 + $0xea8] sm:$0xff]
  %v2139 = vld [vmem:[%s1668 + $0xeb0] sm:$0xff]
  %v2140 = vld [vmem:[%s1668 + $0xeb8] sm:$0xff]
  %v2141 = vld [vmem:[%s1668 + $0xec0] sm:$0xff]
  %v2142 = vld [vmem:[%s1668 + $0xec8] sm:$0xff]
  %v2143 = vld [vmem:[%s1668 + $0xed0] sm:$0xff]
  %2144 = vmatpush.msra.mxu0 %v2044
  %2145 = vmatpush.msra.mxu0 %v2019
  %2146 = vmatpush.msra.mxu0 %v1994
  %2147 = vmatpush.msra.mxu0 %v1969
  %2148 = vmatpush.msra.mxu0 %v1944
  %2149 = vmatpush.msra.mxu0 %v1919
  %2150 = vmatpush.msra.mxu0 %v1894
  %2151 = vmatpush.msra.mxu0 %v1869
  %2152 = vmatpush.msra.mxu0 %v1844
  %2153 = vmatpush.msra.mxu0 %v1819
  %2154 = vmatpush.msra.mxu0 %v1794
  %2155 = vmatpush.msra.mxu0 %v1769
  %2156 = vmatpush.msra.mxu0 %v1744
  %2157 = vmatpush.msra.mxu0 %v1719
  %2158 = vmatpush.msra.mxu0 %v1694
  %2159 = vmatpush.msra.mxu0 %v1669
  %2160 = vmatmul.f32.gmra.mxu0 %v32
  %v2161 = vpop.f32.mrf.mxu0
  %v2162 = vadd.f32 0.0, %v2161
  %2163 = vmatmul.f32.gmra.mxu0 %v34
  %v2164 = vpop.f32.mrf.mxu0
  %v2165 = vadd.f32 0.0, %v2164
  %2166 = vdwg.mxu0
  %2167 = vmatpush.msra.mxu0 0.0
  %2168 = vmatpush.msra.mxu0 0.0
  %2169 = vmatpush.msra.mxu0 0.0
  %2170 = vmatpush.msra.mxu0 0.0
  %2171 = vmatpush.msra.mxu0 0.0
  %2172 = vmatpush.msra.mxu0 0.0
  %2173 = vmatpush.msra.mxu0 0.0
  %2174 = vmatpush.msra.mxu0 0.0
  %2175 = vmatpush.msra.mxu0 0.0
  %2176 = vmatpush.msra.mxu0 0.0
  %2177 = vmatpush.msra.mxu0 0.0
  %2178 = vmatpush.msra.mxu0 0.0
  %2179 = vmatpush.msra.mxu0 0.0
  %2180 = vmatpush.msra.mxu0 %v2119
  %2181 = vmatpush.msra.mxu0 %v2094
  %2182 = vmatpush.msra.mxu0 %v2069
  %2183 = vmatmul.f32.gmra.mxu0 %v513
  %v2184 = vpop.f32.mrf.mxu0
  %v2185 = vadd.f32 %v2162, %v2184
  %2186 = vmatmul.f32.gmra.mxu0 %v516
  %v2187 = vpop.f32.mrf.mxu0
  %v2188 = vadd.f32 %v2165, %v2187
  %2189 = vdwg.mxu0
  %2190 = vmatpush.msra.mxu0 %v2045
  %2191 = vmatpush.msra.mxu0 %v2020
  %2192 = vmatpush.msra.mxu0 %v1995
  %2193 = vmatpush.msra.mxu0 %v1970
  %2194 = vmatpush.msra.mxu0 %v1945
  %2195 = vmatpush.msra.mxu0 %v1920
  %2196 = vmatpush.msra.mxu0 %v1895
  %2197 = vmatpush.msra.mxu0 %v1870
  %2198 = vmatpush.msra.mxu0 %v1845
  %2199 = vmatpush.msra.mxu0 %v1820
  %2200 = vmatpush.msra.mxu0 %v1795
  %2201 = vmatpush.msra.mxu0 %v1770
  %2202 = vmatpush.msra.mxu0 %v1745
  %2203 = vmatpush.msra.mxu0 %v1720
  %2204 = vmatpush.msra.mxu0 %v1695
  %2205 = vmatpush.msra.mxu0 %v1670
  %2206 = vmatmul.f32.gmra.mxu0 %v32
  %v2207 = vpop.f32.mrf.mxu0
  %v2208 = vadd.f32 0.0, %v2207
  %2209 = vmatmul.f32.gmra.mxu0 %v34
  %v2210 = vpop.f32.mrf.mxu0
  %v2211 = vadd.f32 0.0, %v2210
  %2212 = vdwg.mxu0
  %2213 = vmatpush.msra.mxu0 0.0
  %2214 = vmatpush.msra.mxu0 0.0
  %2215 = vmatpush.msra.mxu0 0.0
  %2216 = vmatpush.msra.mxu0 0.0
  %2217 = vmatpush.msra.mxu0 0.0
  %2218 = vmatpush.msra.mxu0 0.0
  %2219 = vmatpush.msra.mxu0 0.0
  %2220 = vmatpush.msra.mxu0 0.0
  %2221 = vmatpush.msra.mxu0 0.0
  %2222 = vmatpush.msra.mxu0 0.0
  %2223 = vmatpush.msra.mxu0 0.0
  %2224 = vmatpush.msra.mxu0 0.0
  %2225 = vmatpush.msra.mxu0 0.0
  %2226 = vmatpush.msra.mxu0 %v2120
  %2227 = vmatpush.msra.mxu0 %v2095
  %2228 = vmatpush.msra.mxu0 %v2070
  %2229 = vmatmul.f32.gmra.mxu0 %v513
  %v2230 = vpop.f32.mrf.mxu0
  %v2231 = vadd.f32 %v2208, %v2230
  %2232 = vmatmul.f32.gmra.mxu0 %v516
  %v2233 = vpop.f32.mrf.mxu0
  %v2234 = vadd.f32 %v2211, %v2233
  %2235 = vdwg.mxu0
  %2236 = vmatpush.msra.mxu0 %v2046
  %2237 = vmatpush.msra.mxu0 %v2021
  %2238 = vmatpush.msra.mxu0 %v1996
  %2239 = vmatpush.msra.mxu0 %v1971
  %2240 = vmatpush.msra.mxu0 %v1946
  %2241 = vmatpush.msra.mxu0 %v1921
  %2242 = vmatpush.msra.mxu0 %v1896
  %2243 = vmatpush.msra.mxu0 %v1871
  %2244 = vmatpush.msra.mxu0 %v1846
  %2245 = vmatpush.msra.mxu0 %v1821
  %2246 = vmatpush.msra.mxu0 %v1796
  %2247 = vmatpush.msra.mxu0 %v1771
  %2248 = vmatpush.msra.mxu0 %v1746
  %2249 = vmatpush.msra.mxu0 %v1721
  %2250 = vmatpush.msra.mxu0 %v1696
  %2251 = vmatpush.msra.mxu0 %v1671
  %2252 = vmatmul.f32.gmra.mxu0 %v32
  %v2253 = vpop.f32.mrf.mxu0
  %v2254 = vadd.f32 0.0, %v2253
  %2255 = vmatmul.f32.gmra.mxu0 %v34
  %v2256 = vpop.f32.mrf.mxu0
  %v2257 = vadd.f32 0.0, %v2256
  %2258 = vdwg.mxu0
  %2259 = vmatpush.msra.mxu0 0.0
  %2260 = vmatpush.msra.mxu0 0.0
  %2261 = vmatpush.msra.mxu0 0.0
  %2262 = vmatpush.msra.mxu0 0.0
  %2263 = vmatpush.msra.mxu0 0.0
  %2264 = vmatpush.msra.mxu0 0.0
  %2265 = vmatpush.msra.mxu0 0.0
  %2266 = vmatpush.msra.mxu0 0.0
  %2267 = vmatpush.msra.mxu0 0.0
  %2268 = vmatpush.msra.mxu0 0.0
  %2269 = vmatpush.msra.mxu0 0.0
  %2270 = vmatpush.msra.mxu0 0.0
  %2271 = vmatpush.msra.mxu0 0.0
  %2272 = vmatpush.msra.mxu0 %v2121
  %2273 = vmatpush.msra.mxu0 %v2096
  %2274 = vmatpush.msra.mxu0 %v2071
  %2275 = vmatmul.f32.gmra.mxu0 %v513
  %v2276 = vpop.f32.mrf.mxu0
  %v2277 = vadd.f32 %v2254, %v2276
  %2278 = vmatmul.f32.gmra.mxu0 %v516
  %v2279 = vpop.f32.mrf.mxu0
  %v2280 = vadd.f32 %v2257, %v2279
  %2281 = vdwg.mxu0
  %2282 = vmatpush.msra.mxu0 %v2047
  %2283 = vmatpush.msra.mxu0 %v2022
  %2284 = vmatpush.msra.mxu0 %v1997
  %2285 = vmatpush.msra.mxu0 %v1972
  %2286 = vmatpush.msra.mxu0 %v1947
  %2287 = vmatpush.msra.mxu0 %v1922
  %2288 = vmatpush.msra.mxu0 %v1897
  %2289 = vmatpush.msra.mxu0 %v1872
  %2290 = vmatpush.msra.mxu0 %v1847
  %2291 = vmatpush.msra.mxu0 %v1822
  %2292 = vmatpush.msra.mxu0 %v1797
  %2293 = vmatpush.msra.mxu0 %v1772
  %2294 = vmatpush.msra.mxu0 %v1747
  %2295 = vmatpush.msra.mxu0 %v1722
  %2296 = vmatpush.msra.mxu0 %v1697
  %2297 = vmatpush.msra.mxu0 %v1672
  %2298 = vmatmul.f32.gmra.mxu0 %v32
  %v2299 = vpop.f32.mrf.mxu0
  %v2300 = vadd.f32 0.0, %v2299
  %2301 = vmatmul.f32.gmra.mxu0 %v34
  %v2302 = vpop.f32.mrf.mxu0
  %v2303 = vadd.f32 0.0, %v2302
  %2304 = vdwg.mxu0
  %2305 = vmatpush.msra.mxu0 0.0
  %2306 = vmatpush.msra.mxu0 0.0
  %2307 = vmatpush.msra.mxu0 0.0
  %2308 = vmatpush.msra.mxu0 0.0
  %2309 = vmatpush.msra.mxu0 0.0
  %2310 = vmatpush.msra.mxu0 0.0
  %2311 = vmatpush.msra.mxu0 0.0
  %2312 = vmatpush.msra.mxu0 0.0
  %2313 = vmatpush.msra.mxu0 0.0
  %2314 = vmatpush.msra.mxu0 0.0
  %2315 = vmatpush.msra.mxu0 0.0
  %2316 = vmatpush.msra.mxu0 0.0
  %2317 = vmatpush.msra.mxu0 0.0
  %2318 = vmatpush.msra.mxu0 %v2122
  %2319 = vmatpush.msra.mxu0 %v2097
  %2320 = vmatpush.msra.mxu0 %v2072
  %2321 = vmatmul.f32.gmra.mxu0 %v513
  %v2322 = vpop.f32.mrf.mxu0
  %v2323 = vadd.f32 %v2300, %v2322
  %2324 = vmatmul.f32.gmra.mxu0 %v516
  %v2325 = vpop.f32.mrf.mxu0
  %v2326 = vadd.f32 %v2303, %v2325
  %2327 = vdwg.mxu0
  %2328 = vmatpush.msra.mxu0 %v2048
  %2329 = vmatpush.msra.mxu0 %v2023
  %2330 = vmatpush.msra.mxu0 %v1998
  %2331 = vmatpush.msra.mxu0 %v1973
  %2332 = vmatpush.msra.mxu0 %v1948
  %2333 = vmatpush.msra.mxu0 %v1923
  %2334 = vmatpush.msra.mxu0 %v1898
  %2335 = vmatpush.msra.mxu0 %v1873
  %2336 = vmatpush.msra.mxu0 %v1848
  %2337 = vmatpush.msra.mxu0 %v1823
  %2338 = vmatpush.msra.mxu0 %v1798
  %2339 = vmatpush.msra.mxu0 %v1773
  %2340 = vmatpush.msra.mxu0 %v1748
  %2341 = vmatpush.msra.mxu0 %v1723
  %2342 = vmatpush.msra.mxu0 %v1698
  %2343 = vmatpush.msra.mxu0 %v1673
  %2344 = vmatmul.f32.gmra.mxu0 %v32
  %v2345 = vpop.f32.mrf.mxu0
  %v2346 = vadd.f32 0.0, %v2345
  %2347 = vmatmul.f32.gmra.mxu0 %v34
  %v2348 = vpop.f32.mrf.mxu0
  %v2349 = vadd.f32 0.0, %v2348
  %2350 = vdwg.mxu0
  %2351 = vmatpush.msra.mxu0 0.0
  %2352 = vmatpush.msra.mxu0 0.0
  %2353 = vmatpush.msra.mxu0 0.0
  %2354 = vmatpush.msra.mxu0 0.0
  %2355 = vmatpush.msra.mxu0 0.0
  %2356 = vmatpush.msra.mxu0 0.0
  %2357 = vmatpush.msra.mxu0 0.0
  %2358 = vmatpush.msra.mxu0 0.0
  %2359 = vmatpush.msra.mxu0 0.0
  %2360 = vmatpush.msra.mxu0 0.0
  %2361 = vmatpush.msra.mxu0 0.0
  %2362 = vmatpush.msra.mxu0 0.0
  %2363 = vmatpush.msra.mxu0 0.0
  %2364 = vmatpush.msra.mxu0 %v2123
  %2365 = vmatpush.msra.mxu0 %v2098
  %2366 = vmatpush.msra.mxu0 %v2073
  %2367 = vmatmul.f32.gmra.mxu0 %v513
  %v2368 = vpop.f32.mrf.mxu0
  %v2369 = vadd.f32 %v2346, %v2368
  %2370 = vmatmul.f32.gmra.mxu0 %v516
  %v2371 = vpop.f32.mrf.mxu0
  %v2372 = vadd.f32 %v2349, %v2371
  %2373 = vdwg.mxu0
  %2374 = vmatpush.msra.mxu0 %v2049
  %2375 = vmatpush.msra.mxu0 %v2024
  %2376 = vmatpush.msra.mxu0 %v1999
  %2377 = vmatpush.msra.mxu0 %v1974
  %2378 = vmatpush.msra.mxu0 %v1949
  %2379 = vmatpush.msra.mxu0 %v1924
  %2380 = vmatpush.msra.mxu0 %v1899
  %2381 = vmatpush.msra.mxu0 %v1874
  %2382 = vmatpush.msra.mxu0 %v1849
  %2383 = vmatpush.msra.mxu0 %v1824
  %2384 = vmatpush.msra.mxu0 %v1799
  %2385 = vmatpush.msra.mxu0 %v1774
  %2386 = vmatpush.msra.mxu0 %v1749
  %2387 = vmatpush.msra.mxu0 %v1724
  %2388 = vmatpush.msra.mxu0 %v1699
  %2389 = vmatpush.msra.mxu0 %v1674
  %2390 = vmatmul.f32.gmra.mxu0 %v32
  %v2391 = vpop.f32.mrf.mxu0
  %v2392 = vadd.f32 0.0, %v2391
  %2393 = vmatmul.f32.gmra.mxu0 %v34
  %v2394 = vpop.f32.mrf.mxu0
  %v2395 = vadd.f32 0.0, %v2394
  %2396 = vdwg.mxu0
  %2397 = vmatpush.msra.mxu0 0.0
  %2398 = vmatpush.msra.mxu0 0.0
  %2399 = vmatpush.msra.mxu0 0.0
  %2400 = vmatpush.msra.mxu0 0.0
  %2401 = vmatpush.msra.mxu0 0.0
  %2402 = vmatpush.msra.mxu0 0.0
  %2403 = vmatpush.msra.mxu0 0.0
  %2404 = vmatpush.msra.mxu0 0.0
  %2405 = vmatpush.msra.mxu0 0.0
  %2406 = vmatpush.msra.mxu0 0.0
  %2407 = vmatpush.msra.mxu0 0.0
  %2408 = vmatpush.msra.mxu0 0.0
  %2409 = vmatpush.msra.mxu0 0.0
  %2410 = vmatpush.msra.mxu0 %v2124
  %2411 = vmatpush.msra.mxu0 %v2099
  %2412 = vmatpush.msra.mxu0 %v2074
  %2413 = vmatmul.f32.gmra.mxu0 %v513
  %v2414 = vpop.f32.mrf.mxu0
  %v2415 = vadd.f32 %v2392, %v2414
  %2416 = vmatmul.f32.gmra.mxu0 %v516
  %v2417 = vpop.f32.mrf.mxu0
  %v2418 = vadd.f32 %v2395, %v2417
  %2419 = vdwg.mxu0
  %2420 = vmatpush.msra.mxu0 %v2050
  %2421 = vmatpush.msra.mxu0 %v2025
  %2422 = vmatpush.msra.mxu0 %v2000
  %2423 = vmatpush.msra.mxu0 %v1975
  %2424 = vmatpush.msra.mxu0 %v1950
  %2425 = vmatpush.msra.mxu0 %v1925
  %2426 = vmatpush.msra.mxu0 %v1900
  %2427 = vmatpush.msra.mxu0 %v1875
  %2428 = vmatpush.msra.mxu0 %v1850
  %2429 = vmatpush.msra.mxu0 %v1825
  %2430 = vmatpush.msra.mxu0 %v1800
  %2431 = vmatpush.msra.mxu0 %v1775
  %2432 = vmatpush.msra.mxu0 %v1750
  %2433 = vmatpush.msra.mxu0 %v1725
  %2434 = vmatpush.msra.mxu0 %v1700
  %2435 = vmatpush.msra.mxu0 %v1675
  %2436 = vmatmul.f32.gmra.mxu0 %v32
  %v2437 = vpop.f32.mrf.mxu0
  %v2438 = vadd.f32 0.0, %v2437
  %2439 = vmatmul.f32.gmra.mxu0 %v34
  %v2440 = vpop.f32.mrf.mxu0
  %v2441 = vadd.f32 0.0, %v2440
  %2442 = vdwg.mxu0
  %2443 = vmatpush.msra.mxu0 0.0
  %2444 = vmatpush.msra.mxu0 0.0
  %2445 = vmatpush.msra.mxu0 0.0
  %2446 = vmatpush.msra.mxu0 0.0
  %2447 = vmatpush.msra.mxu0 0.0
  %2448 = vmatpush.msra.mxu0 0.0
  %2449 = vmatpush.msra.mxu0 0.0
  %2450 = vmatpush.msra.mxu0 0.0
  %2451 = vmatpush.msra.mxu0 0.0
  %2452 = vmatpush.msra.mxu0 0.0
  %2453 = vmatpush.msra.mxu0 0.0
  %2454 = vmatpush.msra.mxu0 0.0
  %2455 = vmatpush.msra.mxu0 0.0
  %2456 = vmatpush.msra.mxu0 %v2125
  %2457 = vmatpush.msra.mxu0 %v2100
  %2458 = vmatpush.msra.mxu0 %v2075
  %2459 = vmatmul.f32.gmra.mxu0 %v513
  %v2460 = vpop.f32.mrf.mxu0
  %v2461 = vadd.f32 %v2438, %v2460
  %2462 = vmatmul.f32.gmra.mxu0 %v516
  %v2463 = vpop.f32.mrf.mxu0
  %v2464 = vadd.f32 %v2441, %v2463
  %2465 = vdwg.mxu0
  %2466 = vmatpush.msra.mxu0 %v2051
  %2467 = vmatpush.msra.mxu0 %v2026
  %2468 = vmatpush.msra.mxu0 %v2001
  %2469 = vmatpush.msra.mxu0 %v1976
  %2470 = vmatpush.msra.mxu0 %v1951
  %2471 = vmatpush.msra.mxu0 %v1926
  %2472 = vmatpush.msra.mxu0 %v1901
  %2473 = vmatpush.msra.mxu0 %v1876
  %2474 = vmatpush.msra.mxu0 %v1851
  %2475 = vmatpush.msra.mxu0 %v1826
  %2476 = vmatpush.msra.mxu0 %v1801
  %2477 = vmatpush.msra.mxu0 %v1776
  %2478 = vmatpush.msra.mxu0 %v1751
  %2479 = vmatpush.msra.mxu0 %v1726
  %2480 = vmatpush.msra.mxu0 %v1701
  %2481 = vmatpush.msra.mxu0 %v1676
  %2482 = vmatmul.f32.gmra.mxu0 %v32
  %v2483 = vpop.f32.mrf.mxu0
  %v2484 = vadd.f32 0.0, %v2483
  %2485 = vmatmul.f32.gmra.mxu0 %v34
  %v2486 = vpop.f32.mrf.mxu0
  %v2487 = vadd.f32 0.0, %v2486
  %2488 = vdwg.mxu0
  %2489 = vmatpush.msra.mxu0 0.0
  %2490 = vmatpush.msra.mxu0 0.0
  %2491 = vmatpush.msra.mxu0 0.0
  %2492 = vmatpush.msra.mxu0 0.0
  %2493 = vmatpush.msra.mxu0 0.0
  %2494 = vmatpush.msra.mxu0 0.0
  %2495 = vmatpush.msra.mxu0 0.0
  %2496 = vmatpush.msra.mxu0 0.0
  %2497 = vmatpush.msra.mxu0 0.0
  %2498 = vmatpush.msra.mxu0 0.0
  %2499 = vmatpush.msra.mxu0 0.0
  %2500 = vmatpush.msra.mxu0 0.0
  %2501 = vmatpush.msra.mxu0 0.0
  %2502 = vmatpush.msra.mxu0 %v2126
  %2503 = vmatpush.msra.mxu0 %v2101
  %2504 = vmatpush.msra.mxu0 %v2076
  %2505 = vmatmul.f32.gmra.mxu0 %v513
  %v2506 = vpop.f32.mrf.mxu0
  %v2507 = vadd.f32 %v2484, %v2506
  %2508 = vmatmul.f32.gmra.mxu0 %v516
  %v2509 = vpop.f32.mrf.mxu0
  %v2510 = vadd.f32 %v2487, %v2509
  %2511 = vdwg.mxu0
  %2512 = vmatpush.msra.mxu0 %v2052
  %2513 = vmatpush.msra.mxu0 %v2027
  %2514 = vmatpush.msra.mxu0 %v2002
  %2515 = vmatpush.msra.mxu0 %v1977
  %2516 = vmatpush.msra.mxu0 %v1952
  %2517 = vmatpush.msra.mxu0 %v1927
  %2518 = vmatpush.msra.mxu0 %v1902
  %2519 = vmatpush.msra.mxu0 %v1877
  %2520 = vmatpush.msra.mxu0 %v1852
  %2521 = vmatpush.msra.mxu0 %v1827
  %2522 = vmatpush.msra.mxu0 %v1802
  %2523 = vmatpush.msra.mxu0 %v1777
  %2524 = vmatpush.msra.mxu0 %v1752
  %2525 = vmatpush.msra.mxu0 %v1727
  %2526 = vmatpush.msra.mxu0 %v1702
  %2527 = vmatpush.msra.mxu0 %v1677
  %2528 = vmatmul.f32.gmra.mxu0 %v32
  %v2529 = vpop.f32.mrf.mxu0
  %v2530 = vadd.f32 0.0, %v2529
  %2531 = vmatmul.f32.gmra.mxu0 %v34
  %v2532 = vpop.f32.mrf.mxu0
  %v2533 = vadd.f32 0.0, %v2532
  %2534 = vdwg.mxu0
  %2535 = vmatpush.msra.mxu0 0.0
  %2536 = vmatpush.msra.mxu0 0.0
  %2537 = vmatpush.msra.mxu0 0.0
  %2538 = vmatpush.msra.mxu0 0.0
  %2539 = vmatpush.msra.mxu0 0.0
  %2540 = vmatpush.msra.mxu0 0.0
  %2541 = vmatpush.msra.mxu0 0.0
  %2542 = vmatpush.msra.mxu0 0.0
  %2543 = vmatpush.msra.mxu0 0.0
  %2544 = vmatpush.msra.mxu0 0.0
  %2545 = vmatpush.msra.mxu0 0.0
  %2546 = vmatpush.msra.mxu0 0.0
  %2547 = vmatpush.msra.mxu0 0.0
  %2548 = vmatpush.msra.mxu0 %v2127
  %2549 = vmatpush.msra.mxu0 %v2102
  %2550 = vmatpush.msra.mxu0 %v2077
  %2551 = vmatmul.f32.gmra.mxu0 %v513
  %v2552 = vpop.f32.mrf.mxu0
  %v2553 = vadd.f32 %v2530, %v2552
  %2554 = vmatmul.f32.gmra.mxu0 %v516
  %v2555 = vpop.f32.mrf.mxu0
  %v2556 = vadd.f32 %v2533, %v2555
  %2557 = vdwg.mxu0
  %2558 = vmatpush.msra.mxu0 %v2053
  %2559 = vmatpush.msra.mxu0 %v2028
  %2560 = vmatpush.msra.mxu0 %v2003
  %2561 = vmatpush.msra.mxu0 %v1978
  %2562 = vmatpush.msra.mxu0 %v1953
  %2563 = vmatpush.msra.mxu0 %v1928
  %2564 = vmatpush.msra.mxu0 %v1903
  %2565 = vmatpush.msra.mxu0 %v1878
  %2566 = vmatpush.msra.mxu0 %v1853
  %2567 = vmatpush.msra.mxu0 %v1828
  %2568 = vmatpush.msra.mxu0 %v1803
  %2569 = vmatpush.msra.mxu0 %v1778
  %2570 = vmatpush.msra.mxu0 %v1753
  %2571 = vmatpush.msra.mxu0 %v1728
  %2572 = vmatpush.msra.mxu0 %v1703
  %2573 = vmatpush.msra.mxu0 %v1678
  %2574 = vmatmul.f32.gmra.mxu0 %v32
  %v2575 = vpop.f32.mrf.mxu0
  %v2576 = vadd.f32 0.0, %v2575
  %2577 = vmatmul.f32.gmra.mxu0 %v34
  %v2578 = vpop.f32.mrf.mxu0
  %v2579 = vadd.f32 0.0, %v2578
  %2580 = vdwg.mxu0
  %2581 = vmatpush.msra.mxu0 0.0
  %2582 = vmatpush.msra.mxu0 0.0
  %2583 = vmatpush.msra.mxu0 0.0
  %2584 = vmatpush.msra.mxu0 0.0
  %2585 = vmatpush.msra.mxu0 0.0
  %2586 = vmatpush.msra.mxu0 0.0
  %2587 = vmatpush.msra.mxu0 0.0
  %2588 = vmatpush.msra.mxu0 0.0
  %2589 = vmatpush.msra.mxu0 0.0
  %2590 = vmatpush.msra.mxu0 0.0
  %2591 = vmatpush.msra.mxu0 0.0
  %2592 = vmatpush.msra.mxu0 0.0
  %2593 = vmatpush.msra.mxu0 0.0
  %2594 = vmatpush.msra.mxu0 %v2128
  %2595 = vmatpush.msra.mxu0 %v2103
  %2596 = vmatpush.msra.mxu0 %v2078
  %2597 = vmatmul.f32.gmra.mxu0 %v513
  %v2598 = vpop.f32.mrf.mxu0
  %v2599 = vadd.f32 %v2576, %v2598
  %2600 = vmatmul.f32.gmra.mxu0 %v516
  %v2601 = vpop.f32.mrf.mxu0
  %v2602 = vadd.f32 %v2579, %v2601
  %2603 = vdwg.mxu0
  %2604 = vmatpush.msra.mxu0 %v2054
  %2605 = vmatpush.msra.mxu0 %v2029
  %2606 = vmatpush.msra.mxu0 %v2004
  %2607 = vmatpush.msra.mxu0 %v1979
  %2608 = vmatpush.msra.mxu0 %v1954
  %2609 = vmatpush.msra.mxu0 %v1929
  %2610 = vmatpush.msra.mxu0 %v1904
  %2611 = vmatpush.msra.mxu0 %v1879
  %2612 = vmatpush.msra.mxu0 %v1854
  %2613 = vmatpush.msra.mxu0 %v1829
  %2614 = vmatpush.msra.mxu0 %v1804
  %2615 = vmatpush.msra.mxu0 %v1779
  %2616 = vmatpush.msra.mxu0 %v1754
  %2617 = vmatpush.msra.mxu0 %v1729
  %2618 = vmatpush.msra.mxu0 %v1704
  %2619 = vmatpush.msra.mxu0 %v1679
  %2620 = vmatmul.f32.gmra.mxu0 %v32
  %v2621 = vpop.f32.mrf.mxu0
  %v2622 = vadd.f32 0.0, %v2621
  %2623 = vmatmul.f32.gmra.mxu0 %v34
  %v2624 = vpop.f32.mrf.mxu0
  %v2625 = vadd.f32 0.0, %v2624
  %2626 = vdwg.mxu0
  %2627 = vmatpush.msra.mxu0 0.0
  %2628 = vmatpush.msra.mxu0 0.0
  %2629 = vmatpush.msra.mxu0 0.0
  %2630 = vmatpush.msra.mxu0 0.0
  %2631 = vmatpush.msra.mxu0 0.0
  %2632 = vmatpush.msra.mxu0 0.0
  %2633 = vmatpush.msra.mxu0 0.0
  %2634 = vmatpush.msra.mxu0 0.0
  %2635 = vmatpush.msra.mxu0 0.0
  %2636 = vmatpush.msra.mxu0 0.0
  %2637 = vmatpush.msra.mxu0 0.0
  %2638 = vmatpush.msra.mxu0 0.0
  %2639 = vmatpush.msra.mxu0 0.0
  %2640 = vmatpush.msra.mxu0 %v2129
  %2641 = vmatpush.msra.mxu0 %v2104
  %2642 = vmatpush.msra.mxu0 %v2079
  %2643 = vmatmul.f32.gmra.mxu0 %v513
  %v2644 = vpop.f32.mrf.mxu0
  %v2645 = vadd.f32 %v2622, %v2644
  %2646 = vmatmul.f32.gmra.mxu0 %v516
  %v2647 = vpop.f32.mrf.mxu0
  %v2648 = vadd.f32 %v2625, %v2647
  %2649 = vdwg.mxu0
  %2650 = vmatpush.msra.mxu0 %v2055
  %2651 = vmatpush.msra.mxu0 %v2030
  %2652 = vmatpush.msra.mxu0 %v2005
  %2653 = vmatpush.msra.mxu0 %v1980
  %2654 = vmatpush.msra.mxu0 %v1955
  %2655 = vmatpush.msra.mxu0 %v1930
  %2656 = vmatpush.msra.mxu0 %v1905
  %2657 = vmatpush.msra.mxu0 %v1880
  %2658 = vmatpush.msra.mxu0 %v1855
  %2659 = vmatpush.msra.mxu0 %v1830
  %2660 = vmatpush.msra.mxu0 %v1805
  %2661 = vmatpush.msra.mxu0 %v1780
  %2662 = vmatpush.msra.mxu0 %v1755
  %2663 = vmatpush.msra.mxu0 %v1730
  %2664 = vmatpush.msra.mxu0 %v1705
  %2665 = vmatpush.msra.mxu0 %v1680
  %2666 = vmatmul.f32.gmra.mxu0 %v32
  %v2667 = vpop.f32.mrf.mxu0
  %v2668 = vadd.f32 0.0, %v2667
  %2669 = vmatmul.f32.gmra.mxu0 %v34
  %v2670 = vpop.f32.mrf.mxu0
  %v2671 = vadd.f32 0.0, %v2670
  %2672 = vdwg.mxu0
  %2673 = vmatpush.msra.mxu0 0.0
  %2674 = vmatpush.msra.mxu0 0.0
  %2675 = vmatpush.msra.mxu0 0.0
  %2676 = vmatpush.msra.mxu0 0.0
  %2677 = vmatpush.msra.mxu0 0.0
  %2678 = vmatpush.msra.mxu0 0.0
  %2679 = vmatpush.msra.mxu0 0.0
  %2680 = vmatpush.msra.mxu0 0.0
  %2681 = vmatpush.msra.mxu0 0.0
  %2682 = vmatpush.msra.mxu0 0.0
  %2683 = vmatpush.msra.mxu0 0.0
  %2684 = vmatpush.msra.mxu0 0.0
  %2685 = vmatpush.msra.mxu0 0.0
  %2686 = vmatpush.msra.mxu0 %v2130
  %2687 = vmatpush.msra.mxu0 %v2105
  %2688 = vmatpush.msra.mxu0 %v2080
  %2689 = vmatmul.f32.gmra.mxu0 %v513
  %v2690 = vpop.f32.mrf.mxu0
  %v2691 = vadd.f32 %v2668, %v2690
  %2692 = vmatmul.f32.gmra.mxu0 %v516
  %v2693 = vpop.f32.mrf.mxu0
  %v2694 = vadd.f32 %v2671, %v2693
  %2695 = vdwg.mxu0
  %2696 = vmatpush.msra.mxu0 %v2056
  %2697 = vmatpush.msra.mxu0 %v2031
  %2698 = vmatpush.msra.mxu0 %v2006
  %2699 = vmatpush.msra.mxu0 %v1981
  %2700 = vmatpush.msra.mxu0 %v1956
  %2701 = vmatpush.msra.mxu0 %v1931
  %2702 = vmatpush.msra.mxu0 %v1906
  %2703 = vmatpush.msra.mxu0 %v1881
  %2704 = vmatpush.msra.mxu0 %v1856
  %2705 = vmatpush.msra.mxu0 %v1831
  %2706 = vmatpush.msra.mxu0 %v1806
  %2707 = vmatpush.msra.mxu0 %v1781
  %2708 = vmatpush.msra.mxu0 %v1756
  %2709 = vmatpush.msra.mxu0 %v1731
  %2710 = vmatpush.msra.mxu0 %v1706
  %2711 = vmatpush.msra.mxu0 %v1681
  %2712 = vmatmul.f32.gmra.mxu0 %v32
  %v2713 = vpop.f32.mrf.mxu0
  %v2714 = vadd.f32 0.0, %v2713
  %2715 = vmatmul.f32.gmra.mxu0 %v34
  %v2716 = vpop.f32.mrf.mxu0
  %v2717 = vadd.f32 0.0, %v2716
  %2718 = vdwg.mxu0
  %2719 = vmatpush.msra.mxu0 0.0
  %2720 = vmatpush.msra.mxu0 0.0
  %2721 = vmatpush.msra.mxu0 0.0
  %2722 = vmatpush.msra.mxu0 0.0
  %2723 = vmatpush.msra.mxu0 0.0
  %2724 = vmatpush.msra.mxu0 0.0
  %2725 = vmatpush.msra.mxu0 0.0
  %2726 = vmatpush.msra.mxu0 0.0
  %2727 = vmatpush.msra.mxu0 0.0
  %2728 = vmatpush.msra.mxu0 0.0
  %2729 = vmatpush.msra.mxu0 0.0
  %2730 = vmatpush.msra.mxu0 0.0
  %2731 = vmatpush.msra.mxu0 0.0
  %2732 = vmatpush.msra.mxu0 %v2131
  %2733 = vmatpush.msra.mxu0 %v2106
  %2734 = vmatpush.msra.mxu0 %v2081
  %2735 = vmatmul.f32.gmra.mxu0 %v513
  %v2736 = vpop.f32.mrf.mxu0
  %v2737 = vadd.f32 %v2714, %v2736
  %2738 = vmatmul.f32.gmra.mxu0 %v516
  %v2739 = vpop.f32.mrf.mxu0
  %v2740 = vadd.f32 %v2717, %v2739
  %2741 = vdwg.mxu0
  %2742 = vmatpush.msra.mxu0 %v2057
  %2743 = vmatpush.msra.mxu0 %v2032
  %2744 = vmatpush.msra.mxu0 %v2007
  %2745 = vmatpush.msra.mxu0 %v1982
  %2746 = vmatpush.msra.mxu0 %v1957
  %2747 = vmatpush.msra.mxu0 %v1932
  %2748 = vmatpush.msra.mxu0 %v1907
  %2749 = vmatpush.msra.mxu0 %v1882
  %2750 = vmatpush.msra.mxu0 %v1857
  %2751 = vmatpush.msra.mxu0 %v1832
  %2752 = vmatpush.msra.mxu0 %v1807
  %2753 = vmatpush.msra.mxu0 %v1782
  %2754 = vmatpush.msra.mxu0 %v1757
  %2755 = vmatpush.msra.mxu0 %v1732
  %2756 = vmatpush.msra.mxu0 %v1707
  %2757 = vmatpush.msra.mxu0 %v1682
  %2758 = vmatmul.f32.gmra.mxu0 %v32
  %v2759 = vpop.f32.mrf.mxu0
  %v2760 = vadd.f32 0.0, %v2759
  %2761 = vmatmul.f32.gmra.mxu0 %v34
  %v2762 = vpop.f32.mrf.mxu0
  %v2763 = vadd.f32 0.0, %v2762
  %2764 = vdwg.mxu0
  %2765 = vmatpush.msra.mxu0 0.0
  %2766 = vmatpush.msra.mxu0 0.0
  %2767 = vmatpush.msra.mxu0 0.0
  %2768 = vmatpush.msra.mxu0 0.0
  %2769 = vmatpush.msra.mxu0 0.0
  %2770 = vmatpush.msra.mxu0 0.0
  %2771 = vmatpush.msra.mxu0 0.0
  %2772 = vmatpush.msra.mxu0 0.0
  %2773 = vmatpush.msra.mxu0 0.0
  %2774 = vmatpush.msra.mxu0 0.0
  %2775 = vmatpush.msra.mxu0 0.0
  %2776 = vmatpush.msra.mxu0 0.0
  %2777 = vmatpush.msra.mxu0 0.0
  %2778 = vmatpush.msra.mxu0 %v2132
  %2779 = vmatpush.msra.mxu0 %v2107
  %2780 = vmatpush.msra.mxu0 %v2082
  %2781 = vmatmul.f32.gmra.mxu0 %v513
  %v2782 = vpop.f32.mrf.mxu0
  %v2783 = vadd.f32 %v2760, %v2782
  %2784 = vmatmul.f32.gmra.mxu0 %v516
  %v2785 = vpop.f32.mrf.mxu0
  %v2786 = vadd.f32 %v2763, %v2785
  %2787 = vdwg.mxu0
  %2788 = vmatpush.msra.mxu0 %v2058
  %2789 = vmatpush.msra.mxu0 %v2033
  %2790 = vmatpush.msra.mxu0 %v2008
  %2791 = vmatpush.msra.mxu0 %v1983
  %2792 = vmatpush.msra.mxu0 %v1958
  %2793 = vmatpush.msra.mxu0 %v1933
  %2794 = vmatpush.msra.mxu0 %v1908
  %2795 = vmatpush.msra.mxu0 %v1883
  %2796 = vmatpush.msra.mxu0 %v1858
  %2797 = vmatpush.msra.mxu0 %v1833
  %2798 = vmatpush.msra.mxu0 %v1808
  %2799 = vmatpush.msra.mxu0 %v1783
  %2800 = vmatpush.msra.mxu0 %v1758
  %2801 = vmatpush.msra.mxu0 %v1733
  %2802 = vmatpush.msra.mxu0 %v1708
  %2803 = vmatpush.msra.mxu0 %v1683
  %2804 = vmatmul.f32.gmra.mxu0 %v32
  %v2805 = vpop.f32.mrf.mxu0
  %v2806 = vadd.f32 0.0, %v2805
  %2807 = vmatmul.f32.gmra.mxu0 %v34
  %v2808 = vpop.f32.mrf.mxu0
  %v2809 = vadd.f32 0.0, %v2808
  %2810 = vdwg.mxu0
  %2811 = vmatpush.msra.mxu0 0.0
  %2812 = vmatpush.msra.mxu0 0.0
  %2813 = vmatpush.msra.mxu0 0.0
  %2814 = vmatpush.msra.mxu0 0.0
  %2815 = vmatpush.msra.mxu0 0.0
  %2816 = vmatpush.msra.mxu0 0.0
  %2817 = vmatpush.msra.mxu0 0.0
  %2818 = vmatpush.msra.mxu0 0.0
  %2819 = vmatpush.msra.mxu0 0.0
  %2820 = vmatpush.msra.mxu0 0.0
  %2821 = vmatpush.msra.mxu0 0.0
  %2822 = vmatpush.msra.mxu0 0.0
  %2823 = vmatpush.msra.mxu0 0.0
  %2824 = vmatpush.msra.mxu0 %v2133
  %2825 = vmatpush.msra.mxu0 %v2108
  %2826 = vmatpush.msra.mxu0 %v2083
  %2827 = vmatmul.f32.gmra.mxu0 %v513
  %v2828 = vpop.f32.mrf.mxu0
  %v2829 = vadd.f32 %v2806, %v2828
  %2830 = vmatmul.f32.gmra.mxu0 %v516
  %v2831 = vpop.f32.mrf.mxu0
  %v2832 = vadd.f32 %v2809, %v2831
  %2833 = vdwg.mxu0
  %2834 = vmatpush.msra.mxu0 %v2059
  %2835 = vmatpush.msra.mxu0 %v2034
  %2836 = vmatpush.msra.mxu0 %v2009
  %2837 = vmatpush.msra.mxu0 %v1984
  %2838 = vmatpush.msra.mxu0 %v1959
  %2839 = vmatpush.msra.mxu0 %v1934
  %2840 = vmatpush.msra.mxu0 %v1909
  %2841 = vmatpush.msra.mxu0 %v1884
  %2842 = vmatpush.msra.mxu0 %v1859
  %2843 = vmatpush.msra.mxu0 %v1834
  %2844 = vmatpush.msra.mxu0 %v1809
  %2845 = vmatpush.msra.mxu0 %v1784
  %2846 = vmatpush.msra.mxu0 %v1759
  %2847 = vmatpush.msra.mxu0 %v1734
  %2848 = vmatpush.msra.mxu0 %v1709
  %2849 = vmatpush.msra.mxu0 %v1684
  %2850 = vmatmul.f32.gmra.mxu0 %v32
  %v2851 = vpop.f32.mrf.mxu0
  %v2852 = vadd.f32 0.0, %v2851
  %2853 = vmatmul.f32.gmra.mxu0 %v34
  %v2854 = vpop.f32.mrf.mxu0
  %v2855 = vadd.f32 0.0, %v2854
  %2856 = vdwg.mxu0
  %2857 = vmatpush.msra.mxu0 0.0
  %2858 = vmatpush.msra.mxu0 0.0
  %2859 = vmatpush.msra.mxu0 0.0
  %2860 = vmatpush.msra.mxu0 0.0
  %2861 = vmatpush.msra.mxu0 0.0
  %2862 = vmatpush.msra.mxu0 0.0
  %2863 = vmatpush.msra.mxu0 0.0
  %2864 = vmatpush.msra.mxu0 0.0
  %2865 = vmatpush.msra.mxu0 0.0
  %2866 = vmatpush.msra.mxu0 0.0
  %2867 = vmatpush.msra.mxu0 0.0
  %2868 = vmatpush.msra.mxu0 0.0
  %2869 = vmatpush.msra.mxu0 0.0
  %2870 = vmatpush.msra.mxu0 %v2134
  %2871 = vmatpush.msra.mxu0 %v2109
  %2872 = vmatpush.msra.mxu0 %v2084
  %2873 = vmatmul.f32.gmra.mxu0 %v513
  %v2874 = vpop.f32.mrf.mxu0
  %v2875 = vadd.f32 %v2852, %v2874
  %2876 = vmatmul.f32.gmra.mxu0 %v516
  %v2877 = vpop.f32.mrf.mxu0
  %v2878 = vadd.f32 %v2855, %v2877
  %2879 = vdwg.mxu0
  %2880 = vmatpush.msra.mxu0 %v2060
  %2881 = vmatpush.msra.mxu0 %v2035
  %2882 = vmatpush.msra.mxu0 %v2010
  %2883 = vmatpush.msra.mxu0 %v1985
  %2884 = vmatpush.msra.mxu0 %v1960
  %2885 = vmatpush.msra.mxu0 %v1935
  %2886 = vmatpush.msra.mxu0 %v1910
  %2887 = vmatpush.msra.mxu0 %v1885
  %2888 = vmatpush.msra.mxu0 %v1860
  %2889 = vmatpush.msra.mxu0 %v1835
  %2890 = vmatpush.msra.mxu0 %v1810
  %2891 = vmatpush.msra.mxu0 %v1785
  %2892 = vmatpush.msra.mxu0 %v1760
  %2893 = vmatpush.msra.mxu0 %v1735
  %2894 = vmatpush.msra.mxu0 %v1710
  %2895 = vmatpush.msra.mxu0 %v1685
  %2896 = vmatmul.f32.gmra.mxu0 %v32
  %v2897 = vpop.f32.mrf.mxu0
  %v2898 = vadd.f32 0.0, %v2897
  %2899 = vmatmul.f32.gmra.mxu0 %v34
  %v2900 = vpop.f32.mrf.mxu0
  %v2901 = vadd.f32 0.0, %v2900
  %2902 = vdwg.mxu0
  %2903 = vmatpush.msra.mxu0 0.0
  %2904 = vmatpush.msra.mxu0 0.0
  %2905 = vmatpush.msra.mxu0 0.0
  %2906 = vmatpush.msra.mxu0 0.0
  %2907 = vmatpush.msra.mxu0 0.0
  %2908 = vmatpush.msra.mxu0 0.0
  %2909 = vmatpush.msra.mxu0 0.0
  %2910 = vmatpush.msra.mxu0 0.0
  %2911 = vmatpush.msra.mxu0 0.0
  %2912 = vmatpush.msra.mxu0 0.0
  %2913 = vmatpush.msra.mxu0 0.0
  %2914 = vmatpush.msra.mxu0 0.0
  %2915 = vmatpush.msra.mxu0 0.0
  %2916 = vmatpush.msra.mxu0 %v2135
  %2917 = vmatpush.msra.mxu0 %v2110
  %2918 = vmatpush.msra.mxu0 %v2085
  %2919 = vmatmul.f32.gmra.mxu0 %v513
  %v2920 = vpop.f32.mrf.mxu0
  %v2921 = vadd.f32 %v2898, %v2920
  %2922 = vmatmul.f32.gmra.mxu0 %v516
  %v2923 = vpop.f32.mrf.mxu0
  %v2924 = vadd.f32 %v2901, %v2923
  %2925 = vdwg.mxu0
  %2926 = vmatpush.msra.mxu0 %v2061
  %2927 = vmatpush.msra.mxu0 %v2036
  %2928 = vmatpush.msra.mxu0 %v2011
  %2929 = vmatpush.msra.mxu0 %v1986
  %2930 = vmatpush.msra.mxu0 %v1961
  %2931 = vmatpush.msra.mxu0 %v1936
  %2932 = vmatpush.msra.mxu0 %v1911
  %2933 = vmatpush.msra.mxu0 %v1886
  %2934 = vmatpush.msra.mxu0 %v1861
  %2935 = vmatpush.msra.mxu0 %v1836
  %2936 = vmatpush.msra.mxu0 %v1811
  %2937 = vmatpush.msra.mxu0 %v1786
  %2938 = vmatpush.msra.mxu0 %v1761
  %2939 = vmatpush.msra.mxu0 %v1736
  %2940 = vmatpush.msra.mxu0 %v1711
  %2941 = vmatpush.msra.mxu0 %v1686
  %2942 = vmatmul.f32.gmra.mxu0 %v32
  %v2943 = vpop.f32.mrf.mxu0
  %v2944 = vadd.f32 0.0, %v2943
  %2945 = vmatmul.f32.gmra.mxu0 %v34
  %v2946 = vpop.f32.mrf.mxu0
  %v2947 = vadd.f32 0.0, %v2946
  %2948 = vdwg.mxu0
  %2949 = vmatpush.msra.mxu0 0.0
  %2950 = vmatpush.msra.mxu0 0.0
  %2951 = vmatpush.msra.mxu0 0.0
  %2952 = vmatpush.msra.mxu0 0.0
  %2953 = vmatpush.msra.mxu0 0.0
  %2954 = vmatpush.msra.mxu0 0.0
  %2955 = vmatpush.msra.mxu0 0.0
  %2956 = vmatpush.msra.mxu0 0.0
  %2957 = vmatpush.msra.mxu0 0.0
  %2958 = vmatpush.msra.mxu0 0.0
  %2959 = vmatpush.msra.mxu0 0.0
  %2960 = vmatpush.msra.mxu0 0.0
  %2961 = vmatpush.msra.mxu0 0.0
  %2962 = vmatpush.msra.mxu0 %v2136
  %2963 = vmatpush.msra.mxu0 %v2111
  %2964 = vmatpush.msra.mxu0 %v2086
  %2965 = vmatmul.f32.gmra.mxu0 %v513
  %v2966 = vpop.f32.mrf.mxu0
  %v2967 = vadd.f32 %v2944, %v2966
  %2968 = vmatmul.f32.gmra.mxu0 %v516
  %v2969 = vpop.f32.mrf.mxu0
  %v2970 = vadd.f32 %v2947, %v2969
  %2971 = vdwg.mxu0
  %2972 = vmatpush.msra.mxu0 %v2062
  %2973 = vmatpush.msra.mxu0 %v2037
  %2974 = vmatpush.msra.mxu0 %v2012
  %2975 = vmatpush.msra.mxu0 %v1987
  %2976 = vmatpush.msra.mxu0 %v1962
  %2977 = vmatpush.msra.mxu0 %v1937
  %2978 = vmatpush.msra.mxu0 %v1912
  %2979 = vmatpush.msra.mxu0 %v1887
  %2980 = vmatpush.msra.mxu0 %v1862
  %2981 = vmatpush.msra.mxu0 %v1837
  %2982 = vmatpush.msra.mxu0 %v1812
  %2983 = vmatpush.msra.mxu0 %v1787
  %2984 = vmatpush.msra.mxu0 %v1762
  %2985 = vmatpush.msra.mxu0 %v1737
  %2986 = vmatpush.msra.mxu0 %v1712
  %2987 = vmatpush.msra.mxu0 %v1687
  %2988 = vmatmul.f32.gmra.mxu0 %v32
  %v2989 = vpop.f32.mrf.mxu0
  %v2990 = vadd.f32 0.0, %v2989
  %2991 = vmatmul.f32.gmra.mxu0 %v34
  %v2992 = vpop.f32.mrf.mxu0
  %v2993 = vadd.f32 0.0, %v2992
  %2994 = vdwg.mxu0
  %2995 = vmatpush.msra.mxu0 0.0
  %2996 = vmatpush.msra.mxu0 0.0
  %2997 = vmatpush.msra.mxu0 0.0
  %2998 = vmatpush.msra.mxu0 0.0
  %2999 = vmatpush.msra.mxu0 0.0
  %3000 = vmatpush.msra.mxu0 0.0
  %3001 = vmatpush.msra.mxu0 0.0
  %3002 = vmatpush.msra.mxu0 0.0
  %3003 = vmatpush.msra.mxu0 0.0
  %3004 = vmatpush.msra.mxu0 0.0
  %3005 = vmatpush.msra.mxu0 0.0
  %3006 = vmatpush.msra.mxu0 0.0
  %3007 = vmatpush.msra.mxu0 0.0
  %3008 = vmatpush.msra.mxu0 %v2137
  %3009 = vmatpush.msra.mxu0 %v2112
  %3010 = vmatpush.msra.mxu0 %v2087
  %3011 = vmatmul.f32.gmra.mxu0 %v513
  %v3012 = vpop.f32.mrf.mxu0
  %v3013 = vadd.f32 %v2990, %v3012
  %3014 = vmatmul.f32.gmra.mxu0 %v516
  %v3015 = vpop.f32.mrf.mxu0
  %v3016 = vadd.f32 %v2993, %v3015
  %3017 = vdwg.mxu0
  %3018 = vmatpush.msra.mxu0 %v2063
  %3019 = vmatpush.msra.mxu0 %v2038
  %3020 = vmatpush.msra.mxu0 %v2013
  %3021 = vmatpush.msra.mxu0 %v1988
  %3022 = vmatpush.msra.mxu0 %v1963
  %3023 = vmatpush.msra.mxu0 %v1938
  %3024 = vmatpush.msra.mxu0 %v1913
  %3025 = vmatpush.msra.mxu0 %v1888
  %3026 = vmatpush.msra.mxu0 %v1863
  %3027 = vmatpush.msra.mxu0 %v1838
  %3028 = vmatpush.msra.mxu0 %v1813
  %3029 = vmatpush.msra.mxu0 %v1788
  %3030 = vmatpush.msra.mxu0 %v1763
  %3031 = vmatpush.msra.mxu0 %v1738
  %3032 = vmatpush.msra.mxu0 %v1713
  %3033 = vmatpush.msra.mxu0 %v1688
  %3034 = vmatmul.f32.gmra.mxu0 %v32
  %v3035 = vpop.f32.mrf.mxu0
  %v3036 = vadd.f32 0.0, %v3035
  %3037 = vmatmul.f32.gmra.mxu0 %v34
  %v3038 = vpop.f32.mrf.mxu0
  %v3039 = vadd.f32 0.0, %v3038
  %3040 = vdwg.mxu0
  %3041 = vmatpush.msra.mxu0 0.0
  %3042 = vmatpush.msra.mxu0 0.0
  %3043 = vmatpush.msra.mxu0 0.0
  %3044 = vmatpush.msra.mxu0 0.0
  %3045 = vmatpush.msra.mxu0 0.0
  %3046 = vmatpush.msra.mxu0 0.0
  %3047 = vmatpush.msra.mxu0 0.0
  %3048 = vmatpush.msra.mxu0 0.0
  %3049 = vmatpush.msra.mxu0 0.0
  %3050 = vmatpush.msra.mxu0 0.0
  %3051 = vmatpush.msra.mxu0 0.0
  %3052 = vmatpush.msra.mxu0 0.0
  %3053 = vmatpush.msra.mxu0 0.0
  %3054 = vmatpush.msra.mxu0 %v2138
  %3055 = vmatpush.msra.mxu0 %v2113
  %3056 = vmatpush.msra.mxu0 %v2088
  %3057 = vmatmul.f32.gmra.mxu0 %v513
  %v3058 = vpop.f32.mrf.mxu0
  %v3059 = vadd.f32 %v3036, %v3058
  %3060 = vmatmul.f32.gmra.mxu0 %v516
  %v3061 = vpop.f32.mrf.mxu0
  %v3062 = vadd.f32 %v3039, %v3061
  %3063 = vdwg.mxu0
  %3064 = vmatpush.msra.mxu0 %v2064
  %3065 = vmatpush.msra.mxu0 %v2039
  %3066 = vmatpush.msra.mxu0 %v2014
  %3067 = vmatpush.msra.mxu0 %v1989
  %3068 = vmatpush.msra.mxu0 %v1964
  %3069 = vmatpush.msra.mxu0 %v1939
  %3070 = vmatpush.msra.mxu0 %v1914
  %3071 = vmatpush.msra.mxu0 %v1889
  %3072 = vmatpush.msra.mxu0 %v1864
  %3073 = vmatpush.msra.mxu0 %v1839
  %3074 = vmatpush.msra.mxu0 %v1814
  %3075 = vmatpush.msra.mxu0 %v1789
  %3076 = vmatpush.msra.mxu0 %v1764
  %3077 = vmatpush.msra.mxu0 %v1739
  %3078 = vmatpush.msra.mxu0 %v1714
  %3079 = vmatpush.msra.mxu0 %v1689
  %3080 = vmatmul.f32.gmra.mxu0 %v32
  %v3081 = vpop.f32.mrf.mxu0
  %v3082 = vadd.f32 0.0, %v3081
  %3083 = vmatmul.f32.gmra.mxu0 %v34
  %v3084 = vpop.f32.mrf.mxu0
  %v3085 = vadd.f32 0.0, %v3084
  %3086 = vdwg.mxu0
  %3087 = vmatpush.msra.mxu0 0.0
  %3088 = vmatpush.msra.mxu0 0.0
  %3089 = vmatpush.msra.mxu0 0.0
  %3090 = vmatpush.msra.mxu0 0.0
  %3091 = vmatpush.msra.mxu0 0.0
  %3092 = vmatpush.msra.mxu0 0.0
  %3093 = vmatpush.msra.mxu0 0.0
  %3094 = vmatpush.msra.mxu0 0.0
  %3095 = vmatpush.msra.mxu0 0.0
  %3096 = vmatpush.msra.mxu0 0.0
  %3097 = vmatpush.msra.mxu0 0.0
  %3098 = vmatpush.msra.mxu0 0.0
  %3099 = vmatpush.msra.mxu0 0.0
  %3100 = vmatpush.msra.mxu0 %v2139
  %3101 = vmatpush.msra.mxu0 %v2114
  %3102 = vmatpush.msra.mxu0 %v2089
  %3103 = vmatmul.f32.gmra.mxu0 %v513
  %v3104 = vpop.f32.mrf.mxu0
  %v3105 = vadd.f32 %v3082, %v3104
  %3106 = vmatmul.f32.gmra.mxu0 %v516
  %v3107 = vpop.f32.mrf.mxu0
  %v3108 = vadd.f32 %v3085, %v3107
  %3109 = vdwg.mxu0
  %3110 = vmatpush.msra.mxu0 %v2065
  %3111 = vmatpush.msra.mxu0 %v2040
  %3112 = vmatpush.msra.mxu0 %v2015
  %3113 = vmatpush.msra.mxu0 %v1990
  %3114 = vmatpush.msra.mxu0 %v1965
  %3115 = vmatpush.msra.mxu0 %v1940
  %3116 = vmatpush.msra.mxu0 %v1915
  %3117 = vmatpush.msra.mxu0 %v1890
  %3118 = vmatpush.msra.mxu0 %v1865
  %3119 = vmatpush.msra.mxu0 %v1840
  %3120 = vmatpush.msra.mxu0 %v1815
  %3121 = vmatpush.msra.mxu0 %v1790
  %3122 = vmatpush.msra.mxu0 %v1765
  %3123 = vmatpush.msra.mxu0 %v1740
  %3124 = vmatpush.msra.mxu0 %v1715
  %3125 = vmatpush.msra.mxu0 %v1690
  %3126 = vmatmul.f32.gmra.mxu0 %v32
  %v3127 = vpop.f32.mrf.mxu0
  %v3128 = vadd.f32 0.0, %v3127
  %3129 = vmatmul.f32.gmra.mxu0 %v34
  %v3130 = vpop.f32.mrf.mxu0
  %v3131 = vadd.f32 0.0, %v3130
  %3132 = vdwg.mxu0
  %3133 = vmatpush.msra.mxu0 0.0
  %3134 = vmatpush.msra.mxu0 0.0
  %3135 = vmatpush.msra.mxu0 0.0
  %3136 = vmatpush.msra.mxu0 0.0
  %3137 = vmatpush.msra.mxu0 0.0
  %3138 = vmatpush.msra.mxu0 0.0
  %3139 = vmatpush.msra.mxu0 0.0
  %3140 = vmatpush.msra.mxu0 0.0
  %3141 = vmatpush.msra.mxu0 0.0
  %3142 = vmatpush.msra.mxu0 0.0
  %3143 = vmatpush.msra.mxu0 0.0
  %3144 = vmatpush.msra.mxu0 0.0
  %3145 = vmatpush.msra.mxu0 0.0
  %3146 = vmatpush.msra.mxu0 %v2140
  %3147 = vmatpush.msra.mxu0 %v2115
  %3148 = vmatpush.msra.mxu0 %v2090
  %3149 = vmatmul.f32.gmra.mxu0 %v513
  %v3150 = vpop.f32.mrf.mxu0
  %v3151 = vadd.f32 %v3128, %v3150
  %3152 = vmatmul.f32.gmra.mxu0 %v516
  %v3153 = vpop.f32.mrf.mxu0
  %v3154 = vadd.f32 %v3131, %v3153
  %3155 = vdwg.mxu0
  %3156 = vmatpush.msra.mxu0 %v2066
  %3157 = vmatpush.msra.mxu0 %v2041
  %3158 = vmatpush.msra.mxu0 %v2016
  %3159 = vmatpush.msra.mxu0 %v1991
  %3160 = vmatpush.msra.mxu0 %v1966
  %3161 = vmatpush.msra.mxu0 %v1941
  %3162 = vmatpush.msra.mxu0 %v1916
  %3163 = vmatpush.msra.mxu0 %v1891
  %3164 = vmatpush.msra.mxu0 %v1866
  %3165 = vmatpush.msra.mxu0 %v1841
  %3166 = vmatpush.msra.mxu0 %v1816
  %3167 = vmatpush.msra.mxu0 %v1791
  %3168 = vmatpush.msra.mxu0 %v1766
  %3169 = vmatpush.msra.mxu0 %v1741
  %3170 = vmatpush.msra.mxu0 %v1716
  %3171 = vmatpush.msra.mxu0 %v1691
  %3172 = vmatmul.f32.gmra.mxu0 %v32
  %v3173 = vpop.f32.mrf.mxu0
  %v3174 = vadd.f32 0.0, %v3173
  %3175 = vmatmul.f32.gmra.mxu0 %v34
  %v3176 = vpop.f32.mrf.mxu0
  %v3177 = vadd.f32 0.0, %v3176
  %3178 = vdwg.mxu0
  %3179 = vmatpush.msra.mxu0 0.0
  %3180 = vmatpush.msra.mxu0 0.0
  %3181 = vmatpush.msra.mxu0 0.0
  %3182 = vmatpush.msra.mxu0 0.0
  %3183 = vmatpush.msra.mxu0 0.0
  %3184 = vmatpush.msra.mxu0 0.0
  %3185 = vmatpush.msra.mxu0 0.0
  %3186 = vmatpush.msra.mxu0 0.0
  %3187 = vmatpush.msra.mxu0 0.0
  %3188 = vmatpush.msra.mxu0 0.0
  %3189 = vmatpush.msra.mxu0 0.0
  %3190 = vmatpush.msra.mxu0 0.0
  %3191 = vmatpush.msra.mxu0 0.0
  %3192 = vmatpush.msra.mxu0 %v2141
  %3193 = vmatpush.msra.mxu0 %v2116
  %3194 = vmatpush.msra.mxu0 %v2091
  %3195 = vmatmul.f32.gmra.mxu0 %v513
  %v3196 = vpop.f32.mrf.mxu0
  %v3197 = vadd.f32 %v3174, %v3196
  %3198 = vmatmul.f32.gmra.mxu0 %v516
  %v3199 = vpop.f32.mrf.mxu0
  %v3200 = vadd.f32 %v3177, %v3199
  %3201 = vdwg.mxu0
  %3202 = vmatpush.msra.mxu0 %v2067
  %3203 = vmatpush.msra.mxu0 %v2042
  %3204 = vmatpush.msra.mxu0 %v2017
  %3205 = vmatpush.msra.mxu0 %v1992
  %3206 = vmatpush.msra.mxu0 %v1967
  %3207 = vmatpush.msra.mxu0 %v1942
  %3208 = vmatpush.msra.mxu0 %v1917
  %3209 = vmatpush.msra.mxu0 %v1892
  %3210 = vmatpush.msra.mxu0 %v1867
  %3211 = vmatpush.msra.mxu0 %v1842
  %3212 = vmatpush.msra.mxu0 %v1817
  %3213 = vmatpush.msra.mxu0 %v1792
  %3214 = vmatpush.msra.mxu0 %v1767
  %3215 = vmatpush.msra.mxu0 %v1742
  %3216 = vmatpush.msra.mxu0 %v1717
  %3217 = vmatpush.msra.mxu0 %v1692
  %3218 = vmatmul.f32.gmra.mxu0 %v32
  %v3219 = vpop.f32.mrf.mxu0
  %v3220 = vadd.f32 0.0, %v3219
  %3221 = vmatmul.f32.gmra.mxu0 %v34
  %v3222 = vpop.f32.mrf.mxu0
  %v3223 = vadd.f32 0.0, %v3222
  %3224 = vdwg.mxu0
  %3225 = vmatpush.msra.mxu0 0.0
  %3226 = vmatpush.msra.mxu0 0.0
  %3227 = vmatpush.msra.mxu0 0.0
  %3228 = vmatpush.msra.mxu0 0.0
  %3229 = vmatpush.msra.mxu0 0.0
  %3230 = vmatpush.msra.mxu0 0.0
  %3231 = vmatpush.msra.mxu0 0.0
  %3232 = vmatpush.msra.mxu0 0.0
  %3233 = vmatpush.msra.mxu0 0.0
  %3234 = vmatpush.msra.mxu0 0.0
  %3235 = vmatpush.msra.mxu0 0.0
  %3236 = vmatpush.msra.mxu0 0.0
  %3237 = vmatpush.msra.mxu0 0.0
  %3238 = vmatpush.msra.mxu0 %v2142
  %3239 = vmatpush.msra.mxu0 %v2117
  %3240 = vmatpush.msra.mxu0 %v2092
  %3241 = vmatmul.f32.gmra.mxu0 %v513
  %v3242 = vpop.f32.mrf.mxu0
  %v3243 = vadd.f32 %v3220, %v3242
  %3244 = vmatmul.f32.gmra.mxu0 %v516
  %v3245 = vpop.f32.mrf.mxu0
  %v3246 = vadd.f32 %v3223, %v3245
  %3247 = vdwg.mxu0
  %3248 = vmatpush.msra.mxu0 %v2068
  %3249 = vmatpush.msra.mxu0 %v2043
  %3250 = vmatpush.msra.mxu0 %v2018
  %3251 = vmatpush.msra.mxu0 %v1993
  %3252 = vmatpush.msra.mxu0 %v1968
  %3253 = vmatpush.msra.mxu0 %v1943
  %3254 = vmatpush.msra.mxu0 %v1918
  %3255 = vmatpush.msra.mxu0 %v1893
  %3256 = vmatpush.msra.mxu0 %v1868
  %3257 = vmatpush.msra.mxu0 %v1843
  %3258 = vmatpush.msra.mxu0 %v1818
  %3259 = vmatpush.msra.mxu0 %v1793
  %3260 = vmatpush.msra.mxu0 %v1768
  %3261 = vmatpush.msra.mxu0 %v1743
  %3262 = vmatpush.msra.mxu0 %v1718
  %3263 = vmatpush.msra.mxu0 %v1693
  %3264 = vmatmul.f32.gmra.mxu0 %v32
  %v3265 = vpop.f32.mrf.mxu0
  %v3266 = vadd.f32 0.0, %v3265
  %3267 = vmatmul.f32.gmra.mxu0 %v34
  %v3268 = vpop.f32.mrf.mxu0
  %v3269 = vadd.f32 0.0, %v3268
  %3270 = vdwg.mxu0
  %3271 = vmatpush.msra.mxu0 0.0
  %3272 = vmatpush.msra.mxu0 0.0
  %3273 = vmatpush.msra.mxu0 0.0
  %3274 = vmatpush.msra.mxu0 0.0
  %3275 = vmatpush.msra.mxu0 0.0
  %3276 = vmatpush.msra.mxu0 0.0
  %3277 = vmatpush.msra.mxu0 0.0
  %3278 = vmatpush.msra.mxu0 0.0
  %3279 = vmatpush.msra.mxu0 0.0
  %3280 = vmatpush.msra.mxu0 0.0
  %3281 = vmatpush.msra.mxu0 0.0
  %3282 = vmatpush.msra.mxu0 0.0
  %3283 = vmatpush.msra.mxu0 0.0
  %3284 = vmatpush.msra.mxu0 %v2143
  %3285 = vmatpush.msra.mxu0 %v2118
  %3286 = vmatpush.msra.mxu0 %v2093
  %3287 = vmatmul.f32.gmra.mxu0 %v513
  %v3288 = vpop.f32.mrf.mxu0
  %v3289 = vadd.f32 %v3266, %v3288
  %3290 = vmatmul.f32.gmra.mxu0 %v516
  %v3291 = vpop.f32.mrf.mxu0
  %v3292 = vadd.f32 %v3269, %v3291
  %3293 = vdwg.mxu0
  %v3294 = vmax.f32 %v559, %v2185
  %v3295 = vmax.f32 %v605, %v2231
  %v3296 = vmax.f32 %v651, %v2277
  %v3297 = vmax.f32 %v697, %v2323
  %v3298 = vmax.f32 %v743, %v2369
  %v3299 = vmax.f32 %v789, %v2415
  %v3300 = vmax.f32 %v835, %v2461
  %v3301 = vmax.f32 %v881, %v2507
  %v3302 = vmax.f32 %v927, %v2553
  %v3303 = vmax.f32 %v973, %v2599
  %v3304 = vmax.f32 %v1019, %v2645
  %v3305 = vmax.f32 %v1065, %v2691
  %v3306 = vmax.f32 %v1111, %v2737
  %v3307 = vmax.f32 %v1157, %v2783
  %v3308 = vmax.f32 %v1203, %v2829
  %v3309 = vmax.f32 %v1249, %v2875
  %v3310 = vmax.f32 %v1295, %v2921
  %v3311 = vmax.f32 %v1341, %v2967
  %v3312 = vmax.f32 %v1387, %v3013
  %v3313 = vmax.f32 %v1433, %v3059
  %v3314 = vmax.f32 %v1479, %v3105
  %v3315 = vmax.f32 %v1525, %v3151
  %v3316 = vmax.f32 %v1571, %v3197
  %v3317 = vmax.f32 %v1617, %v3243
  %v3318 = vmax.f32 %v1663, %v3289
  %v3319 = vmax.f32 %v562, %v2188
  %v3320 = vmax.f32 %v608, %v2234
  %v3321 = vmax.f32 %v654, %v2280
  %v3322 = vmax.f32 %v700, %v2326
  %v3323 = vmax.f32 %v746, %v2372
  %v3324 = vmax.f32 %v792, %v2418
  %v3325 = vmax.f32 %v838, %v2464
  %v3326 = vmax.f32 %v884, %v2510
  %v3327 = vmax.f32 %v930, %v2556
  %v3328 = vmax.f32 %v976, %v2602
  %v3329 = vmax.f32 %v1022, %v2648
  %v3330 = vmax.f32 %v1068, %v2694
  %v3331 = vmax.f32 %v1114, %v2740
  %v3332 = vmax.f32 %v1160, %v2786
  %v3333 = vmax.f32 %v1206, %v2832
  %v3334 = vmax.f32 %v1252, %v2878
  %v3335 = vmax.f32 %v1298, %v2924
  %v3336 = vmax.f32 %v1344, %v2970
  %v3337 = vmax.f32 %v1390, %v3016
  %v3338 = vmax.f32 %v1436, %v3062
  %v3339 = vmax.f32 %v1482, %v3108
  %v3340 = vmax.f32 %v1528, %v3154
  %v3341 = vmax.f32 %v1574, %v3200
  %v3342 = vmax.f32 %v1620, %v3246
  %v3343 = vmax.f32 %v1666, %v3292
  %s3344 = scalar_lea.vmem %s0, 7600
  %v3345 = vld [vmem:[%s3344] sm:$0xff]
  %v3346 = vld [vmem:[%s3344 + $0x8] sm:$0xff]
  %v3347 = vld [vmem:[%s3344 + $0x10] sm:$0xff]
  %v3348 = vld [vmem:[%s3344 + $0x18] sm:$0xff]
  %v3349 = vld [vmem:[%s3344 + $0x20] sm:$0xff]
  %v3350 = vld [vmem:[%s3344 + $0x28] sm:$0xff]
  %v3351 = vld [vmem:[%s3344 + $0x30] sm:$0xff]
  %v3352 = vld [vmem:[%s3344 + $0x38] sm:$0xff]
  %v3353 = vld [vmem:[%s3344 + $0x40] sm:$0xff]
  %v3354 = vld [vmem:[%s3344 + $0x48] sm:$0xff]
  %v3355 = vld [vmem:[%s3344 + $0x50] sm:$0xff]
  %v3356 = vld [vmem:[%s3344 + $0x58] sm:$0xff]
  %v3357 = vld [vmem:[%s3344 + $0x60] sm:$0xff]
  %v3358 = vld [vmem:[%s3344 + $0x68] sm:$0xff]
  %v3359 = vld [vmem:[%s3344 + $0x70] sm:$0xff]
  %v3360 = vld [vmem:[%s3344 + $0x78] sm:$0xff]
  %v3361 = vld [vmem:[%s3344 + $0x80] sm:$0xff]
  %v3362 = vld [vmem:[%s3344 + $0x88] sm:$0xff]
  %v3363 = vld [vmem:[%s3344 + $0x90] sm:$0xff]
  %v3364 = vld [vmem:[%s3344 + $0x98] sm:$0xff]
  %v3365 = vld [vmem:[%s3344 + $0xa0] sm:$0xff]
  %v3366 = vld [vmem:[%s3344 + $0xa8] sm:$0xff]
  %v3367 = vld [vmem:[%s3344 + $0xb0] sm:$0xff]
  %v3368 = vld [vmem:[%s3344 + $0xb8] sm:$0xff]
  %v3369 = vld [vmem:[%s3344 + $0xc0] sm:$0xff]
  %v3370 = vld [vmem:[%s3344 + $0xc8] sm:$0xff]
  %v3371 = vld [vmem:[%s3344 + $0xd0] sm:$0xff]
  %v3372 = vld [vmem:[%s3344 + $0xd8] sm:$0xff]
  %v3373 = vld [vmem:[%s3344 + $0xe0] sm:$0xff]
  %v3374 = vld [vmem:[%s3344 + $0xe8] sm:$0xff]
  %v3375 = vld [vmem:[%s3344 + $0xf0] sm:$0xff]
  %v3376 = vld [vmem:[%s3344 + $0xf8] sm:$0xff]
  %v3377 = vld [vmem:[%s3344 + $0x100] sm:$0xff]
  %v3378 = vld [vmem:[%s3344 + $0x108] sm:$0xff]
  %v3379 = vld [vmem:[%s3344 + $0x110] sm:$0xff]
  %v3380 = vld [vmem:[%s3344 + $0x118] sm:$0xff]
  %v3381 = vld [vmem:[%s3344 + $0x120] sm:$0xff]
  %v3382 = vld [vmem:[%s3344 + $0x128] sm:$0xff]
  %v3383 = vld [vmem:[%s3344 + $0x130] sm:$0xff]
  %v3384 = vld [vmem:[%s3344 + $0x138] sm:$0xff]
  %v3385 = vld [vmem:[%s3344 + $0x140] sm:$0xff]
  %v3386 = vld [vmem:[%s3344 + $0x148] sm:$0xff]
  %v3387 = vld [vmem:[%s3344 + $0x150] sm:$0xff]
  %v3388 = vld [vmem:[%s3344 + $0x158] sm:$0xff]
  %v3389 = vld [vmem:[%s3344 + $0x160] sm:$0xff]
  %v3390 = vld [vmem:[%s3344 + $0x168] sm:$0xff]
  %v3391 = vld [vmem:[%s3344 + $0x170] sm:$0xff]
  %v3392 = vld [vmem:[%s3344 + $0x178] sm:$0xff]
  %v3393 = vld [vmem:[%s3344 + $0x180] sm:$0xff]
  %v3394 = vld [vmem:[%s3344 + $0x188] sm:$0xff]
  %v3395 = vld [vmem:[%s3344 + $0x190] sm:$0xff]
  %v3396 = vld [vmem:[%s3344 + $0x198] sm:$0xff]
  %v3397 = vld [vmem:[%s3344 + $0x1a0] sm:$0xff]
  %v3398 = vld [vmem:[%s3344 + $0x1a8] sm:$0xff]
  %v3399 = vld [vmem:[%s3344 + $0x1b0] sm:$0xff]
  %v3400 = vld [vmem:[%s3344 + $0x1b8] sm:$0xff]
  %v3401 = vld [vmem:[%s3344 + $0x1c0] sm:$0xff]
  %v3402 = vld [vmem:[%s3344 + $0x1c8] sm:$0xff]
  %v3403 = vld [vmem:[%s3344 + $0x1d0] sm:$0xff]
  %v3404 = vld [vmem:[%s3344 + $0x1d8] sm:$0xff]
  %v3405 = vld [vmem:[%s3344 + $0x1e0] sm:$0xff]
  %v3406 = vld [vmem:[%s3344 + $0x1e8] sm:$0xff]
  %v3407 = vld [vmem:[%s3344 + $0x1f0] sm:$0xff]
  %v3408 = vld [vmem:[%s3344 + $0x1f8] sm:$0xff]
  %v3409 = vld [vmem:[%s3344 + $0x200] sm:$0xff]
  %v3410 = vld [vmem:[%s3344 + $0x208] sm:$0xff]
  %v3411 = vld [vmem:[%s3344 + $0x210] sm:$0xff]
  %v3412 = vld [vmem:[%s3344 + $0x218] sm:$0xff]
  %v3413 = vld [vmem:[%s3344 + $0x220] sm:$0xff]
  %v3414 = vld [vmem:[%s3344 + $0x228] sm:$0xff]
  %v3415 = vld [vmem:[%s3344 + $0x230] sm:$0xff]
  %v3416 = vld [vmem:[%s3344 + $0x238] sm:$0xff]
  %v3417 = vld [vmem:[%s3344 + $0x240] sm:$0xff]
  %v3418 = vld [vmem:[%s3344 + $0x248] sm:$0xff]
  %v3419 = vld [vmem:[%s3344 + $0x250] sm:$0xff]
  %v3420 = vld [vmem:[%s3344 + $0x258] sm:$0xff]
  %v3421 = vld [vmem:[%s3344 + $0x260] sm:$0xff]
  %v3422 = vld [vmem:[%s3344 + $0x268] sm:$0xff]
  %v3423 = vld [vmem:[%s3344 + $0x270] sm:$0xff]
  %v3424 = vld [vmem:[%s3344 + $0x278] sm:$0xff]
  %v3425 = vld [vmem:[%s3344 + $0x280] sm:$0xff]
  %v3426 = vld [vmem:[%s3344 + $0x288] sm:$0xff]
  %v3427 = vld [vmem:[%s3344 + $0x290] sm:$0xff]
  %v3428 = vld [vmem:[%s3344 + $0x298] sm:$0xff]
  %v3429 = vld [vmem:[%s3344 + $0x2a0] sm:$0xff]
  %v3430 = vld [vmem:[%s3344 + $0x2a8] sm:$0xff]
  %v3431 = vld [vmem:[%s3344 + $0x2b0] sm:$0xff]
  %v3432 = vld [vmem:[%s3344 + $0x2b8] sm:$0xff]
  %v3433 = vld [vmem:[%s3344 + $0x2c0] sm:$0xff]
  %v3434 = vld [vmem:[%s3344 + $0x2c8] sm:$0xff]
  %v3435 = vld [vmem:[%s3344 + $0x2d0] sm:$0xff]
  %v3436 = vld [vmem:[%s3344 + $0x2d8] sm:$0xff]
  %v3437 = vld [vmem:[%s3344 + $0x2e0] sm:$0xff]
  %v3438 = vld [vmem:[%s3344 + $0x2e8] sm:$0xff]
  %v3439 = vld [vmem:[%s3344 + $0x2f0] sm:$0xff]
  %v3440 = vld [vmem:[%s3344 + $0x2f8] sm:$0xff]
  %v3441 = vld [vmem:[%s3344 + $0x300] sm:$0xff]
  %v3442 = vld [vmem:[%s3344 + $0x308] sm:$0xff]
  %v3443 = vld [vmem:[%s3344 + $0x310] sm:$0xff]
  %v3444 = vld [vmem:[%s3344 + $0x318] sm:$0xff]
  %v3445 = vld [vmem:[%s3344 + $0x320] sm:$0xff]
  %v3446 = vld [vmem:[%s3344 + $0x328] sm:$0xff]
  %v3447 = vld [vmem:[%s3344 + $0x330] sm:$0xff]
  %v3448 = vld [vmem:[%s3344 + $0x338] sm:$0xff]
  %v3449 = vld [vmem:[%s3344 + $0x340] sm:$0xff]
  %v3450 = vld [vmem:[%s3344 + $0x348] sm:$0xff]
  %v3451 = vld [vmem:[%s3344 + $0x350] sm:$0xff]
  %v3452 = vld [vmem:[%s3344 + $0x358] sm:$0xff]
  %v3453 = vld [vmem:[%s3344 + $0x360] sm:$0xff]
  %v3454 = vld [vmem:[%s3344 + $0x368] sm:$0xff]
  %v3455 = vld [vmem:[%s3344 + $0x370] sm:$0xff]
  %v3456 = vld [vmem:[%s3344 + $0x378] sm:$0xff]
  %v3457 = vld [vmem:[%s3344 + $0x380] sm:$0xff]
  %v3458 = vld [vmem:[%s3344 + $0x388] sm:$0xff]
  %v3459 = vld [vmem:[%s3344 + $0x390] sm:$0xff]
  %v3460 = vld [vmem:[%s3344 + $0x398] sm:$0xff]
  %v3461 = vld [vmem:[%s3344 + $0x3a0] sm:$0xff]
  %v3462 = vld [vmem:[%s3344 + $0x3a8] sm:$0xff]
  %v3463 = vld [vmem:[%s3344 + $0x3b0] sm:$0xff]
  %v3464 = vld [vmem:[%s3344 + $0x3b8] sm:$0xff]
  %v3465 = vld [vmem:[%s3344 + $0x3c0] sm:$0xff]
  %v3466 = vld [vmem:[%s3344 + $0x3c8] sm:$0xff]
  %v3467 = vld [vmem:[%s3344 + $0x3d0] sm:$0xff]
  %v3468 = vld [vmem:[%s3344 + $0x3d8] sm:$0xff]
  %v3469 = vld [vmem:[%s3344 + $0x3e0] sm:$0xff]
  %v3470 = vld [vmem:[%s3344 + $0x3e8] sm:$0xff]
  %v3471 = vld [vmem:[%s3344 + $0x3f0] sm:$0xff]
  %v3472 = vld [vmem:[%s3344 + $0x3f8] sm:$0xff]
  %v3473 = vld [vmem:[%s3344 + $0x400] sm:$0xff]
  %v3474 = vld [vmem:[%s3344 + $0x408] sm:$0xff]
  %v3475 = vld [vmem:[%s3344 + $0x410] sm:$0xff]
  %v3476 = vld [vmem:[%s3344 + $0x418] sm:$0xff]
  %v3477 = vld [vmem:[%s3344 + $0x420] sm:$0xff]
  %v3478 = vld [vmem:[%s3344 + $0x428] sm:$0xff]
  %v3479 = vld [vmem:[%s3344 + $0x430] sm:$0xff]
  %v3480 = vld [vmem:[%s3344 + $0x438] sm:$0xff]
  %v3481 = vld [vmem:[%s3344 + $0x440] sm:$0xff]
  %v3482 = vld [vmem:[%s3344 + $0x448] sm:$0xff]
  %v3483 = vld [vmem:[%s3344 + $0x450] sm:$0xff]
  %v3484 = vld [vmem:[%s3344 + $0x458] sm:$0xff]
  %v3485 = vld [vmem:[%s3344 + $0x460] sm:$0xff]
  %v3486 = vld [vmem:[%s3344 + $0x468] sm:$0xff]
  %v3487 = vld [vmem:[%s3344 + $0x470] sm:$0xff]
  %v3488 = vld [vmem:[%s3344 + $0x478] sm:$0xff]
  %v3489 = vld [vmem:[%s3344 + $0x480] sm:$0xff]
  %v3490 = vld [vmem:[%s3344 + $0x488] sm:$0xff]
  %v3491 = vld [vmem:[%s3344 + $0x490] sm:$0xff]
  %v3492 = vld [vmem:[%s3344 + $0x498] sm:$0xff]
  %v3493 = vld [vmem:[%s3344 + $0x4a0] sm:$0xff]
  %v3494 = vld [vmem:[%s3344 + $0x4a8] sm:$0xff]
  %v3495 = vld [vmem:[%s3344 + $0x4b0] sm:$0xff]
  %v3496 = vld [vmem:[%s3344 + $0x4b8] sm:$0xff]
  %v3497 = vld [vmem:[%s3344 + $0x4c0] sm:$0xff]
  %v3498 = vld [vmem:[%s3344 + $0x4c8] sm:$0xff]
  %v3499 = vld [vmem:[%s3344 + $0x4d0] sm:$0xff]
  %v3500 = vld [vmem:[%s3344 + $0x4d8] sm:$0xff]
  %v3501 = vld [vmem:[%s3344 + $0x4e0] sm:$0xff]
  %v3502 = vld [vmem:[%s3344 + $0x4e8] sm:$0xff]
  %v3503 = vld [vmem:[%s3344 + $0x4f0] sm:$0xff]
  %v3504 = vld [vmem:[%s3344 + $0x4f8] sm:$0xff]
  %v3505 = vld [vmem:[%s3344 + $0x500] sm:$0xff]
  %v3506 = vld [vmem:[%s3344 + $0x508] sm:$0xff]
  %v3507 = vld [vmem:[%s3344 + $0x510] sm:$0xff]
  %v3508 = vld [vmem:[%s3344 + $0x518] sm:$0xff]
  %v3509 = vld [vmem:[%s3344 + $0x520] sm:$0xff]
  %v3510 = vld [vmem:[%s3344 + $0x528] sm:$0xff]
  %v3511 = vld [vmem:[%s3344 + $0x530] sm:$0xff]
  %v3512 = vld [vmem:[%s3344 + $0x538] sm:$0xff]
  %v3513 = vld [vmem:[%s3344 + $0x540] sm:$0xff]
  %v3514 = vld [vmem:[%s3344 + $0x548] sm:$0xff]
  %v3515 = vld [vmem:[%s3344 + $0x550] sm:$0xff]
  %v3516 = vld [vmem:[%s3344 + $0x558] sm:$0xff]
  %v3517 = vld [vmem:[%s3344 + $0x560] sm:$0xff]
  %v3518 = vld [vmem:[%s3344 + $0x568] sm:$0xff]
  %v3519 = vld [vmem:[%s3344 + $0x570] sm:$0xff]
  %v3520 = vld [vmem:[%s3344 + $0x578] sm:$0xff]
  %v3521 = vld [vmem:[%s3344 + $0x580] sm:$0xff]
  %v3522 = vld [vmem:[%s3344 + $0x588] sm:$0xff]
  %v3523 = vld [vmem:[%s3344 + $0x590] sm:$0xff]
  %v3524 = vld [vmem:[%s3344 + $0x598] sm:$0xff]
  %v3525 = vld [vmem:[%s3344 + $0x5a0] sm:$0xff]
  %v3526 = vld [vmem:[%s3344 + $0x5a8] sm:$0xff]
  %v3527 = vld [vmem:[%s3344 + $0x5b0] sm:$0xff]
  %v3528 = vld [vmem:[%s3344 + $0x5b8] sm:$0xff]
  %v3529 = vld [vmem:[%s3344 + $0x5c0] sm:$0xff]
  %v3530 = vld [vmem:[%s3344 + $0x5c8] sm:$0xff]
  %v3531 = vld [vmem:[%s3344 + $0x5d0] sm:$0xff]
  %v3532 = vld [vmem:[%s3344 + $0x5d8] sm:$0xff]
  %v3533 = vld [vmem:[%s3344 + $0x5e0] sm:$0xff]
  %v3534 = vld [vmem:[%s3344 + $0x5e8] sm:$0xff]
  %v3535 = vld [vmem:[%s3344 + $0x5f0] sm:$0xff]
  %v3536 = vld [vmem:[%s3344 + $0x5f8] sm:$0xff]
  %v3537 = vld [vmem:[%s3344 + $0x600] sm:$0xff]
  %v3538 = vld [vmem:[%s3344 + $0x608] sm:$0xff]
  %v3539 = vld [vmem:[%s3344 + $0x610] sm:$0xff]
  %v3540 = vld [vmem:[%s3344 + $0x618] sm:$0xff]
  %v3541 = vld [vmem:[%s3344 + $0x620] sm:$0xff]
  %v3542 = vld [vmem:[%s3344 + $0x628] sm:$0xff]
  %v3543 = vld [vmem:[%s3344 + $0x630] sm:$0xff]
  %v3544 = vld [vmem:[%s3344 + $0x638] sm:$0xff]
  %v3545 = vld [vmem:[%s3344 + $0x640] sm:$0xff]
  %v3546 = vld [vmem:[%s3344 + $0x648] sm:$0xff]
  %v3547 = vld [vmem:[%s3344 + $0x650] sm:$0xff]
  %v3548 = vld [vmem:[%s3344 + $0x658] sm:$0xff]
  %v3549 = vld [vmem:[%s3344 + $0x660] sm:$0xff]
  %v3550 = vld [vmem:[%s3344 + $0x668] sm:$0xff]
  %v3551 = vld [vmem:[%s3344 + $0x670] sm:$0xff]
  %v3552 = vld [vmem:[%s3344 + $0x678] sm:$0xff]
  %v3553 = vld [vmem:[%s3344 + $0x680] sm:$0xff]
  %v3554 = vld [vmem:[%s3344 + $0x688] sm:$0xff]
  %v3555 = vld [vmem:[%s3344 + $0x690] sm:$0xff]
  %v3556 = vld [vmem:[%s3344 + $0x698] sm:$0xff]
  %v3557 = vld [vmem:[%s3344 + $0x6a0] sm:$0xff]
  %v3558 = vld [vmem:[%s3344 + $0x6a8] sm:$0xff]
  %v3559 = vld [vmem:[%s3344 + $0x6b0] sm:$0xff]
  %v3560 = vld [vmem:[%s3344 + $0x6b8] sm:$0xff]
  %v3561 = vld [vmem:[%s3344 + $0x6c0] sm:$0xff]
  %v3562 = vld [vmem:[%s3344 + $0x6c8] sm:$0xff]
  %v3563 = vld [vmem:[%s3344 + $0x6d0] sm:$0xff]
  %v3564 = vld [vmem:[%s3344 + $0x6d8] sm:$0xff]
  %v3565 = vld [vmem:[%s3344 + $0x6e0] sm:$0xff]
  %v3566 = vld [vmem:[%s3344 + $0x6e8] sm:$0xff]
  %v3567 = vld [vmem:[%s3344 + $0x6f0] sm:$0xff]
  %v3568 = vld [vmem:[%s3344 + $0x6f8] sm:$0xff]
  %v3569 = vld [vmem:[%s3344 + $0x700] sm:$0xff]
  %v3570 = vld [vmem:[%s3344 + $0x708] sm:$0xff]
  %v3571 = vld [vmem:[%s3344 + $0x710] sm:$0xff]
  %v3572 = vld [vmem:[%s3344 + $0x718] sm:$0xff]
  %v3573 = vld [vmem:[%s3344 + $0x720] sm:$0xff]
  %v3574 = vld [vmem:[%s3344 + $0x728] sm:$0xff]
  %v3575 = vld [vmem:[%s3344 + $0x730] sm:$0xff]
  %v3576 = vld [vmem:[%s3344 + $0x738] sm:$0xff]
  %v3577 = vld [vmem:[%s3344 + $0x740] sm:$0xff]
  %v3578 = vld [vmem:[%s3344 + $0x748] sm:$0xff]
  %v3579 = vld [vmem:[%s3344 + $0x750] sm:$0xff]
  %v3580 = vld [vmem:[%s3344 + $0x758] sm:$0xff]
  %v3581 = vld [vmem:[%s3344 + $0x760] sm:$0xff]
  %v3582 = vld [vmem:[%s3344 + $0x768] sm:$0xff]
  %v3583 = vld [vmem:[%s3344 + $0x770] sm:$0xff]
  %v3584 = vld [vmem:[%s3344 + $0x778] sm:$0xff]
  %v3585 = vld [vmem:[%s3344 + $0x780] sm:$0xff]
  %v3586 = vld [vmem:[%s3344 + $0x788] sm:$0xff]
  %v3587 = vld [vmem:[%s3344 + $0x790] sm:$0xff]
  %v3588 = vld [vmem:[%s3344 + $0x798] sm:$0xff]
  %v3589 = vld [vmem:[%s3344 + $0x7a0] sm:$0xff]
  %v3590 = vld [vmem:[%s3344 + $0x7a8] sm:$0xff]
  %v3591 = vld [vmem:[%s3344 + $0x7b0] sm:$0xff]
  %v3592 = vld [vmem:[%s3344 + $0x7b8] sm:$0xff]
  %v3593 = vld [vmem:[%s3344 + $0x7c0] sm:$0xff]
  %v3594 = vld [vmem:[%s3344 + $0x7c8] sm:$0xff]
  %v3595 = vld [vmem:[%s3344 + $0x7d0] sm:$0xff]
  %v3596 = vld [vmem:[%s3344 + $0x7d8] sm:$0xff]
  %v3597 = vld [vmem:[%s3344 + $0x7e0] sm:$0xff]
  %v3598 = vld [vmem:[%s3344 + $0x7e8] sm:$0xff]
  %v3599 = vld [vmem:[%s3344 + $0x7f0] sm:$0xff]
  %v3600 = vld [vmem:[%s3344 + $0x7f8] sm:$0xff]
  %v3601 = vld [vmem:[%s3344 + $0x800] sm:$0xff]
  %v3602 = vld [vmem:[%s3344 + $0x808] sm:$0xff]
  %v3603 = vld [vmem:[%s3344 + $0x810] sm:$0xff]
  %v3604 = vld [vmem:[%s3344 + $0x818] sm:$0xff]
  %v3605 = vld [vmem:[%s3344 + $0x820] sm:$0xff]
  %v3606 = vld [vmem:[%s3344 + $0x828] sm:$0xff]
  %v3607 = vld [vmem:[%s3344 + $0x830] sm:$0xff]
  %v3608 = vld [vmem:[%s3344 + $0x838] sm:$0xff]
  %v3609 = vld [vmem:[%s3344 + $0x840] sm:$0xff]
  %v3610 = vld [vmem:[%s3344 + $0x848] sm:$0xff]
  %v3611 = vld [vmem:[%s3344 + $0x850] sm:$0xff]
  %v3612 = vld [vmem:[%s3344 + $0x858] sm:$0xff]
  %v3613 = vld [vmem:[%s3344 + $0x860] sm:$0xff]
  %v3614 = vld [vmem:[%s3344 + $0x868] sm:$0xff]
  %v3615 = vld [vmem:[%s3344 + $0x870] sm:$0xff]
  %v3616 = vld [vmem:[%s3344 + $0x878] sm:$0xff]
  %v3617 = vld [vmem:[%s3344 + $0x880] sm:$0xff]
  %v3618 = vld [vmem:[%s3344 + $0x888] sm:$0xff]
  %v3619 = vld [vmem:[%s3344 + $0x890] sm:$0xff]
  %v3620 = vld [vmem:[%s3344 + $0x898] sm:$0xff]
  %v3621 = vld [vmem:[%s3344 + $0x8a0] sm:$0xff]
  %v3622 = vld [vmem:[%s3344 + $0x8a8] sm:$0xff]
  %v3623 = vld [vmem:[%s3344 + $0x8b0] sm:$0xff]
  %v3624 = vld [vmem:[%s3344 + $0x8b8] sm:$0xff]
  %v3625 = vld [vmem:[%s3344 + $0x8c0] sm:$0xff]
  %v3626 = vld [vmem:[%s3344 + $0x8c8] sm:$0xff]
  %v3627 = vld [vmem:[%s3344 + $0x8d0] sm:$0xff]
  %v3628 = vld [vmem:[%s3344 + $0x8d8] sm:$0xff]
  %v3629 = vld [vmem:[%s3344 + $0x8e0] sm:$0xff]
  %v3630 = vld [vmem:[%s3344 + $0x8e8] sm:$0xff]
  %v3631 = vld [vmem:[%s3344 + $0x8f0] sm:$0xff]
  %v3632 = vld [vmem:[%s3344 + $0x8f8] sm:$0xff]
  %v3633 = vld [vmem:[%s3344 + $0x900] sm:$0xff]
  %v3634 = vld [vmem:[%s3344 + $0x908] sm:$0xff]
  %v3635 = vld [vmem:[%s3344 + $0x910] sm:$0xff]
  %v3636 = vld [vmem:[%s3344 + $0x918] sm:$0xff]
  %v3637 = vld [vmem:[%s3344 + $0x920] sm:$0xff]
  %v3638 = vld [vmem:[%s3344 + $0x928] sm:$0xff]
  %v3639 = vld [vmem:[%s3344 + $0x930] sm:$0xff]
  %v3640 = vld [vmem:[%s3344 + $0x938] sm:$0xff]
  %v3641 = vld [vmem:[%s3344 + $0x940] sm:$0xff]
  %v3642 = vld [vmem:[%s3344 + $0x948] sm:$0xff]
  %v3643 = vld [vmem:[%s3344 + $0x950] sm:$0xff]
  %v3644 = vld [vmem:[%s3344 + $0x958] sm:$0xff]
  %v3645 = vld [vmem:[%s3344 + $0x960] sm:$0xff]
  %v3646 = vld [vmem:[%s3344 + $0x968] sm:$0xff]
  %v3647 = vld [vmem:[%s3344 + $0x970] sm:$0xff]
  %v3648 = vld [vmem:[%s3344 + $0x978] sm:$0xff]
  %v3649 = vld [vmem:[%s3344 + $0x980] sm:$0xff]
  %v3650 = vld [vmem:[%s3344 + $0x988] sm:$0xff]
  %v3651 = vld [vmem:[%s3344 + $0x990] sm:$0xff]
  %v3652 = vld [vmem:[%s3344 + $0x998] sm:$0xff]
  %v3653 = vld [vmem:[%s3344 + $0x9a0] sm:$0xff]
  %v3654 = vld [vmem:[%s3344 + $0x9a8] sm:$0xff]
  %v3655 = vld [vmem:[%s3344 + $0x9b0] sm:$0xff]
  %v3656 = vld [vmem:[%s3344 + $0x9b8] sm:$0xff]
  %v3657 = vld [vmem:[%s3344 + $0x9c0] sm:$0xff]
  %v3658 = vld [vmem:[%s3344 + $0x9c8] sm:$0xff]
  %v3659 = vld [vmem:[%s3344 + $0x9d0] sm:$0xff]
  %v3660 = vld [vmem:[%s3344 + $0x9d8] sm:$0xff]
  %v3661 = vld [vmem:[%s3344 + $0x9e0] sm:$0xff]
  %v3662 = vld [vmem:[%s3344 + $0x9e8] sm:$0xff]
  %v3663 = vld [vmem:[%s3344 + $0x9f0] sm:$0xff]
  %v3664 = vld [vmem:[%s3344 + $0x9f8] sm:$0xff]
  %v3665 = vld [vmem:[%s3344 + $0xa00] sm:$0xff]
  %v3666 = vld [vmem:[%s3344 + $0xa08] sm:$0xff]
  %v3667 = vld [vmem:[%s3344 + $0xa10] sm:$0xff]
  %v3668 = vld [vmem:[%s3344 + $0xa18] sm:$0xff]
  %v3669 = vld [vmem:[%s3344 + $0xa20] sm:$0xff]
  %v3670 = vld [vmem:[%s3344 + $0xa28] sm:$0xff]
  %v3671 = vld [vmem:[%s3344 + $0xa30] sm:$0xff]
  %v3672 = vld [vmem:[%s3344 + $0xa38] sm:$0xff]
  %v3673 = vld [vmem:[%s3344 + $0xa40] sm:$0xff]
  %v3674 = vld [vmem:[%s3344 + $0xa48] sm:$0xff]
  %v3675 = vld [vmem:[%s3344 + $0xa50] sm:$0xff]
  %v3676 = vld [vmem:[%s3344 + $0xa58] sm:$0xff]
  %v3677 = vld [vmem:[%s3344 + $0xa60] sm:$0xff]
  %v3678 = vld [vmem:[%s3344 + $0xa68] sm:$0xff]
  %v3679 = vld [vmem:[%s3344 + $0xa70] sm:$0xff]
  %v3680 = vld [vmem:[%s3344 + $0xa78] sm:$0xff]
  %v3681 = vld [vmem:[%s3344 + $0xa80] sm:$0xff]
  %v3682 = vld [vmem:[%s3344 + $0xa88] sm:$0xff]
  %v3683 = vld [vmem:[%s3344 + $0xa90] sm:$0xff]
  %v3684 = vld [vmem:[%s3344 + $0xa98] sm:$0xff]
  %v3685 = vld [vmem:[%s3344 + $0xaa0] sm:$0xff]
  %v3686 = vld [vmem:[%s3344 + $0xaa8] sm:$0xff]
  %v3687 = vld [vmem:[%s3344 + $0xab0] sm:$0xff]
  %v3688 = vld [vmem:[%s3344 + $0xab8] sm:$0xff]
  %v3689 = vld [vmem:[%s3344 + $0xac0] sm:$0xff]
  %v3690 = vld [vmem:[%s3344 + $0xac8] sm:$0xff]
  %v3691 = vld [vmem:[%s3344 + $0xad0] sm:$0xff]
  %v3692 = vld [vmem:[%s3344 + $0xad8] sm:$0xff]
  %v3693 = vld [vmem:[%s3344 + $0xae0] sm:$0xff]
  %v3694 = vld [vmem:[%s3344 + $0xae8] sm:$0xff]
  %v3695 = vld [vmem:[%s3344 + $0xaf0] sm:$0xff]
  %v3696 = vld [vmem:[%s3344 + $0xaf8] sm:$0xff]
  %v3697 = vld [vmem:[%s3344 + $0xb00] sm:$0xff]
  %v3698 = vld [vmem:[%s3344 + $0xb08] sm:$0xff]
  %v3699 = vld [vmem:[%s3344 + $0xb10] sm:$0xff]
  %v3700 = vld [vmem:[%s3344 + $0xb18] sm:$0xff]
  %v3701 = vld [vmem:[%s3344 + $0xb20] sm:$0xff]
  %v3702 = vld [vmem:[%s3344 + $0xb28] sm:$0xff]
  %v3703 = vld [vmem:[%s3344 + $0xb30] sm:$0xff]
  %v3704 = vld [vmem:[%s3344 + $0xb38] sm:$0xff]
  %v3705 = vld [vmem:[%s3344 + $0xb40] sm:$0xff]
  %v3706 = vld [vmem:[%s3344 + $0xb48] sm:$0xff]
  %v3707 = vld [vmem:[%s3344 + $0xb50] sm:$0xff]
  %v3708 = vld [vmem:[%s3344 + $0xb58] sm:$0xff]
  %v3709 = vld [vmem:[%s3344 + $0xb60] sm:$0xff]
  %v3710 = vld [vmem:[%s3344 + $0xb68] sm:$0xff]
  %v3711 = vld [vmem:[%s3344 + $0xb70] sm:$0xff]
  %v3712 = vld [vmem:[%s3344 + $0xb78] sm:$0xff]
  %v3713 = vld [vmem:[%s3344 + $0xb80] sm:$0xff]
  %v3714 = vld [vmem:[%s3344 + $0xb88] sm:$0xff]
  %v3715 = vld [vmem:[%s3344 + $0xb90] sm:$0xff]
  %v3716 = vld [vmem:[%s3344 + $0xb98] sm:$0xff]
  %v3717 = vld [vmem:[%s3344 + $0xba0] sm:$0xff]
  %v3718 = vld [vmem:[%s3344 + $0xba8] sm:$0xff]
  %v3719 = vld [vmem:[%s3344 + $0xbb0] sm:$0xff]
  %v3720 = vld [vmem:[%s3344 + $0xbb8] sm:$0xff]
  %v3721 = vld [vmem:[%s3344 + $0xbc0] sm:$0xff]
  %v3722 = vld [vmem:[%s3344 + $0xbc8] sm:$0xff]
  %v3723 = vld [vmem:[%s3344 + $0xbd0] sm:$0xff]
  %v3724 = vld [vmem:[%s3344 + $0xbd8] sm:$0xff]
  %v3725 = vld [vmem:[%s3344 + $0xbe0] sm:$0xff]
  %v3726 = vld [vmem:[%s3344 + $0xbe8] sm:$0xff]
  %v3727 = vld [vmem:[%s3344 + $0xbf0] sm:$0xff]
  %v3728 = vld [vmem:[%s3344 + $0xbf8] sm:$0xff]
  %v3729 = vld [vmem:[%s3344 + $0xc00] sm:$0xff]
  %v3730 = vld [vmem:[%s3344 + $0xc08] sm:$0xff]
  %v3731 = vld [vmem:[%s3344 + $0xc10] sm:$0xff]
  %v3732 = vld [vmem:[%s3344 + $0xc18] sm:$0xff]
  %v3733 = vld [vmem:[%s3344 + $0xc20] sm:$0xff]
  %v3734 = vld [vmem:[%s3344 + $0xc28] sm:$0xff]
  %v3735 = vld [vmem:[%s3344 + $0xc30] sm:$0xff]
  %v3736 = vld [vmem:[%s3344 + $0xc38] sm:$0xff]
  %v3737 = vld [vmem:[%s3344 + $0xc40] sm:$0xff]
  %v3738 = vld [vmem:[%s3344 + $0xc48] sm:$0xff]
  %v3739 = vld [vmem:[%s3344 + $0xc50] sm:$0xff]
  %v3740 = vld [vmem:[%s3344 + $0xc58] sm:$0xff]
  %v3741 = vld [vmem:[%s3344 + $0xc60] sm:$0xff]
  %v3742 = vld [vmem:[%s3344 + $0xc68] sm:$0xff]
  %v3743 = vld [vmem:[%s3344 + $0xc70] sm:$0xff]
  %v3744 = vld [vmem:[%s3344 + $0xc78] sm:$0xff]
  %v3745 = vld [vmem:[%s3344 + $0xc80] sm:$0xff]
  %v3746 = vld [vmem:[%s3344 + $0xc88] sm:$0xff]
  %v3747 = vld [vmem:[%s3344 + $0xc90] sm:$0xff]
  %v3748 = vld [vmem:[%s3344 + $0xc98] sm:$0xff]
  %v3749 = vld [vmem:[%s3344 + $0xca0] sm:$0xff]
  %v3750 = vld [vmem:[%s3344 + $0xca8] sm:$0xff]
  %v3751 = vld [vmem:[%s3344 + $0xcb0] sm:$0xff]
  %v3752 = vld [vmem:[%s3344 + $0xcb8] sm:$0xff]
  %v3753 = vld [vmem:[%s3344 + $0xcc0] sm:$0xff]
  %v3754 = vld [vmem:[%s3344 + $0xcc8] sm:$0xff]
  %v3755 = vld [vmem:[%s3344 + $0xcd0] sm:$0xff]
  %v3756 = vld [vmem:[%s3344 + $0xcd8] sm:$0xff]
  %v3757 = vld [vmem:[%s3344 + $0xce0] sm:$0xff]
  %v3758 = vld [vmem:[%s3344 + $0xce8] sm:$0xff]
  %v3759 = vld [vmem:[%s3344 + $0xcf0] sm:$0xff]
  %v3760 = vld [vmem:[%s3344 + $0xcf8] sm:$0xff]
  %v3761 = vld [vmem:[%s3344 + $0xd00] sm:$0xff]
  %v3762 = vld [vmem:[%s3344 + $0xd08] sm:$0xff]
  %v3763 = vld [vmem:[%s3344 + $0xd10] sm:$0xff]
  %v3764 = vld [vmem:[%s3344 + $0xd18] sm:$0xff]
  %v3765 = vld [vmem:[%s3344 + $0xd20] sm:$0xff]
  %v3766 = vld [vmem:[%s3344 + $0xd28] sm:$0xff]
  %v3767 = vld [vmem:[%s3344 + $0xd30] sm:$0xff]
  %v3768 = vld [vmem:[%s3344 + $0xd38] sm:$0xff]
  %v3769 = vld [vmem:[%s3344 + $0xd40] sm:$0xff]
  %v3770 = vld [vmem:[%s3344 + $0xd48] sm:$0xff]
  %v3771 = vld [vmem:[%s3344 + $0xd50] sm:$0xff]
  %v3772 = vld [vmem:[%s3344 + $0xd58] sm:$0xff]
  %v3773 = vld [vmem:[%s3344 + $0xd60] sm:$0xff]
  %v3774 = vld [vmem:[%s3344 + $0xd68] sm:$0xff]
  %v3775 = vld [vmem:[%s3344 + $0xd70] sm:$0xff]
  %v3776 = vld [vmem:[%s3344 + $0xd78] sm:$0xff]
  %v3777 = vld [vmem:[%s3344 + $0xd80] sm:$0xff]
  %v3778 = vld [vmem:[%s3344 + $0xd88] sm:$0xff]
  %v3779 = vld [vmem:[%s3344 + $0xd90] sm:$0xff]
  %v3780 = vld [vmem:[%s3344 + $0xd98] sm:$0xff]
  %v3781 = vld [vmem:[%s3344 + $0xda0] sm:$0xff]
  %v3782 = vld [vmem:[%s3344 + $0xda8] sm:$0xff]
  %v3783 = vld [vmem:[%s3344 + $0xdb0] sm:$0xff]
  %v3784 = vld [vmem:[%s3344 + $0xdb8] sm:$0xff]
  %v3785 = vld [vmem:[%s3344 + $0xdc0] sm:$0xff]
  %v3786 = vld [vmem:[%s3344 + $0xdc8] sm:$0xff]
  %v3787 = vld [vmem:[%s3344 + $0xdd0] sm:$0xff]
  %v3788 = vld [vmem:[%s3344 + $0xdd8] sm:$0xff]
  %v3789 = vld [vmem:[%s3344 + $0xde0] sm:$0xff]
  %v3790 = vld [vmem:[%s3344 + $0xde8] sm:$0xff]
  %v3791 = vld [vmem:[%s3344 + $0xdf0] sm:$0xff]
  %v3792 = vld [vmem:[%s3344 + $0xdf8] sm:$0xff]
  %v3793 = vld [vmem:[%s3344 + $0xe00] sm:$0xff]
  %v3794 = vld [vmem:[%s3344 + $0xe08] sm:$0xff]
  %v3795 = vld [vmem:[%s3344 + $0xe10] sm:$0xff]
  %v3796 = vld [vmem:[%s3344 + $0xe18] sm:$0xff]
  %v3797 = vld [vmem:[%s3344 + $0xe20] sm:$0xff]
  %v3798 = vld [vmem:[%s3344 + $0xe28] sm:$0xff]
  %v3799 = vld [vmem:[%s3344 + $0xe30] sm:$0xff]
  %v3800 = vld [vmem:[%s3344 + $0xe38] sm:$0xff]
  %v3801 = vld [vmem:[%s3344 + $0xe40] sm:$0xff]
  %v3802 = vld [vmem:[%s3344 + $0xe48] sm:$0xff]
  %v3803 = vld [vmem:[%s3344 + $0xe50] sm:$0xff]
  %v3804 = vld [vmem:[%s3344 + $0xe58] sm:$0xff]
  %v3805 = vld [vmem:[%s3344 + $0xe60] sm:$0xff]
  %v3806 = vld [vmem:[%s3344 + $0xe68] sm:$0xff]
  %v3807 = vld [vmem:[%s3344 + $0xe70] sm:$0xff]
  %v3808 = vld [vmem:[%s3344 + $0xe78] sm:$0xff]
  %v3809 = vld [vmem:[%s3344 + $0xe80] sm:$0xff]
  %v3810 = vld [vmem:[%s3344 + $0xe88] sm:$0xff]
  %v3811 = vld [vmem:[%s3344 + $0xe90] sm:$0xff]
  %v3812 = vld [vmem:[%s3344 + $0xe98] sm:$0xff]
  %v3813 = vld [vmem:[%s3344 + $0xea0] sm:$0xff]
  %v3814 = vld [vmem:[%s3344 + $0xea8] sm:$0xff]
  %v3815 = vld [vmem:[%s3344 + $0xeb0] sm:$0xff]
  %v3816 = vld [vmem:[%s3344 + $0xeb8] sm:$0xff]
  %v3817 = vld [vmem:[%s3344 + $0xec0] sm:$0xff]
  %v3818 = vld [vmem:[%s3344 + $0xec8] sm:$0xff]
  %v3819 = vld [vmem:[%s3344 + $0xed0] sm:$0xff]
  %3820 = vmatpush.msra.mxu0 %v3720
  %3821 = vmatpush.msra.mxu0 %v3695
  %3822 = vmatpush.msra.mxu0 %v3670
  %3823 = vmatpush.msra.mxu0 %v3645
  %3824 = vmatpush.msra.mxu0 %v3620
  %3825 = vmatpush.msra.mxu0 %v3595
  %3826 = vmatpush.msra.mxu0 %v3570
  %3827 = vmatpush.msra.mxu0 %v3545
  %3828 = vmatpush.msra.mxu0 %v3520
  %3829 = vmatpush.msra.mxu0 %v3495
  %3830 = vmatpush.msra.mxu0 %v3470
  %3831 = vmatpush.msra.mxu0 %v3445
  %3832 = vmatpush.msra.mxu0 %v3420
  %3833 = vmatpush.msra.mxu0 %v3395
  %3834 = vmatpush.msra.mxu0 %v3370
  %3835 = vmatpush.msra.mxu0 %v3345
  %3836 = vmatmul.f32.gmra.mxu0 %v32
  %v3837 = vpop.f32.mrf.mxu0
  %v3838 = vadd.f32 0.0, %v3837
  %3839 = vmatmul.f32.gmra.mxu0 %v34
  %v3840 = vpop.f32.mrf.mxu0
  %v3841 = vadd.f32 0.0, %v3840
  %3842 = vdwg.mxu0
  %3843 = vmatpush.msra.mxu0 0.0
  %3844 = vmatpush.msra.mxu0 0.0
  %3845 = vmatpush.msra.mxu0 0.0
  %3846 = vmatpush.msra.mxu0 0.0
  %3847 = vmatpush.msra.mxu0 0.0
  %3848 = vmatpush.msra.mxu0 0.0
  %3849 = vmatpush.msra.mxu0 0.0
  %3850 = vmatpush.msra.mxu0 0.0
  %3851 = vmatpush.msra.mxu0 0.0
  %3852 = vmatpush.msra.mxu0 0.0
  %3853 = vmatpush.msra.mxu0 0.0
  %3854 = vmatpush.msra.mxu0 0.0
  %3855 = vmatpush.msra.mxu0 0.0
  %3856 = vmatpush.msra.mxu0 %v3795
  %3857 = vmatpush.msra.mxu0 %v3770
  %3858 = vmatpush.msra.mxu0 %v3745
  %3859 = vmatmul.f32.gmra.mxu0 %v513
  %v3860 = vpop.f32.mrf.mxu0
  %v3861 = vadd.f32 %v3838, %v3860
  %3862 = vmatmul.f32.gmra.mxu0 %v516
  %v3863 = vpop.f32.mrf.mxu0
  %v3864 = vadd.f32 %v3841, %v3863
  %3865 = vdwg.mxu0
  %3866 = vmatpush.msra.mxu0 %v3721
  %3867 = vmatpush.msra.mxu0 %v3696
  %3868 = vmatpush.msra.mxu0 %v3671
  %3869 = vmatpush.msra.mxu0 %v3646
  %3870 = vmatpush.msra.mxu0 %v3621
  %3871 = vmatpush.msra.mxu0 %v3596
  %3872 = vmatpush.msra.mxu0 %v3571
  %3873 = vmatpush.msra.mxu0 %v3546
  %3874 = vmatpush.msra.mxu0 %v3521
  %3875 = vmatpush.msra.mxu0 %v3496
  %3876 = vmatpush.msra.mxu0 %v3471
  %3877 = vmatpush.msra.mxu0 %v3446
  %3878 = vmatpush.msra.mxu0 %v3421
  %3879 = vmatpush.msra.mxu0 %v3396
  %3880 = vmatpush.msra.mxu0 %v3371
  %3881 = vmatpush.msra.mxu0 %v3346
  %3882 = vmatmul.f32.gmra.mxu0 %v32
  %v3883 = vpop.f32.mrf.mxu0
  %v3884 = vadd.f32 0.0, %v3883
  %3885 = vmatmul.f32.gmra.mxu0 %v34
  %v3886 = vpop.f32.mrf.mxu0
  %v3887 = vadd.f32 0.0, %v3886
  %3888 = vdwg.mxu0
  %3889 = vmatpush.msra.mxu0 0.0
  %3890 = vmatpush.msra.mxu0 0.0
  %3891 = vmatpush.msra.mxu0 0.0
  %3892 = vmatpush.msra.mxu0 0.0
  %3893 = vmatpush.msra.mxu0 0.0
  %3894 = vmatpush.msra.mxu0 0.0
  %3895 = vmatpush.msra.mxu0 0.0
  %3896 = vmatpush.msra.mxu0 0.0
  %3897 = vmatpush.msra.mxu0 0.0
  %3898 = vmatpush.msra.mxu0 0.0
  %3899 = vmatpush.msra.mxu0 0.0
  %3900 = vmatpush.msra.mxu0 0.0
  %3901 = vmatpush.msra.mxu0 0.0
  %3902 = vmatpush.msra.mxu0 %v3796
  %3903 = vmatpush.msra.mxu0 %v3771
  %3904 = vmatpush.msra.mxu0 %v3746
  %3905 = vmatmul.f32.gmra.mxu0 %v513
  %v3906 = vpop.f32.mrf.mxu0
  %v3907 = vadd.f32 %v3884, %v3906
  %3908 = vmatmul.f32.gmra.mxu0 %v516
  %v3909 = vpop.f32.mrf.mxu0
  %v3910 = vadd.f32 %v3887, %v3909
  %3911 = vdwg.mxu0
  %3912 = vmatpush.msra.mxu0 %v3722
  %3913 = vmatpush.msra.mxu0 %v3697
  %3914 = vmatpush.msra.mxu0 %v3672
  %3915 = vmatpush.msra.mxu0 %v3647
  %3916 = vmatpush.msra.mxu0 %v3622
  %3917 = vmatpush.msra.mxu0 %v3597
  %3918 = vmatpush.msra.mxu0 %v3572
  %3919 = vmatpush.msra.mxu0 %v3547
  %3920 = vmatpush.msra.mxu0 %v3522
  %3921 = vmatpush.msra.mxu0 %v3497
  %3922 = vmatpush.msra.mxu0 %v3472
  %3923 = vmatpush.msra.mxu0 %v3447
  %3924 = vmatpush.msra.mxu0 %v3422
  %3925 = vmatpush.msra.mxu0 %v3397
  %3926 = vmatpush.msra.mxu0 %v3372
  %3927 = vmatpush.msra.mxu0 %v3347
  %3928 = vmatmul.f32.gmra.mxu0 %v32
  %v3929 = vpop.f32.mrf.mxu0
  %v3930 = vadd.f32 0.0, %v3929
  %3931 = vmatmul.f32.gmra.mxu0 %v34
  %v3932 = vpop.f32.mrf.mxu0
  %v3933 = vadd.f32 0.0, %v3932
  %3934 = vdwg.mxu0
  %3935 = vmatpush.msra.mxu0 0.0
  %3936 = vmatpush.msra.mxu0 0.0
  %3937 = vmatpush.msra.mxu0 0.0
  %3938 = vmatpush.msra.mxu0 0.0
  %3939 = vmatpush.msra.mxu0 0.0
  %3940 = vmatpush.msra.mxu0 0.0
  %3941 = vmatpush.msra.mxu0 0.0
  %3942 = vmatpush.msra.mxu0 0.0
  %3943 = vmatpush.msra.mxu0 0.0
  %3944 = vmatpush.msra.mxu0 0.0
  %3945 = vmatpush.msra.mxu0 0.0
  %3946 = vmatpush.msra.mxu0 0.0
  %3947 = vmatpush.msra.mxu0 0.0
  %3948 = vmatpush.msra.mxu0 %v3797
  %3949 = vmatpush.msra.mxu0 %v3772
  %3950 = vmatpush.msra.mxu0 %v3747
  %3951 = vmatmul.f32.gmra.mxu0 %v513
  %v3952 = vpop.f32.mrf.mxu0
  %v3953 = vadd.f32 %v3930, %v3952
  %3954 = vmatmul.f32.gmra.mxu0 %v516
  %v3955 = vpop.f32.mrf.mxu0
  %v3956 = vadd.f32 %v3933, %v3955
  %3957 = vdwg.mxu0
  %3958 = vmatpush.msra.mxu0 %v3723
  %3959 = vmatpush.msra.mxu0 %v3698
  %3960 = vmatpush.msra.mxu0 %v3673
  %3961 = vmatpush.msra.mxu0 %v3648
  %3962 = vmatpush.msra.mxu0 %v3623
  %3963 = vmatpush.msra.mxu0 %v3598
  %3964 = vmatpush.msra.mxu0 %v3573
  %3965 = vmatpush.msra.mxu0 %v3548
  %3966 = vmatpush.msra.mxu0 %v3523
  %3967 = vmatpush.msra.mxu0 %v3498
  %3968 = vmatpush.msra.mxu0 %v3473
  %3969 = vmatpush.msra.mxu0 %v3448
  %3970 = vmatpush.msra.mxu0 %v3423
  %3971 = vmatpush.msra.mxu0 %v3398
  %3972 = vmatpush.msra.mxu0 %v3373
  %3973 = vmatpush.msra.mxu0 %v3348
  %3974 = vmatmul.f32.gmra.mxu0 %v32
  %v3975 = vpop.f32.mrf.mxu0
  %v3976 = vadd.f32 0.0, %v3975
  %3977 = vmatmul.f32.gmra.mxu0 %v34
  %v3978 = vpop.f32.mrf.mxu0
  %v3979 = vadd.f32 0.0, %v3978
  %3980 = vdwg.mxu0
  %3981 = vmatpush.msra.mxu0 0.0
  %3982 = vmatpush.msra.mxu0 0.0
  %3983 = vmatpush.msra.mxu0 0.0
  %3984 = vmatpush.msra.mxu0 0.0
  %3985 = vmatpush.msra.mxu0 0.0
  %3986 = vmatpush.msra.mxu0 0.0
  %3987 = vmatpush.msra.mxu0 0.0
  %3988 = vmatpush.msra.mxu0 0.0
  %3989 = vmatpush.msra.mxu0 0.0
  %3990 = vmatpush.msra.mxu0 0.0
  %3991 = vmatpush.msra.mxu0 0.0
  %3992 = vmatpush.msra.mxu0 0.0
  %3993 = vmatpush.msra.mxu0 0.0
  %3994 = vmatpush.msra.mxu0 %v3798
  %3995 = vmatpush.msra.mxu0 %v3773
  %3996 = vmatpush.msra.mxu0 %v3748
  %3997 = vmatmul.f32.gmra.mxu0 %v513
  %v3998 = vpop.f32.mrf.mxu0
  %v3999 = vadd.f32 %v3976, %v3998
  %4000 = vmatmul.f32.gmra.mxu0 %v516
  %v4001 = vpop.f32.mrf.mxu0
  %v4002 = vadd.f32 %v3979, %v4001
  %4003 = vdwg.mxu0
  %4004 = vmatpush.msra.mxu0 %v3724
  %4005 = vmatpush.msra.mxu0 %v3699
  %4006 = vmatpush.msra.mxu0 %v3674
  %4007 = vmatpush.msra.mxu0 %v3649
  %4008 = vmatpush.msra.mxu0 %v3624
  %4009 = vmatpush.msra.mxu0 %v3599
  %4010 = vmatpush.msra.mxu0 %v3574
  %4011 = vmatpush.msra.mxu0 %v3549
  %4012 = vmatpush.msra.mxu0 %v3524
  %4013 = vmatpush.msra.mxu0 %v3499
  %4014 = vmatpush.msra.mxu0 %v3474
  %4015 = vmatpush.msra.mxu0 %v3449
  %4016 = vmatpush.msra.mxu0 %v3424
  %4017 = vmatpush.msra.mxu0 %v3399
  %4018 = vmatpush.msra.mxu0 %v3374
  %4019 = vmatpush.msra.mxu0 %v3349
  %4020 = vmatmul.f32.gmra.mxu0 %v32
  %v4021 = vpop.f32.mrf.mxu0
  %v4022 = vadd.f32 0.0, %v4021
  %4023 = vmatmul.f32.gmra.mxu0 %v34
  %v4024 = vpop.f32.mrf.mxu0
  %v4025 = vadd.f32 0.0, %v4024
  %4026 = vdwg.mxu0
  %4027 = vmatpush.msra.mxu0 0.0
  %4028 = vmatpush.msra.mxu0 0.0
  %4029 = vmatpush.msra.mxu0 0.0
  %4030 = vmatpush.msra.mxu0 0.0
  %4031 = vmatpush.msra.mxu0 0.0
  %4032 = vmatpush.msra.mxu0 0.0
  %4033 = vmatpush.msra.mxu0 0.0
  %4034 = vmatpush.msra.mxu0 0.0
  %4035 = vmatpush.msra.mxu0 0.0
  %4036 = vmatpush.msra.mxu0 0.0
  %4037 = vmatpush.msra.mxu0 0.0
  %4038 = vmatpush.msra.mxu0 0.0
  %4039 = vmatpush.msra.mxu0 0.0
  %4040 = vmatpush.msra.mxu0 %v3799
  %4041 = vmatpush.msra.mxu0 %v3774
  %4042 = vmatpush.msra.mxu0 %v3749
  %4043 = vmatmul.f32.gmra.mxu0 %v513
  %v4044 = vpop.f32.mrf.mxu0
  %v4045 = vadd.f32 %v4022, %v4044
  %4046 = vmatmul.f32.gmra.mxu0 %v516
  %v4047 = vpop.f32.mrf.mxu0
  %v4048 = vadd.f32 %v4025, %v4047
  %4049 = vdwg.mxu0
  %4050 = vmatpush.msra.mxu0 %v3725
  %4051 = vmatpush.msra.mxu0 %v3700
  %4052 = vmatpush.msra.mxu0 %v3675
  %4053 = vmatpush.msra.mxu0 %v3650
  %4054 = vmatpush.msra.mxu0 %v3625
  %4055 = vmatpush.msra.mxu0 %v3600
  %4056 = vmatpush.msra.mxu0 %v3575
  %4057 = vmatpush.msra.mxu0 %v3550
  %4058 = vmatpush.msra.mxu0 %v3525
  %4059 = vmatpush.msra.mxu0 %v3500
  %4060 = vmatpush.msra.mxu0 %v3475
  %4061 = vmatpush.msra.mxu0 %v3450
  %4062 = vmatpush.msra.mxu0 %v3425
  %4063 = vmatpush.msra.mxu0 %v3400
  %4064 = vmatpush.msra.mxu0 %v3375
  %4065 = vmatpush.msra.mxu0 %v3350
  %4066 = vmatmul.f32.gmra.mxu0 %v32
  %v4067 = vpop.f32.mrf.mxu0
  %v4068 = vadd.f32 0.0, %v4067
  %4069 = vmatmul.f32.gmra.mxu0 %v34
  %v4070 = vpop.f32.mrf.mxu0
  %v4071 = vadd.f32 0.0, %v4070
  %4072 = vdwg.mxu0
  %4073 = vmatpush.msra.mxu0 0.0
  %4074 = vmatpush.msra.mxu0 0.0
  %4075 = vmatpush.msra.mxu0 0.0
  %4076 = vmatpush.msra.mxu0 0.0
  %4077 = vmatpush.msra.mxu0 0.0
  %4078 = vmatpush.msra.mxu0 0.0
  %4079 = vmatpush.msra.mxu0 0.0
  %4080 = vmatpush.msra.mxu0 0.0
  %4081 = vmatpush.msra.mxu0 0.0
  %4082 = vmatpush.msra.mxu0 0.0
  %4083 = vmatpush.msra.mxu0 0.0
  %4084 = vmatpush.msra.mxu0 0.0
  %4085 = vmatpush.msra.mxu0 0.0
  %4086 = vmatpush.msra.mxu0 %v3800
  %4087 = vmatpush.msra.mxu0 %v3775
  %4088 = vmatpush.msra.mxu0 %v3750
  %4089 = vmatmul.f32.gmra.mxu0 %v513
  %v4090 = vpop.f32.mrf.mxu0
  %v4091 = vadd.f32 %v4068, %v4090
  %4092 = vmatmul.f32.gmra.mxu0 %v516
  %v4093 = vpop.f32.mrf.mxu0
  %v4094 = vadd.f32 %v4071, %v4093
  %4095 = vdwg.mxu0
  %4096 = vmatpush.msra.mxu0 %v3726
  %4097 = vmatpush.msra.mxu0 %v3701
  %4098 = vmatpush.msra.mxu0 %v3676
  %4099 = vmatpush.msra.mxu0 %v3651
  %4100 = vmatpush.msra.mxu0 %v3626
  %4101 = vmatpush.msra.mxu0 %v3601
  %4102 = vmatpush.msra.mxu0 %v3576
  %4103 = vmatpush.msra.mxu0 %v3551
  %4104 = vmatpush.msra.mxu0 %v3526
  %4105 = vmatpush.msra.mxu0 %v3501
  %4106 = vmatpush.msra.mxu0 %v3476
  %4107 = vmatpush.msra.mxu0 %v3451
  %4108 = vmatpush.msra.mxu0 %v3426
  %4109 = vmatpush.msra.mxu0 %v3401
  %4110 = vmatpush.msra.mxu0 %v3376
  %4111 = vmatpush.msra.mxu0 %v3351
  %4112 = vmatmul.f32.gmra.mxu0 %v32
  %v4113 = vpop.f32.mrf.mxu0
  %v4114 = vadd.f32 0.0, %v4113
  %4115 = vmatmul.f32.gmra.mxu0 %v34
  %v4116 = vpop.f32.mrf.mxu0
  %v4117 = vadd.f32 0.0, %v4116
  %4118 = vdwg.mxu0
  %4119 = vmatpush.msra.mxu0 0.0
  %4120 = vmatpush.msra.mxu0 0.0
  %4121 = vmatpush.msra.mxu0 0.0
  %4122 = vmatpush.msra.mxu0 0.0
  %4123 = vmatpush.msra.mxu0 0.0
  %4124 = vmatpush.msra.mxu0 0.0
  %4125 = vmatpush.msra.mxu0 0.0
  %4126 = vmatpush.msra.mxu0 0.0
  %4127 = vmatpush.msra.mxu0 0.0
  %4128 = vmatpush.msra.mxu0 0.0
  %4129 = vmatpush.msra.mxu0 0.0
  %4130 = vmatpush.msra.mxu0 0.0
  %4131 = vmatpush.msra.mxu0 0.0
  %4132 = vmatpush.msra.mxu0 %v3801
  %4133 = vmatpush.msra.mxu0 %v3776
  %4134 = vmatpush.msra.mxu0 %v3751
  %4135 = vmatmul.f32.gmra.mxu0 %v513
  %v4136 = vpop.f32.mrf.mxu0
  %v4137 = vadd.f32 %v4114, %v4136
  %4138 = vmatmul.f32.gmra.mxu0 %v516
  %v4139 = vpop.f32.mrf.mxu0
  %v4140 = vadd.f32 %v4117, %v4139
  %4141 = vdwg.mxu0
  %4142 = vmatpush.msra.mxu0 %v3727
  %4143 = vmatpush.msra.mxu0 %v3702
  %4144 = vmatpush.msra.mxu0 %v3677
  %4145 = vmatpush.msra.mxu0 %v3652
  %4146 = vmatpush.msra.mxu0 %v3627
  %4147 = vmatpush.msra.mxu0 %v3602
  %4148 = vmatpush.msra.mxu0 %v3577
  %4149 = vmatpush.msra.mxu0 %v3552
  %4150 = vmatpush.msra.mxu0 %v3527
  %4151 = vmatpush.msra.mxu0 %v3502
  %4152 = vmatpush.msra.mxu0 %v3477
  %4153 = vmatpush.msra.mxu0 %v3452
  %4154 = vmatpush.msra.mxu0 %v3427
  %4155 = vmatpush.msra.mxu0 %v3402
  %4156 = vmatpush.msra.mxu0 %v3377
  %4157 = vmatpush.msra.mxu0 %v3352
  %4158 = vmatmul.f32.gmra.mxu0 %v32
  %v4159 = vpop.f32.mrf.mxu0
  %v4160 = vadd.f32 0.0, %v4159
  %4161 = vmatmul.f32.gmra.mxu0 %v34
  %v4162 = vpop.f32.mrf.mxu0
  %v4163 = vadd.f32 0.0, %v4162
  %4164 = vdwg.mxu0
  %4165 = vmatpush.msra.mxu0 0.0
  %4166 = vmatpush.msra.mxu0 0.0
  %4167 = vmatpush.msra.mxu0 0.0
  %4168 = vmatpush.msra.mxu0 0.0
  %4169 = vmatpush.msra.mxu0 0.0
  %4170 = vmatpush.msra.mxu0 0.0
  %4171 = vmatpush.msra.mxu0 0.0
  %4172 = vmatpush.msra.mxu0 0.0
  %4173 = vmatpush.msra.mxu0 0.0
  %4174 = vmatpush.msra.mxu0 0.0
  %4175 = vmatpush.msra.mxu0 0.0
  %4176 = vmatpush.msra.mxu0 0.0
  %4177 = vmatpush.msra.mxu0 0.0
  %4178 = vmatpush.msra.mxu0 %v3802
  %4179 = vmatpush.msra.mxu0 %v3777
  %4180 = vmatpush.msra.mxu0 %v3752
  %4181 = vmatmul.f32.gmra.mxu0 %v513
  %v4182 = vpop.f32.mrf.mxu0
  %v4183 = vadd.f32 %v4160, %v4182
  %4184 = vmatmul.f32.gmra.mxu0 %v516
  %v4185 = vpop.f32.mrf.mxu0
  %v4186 = vadd.f32 %v4163, %v4185
  %4187 = vdwg.mxu0
  %4188 = vmatpush.msra.mxu0 %v3728
  %4189 = vmatpush.msra.mxu0 %v3703
  %4190 = vmatpush.msra.mxu0 %v3678
  %4191 = vmatpush.msra.mxu0 %v3653
  %4192 = vmatpush.msra.mxu0 %v3628
  %4193 = vmatpush.msra.mxu0 %v3603
  %4194 = vmatpush.msra.mxu0 %v3578
  %4195 = vmatpush.msra.mxu0 %v3553
  %4196 = vmatpush.msra.mxu0 %v3528
  %4197 = vmatpush.msra.mxu0 %v3503
  %4198 = vmatpush.msra.mxu0 %v3478
  %4199 = vmatpush.msra.mxu0 %v3453
  %4200 = vmatpush.msra.mxu0 %v3428
  %4201 = vmatpush.msra.mxu0 %v3403
  %4202 = vmatpush.msra.mxu0 %v3378
  %4203 = vmatpush.msra.mxu0 %v3353
  %4204 = vmatmul.f32.gmra.mxu0 %v32
  %v4205 = vpop.f32.mrf.mxu0
  %v4206 = vadd.f32 0.0, %v4205
  %4207 = vmatmul.f32.gmra.mxu0 %v34
  %v4208 = vpop.f32.mrf.mxu0
  %v4209 = vadd.f32 0.0, %v4208
  %4210 = vdwg.mxu0
  %4211 = vmatpush.msra.mxu0 0.0
  %4212 = vmatpush.msra.mxu0 0.0
  %4213 = vmatpush.msra.mxu0 0.0
  %4214 = vmatpush.msra.mxu0 0.0
  %4215 = vmatpush.msra.mxu0 0.0
  %4216 = vmatpush.msra.mxu0 0.0
  %4217 = vmatpush.msra.mxu0 0.0
  %4218 = vmatpush.msra.mxu0 0.0
  %4219 = vmatpush.msra.mxu0 0.0
  %4220 = vmatpush.msra.mxu0 0.0
  %4221 = vmatpush.msra.mxu0 0.0
  %4222 = vmatpush.msra.mxu0 0.0
  %4223 = vmatpush.msra.mxu0 0.0
  %4224 = vmatpush.msra.mxu0 %v3803
  %4225 = vmatpush.msra.mxu0 %v3778
  %4226 = vmatpush.msra.mxu0 %v3753
  %4227 = vmatmul.f32.gmra.mxu0 %v513
  %v4228 = vpop.f32.mrf.mxu0
  %v4229 = vadd.f32 %v4206, %v4228
  %4230 = vmatmul.f32.gmra.mxu0 %v516
  %v4231 = vpop.f32.mrf.mxu0
  %v4232 = vadd.f32 %v4209, %v4231
  %4233 = vdwg.mxu0
  %4234 = vmatpush.msra.mxu0 %v3729
  %4235 = vmatpush.msra.mxu0 %v3704
  %4236 = vmatpush.msra.mxu0 %v3679
  %4237 = vmatpush.msra.mxu0 %v3654
  %4238 = vmatpush.msra.mxu0 %v3629
  %4239 = vmatpush.msra.mxu0 %v3604
  %4240 = vmatpush.msra.mxu0 %v3579
  %4241 = vmatpush.msra.mxu0 %v3554
  %4242 = vmatpush.msra.mxu0 %v3529
  %4243 = vmatpush.msra.mxu0 %v3504
  %4244 = vmatpush.msra.mxu0 %v3479
  %4245 = vmatpush.msra.mxu0 %v3454
  %4246 = vmatpush.msra.mxu0 %v3429
  %4247 = vmatpush.msra.mxu0 %v3404
  %4248 = vmatpush.msra.mxu0 %v3379
  %4249 = vmatpush.msra.mxu0 %v3354
  %4250 = vmatmul.f32.gmra.mxu0 %v32
  %v4251 = vpop.f32.mrf.mxu0
  %v4252 = vadd.f32 0.0, %v4251
  %4253 = vmatmul.f32.gmra.mxu0 %v34
  %v4254 = vpop.f32.mrf.mxu0
  %v4255 = vadd.f32 0.0, %v4254
  %4256 = vdwg.mxu0
  %4257 = vmatpush.msra.mxu0 0.0
  %4258 = vmatpush.msra.mxu0 0.0
  %4259 = vmatpush.msra.mxu0 0.0
  %4260 = vmatpush.msra.mxu0 0.0
  %4261 = vmatpush.msra.mxu0 0.0
  %4262 = vmatpush.msra.mxu0 0.0
  %4263 = vmatpush.msra.mxu0 0.0
  %4264 = vmatpush.msra.mxu0 0.0
  %4265 = vmatpush.msra.mxu0 0.0
  %4266 = vmatpush.msra.mxu0 0.0
  %4267 = vmatpush.msra.mxu0 0.0
  %4268 = vmatpush.msra.mxu0 0.0
  %4269 = vmatpush.msra.mxu0 0.0
  %4270 = vmatpush.msra.mxu0 %v3804
  %4271 = vmatpush.msra.mxu0 %v3779
  %4272 = vmatpush.msra.mxu0 %v3754
  %4273 = vmatmul.f32.gmra.mxu0 %v513
  %v4274 = vpop.f32.mrf.mxu0
  %v4275 = vadd.f32 %v4252, %v4274
  %4276 = vmatmul.f32.gmra.mxu0 %v516
  %v4277 = vpop.f32.mrf.mxu0
  %v4278 = vadd.f32 %v4255, %v4277
  %4279 = vdwg.mxu0
  %4280 = vmatpush.msra.mxu0 %v3730
  %4281 = vmatpush.msra.mxu0 %v3705
  %4282 = vmatpush.msra.mxu0 %v3680
  %4283 = vmatpush.msra.mxu0 %v3655
  %4284 = vmatpush.msra.mxu0 %v3630
  %4285 = vmatpush.msra.mxu0 %v3605
  %4286 = vmatpush.msra.mxu0 %v3580
  %4287 = vmatpush.msra.mxu0 %v3555
  %4288 = vmatpush.msra.mxu0 %v3530
  %4289 = vmatpush.msra.mxu0 %v3505
  %4290 = vmatpush.msra.mxu0 %v3480
  %4291 = vmatpush.msra.mxu0 %v3455
  %4292 = vmatpush.msra.mxu0 %v3430
  %4293 = vmatpush.msra.mxu0 %v3405
  %4294 = vmatpush.msra.mxu0 %v3380
  %4295 = vmatpush.msra.mxu0 %v3355
  %4296 = vmatmul.f32.gmra.mxu0 %v32
  %v4297 = vpop.f32.mrf.mxu0
  %v4298 = vadd.f32 0.0, %v4297
  %4299 = vmatmul.f32.gmra.mxu0 %v34
  %v4300 = vpop.f32.mrf.mxu0
  %v4301 = vadd.f32 0.0, %v4300
  %4302 = vdwg.mxu0
  %4303 = vmatpush.msra.mxu0 0.0
  %4304 = vmatpush.msra.mxu0 0.0
  %4305 = vmatpush.msra.mxu0 0.0
  %4306 = vmatpush.msra.mxu0 0.0
  %4307 = vmatpush.msra.mxu0 0.0
  %4308 = vmatpush.msra.mxu0 0.0
  %4309 = vmatpush.msra.mxu0 0.0
  %4310 = vmatpush.msra.mxu0 0.0
  %4311 = vmatpush.msra.mxu0 0.0
  %4312 = vmatpush.msra.mxu0 0.0
  %4313 = vmatpush.msra.mxu0 0.0
  %4314 = vmatpush.msra.mxu0 0.0
  %4315 = vmatpush.msra.mxu0 0.0
  %4316 = vmatpush.msra.mxu0 %v3805
  %4317 = vmatpush.msra.mxu0 %v3780
  %4318 = vmatpush.msra.mxu0 %v3755
  %4319 = vmatmul.f32.gmra.mxu0 %v513
  %v4320 = vpop.f32.mrf.mxu0
  %v4321 = vadd.f32 %v4298, %v4320
  %4322 = vmatmul.f32.gmra.mxu0 %v516
  %v4323 = vpop.f32.mrf.mxu0
  %v4324 = vadd.f32 %v4301, %v4323
  %4325 = vdwg.mxu0
  %4326 = vmatpush.msra.mxu0 %v3731
  %4327 = vmatpush.msra.mxu0 %v3706
  %4328 = vmatpush.msra.mxu0 %v3681
  %4329 = vmatpush.msra.mxu0 %v3656
  %4330 = vmatpush.msra.mxu0 %v3631
  %4331 = vmatpush.msra.mxu0 %v3606
  %4332 = vmatpush.msra.mxu0 %v3581
  %4333 = vmatpush.msra.mxu0 %v3556
  %4334 = vmatpush.msra.mxu0 %v3531
  %4335 = vmatpush.msra.mxu0 %v3506
  %4336 = vmatpush.msra.mxu0 %v3481
  %4337 = vmatpush.msra.mxu0 %v3456
  %4338 = vmatpush.msra.mxu0 %v3431
  %4339 = vmatpush.msra.mxu0 %v3406
  %4340 = vmatpush.msra.mxu0 %v3381
  %4341 = vmatpush.msra.mxu0 %v3356
  %4342 = vmatmul.f32.gmra.mxu0 %v32
  %v4343 = vpop.f32.mrf.mxu0
  %v4344 = vadd.f32 0.0, %v4343
  %4345 = vmatmul.f32.gmra.mxu0 %v34
  %v4346 = vpop.f32.mrf.mxu0
  %v4347 = vadd.f32 0.0, %v4346
  %4348 = vdwg.mxu0
  %4349 = vmatpush.msra.mxu0 0.0
  %4350 = vmatpush.msra.mxu0 0.0
  %4351 = vmatpush.msra.mxu0 0.0
  %4352 = vmatpush.msra.mxu0 0.0
  %4353 = vmatpush.msra.mxu0 0.0
  %4354 = vmatpush.msra.mxu0 0.0
  %4355 = vmatpush.msra.mxu0 0.0
  %4356 = vmatpush.msra.mxu0 0.0
  %4357 = vmatpush.msra.mxu0 0.0
  %4358 = vmatpush.msra.mxu0 0.0
  %4359 = vmatpush.msra.mxu0 0.0
  %4360 = vmatpush.msra.mxu0 0.0
  %4361 = vmatpush.msra.mxu0 0.0
  %4362 = vmatpush.msra.mxu0 %v3806
  %4363 = vmatpush.msra.mxu0 %v3781
  %4364 = vmatpush.msra.mxu0 %v3756
  %4365 = vmatmul.f32.gmra.mxu0 %v513
  %v4366 = vpop.f32.mrf.mxu0
  %v4367 = vadd.f32 %v4344, %v4366
  %4368 = vmatmul.f32.gmra.mxu0 %v516
  %v4369 = vpop.f32.mrf.mxu0
  %v4370 = vadd.f32 %v4347, %v4369
  %4371 = vdwg.mxu0
  %4372 = vmatpush.msra.mxu0 %v3732
  %4373 = vmatpush.msra.mxu0 %v3707
  %4374 = vmatpush.msra.mxu0 %v3682
  %4375 = vmatpush.msra.mxu0 %v3657
  %4376 = vmatpush.msra.mxu0 %v3632
  %4377 = vmatpush.msra.mxu0 %v3607
  %4378 = vmatpush.msra.mxu0 %v3582
  %4379 = vmatpush.msra.mxu0 %v3557
  %4380 = vmatpush.msra.mxu0 %v3532
  %4381 = vmatpush.msra.mxu0 %v3507
  %4382 = vmatpush.msra.mxu0 %v3482
  %4383 = vmatpush.msra.mxu0 %v3457
  %4384 = vmatpush.msra.mxu0 %v3432
  %4385 = vmatpush.msra.mxu0 %v3407
  %4386 = vmatpush.msra.mxu0 %v3382
  %4387 = vmatpush.msra.mxu0 %v3357
  %4388 = vmatmul.f32.gmra.mxu0 %v32
  %v4389 = vpop.f32.mrf.mxu0
  %v4390 = vadd.f32 0.0, %v4389
  %4391 = vmatmul.f32.gmra.mxu0 %v34
  %v4392 = vpop.f32.mrf.mxu0
  %v4393 = vadd.f32 0.0, %v4392
  %4394 = vdwg.mxu0
  %4395 = vmatpush.msra.mxu0 0.0
  %4396 = vmatpush.msra.mxu0 0.0
  %4397 = vmatpush.msra.mxu0 0.0
  %4398 = vmatpush.msra.mxu0 0.0
  %4399 = vmatpush.msra.mxu0 0.0
  %4400 = vmatpush.msra.mxu0 0.0
  %4401 = vmatpush.msra.mxu0 0.0
  %4402 = vmatpush.msra.mxu0 0.0
  %4403 = vmatpush.msra.mxu0 0.0
  %4404 = vmatpush.msra.mxu0 0.0
  %4405 = vmatpush.msra.mxu0 0.0
  %4406 = vmatpush.msra.mxu0 0.0
  %4407 = vmatpush.msra.mxu0 0.0
  %4408 = vmatpush.msra.mxu0 %v3807
  %4409 = vmatpush.msra.mxu0 %v3782
  %4410 = vmatpush.msra.mxu0 %v3757
  %4411 = vmatmul.f32.gmra.mxu0 %v513
  %v4412 = vpop.f32.mrf.mxu0
  %v4413 = vadd.f32 %v4390, %v4412
  %4414 = vmatmul.f32.gmra.mxu0 %v516
  %v4415 = vpop.f32.mrf.mxu0
  %v4416 = vadd.f32 %v4393, %v4415
  %4417 = vdwg.mxu0
  %4418 = vmatpush.msra.mxu0 %v3733
  %4419 = vmatpush.msra.mxu0 %v3708
  %4420 = vmatpush.msra.mxu0 %v3683
  %4421 = vmatpush.msra.mxu0 %v3658
  %4422 = vmatpush.msra.mxu0 %v3633
  %4423 = vmatpush.msra.mxu0 %v3608
  %4424 = vmatpush.msra.mxu0 %v3583
  %4425 = vmatpush.msra.mxu0 %v3558
  %4426 = vmatpush.msra.mxu0 %v3533
  %4427 = vmatpush.msra.mxu0 %v3508
  %4428 = vmatpush.msra.mxu0 %v3483
  %4429 = vmatpush.msra.mxu0 %v3458
  %4430 = vmatpush.msra.mxu0 %v3433
  %4431 = vmatpush.msra.mxu0 %v3408
  %4432 = vmatpush.msra.mxu0 %v3383
  %4433 = vmatpush.msra.mxu0 %v3358
  %4434 = vmatmul.f32.gmra.mxu0 %v32
  %v4435 = vpop.f32.mrf.mxu0
  %v4436 = vadd.f32 0.0, %v4435
  %4437 = vmatmul.f32.gmra.mxu0 %v34
  %v4438 = vpop.f32.mrf.mxu0
  %v4439 = vadd.f32 0.0, %v4438
  %4440 = vdwg.mxu0
  %4441 = vmatpush.msra.mxu0 0.0
  %4442 = vmatpush.msra.mxu0 0.0
  %4443 = vmatpush.msra.mxu0 0.0
  %4444 = vmatpush.msra.mxu0 0.0
  %4445 = vmatpush.msra.mxu0 0.0
  %4446 = vmatpush.msra.mxu0 0.0
  %4447 = vmatpush.msra.mxu0 0.0
  %4448 = vmatpush.msra.mxu0 0.0
  %4449 = vmatpush.msra.mxu0 0.0
  %4450 = vmatpush.msra.mxu0 0.0
  %4451 = vmatpush.msra.mxu0 0.0
  %4452 = vmatpush.msra.mxu0 0.0
  %4453 = vmatpush.msra.mxu0 0.0
  %4454 = vmatpush.msra.mxu0 %v3808
  %4455 = vmatpush.msra.mxu0 %v3783
  %4456 = vmatpush.msra.mxu0 %v3758
  %4457 = vmatmul.f32.gmra.mxu0 %v513
  %v4458 = vpop.f32.mrf.mxu0
  %v4459 = vadd.f32 %v4436, %v4458
  %4460 = vmatmul.f32.gmra.mxu0 %v516
  %v4461 = vpop.f32.mrf.mxu0
  %v4462 = vadd.f32 %v4439, %v4461
  %4463 = vdwg.mxu0
  %4464 = vmatpush.msra.mxu0 %v3734
  %4465 = vmatpush.msra.mxu0 %v3709
  %4466 = vmatpush.msra.mxu0 %v3684
  %4467 = vmatpush.msra.mxu0 %v3659
  %4468 = vmatpush.msra.mxu0 %v3634
  %4469 = vmatpush.msra.mxu0 %v3609
  %4470 = vmatpush.msra.mxu0 %v3584
  %4471 = vmatpush.msra.mxu0 %v3559
  %4472 = vmatpush.msra.mxu0 %v3534
  %4473 = vmatpush.msra.mxu0 %v3509
  %4474 = vmatpush.msra.mxu0 %v3484
  %4475 = vmatpush.msra.mxu0 %v3459
  %4476 = vmatpush.msra.mxu0 %v3434
  %4477 = vmatpush.msra.mxu0 %v3409
  %4478 = vmatpush.msra.mxu0 %v3384
  %4479 = vmatpush.msra.mxu0 %v3359
  %4480 = vmatmul.f32.gmra.mxu0 %v32
  %v4481 = vpop.f32.mrf.mxu0
  %v4482 = vadd.f32 0.0, %v4481
  %4483 = vmatmul.f32.gmra.mxu0 %v34
  %v4484 = vpop.f32.mrf.mxu0
  %v4485 = vadd.f32 0.0, %v4484
  %4486 = vdwg.mxu0
  %4487 = vmatpush.msra.mxu0 0.0
  %4488 = vmatpush.msra.mxu0 0.0
  %4489 = vmatpush.msra.mxu0 0.0
  %4490 = vmatpush.msra.mxu0 0.0
  %4491 = vmatpush.msra.mxu0 0.0
  %4492 = vmatpush.msra.mxu0 0.0
  %4493 = vmatpush.msra.mxu0 0.0
  %4494 = vmatpush.msra.mxu0 0.0
  %4495 = vmatpush.msra.mxu0 0.0
  %4496 = vmatpush.msra.mxu0 0.0
  %4497 = vmatpush.msra.mxu0 0.0
  %4498 = vmatpush.msra.mxu0 0.0
  %4499 = vmatpush.msra.mxu0 0.0
  %4500 = vmatpush.msra.mxu0 %v3809
  %4501 = vmatpush.msra.mxu0 %v3784
  %4502 = vmatpush.msra.mxu0 %v3759
  %4503 = vmatmul.f32.gmra.mxu0 %v513
  %v4504 = vpop.f32.mrf.mxu0
  %v4505 = vadd.f32 %v4482, %v4504
  %4506 = vmatmul.f32.gmra.mxu0 %v516
  %v4507 = vpop.f32.mrf.mxu0
  %v4508 = vadd.f32 %v4485, %v4507
  %4509 = vdwg.mxu0
  %4510 = vmatpush.msra.mxu0 %v3735
  %4511 = vmatpush.msra.mxu0 %v3710
  %4512 = vmatpush.msra.mxu0 %v3685
  %4513 = vmatpush.msra.mxu0 %v3660
  %4514 = vmatpush.msra.mxu0 %v3635
  %4515 = vmatpush.msra.mxu0 %v3610
  %4516 = vmatpush.msra.mxu0 %v3585
  %4517 = vmatpush.msra.mxu0 %v3560
  %4518 = vmatpush.msra.mxu0 %v3535
  %4519 = vmatpush.msra.mxu0 %v3510
  %4520 = vmatpush.msra.mxu0 %v3485
  %4521 = vmatpush.msra.mxu0 %v3460
  %4522 = vmatpush.msra.mxu0 %v3435
  %4523 = vmatpush.msra.mxu0 %v3410
  %4524 = vmatpush.msra.mxu0 %v3385
  %4525 = vmatpush.msra.mxu0 %v3360
  %4526 = vmatmul.f32.gmra.mxu0 %v32
  %v4527 = vpop.f32.mrf.mxu0
  %v4528 = vadd.f32 0.0, %v4527
  %4529 = vmatmul.f32.gmra.mxu0 %v34
  %v4530 = vpop.f32.mrf.mxu0
  %v4531 = vadd.f32 0.0, %v4530
  %4532 = vdwg.mxu0
  %4533 = vmatpush.msra.mxu0 0.0
  %4534 = vmatpush.msra.mxu0 0.0
  %4535 = vmatpush.msra.mxu0 0.0
  %4536 = vmatpush.msra.mxu0 0.0
  %4537 = vmatpush.msra.mxu0 0.0
  %4538 = vmatpush.msra.mxu0 0.0
  %4539 = vmatpush.msra.mxu0 0.0
  %4540 = vmatpush.msra.mxu0 0.0
  %4541 = vmatpush.msra.mxu0 0.0
  %4542 = vmatpush.msra.mxu0 0.0
  %4543 = vmatpush.msra.mxu0 0.0
  %4544 = vmatpush.msra.mxu0 0.0
  %4545 = vmatpush.msra.mxu0 0.0
  %4546 = vmatpush.msra.mxu0 %v3810
  %4547 = vmatpush.msra.mxu0 %v3785
  %4548 = vmatpush.msra.mxu0 %v3760
  %4549 = vmatmul.f32.gmra.mxu0 %v513
  %v4550 = vpop.f32.mrf.mxu0
  %v4551 = vadd.f32 %v4528, %v4550
  %4552 = vmatmul.f32.gmra.mxu0 %v516
  %v4553 = vpop.f32.mrf.mxu0
  %v4554 = vadd.f32 %v4531, %v4553
  %4555 = vdwg.mxu0
  %4556 = vmatpush.msra.mxu0 %v3736
  %4557 = vmatpush.msra.mxu0 %v3711
  %4558 = vmatpush.msra.mxu0 %v3686
  %4559 = vmatpush.msra.mxu0 %v3661
  %4560 = vmatpush.msra.mxu0 %v3636
  %4561 = vmatpush.msra.mxu0 %v3611
  %4562 = vmatpush.msra.mxu0 %v3586
  %4563 = vmatpush.msra.mxu0 %v3561
  %4564 = vmatpush.msra.mxu0 %v3536
  %4565 = vmatpush.msra.mxu0 %v3511
  %4566 = vmatpush.msra.mxu0 %v3486
  %4567 = vmatpush.msra.mxu0 %v3461
  %4568 = vmatpush.msra.mxu0 %v3436
  %4569 = vmatpush.msra.mxu0 %v3411
  %4570 = vmatpush.msra.mxu0 %v3386
  %4571 = vmatpush.msra.mxu0 %v3361
  %4572 = vmatmul.f32.gmra.mxu0 %v32
  %v4573 = vpop.f32.mrf.mxu0
  %v4574 = vadd.f32 0.0, %v4573
  %4575 = vmatmul.f32.gmra.mxu0 %v34
  %v4576 = vpop.f32.mrf.mxu0
  %v4577 = vadd.f32 0.0, %v4576
  %4578 = vdwg.mxu0
  %4579 = vmatpush.msra.mxu0 0.0
  %4580 = vmatpush.msra.mxu0 0.0
  %4581 = vmatpush.msra.mxu0 0.0
  %4582 = vmatpush.msra.mxu0 0.0
  %4583 = vmatpush.msra.mxu0 0.0
  %4584 = vmatpush.msra.mxu0 0.0
  %4585 = vmatpush.msra.mxu0 0.0
  %4586 = vmatpush.msra.mxu0 0.0
  %4587 = vmatpush.msra.mxu0 0.0
  %4588 = vmatpush.msra.mxu0 0.0
  %4589 = vmatpush.msra.mxu0 0.0
  %4590 = vmatpush.msra.mxu0 0.0
  %4591 = vmatpush.msra.mxu0 0.0
  %4592 = vmatpush.msra.mxu0 %v3811
  %4593 = vmatpush.msra.mxu0 %v3786
  %4594 = vmatpush.msra.mxu0 %v3761
  %4595 = vmatmul.f32.gmra.mxu0 %v513
  %v4596 = vpop.f32.mrf.mxu0
  %v4597 = vadd.f32 %v4574, %v4596
  %4598 = vmatmul.f32.gmra.mxu0 %v516
  %v4599 = vpop.f32.mrf.mxu0
  %v4600 = vadd.f32 %v4577, %v4599
  %4601 = vdwg.mxu0
  %4602 = vmatpush.msra.mxu0 %v3737
  %4603 = vmatpush.msra.mxu0 %v3712
  %4604 = vmatpush.msra.mxu0 %v3687
  %4605 = vmatpush.msra.mxu0 %v3662
  %4606 = vmatpush.msra.mxu0 %v3637
  %4607 = vmatpush.msra.mxu0 %v3612
  %4608 = vmatpush.msra.mxu0 %v3587
  %4609 = vmatpush.msra.mxu0 %v3562
  %4610 = vmatpush.msra.mxu0 %v3537
  %4611 = vmatpush.msra.mxu0 %v3512
  %4612 = vmatpush.msra.mxu0 %v3487
  %4613 = vmatpush.msra.mxu0 %v3462
  %4614 = vmatpush.msra.mxu0 %v3437
  %4615 = vmatpush.msra.mxu0 %v3412
  %4616 = vmatpush.msra.mxu0 %v3387
  %4617 = vmatpush.msra.mxu0 %v3362
  %4618 = vmatmul.f32.gmra.mxu0 %v32
  %v4619 = vpop.f32.mrf.mxu0
  %v4620 = vadd.f32 0.0, %v4619
  %4621 = vmatmul.f32.gmra.mxu0 %v34
  %v4622 = vpop.f32.mrf.mxu0
  %v4623 = vadd.f32 0.0, %v4622
  %4624 = vdwg.mxu0
  %4625 = vmatpush.msra.mxu0 0.0
  %4626 = vmatpush.msra.mxu0 0.0
  %4627 = vmatpush.msra.mxu0 0.0
  %4628 = vmatpush.msra.mxu0 0.0
  %4629 = vmatpush.msra.mxu0 0.0
  %4630 = vmatpush.msra.mxu0 0.0
  %4631 = vmatpush.msra.mxu0 0.0
  %4632 = vmatpush.msra.mxu0 0.0
  %4633 = vmatpush.msra.mxu0 0.0
  %4634 = vmatpush.msra.mxu0 0.0
  %4635 = vmatpush.msra.mxu0 0.0
  %4636 = vmatpush.msra.mxu0 0.0
  %4637 = vmatpush.msra.mxu0 0.0
  %4638 = vmatpush.msra.mxu0 %v3812
  %4639 = vmatpush.msra.mxu0 %v3787
  %4640 = vmatpush.msra.mxu0 %v3762
  %4641 = vmatmul.f32.gmra.mxu0 %v513
  %v4642 = vpop.f32.mrf.mxu0
  %v4643 = vadd.f32 %v4620, %v4642
  %4644 = vmatmul.f32.gmra.mxu0 %v516
  %v4645 = vpop.f32.mrf.mxu0
  %v4646 = vadd.f32 %v4623, %v4645
  %4647 = vdwg.mxu0
  %4648 = vmatpush.msra.mxu0 %v3738
  %4649 = vmatpush.msra.mxu0 %v3713
  %4650 = vmatpush.msra.mxu0 %v3688
  %4651 = vmatpush.msra.mxu0 %v3663
  %4652 = vmatpush.msra.mxu0 %v3638
  %4653 = vmatpush.msra.mxu0 %v3613
  %4654 = vmatpush.msra.mxu0 %v3588
  %4655 = vmatpush.msra.mxu0 %v3563
  %4656 = vmatpush.msra.mxu0 %v3538
  %4657 = vmatpush.msra.mxu0 %v3513
  %4658 = vmatpush.msra.mxu0 %v3488
  %4659 = vmatpush.msra.mxu0 %v3463
  %4660 = vmatpush.msra.mxu0 %v3438
  %4661 = vmatpush.msra.mxu0 %v3413
  %4662 = vmatpush.msra.mxu0 %v3388
  %4663 = vmatpush.msra.mxu0 %v3363
  %4664 = vmatmul.f32.gmra.mxu0 %v32
  %v4665 = vpop.f32.mrf.mxu0
  %v4666 = vadd.f32 0.0, %v4665
  %4667 = vmatmul.f32.gmra.mxu0 %v34
  %v4668 = vpop.f32.mrf.mxu0
  %v4669 = vadd.f32 0.0, %v4668
  %4670 = vdwg.mxu0
  %4671 = vmatpush.msra.mxu0 0.0
  %4672 = vmatpush.msra.mxu0 0.0
  %4673 = vmatpush.msra.mxu0 0.0
  %4674 = vmatpush.msra.mxu0 0.0
  %4675 = vmatpush.msra.mxu0 0.0
  %4676 = vmatpush.msra.mxu0 0.0
  %4677 = vmatpush.msra.mxu0 0.0
  %4678 = vmatpush.msra.mxu0 0.0
  %4679 = vmatpush.msra.mxu0 0.0
  %4680 = vmatpush.msra.mxu0 0.0
  %4681 = vmatpush.msra.mxu0 0.0
  %4682 = vmatpush.msra.mxu0 0.0
  %4683 = vmatpush.msra.mxu0 0.0
  %4684 = vmatpush.msra.mxu0 %v3813
  %4685 = vmatpush.msra.mxu0 %v3788
  %4686 = vmatpush.msra.mxu0 %v3763
  %4687 = vmatmul.f32.gmra.mxu0 %v513
  %v4688 = vpop.f32.mrf.mxu0
  %v4689 = vadd.f32 %v4666, %v4688
  %4690 = vmatmul.f32.gmra.mxu0 %v516
  %v4691 = vpop.f32.mrf.mxu0
  %v4692 = vadd.f32 %v4669, %v4691
  %4693 = vdwg.mxu0
  %4694 = vmatpush.msra.mxu0 %v3739
  %4695 = vmatpush.msra.mxu0 %v3714
  %4696 = vmatpush.msra.mxu0 %v3689
  %4697 = vmatpush.msra.mxu0 %v3664
  %4698 = vmatpush.msra.mxu0 %v3639
  %4699 = vmatpush.msra.mxu0 %v3614
  %4700 = vmatpush.msra.mxu0 %v3589
  %4701 = vmatpush.msra.mxu0 %v3564
  %4702 = vmatpush.msra.mxu0 %v3539
  %4703 = vmatpush.msra.mxu0 %v3514
  %4704 = vmatpush.msra.mxu0 %v3489
  %4705 = vmatpush.msra.mxu0 %v3464
  %4706 = vmatpush.msra.mxu0 %v3439
  %4707 = vmatpush.msra.mxu0 %v3414
  %4708 = vmatpush.msra.mxu0 %v3389
  %4709 = vmatpush.msra.mxu0 %v3364
  %4710 = vmatmul.f32.gmra.mxu0 %v32
  %v4711 = vpop.f32.mrf.mxu0
  %v4712 = vadd.f32 0.0, %v4711
  %4713 = vmatmul.f32.gmra.mxu0 %v34
  %v4714 = vpop.f32.mrf.mxu0
  %v4715 = vadd.f32 0.0, %v4714
  %4716 = vdwg.mxu0
  %4717 = vmatpush.msra.mxu0 0.0
  %4718 = vmatpush.msra.mxu0 0.0
  %4719 = vmatpush.msra.mxu0 0.0
  %4720 = vmatpush.msra.mxu0 0.0
  %4721 = vmatpush.msra.mxu0 0.0
  %4722 = vmatpush.msra.mxu0 0.0
  %4723 = vmatpush.msra.mxu0 0.0
  %4724 = vmatpush.msra.mxu0 0.0
  %4725 = vmatpush.msra.mxu0 0.0
  %4726 = vmatpush.msra.mxu0 0.0
  %4727 = vmatpush.msra.mxu0 0.0
  %4728 = vmatpush.msra.mxu0 0.0
  %4729 = vmatpush.msra.mxu0 0.0
  %4730 = vmatpush.msra.mxu0 %v3814
  %4731 = vmatpush.msra.mxu0 %v3789
  %4732 = vmatpush.msra.mxu0 %v3764
  %4733 = vmatmul.f32.gmra.mxu0 %v513
  %v4734 = vpop.f32.mrf.mxu0
  %v4735 = vadd.f32 %v4712, %v4734
  %4736 = vmatmul.f32.gmra.mxu0 %v516
  %v4737 = vpop.f32.mrf.mxu0
  %v4738 = vadd.f32 %v4715, %v4737
  %4739 = vdwg.mxu0
  %4740 = vmatpush.msra.mxu0 %v3740
  %4741 = vmatpush.msra.mxu0 %v3715
  %4742 = vmatpush.msra.mxu0 %v3690
  %4743 = vmatpush.msra.mxu0 %v3665
  %4744 = vmatpush.msra.mxu0 %v3640
  %4745 = vmatpush.msra.mxu0 %v3615
  %4746 = vmatpush.msra.mxu0 %v3590
  %4747 = vmatpush.msra.mxu0 %v3565
  %4748 = vmatpush.msra.mxu0 %v3540
  %4749 = vmatpush.msra.mxu0 %v3515
  %4750 = vmatpush.msra.mxu0 %v3490
  %4751 = vmatpush.msra.mxu0 %v3465
  %4752 = vmatpush.msra.mxu0 %v3440
  %4753 = vmatpush.msra.mxu0 %v3415
  %4754 = vmatpush.msra.mxu0 %v3390
  %4755 = vmatpush.msra.mxu0 %v3365
  %4756 = vmatmul.f32.gmra.mxu0 %v32
  %v4757 = vpop.f32.mrf.mxu0
  %v4758 = vadd.f32 0.0, %v4757
  %4759 = vmatmul.f32.gmra.mxu0 %v34
  %v4760 = vpop.f32.mrf.mxu0
  %v4761 = vadd.f32 0.0, %v4760
  %4762 = vdwg.mxu0
  %4763 = vmatpush.msra.mxu0 0.0
  %4764 = vmatpush.msra.mxu0 0.0
  %4765 = vmatpush.msra.mxu0 0.0
  %4766 = vmatpush.msra.mxu0 0.0
  %4767 = vmatpush.msra.mxu0 0.0
  %4768 = vmatpush.msra.mxu0 0.0
  %4769 = vmatpush.msra.mxu0 0.0
  %4770 = vmatpush.msra.mxu0 0.0
  %4771 = vmatpush.msra.mxu0 0.0
  %4772 = vmatpush.msra.mxu0 0.0
  %4773 = vmatpush.msra.mxu0 0.0
  %4774 = vmatpush.msra.mxu0 0.0
  %4775 = vmatpush.msra.mxu0 0.0
  %4776 = vmatpush.msra.mxu0 %v3815
  %4777 = vmatpush.msra.mxu0 %v3790
  %4778 = vmatpush.msra.mxu0 %v3765
  %4779 = vmatmul.f32.gmra.mxu0 %v513
  %v4780 = vpop.f32.mrf.mxu0
  %v4781 = vadd.f32 %v4758, %v4780
  %4782 = vmatmul.f32.gmra.mxu0 %v516
  %v4783 = vpop.f32.mrf.mxu0
  %v4784 = vadd.f32 %v4761, %v4783
  %4785 = vdwg.mxu0
  %4786 = vmatpush.msra.mxu0 %v3741
  %4787 = vmatpush.msra.mxu0 %v3716
  %4788 = vmatpush.msra.mxu0 %v3691
  %4789 = vmatpush.msra.mxu0 %v3666
  %4790 = vmatpush.msra.mxu0 %v3641
  %4791 = vmatpush.msra.mxu0 %v3616
  %4792 = vmatpush.msra.mxu0 %v3591
  %4793 = vmatpush.msra.mxu0 %v3566
  %4794 = vmatpush.msra.mxu0 %v3541
  %4795 = vmatpush.msra.mxu0 %v3516
  %4796 = vmatpush.msra.mxu0 %v3491
  %4797 = vmatpush.msra.mxu0 %v3466
  %4798 = vmatpush.msra.mxu0 %v3441
  %4799 = vmatpush.msra.mxu0 %v3416
  %4800 = vmatpush.msra.mxu0 %v3391
  %4801 = vmatpush.msra.mxu0 %v3366
  %4802 = vmatmul.f32.gmra.mxu0 %v32
  %v4803 = vpop.f32.mrf.mxu0
  %v4804 = vadd.f32 0.0, %v4803
  %4805 = vmatmul.f32.gmra.mxu0 %v34
  %v4806 = vpop.f32.mrf.mxu0
  %v4807 = vadd.f32 0.0, %v4806
  %4808 = vdwg.mxu0
  %4809 = vmatpush.msra.mxu0 0.0
  %4810 = vmatpush.msra.mxu0 0.0
  %4811 = vmatpush.msra.mxu0 0.0
  %4812 = vmatpush.msra.mxu0 0.0
  %4813 = vmatpush.msra.mxu0 0.0
  %4814 = vmatpush.msra.mxu0 0.0
  %4815 = vmatpush.msra.mxu0 0.0
  %4816 = vmatpush.msra.mxu0 0.0
  %4817 = vmatpush.msra.mxu0 0.0
  %4818 = vmatpush.msra.mxu0 0.0
  %4819 = vmatpush.msra.mxu0 0.0
  %4820 = vmatpush.msra.mxu0 0.0
  %4821 = vmatpush.msra.mxu0 0.0
  %4822 = vmatpush.msra.mxu0 %v3816
  %4823 = vmatpush.msra.mxu0 %v3791
  %4824 = vmatpush.msra.mxu0 %v3766
  %4825 = vmatmul.f32.gmra.mxu0 %v513
  %v4826 = vpop.f32.mrf.mxu0
  %v4827 = vadd.f32 %v4804, %v4826
  %4828 = vmatmul.f32.gmra.mxu0 %v516
  %v4829 = vpop.f32.mrf.mxu0
  %v4830 = vadd.f32 %v4807, %v4829
  %4831 = vdwg.mxu0
  %4832 = vmatpush.msra.mxu0 %v3742
  %4833 = vmatpush.msra.mxu0 %v3717
  %4834 = vmatpush.msra.mxu0 %v3692
  %4835 = vmatpush.msra.mxu0 %v3667
  %4836 = vmatpush.msra.mxu0 %v3642
  %4837 = vmatpush.msra.mxu0 %v3617
  %4838 = vmatpush.msra.mxu0 %v3592
  %4839 = vmatpush.msra.mxu0 %v3567
  %4840 = vmatpush.msra.mxu0 %v3542
  %4841 = vmatpush.msra.mxu0 %v3517
  %4842 = vmatpush.msra.mxu0 %v3492
  %4843 = vmatpush.msra.mxu0 %v3467
  %4844 = vmatpush.msra.mxu0 %v3442
  %4845 = vmatpush.msra.mxu0 %v3417
  %4846 = vmatpush.msra.mxu0 %v3392
  %4847 = vmatpush.msra.mxu0 %v3367
  %4848 = vmatmul.f32.gmra.mxu0 %v32
  %v4849 = vpop.f32.mrf.mxu0
  %v4850 = vadd.f32 0.0, %v4849
  %4851 = vmatmul.f32.gmra.mxu0 %v34
  %v4852 = vpop.f32.mrf.mxu0
  %v4853 = vadd.f32 0.0, %v4852
  %4854 = vdwg.mxu0
  %4855 = vmatpush.msra.mxu0 0.0
  %4856 = vmatpush.msra.mxu0 0.0
  %4857 = vmatpush.msra.mxu0 0.0
  %4858 = vmatpush.msra.mxu0 0.0
  %4859 = vmatpush.msra.mxu0 0.0
  %4860 = vmatpush.msra.mxu0 0.0
  %4861 = vmatpush.msra.mxu0 0.0
  %4862 = vmatpush.msra.mxu0 0.0
  %4863 = vmatpush.msra.mxu0 0.0
  %4864 = vmatpush.msra.mxu0 0.0
  %4865 = vmatpush.msra.mxu0 0.0
  %4866 = vmatpush.msra.mxu0 0.0
  %4867 = vmatpush.msra.mxu0 0.0
  %4868 = vmatpush.msra.mxu0 %v3817
  %4869 = vmatpush.msra.mxu0 %v3792
  %4870 = vmatpush.msra.mxu0 %v3767
  %4871 = vmatmul.f32.gmra.mxu0 %v513
  %v4872 = vpop.f32.mrf.mxu0
  %v4873 = vadd.f32 %v4850, %v4872
  %4874 = vmatmul.f32.gmra.mxu0 %v516
  %v4875 = vpop.f32.mrf.mxu0
  %v4876 = vadd.f32 %v4853, %v4875
  %4877 = vdwg.mxu0
  %4878 = vmatpush.msra.mxu0 %v3743
  %4879 = vmatpush.msra.mxu0 %v3718
  %4880 = vmatpush.msra.mxu0 %v3693
  %4881 = vmatpush.msra.mxu0 %v3668
  %4882 = vmatpush.msra.mxu0 %v3643
  %4883 = vmatpush.msra.mxu0 %v3618
  %4884 = vmatpush.msra.mxu0 %v3593
  %4885 = vmatpush.msra.mxu0 %v3568
  %4886 = vmatpush.msra.mxu0 %v3543
  %4887 = vmatpush.msra.mxu0 %v3518
  %4888 = vmatpush.msra.mxu0 %v3493
  %4889 = vmatpush.msra.mxu0 %v3468
  %4890 = vmatpush.msra.mxu0 %v3443
  %4891 = vmatpush.msra.mxu0 %v3418
  %4892 = vmatpush.msra.mxu0 %v3393
  %4893 = vmatpush.msra.mxu0 %v3368
  %4894 = vmatmul.f32.gmra.mxu0 %v32
  %v4895 = vpop.f32.mrf.mxu0
  %v4896 = vadd.f32 0.0, %v4895
  %4897 = vmatmul.f32.gmra.mxu0 %v34
  %v4898 = vpop.f32.mrf.mxu0
  %v4899 = vadd.f32 0.0, %v4898
  %4900 = vdwg.mxu0
  %4901 = vmatpush.msra.mxu0 0.0
  %4902 = vmatpush.msra.mxu0 0.0
  %4903 = vmatpush.msra.mxu0 0.0
  %4904 = vmatpush.msra.mxu0 0.0
  %4905 = vmatpush.msra.mxu0 0.0
  %4906 = vmatpush.msra.mxu0 0.0
  %4907 = vmatpush.msra.mxu0 0.0
  %4908 = vmatpush.msra.mxu0 0.0
  %4909 = vmatpush.msra.mxu0 0.0
  %4910 = vmatpush.msra.mxu0 0.0
  %4911 = vmatpush.msra.mxu0 0.0
  %4912 = vmatpush.msra.mxu0 0.0
  %4913 = vmatpush.msra.mxu0 0.0
  %4914 = vmatpush.msra.mxu0 %v3818
  %4915 = vmatpush.msra.mxu0 %v3793
  %4916 = vmatpush.msra.mxu0 %v3768
  %4917 = vmatmul.f32.gmra.mxu0 %v513
  %v4918 = vpop.f32.mrf.mxu0
  %v4919 = vadd.f32 %v4896, %v4918
  %4920 = vmatmul.f32.gmra.mxu0 %v516
  %v4921 = vpop.f32.mrf.mxu0
  %v4922 = vadd.f32 %v4899, %v4921
  %4923 = vdwg.mxu0
  %4924 = vmatpush.msra.mxu0 %v3744
  %4925 = vmatpush.msra.mxu0 %v3719
  %4926 = vmatpush.msra.mxu0 %v3694
  %4927 = vmatpush.msra.mxu0 %v3669
  %4928 = vmatpush.msra.mxu0 %v3644
  %4929 = vmatpush.msra.mxu0 %v3619
  %4930 = vmatpush.msra.mxu0 %v3594
  %4931 = vmatpush.msra.mxu0 %v3569
  %4932 = vmatpush.msra.mxu0 %v3544
  %4933 = vmatpush.msra.mxu0 %v3519
  %4934 = vmatpush.msra.mxu0 %v3494
  %4935 = vmatpush.msra.mxu0 %v3469
  %4936 = vmatpush.msra.mxu0 %v3444
  %4937 = vmatpush.msra.mxu0 %v3419
  %4938 = vmatpush.msra.mxu0 %v3394
  %4939 = vmatpush.msra.mxu0 %v3369
  %4940 = vmatmul.f32.gmra.mxu0 %v32
  %v4941 = vpop.f32.mrf.mxu0
  %v4942 = vadd.f32 0.0, %v4941
  %4943 = vmatmul.f32.gmra.mxu0 %v34
  %v4944 = vpop.f32.mrf.mxu0
  %v4945 = vadd.f32 0.0, %v4944
  %4946 = vdwg.mxu0
  %4947 = vmatpush.msra.mxu0 0.0
  %4948 = vmatpush.msra.mxu0 0.0
  %4949 = vmatpush.msra.mxu0 0.0
  %4950 = vmatpush.msra.mxu0 0.0
  %4951 = vmatpush.msra.mxu0 0.0
  %4952 = vmatpush.msra.mxu0 0.0
  %4953 = vmatpush.msra.mxu0 0.0
  %4954 = vmatpush.msra.mxu0 0.0
  %4955 = vmatpush.msra.mxu0 0.0
  %4956 = vmatpush.msra.mxu0 0.0
  %4957 = vmatpush.msra.mxu0 0.0
  %4958 = vmatpush.msra.mxu0 0.0
  %4959 = vmatpush.msra.mxu0 0.0
  %4960 = vmatpush.msra.mxu0 %v3819
  %4961 = vmatpush.msra.mxu0 %v3794
  %4962 = vmatpush.msra.mxu0 %v3769
  %4963 = vmatmul.f32.gmra.mxu0 %v513
  %v4964 = vpop.f32.mrf.mxu0
  %v4965 = vadd.f32 %v4942, %v4964
  %4966 = vmatmul.f32.gmra.mxu0 %v516
  %v4967 = vpop.f32.mrf.mxu0
  %v4968 = vadd.f32 %v4945, %v4967
  %4969 = vdwg.mxu0
  %v4970 = vmax.f32 %v3294, %v3861
  %v4971 = vmax.f32 %v3295, %v3907
  %v4972 = vmax.f32 %v3296, %v3953
  %v4973 = vmax.f32 %v3297, %v3999
  %v4974 = vmax.f32 %v3298, %v4045
  %v4975 = vmax.f32 %v3299, %v4091
  %v4976 = vmax.f32 %v3300, %v4137
  %v4977 = vmax.f32 %v3301, %v4183
  %v4978 = vmax.f32 %v3302, %v4229
  %v4979 = vmax.f32 %v3303, %v4275
  %v4980 = vmax.f32 %v3304, %v4321
  %v4981 = vmax.f32 %v3305, %v4367
  %v4982 = vmax.f32 %v3306, %v4413
  %v4983 = vmax.f32 %v3307, %v4459
  %v4984 = vmax.f32 %v3308, %v4505
  %v4985 = vmax.f32 %v3309, %v4551
  %v4986 = vmax.f32 %v3310, %v4597
  %v4987 = vmax.f32 %v3311, %v4643
  %v4988 = vmax.f32 %v3312, %v4689
  %v4989 = vmax.f32 %v3313, %v4735
  %v4990 = vmax.f32 %v3314, %v4781
  %v4991 = vmax.f32 %v3315, %v4827
  %v4992 = vmax.f32 %v3316, %v4873
  %v4993 = vmax.f32 %v3317, %v4919
  %v4994 = vmax.f32 %v3318, %v4965
  %v4995 = vmax.f32 %v3319, %v3864
  %v4996 = vmax.f32 %v3320, %v3910
  %v4997 = vmax.f32 %v3321, %v3956
  %v4998 = vmax.f32 %v3322, %v4002
  %v4999 = vmax.f32 %v3323, %v4048
  %v5000 = vmax.f32 %v3324, %v4094
  %v5001 = vmax.f32 %v3325, %v4140
  %v5002 = vmax.f32 %v3326, %v4186
  %v5003 = vmax.f32 %v3327, %v4232
  %v5004 = vmax.f32 %v3328, %v4278
  %v5005 = vmax.f32 %v3329, %v4324
  %v5006 = vmax.f32 %v3330, %v4370
  %v5007 = vmax.f32 %v3331, %v4416
  %v5008 = vmax.f32 %v3332, %v4462
  %v5009 = vmax.f32 %v3333, %v4508
  %v5010 = vmax.f32 %v3334, %v4554
  %v5011 = vmax.f32 %v3335, %v4600
  %v5012 = vmax.f32 %v3336, %v4646
  %v5013 = vmax.f32 %v3337, %v4692
  %v5014 = vmax.f32 %v3338, %v4738
  %v5015 = vmax.f32 %v3339, %v4784
  %v5016 = vmax.f32 %v3340, %v4830
  %v5017 = vmax.f32 %v3341, %v4876
  %v5018 = vmax.f32 %v3342, %v4922
  %v5019 = vmax.f32 %v3343, %v4968
  %s5020 = scalar_lea.vmem %s0, 11400
  %v5021 = vld [vmem:[%s5020] sm:$0xff]
  %v5022 = vld [vmem:[%s5020 + $0x8] sm:$0xff]
  %v5023 = vld [vmem:[%s5020 + $0x10] sm:$0xff]
  %v5024 = vld [vmem:[%s5020 + $0x18] sm:$0xff]
  %v5025 = vld [vmem:[%s5020 + $0x20] sm:$0xff]
  %v5026 = vld [vmem:[%s5020 + $0x28] sm:$0xff]
  %v5027 = vld [vmem:[%s5020 + $0x30] sm:$0xff]
  %v5028 = vld [vmem:[%s5020 + $0x38] sm:$0xff]
  %v5029 = vld [vmem:[%s5020 + $0x40] sm:$0xff]
  %v5030 = vld [vmem:[%s5020 + $0x48] sm:$0xff]
  %v5031 = vld [vmem:[%s5020 + $0x50] sm:$0xff]
  %v5032 = vld [vmem:[%s5020 + $0x58] sm:$0xff]
  %v5033 = vld [vmem:[%s5020 + $0x60] sm:$0xff]
  %v5034 = vld [vmem:[%s5020 + $0x68] sm:$0xff]
  %v5035 = vld [vmem:[%s5020 + $0x70] sm:$0xff]
  %v5036 = vld [vmem:[%s5020 + $0x78] sm:$0xff]
  %v5037 = vld [vmem:[%s5020 + $0x80] sm:$0xff]
  %v5038 = vld [vmem:[%s5020 + $0x88] sm:$0xff]
  %v5039 = vld [vmem:[%s5020 + $0x90] sm:$0xff]
  %v5040 = vld [vmem:[%s5020 + $0x98] sm:$0xff]
  %v5041 = vld [vmem:[%s5020 + $0xa0] sm:$0xff]
  %v5042 = vld [vmem:[%s5020 + $0xa8] sm:$0xff]
  %v5043 = vld [vmem:[%s5020 + $0xb0] sm:$0xff]
  %v5044 = vld [vmem:[%s5020 + $0xb8] sm:$0xff]
  %v5045 = vld [vmem:[%s5020 + $0xc0] sm:$0xff]
  %v5046 = vld [vmem:[%s5020 + $0xc8] sm:$0xff]
  %v5047 = vld [vmem:[%s5020 + $0xd0] sm:$0xff]
  %v5048 = vld [vmem:[%s5020 + $0xd8] sm:$0xff]
  %v5049 = vld [vmem:[%s5020 + $0xe0] sm:$0xff]
  %v5050 = vld [vmem:[%s5020 + $0xe8] sm:$0xff]
  %v5051 = vld [vmem:[%s5020 + $0xf0] sm:$0xff]
  %v5052 = vld [vmem:[%s5020 + $0xf8] sm:$0xff]
  %v5053 = vld [vmem:[%s5020 + $0x100] sm:$0xff]
  %v5054 = vld [vmem:[%s5020 + $0x108] sm:$0xff]
  %v5055 = vld [vmem:[%s5020 + $0x110] sm:$0xff]
  %v5056 = vld [vmem:[%s5020 + $0x118] sm:$0xff]
  %v5057 = vld [vmem:[%s5020 + $0x120] sm:$0xff]
  %v5058 = vld [vmem:[%s5020 + $0x128] sm:$0xff]
  %v5059 = vld [vmem:[%s5020 + $0x130] sm:$0xff]
  %v5060 = vld [vmem:[%s5020 + $0x138] sm:$0xff]
  %v5061 = vld [vmem:[%s5020 + $0x140] sm:$0xff]
  %v5062 = vld [vmem:[%s5020 + $0x148] sm:$0xff]
  %v5063 = vld [vmem:[%s5020 + $0x150] sm:$0xff]
  %v5064 = vld [vmem:[%s5020 + $0x158] sm:$0xff]
  %v5065 = vld [vmem:[%s5020 + $0x160] sm:$0xff]
  %v5066 = vld [vmem:[%s5020 + $0x168] sm:$0xff]
  %v5067 = vld [vmem:[%s5020 + $0x170] sm:$0xff]
  %v5068 = vld [vmem:[%s5020 + $0x178] sm:$0xff]
  %v5069 = vld [vmem:[%s5020 + $0x180] sm:$0xff]
  %v5070 = vld [vmem:[%s5020 + $0x188] sm:$0xff]
  %v5071 = vld [vmem:[%s5020 + $0x190] sm:$0xff]
  %v5072 = vld [vmem:[%s5020 + $0x198] sm:$0xff]
  %v5073 = vld [vmem:[%s5020 + $0x1a0] sm:$0xff]
  %v5074 = vld [vmem:[%s5020 + $0x1a8] sm:$0xff]
  %v5075 = vld [vmem:[%s5020 + $0x1b0] sm:$0xff]
  %v5076 = vld [vmem:[%s5020 + $0x1b8] sm:$0xff]
  %v5077 = vld [vmem:[%s5020 + $0x1c0] sm:$0xff]
  %v5078 = vld [vmem:[%s5020 + $0x1c8] sm:$0xff]
  %v5079 = vld [vmem:[%s5020 + $0x1d0] sm:$0xff]
  %v5080 = vld [vmem:[%s5020 + $0x1d8] sm:$0xff]
  %v5081 = vld [vmem:[%s5020 + $0x1e0] sm:$0xff]
  %v5082 = vld [vmem:[%s5020 + $0x1e8] sm:$0xff]
  %v5083 = vld [vmem:[%s5020 + $0x1f0] sm:$0xff]
  %v5084 = vld [vmem:[%s5020 + $0x1f8] sm:$0xff]
  %v5085 = vld [vmem:[%s5020 + $0x200] sm:$0xff]
  %v5086 = vld [vmem:[%s5020 + $0x208] sm:$0xff]
  %v5087 = vld [vmem:[%s5020 + $0x210] sm:$0xff]
  %v5088 = vld [vmem:[%s5020 + $0x218] sm:$0xff]
  %v5089 = vld [vmem:[%s5020 + $0x220] sm:$0xff]
  %v5090 = vld [vmem:[%s5020 + $0x228] sm:$0xff]
  %v5091 = vld [vmem:[%s5020 + $0x230] sm:$0xff]
  %v5092 = vld [vmem:[%s5020 + $0x238] sm:$0xff]
  %v5093 = vld [vmem:[%s5020 + $0x240] sm:$0xff]
  %v5094 = vld [vmem:[%s5020 + $0x248] sm:$0xff]
  %v5095 = vld [vmem:[%s5020 + $0x250] sm:$0xff]
  %v5096 = vld [vmem:[%s5020 + $0x258] sm:$0xff]
  %v5097 = vld [vmem:[%s5020 + $0x260] sm:$0xff]
  %v5098 = vld [vmem:[%s5020 + $0x268] sm:$0xff]
  %v5099 = vld [vmem:[%s5020 + $0x270] sm:$0xff]
  %v5100 = vld [vmem:[%s5020 + $0x278] sm:$0xff]
  %v5101 = vld [vmem:[%s5020 + $0x280] sm:$0xff]
  %v5102 = vld [vmem:[%s5020 + $0x288] sm:$0xff]
  %v5103 = vld [vmem:[%s5020 + $0x290] sm:$0xff]
  %v5104 = vld [vmem:[%s5020 + $0x298] sm:$0xff]
  %v5105 = vld [vmem:[%s5020 + $0x2a0] sm:$0xff]
  %v5106 = vld [vmem:[%s5020 + $0x2a8] sm:$0xff]
  %v5107 = vld [vmem:[%s5020 + $0x2b0] sm:$0xff]
  %v5108 = vld [vmem:[%s5020 + $0x2b8] sm:$0xff]
  %v5109 = vld [vmem:[%s5020 + $0x2c0] sm:$0xff]
  %v5110 = vld [vmem:[%s5020 + $0x2c8] sm:$0xff]
  %v5111 = vld [vmem:[%s5020 + $0x2d0] sm:$0xff]
  %v5112 = vld [vmem:[%s5020 + $0x2d8] sm:$0xff]
  %v5113 = vld [vmem:[%s5020 + $0x2e0] sm:$0xff]
  %v5114 = vld [vmem:[%s5020 + $0x2e8] sm:$0xff]
  %v5115 = vld [vmem:[%s5020 + $0x2f0] sm:$0xff]
  %v5116 = vld [vmem:[%s5020 + $0x2f8] sm:$0xff]
  %v5117 = vld [vmem:[%s5020 + $0x300] sm:$0xff]
  %v5118 = vld [vmem:[%s5020 + $0x308] sm:$0xff]
  %v5119 = vld [vmem:[%s5020 + $0x310] sm:$0xff]
  %v5120 = vld [vmem:[%s5020 + $0x318] sm:$0xff]
  %v5121 = vld [vmem:[%s5020 + $0x320] sm:$0xff]
  %v5122 = vld [vmem:[%s5020 + $0x328] sm:$0xff]
  %v5123 = vld [vmem:[%s5020 + $0x330] sm:$0xff]
  %v5124 = vld [vmem:[%s5020 + $0x338] sm:$0xff]
  %v5125 = vld [vmem:[%s5020 + $0x340] sm:$0xff]
  %v5126 = vld [vmem:[%s5020 + $0x348] sm:$0xff]
  %v5127 = vld [vmem:[%s5020 + $0x350] sm:$0xff]
  %v5128 = vld [vmem:[%s5020 + $0x358] sm:$0xff]
  %v5129 = vld [vmem:[%s5020 + $0x360] sm:$0xff]
  %v5130 = vld [vmem:[%s5020 + $0x368] sm:$0xff]
  %v5131 = vld [vmem:[%s5020 + $0x370] sm:$0xff]
  %v5132 = vld [vmem:[%s5020 + $0x378] sm:$0xff]
  %v5133 = vld [vmem:[%s5020 + $0x380] sm:$0xff]
  %v5134 = vld [vmem:[%s5020 + $0x388] sm:$0xff]
  %v5135 = vld [vmem:[%s5020 + $0x390] sm:$0xff]
  %v5136 = vld [vmem:[%s5020 + $0x398] sm:$0xff]
  %v5137 = vld [vmem:[%s5020 + $0x3a0] sm:$0xff]
  %v5138 = vld [vmem:[%s5020 + $0x3a8] sm:$0xff]
  %v5139 = vld [vmem:[%s5020 + $0x3b0] sm:$0xff]
  %v5140 = vld [vmem:[%s5020 + $0x3b8] sm:$0xff]
  %v5141 = vld [vmem:[%s5020 + $0x3c0] sm:$0xff]
  %v5142 = vld [vmem:[%s5020 + $0x3c8] sm:$0xff]
  %v5143 = vld [vmem:[%s5020 + $0x3d0] sm:$0xff]
  %v5144 = vld [vmem:[%s5020 + $0x3d8] sm:$0xff]
  %v5145 = vld [vmem:[%s5020 + $0x3e0] sm:$0xff]
  %v5146 = vld [vmem:[%s5020 + $0x3e8] sm:$0xff]
  %v5147 = vld [vmem:[%s5020 + $0x3f0] sm:$0xff]
  %v5148 = vld [vmem:[%s5020 + $0x3f8] sm:$0xff]
  %v5149 = vld [vmem:[%s5020 + $0x400] sm:$0xff]
  %v5150 = vld [vmem:[%s5020 + $0x408] sm:$0xff]
  %v5151 = vld [vmem:[%s5020 + $0x410] sm:$0xff]
  %v5152 = vld [vmem:[%s5020 + $0x418] sm:$0xff]
  %v5153 = vld [vmem:[%s5020 + $0x420] sm:$0xff]
  %v5154 = vld [vmem:[%s5020 + $0x428] sm:$0xff]
  %v5155 = vld [vmem:[%s5020 + $0x430] sm:$0xff]
  %v5156 = vld [vmem:[%s5020 + $0x438] sm:$0xff]
  %v5157 = vld [vmem:[%s5020 + $0x440] sm:$0xff]
  %v5158 = vld [vmem:[%s5020 + $0x448] sm:$0xff]
  %v5159 = vld [vmem:[%s5020 + $0x450] sm:$0xff]
  %v5160 = vld [vmem:[%s5020 + $0x458] sm:$0xff]
  %v5161 = vld [vmem:[%s5020 + $0x460] sm:$0xff]
  %v5162 = vld [vmem:[%s5020 + $0x468] sm:$0xff]
  %v5163 = vld [vmem:[%s5020 + $0x470] sm:$0xff]
  %v5164 = vld [vmem:[%s5020 + $0x478] sm:$0xff]
  %v5165 = vld [vmem:[%s5020 + $0x480] sm:$0xff]
  %v5166 = vld [vmem:[%s5020 + $0x488] sm:$0xff]
  %v5167 = vld [vmem:[%s5020 + $0x490] sm:$0xff]
  %v5168 = vld [vmem:[%s5020 + $0x498] sm:$0xff]
  %v5169 = vld [vmem:[%s5020 + $0x4a0] sm:$0xff]
  %v5170 = vld [vmem:[%s5020 + $0x4a8] sm:$0xff]
  %v5171 = vld [vmem:[%s5020 + $0x4b0] sm:$0xff]
  %v5172 = vld [vmem:[%s5020 + $0x4b8] sm:$0xff]
  %v5173 = vld [vmem:[%s5020 + $0x4c0] sm:$0xff]
  %v5174 = vld [vmem:[%s5020 + $0x4c8] sm:$0xff]
  %v5175 = vld [vmem:[%s5020 + $0x4d0] sm:$0xff]
  %v5176 = vld [vmem:[%s5020 + $0x4d8] sm:$0xff]
  %v5177 = vld [vmem:[%s5020 + $0x4e0] sm:$0xff]
  %v5178 = vld [vmem:[%s5020 + $0x4e8] sm:$0xff]
  %v5179 = vld [vmem:[%s5020 + $0x4f0] sm:$0xff]
  %v5180 = vld [vmem:[%s5020 + $0x4f8] sm:$0xff]
  %v5181 = vld [vmem:[%s5020 + $0x500] sm:$0xff]
  %v5182 = vld [vmem:[%s5020 + $0x508] sm:$0xff]
  %v5183 = vld [vmem:[%s5020 + $0x510] sm:$0xff]
  %v5184 = vld [vmem:[%s5020 + $0x518] sm:$0xff]
  %v5185 = vld [vmem:[%s5020 + $0x520] sm:$0xff]
  %v5186 = vld [vmem:[%s5020 + $0x528] sm:$0xff]
  %v5187 = vld [vmem:[%s5020 + $0x530] sm:$0xff]
  %v5188 = vld [vmem:[%s5020 + $0x538] sm:$0xff]
  %v5189 = vld [vmem:[%s5020 + $0x540] sm:$0xff]
  %v5190 = vld [vmem:[%s5020 + $0x548] sm:$0xff]
  %v5191 = vld [vmem:[%s5020 + $0x550] sm:$0xff]
  %v5192 = vld [vmem:[%s5020 + $0x558] sm:$0xff]
  %v5193 = vld [vmem:[%s5020 + $0x560] sm:$0xff]
  %v5194 = vld [vmem:[%s5020 + $0x568] sm:$0xff]
  %v5195 = vld [vmem:[%s5020 + $0x570] sm:$0xff]
  %v5196 = vld [vmem:[%s5020 + $0x578] sm:$0xff]
  %v5197 = vld [vmem:[%s5020 + $0x580] sm:$0xff]
  %v5198 = vld [vmem:[%s5020 + $0x588] sm:$0xff]
  %v5199 = vld [vmem:[%s5020 + $0x590] sm:$0xff]
  %v5200 = vld [vmem:[%s5020 + $0x598] sm:$0xff]
  %v5201 = vld [vmem:[%s5020 + $0x5a0] sm:$0xff]
  %v5202 = vld [vmem:[%s5020 + $0x5a8] sm:$0xff]
  %v5203 = vld [vmem:[%s5020 + $0x5b0] sm:$0xff]
  %v5204 = vld [vmem:[%s5020 + $0x5b8] sm:$0xff]
  %v5205 = vld [vmem:[%s5020 + $0x5c0] sm:$0xff]
  %v5206 = vld [vmem:[%s5020 + $0x5c8] sm:$0xff]
  %v5207 = vld [vmem:[%s5020 + $0x5d0] sm:$0xff]
  %v5208 = vld [vmem:[%s5020 + $0x5d8] sm:$0xff]
  %v5209 = vld [vmem:[%s5020 + $0x5e0] sm:$0xff]
  %v5210 = vld [vmem:[%s5020 + $0x5e8] sm:$0xff]
  %v5211 = vld [vmem:[%s5020 + $0x5f0] sm:$0xff]
  %v5212 = vld [vmem:[%s5020 + $0x5f8] sm:$0xff]
  %v5213 = vld [vmem:[%s5020 + $0x600] sm:$0xff]
  %v5214 = vld [vmem:[%s5020 + $0x608] sm:$0xff]
  %v5215 = vld [vmem:[%s5020 + $0x610] sm:$0xff]
  %v5216 = vld [vmem:[%s5020 + $0x618] sm:$0xff]
  %v5217 = vld [vmem:[%s5020 + $0x620] sm:$0xff]
  %v5218 = vld [vmem:[%s5020 + $0x628] sm:$0xff]
  %v5219 = vld [vmem:[%s5020 + $0x630] sm:$0xff]
  %v5220 = vld [vmem:[%s5020 + $0x638] sm:$0xff]
  %v5221 = vld [vmem:[%s5020 + $0x640] sm:$0xff]
  %v5222 = vld [vmem:[%s5020 + $0x648] sm:$0xff]
  %v5223 = vld [vmem:[%s5020 + $0x650] sm:$0xff]
  %v5224 = vld [vmem:[%s5020 + $0x658] sm:$0xff]
  %v5225 = vld [vmem:[%s5020 + $0x660] sm:$0xff]
  %v5226 = vld [vmem:[%s5020 + $0x668] sm:$0xff]
  %v5227 = vld [vmem:[%s5020 + $0x670] sm:$0xff]
  %v5228 = vld [vmem:[%s5020 + $0x678] sm:$0xff]
  %v5229 = vld [vmem:[%s5020 + $0x680] sm:$0xff]
  %v5230 = vld [vmem:[%s5020 + $0x688] sm:$0xff]
  %v5231 = vld [vmem:[%s5020 + $0x690] sm:$0xff]
  %v5232 = vld [vmem:[%s5020 + $0x698] sm:$0xff]
  %v5233 = vld [vmem:[%s5020 + $0x6a0] sm:$0xff]
  %v5234 = vld [vmem:[%s5020 + $0x6a8] sm:$0xff]
  %v5235 = vld [vmem:[%s5020 + $0x6b0] sm:$0xff]
  %v5236 = vld [vmem:[%s5020 + $0x6b8] sm:$0xff]
  %v5237 = vld [vmem:[%s5020 + $0x6c0] sm:$0xff]
  %v5238 = vld [vmem:[%s5020 + $0x6c8] sm:$0xff]
  %v5239 = vld [vmem:[%s5020 + $0x6d0] sm:$0xff]
  %v5240 = vld [vmem:[%s5020 + $0x6d8] sm:$0xff]
  %v5241 = vld [vmem:[%s5020 + $0x6e0] sm:$0xff]
  %v5242 = vld [vmem:[%s5020 + $0x6e8] sm:$0xff]
  %v5243 = vld [vmem:[%s5020 + $0x6f0] sm:$0xff]
  %v5244 = vld [vmem:[%s5020 + $0x6f8] sm:$0xff]
  %v5245 = vld [vmem:[%s5020 + $0x700] sm:$0xff]
  %v5246 = vld [vmem:[%s5020 + $0x708] sm:$0xff]
  %v5247 = vld [vmem:[%s5020 + $0x710] sm:$0xff]
  %v5248 = vld [vmem:[%s5020 + $0x718] sm:$0xff]
  %v5249 = vld [vmem:[%s5020 + $0x720] sm:$0xff]
  %v5250 = vld [vmem:[%s5020 + $0x728] sm:$0xff]
  %v5251 = vld [vmem:[%s5020 + $0x730] sm:$0xff]
  %v5252 = vld [vmem:[%s5020 + $0x738] sm:$0xff]
  %v5253 = vld [vmem:[%s5020 + $0x740] sm:$0xff]
  %v5254 = vld [vmem:[%s5020 + $0x748] sm:$0xff]
  %v5255 = vld [vmem:[%s5020 + $0x750] sm:$0xff]
  %v5256 = vld [vmem:[%s5020 + $0x758] sm:$0xff]
  %v5257 = vld [vmem:[%s5020 + $0x760] sm:$0xff]
  %v5258 = vld [vmem:[%s5020 + $0x768] sm:$0xff]
  %v5259 = vld [vmem:[%s5020 + $0x770] sm:$0xff]
  %v5260 = vld [vmem:[%s5020 + $0x778] sm:$0xff]
  %v5261 = vld [vmem:[%s5020 + $0x780] sm:$0xff]
  %v5262 = vld [vmem:[%s5020 + $0x788] sm:$0xff]
  %v5263 = vld [vmem:[%s5020 + $0x790] sm:$0xff]
  %v5264 = vld [vmem:[%s5020 + $0x798] sm:$0xff]
  %v5265 = vld [vmem:[%s5020 + $0x7a0] sm:$0xff]
  %v5266 = vld [vmem:[%s5020 + $0x7a8] sm:$0xff]
  %v5267 = vld [vmem:[%s5020 + $0x7b0] sm:$0xff]
  %v5268 = vld [vmem:[%s5020 + $0x7b8] sm:$0xff]
  %v5269 = vld [vmem:[%s5020 + $0x7c0] sm:$0xff]
  %v5270 = vld [vmem:[%s5020 + $0x7c8] sm:$0xff]
  %v5271 = vld [vmem:[%s5020 + $0x7d0] sm:$0xff]
  %v5272 = vld [vmem:[%s5020 + $0x7d8] sm:$0xff]
  %v5273 = vld [vmem:[%s5020 + $0x7e0] sm:$0xff]
  %v5274 = vld [vmem:[%s5020 + $0x7e8] sm:$0xff]
  %v5275 = vld [vmem:[%s5020 + $0x7f0] sm:$0xff]
  %v5276 = vld [vmem:[%s5020 + $0x7f8] sm:$0xff]
  %v5277 = vld [vmem:[%s5020 + $0x800] sm:$0xff]
  %v5278 = vld [vmem:[%s5020 + $0x808] sm:$0xff]
  %v5279 = vld [vmem:[%s5020 + $0x810] sm:$0xff]
  %v5280 = vld [vmem:[%s5020 + $0x818] sm:$0xff]
  %v5281 = vld [vmem:[%s5020 + $0x820] sm:$0xff]
  %v5282 = vld [vmem:[%s5020 + $0x828] sm:$0xff]
  %v5283 = vld [vmem:[%s5020 + $0x830] sm:$0xff]
  %v5284 = vld [vmem:[%s5020 + $0x838] sm:$0xff]
  %v5285 = vld [vmem:[%s5020 + $0x840] sm:$0xff]
  %v5286 = vld [vmem:[%s5020 + $0x848] sm:$0xff]
  %v5287 = vld [vmem:[%s5020 + $0x850] sm:$0xff]
  %v5288 = vld [vmem:[%s5020 + $0x858] sm:$0xff]
  %v5289 = vld [vmem:[%s5020 + $0x860] sm:$0xff]
  %v5290 = vld [vmem:[%s5020 + $0x868] sm:$0xff]
  %v5291 = vld [vmem:[%s5020 + $0x870] sm:$0xff]
  %v5292 = vld [vmem:[%s5020 + $0x878] sm:$0xff]
  %v5293 = vld [vmem:[%s5020 + $0x880] sm:$0xff]
  %v5294 = vld [vmem:[%s5020 + $0x888] sm:$0xff]
  %v5295 = vld [vmem:[%s5020 + $0x890] sm:$0xff]
  %v5296 = vld [vmem:[%s5020 + $0x898] sm:$0xff]
  %v5297 = vld [vmem:[%s5020 + $0x8a0] sm:$0xff]
  %v5298 = vld [vmem:[%s5020 + $0x8a8] sm:$0xff]
  %v5299 = vld [vmem:[%s5020 + $0x8b0] sm:$0xff]
  %v5300 = vld [vmem:[%s5020 + $0x8b8] sm:$0xff]
  %v5301 = vld [vmem:[%s5020 + $0x8c0] sm:$0xff]
  %v5302 = vld [vmem:[%s5020 + $0x8c8] sm:$0xff]
  %v5303 = vld [vmem:[%s5020 + $0x8d0] sm:$0xff]
  %v5304 = vld [vmem:[%s5020 + $0x8d8] sm:$0xff]
  %v5305 = vld [vmem:[%s5020 + $0x8e0] sm:$0xff]
  %v5306 = vld [vmem:[%s5020 + $0x8e8] sm:$0xff]
  %v5307 = vld [vmem:[%s5020 + $0x8f0] sm:$0xff]
  %v5308 = vld [vmem:[%s5020 + $0x8f8] sm:$0xff]
  %v5309 = vld [vmem:[%s5020 + $0x900] sm:$0xff]
  %v5310 = vld [vmem:[%s5020 + $0x908] sm:$0xff]
  %v5311 = vld [vmem:[%s5020 + $0x910] sm:$0xff]
  %v5312 = vld [vmem:[%s5020 + $0x918] sm:$0xff]
  %v5313 = vld [vmem:[%s5020 + $0x920] sm:$0xff]
  %v5314 = vld [vmem:[%s5020 + $0x928] sm:$0xff]
  %v5315 = vld [vmem:[%s5020 + $0x930] sm:$0xff]
  %v5316 = vld [vmem:[%s5020 + $0x938] sm:$0xff]
  %v5317 = vld [vmem:[%s5020 + $0x940] sm:$0xff]
  %v5318 = vld [vmem:[%s5020 + $0x948] sm:$0xff]
  %v5319 = vld [vmem:[%s5020 + $0x950] sm:$0xff]
  %v5320 = vld [vmem:[%s5020 + $0x958] sm:$0xff]
  %v5321 = vld [vmem:[%s5020 + $0x960] sm:$0xff]
  %v5322 = vld [vmem:[%s5020 + $0x968] sm:$0xff]
  %v5323 = vld [vmem:[%s5020 + $0x970] sm:$0xff]
  %v5324 = vld [vmem:[%s5020 + $0x978] sm:$0xff]
  %v5325 = vld [vmem:[%s5020 + $0x980] sm:$0xff]
  %v5326 = vld [vmem:[%s5020 + $0x988] sm:$0xff]
  %v5327 = vld [vmem:[%s5020 + $0x990] sm:$0xff]
  %v5328 = vld [vmem:[%s5020 + $0x998] sm:$0xff]
  %v5329 = vld [vmem:[%s5020 + $0x9a0] sm:$0xff]
  %v5330 = vld [vmem:[%s5020 + $0x9a8] sm:$0xff]
  %v5331 = vld [vmem:[%s5020 + $0x9b0] sm:$0xff]
  %v5332 = vld [vmem:[%s5020 + $0x9b8] sm:$0xff]
  %v5333 = vld [vmem:[%s5020 + $0x9c0] sm:$0xff]
  %v5334 = vld [vmem:[%s5020 + $0x9c8] sm:$0xff]
  %v5335 = vld [vmem:[%s5020 + $0x9d0] sm:$0xff]
  %v5336 = vld [vmem:[%s5020 + $0x9d8] sm:$0xff]
  %v5337 = vld [vmem:[%s5020 + $0x9e0] sm:$0xff]
  %v5338 = vld [vmem:[%s5020 + $0x9e8] sm:$0xff]
  %v5339 = vld [vmem:[%s5020 + $0x9f0] sm:$0xff]
  %v5340 = vld [vmem:[%s5020 + $0x9f8] sm:$0xff]
  %v5341 = vld [vmem:[%s5020 + $0xa00] sm:$0xff]
  %v5342 = vld [vmem:[%s5020 + $0xa08] sm:$0xff]
  %v5343 = vld [vmem:[%s5020 + $0xa10] sm:$0xff]
  %v5344 = vld [vmem:[%s5020 + $0xa18] sm:$0xff]
  %v5345 = vld [vmem:[%s5020 + $0xa20] sm:$0xff]
  %v5346 = vld [vmem:[%s5020 + $0xa28] sm:$0xff]
  %v5347 = vld [vmem:[%s5020 + $0xa30] sm:$0xff]
  %v5348 = vld [vmem:[%s5020 + $0xa38] sm:$0xff]
  %v5349 = vld [vmem:[%s5020 + $0xa40] sm:$0xff]
  %v5350 = vld [vmem:[%s5020 + $0xa48] sm:$0xff]
  %v5351 = vld [vmem:[%s5020 + $0xa50] sm:$0xff]
  %v5352 = vld [vmem:[%s5020 + $0xa58] sm:$0xff]
  %v5353 = vld [vmem:[%s5020 + $0xa60] sm:$0xff]
  %v5354 = vld [vmem:[%s5020 + $0xa68] sm:$0xff]
  %v5355 = vld [vmem:[%s5020 + $0xa70] sm:$0xff]
  %v5356 = vld [vmem:[%s5020 + $0xa78] sm:$0xff]
  %v5357 = vld [vmem:[%s5020 + $0xa80] sm:$0xff]
  %v5358 = vld [vmem:[%s5020 + $0xa88] sm:$0xff]
  %v5359 = vld [vmem:[%s5020 + $0xa90] sm:$0xff]
  %v5360 = vld [vmem:[%s5020 + $0xa98] sm:$0xff]
  %v5361 = vld [vmem:[%s5020 + $0xaa0] sm:$0xff]
  %v5362 = vld [vmem:[%s5020 + $0xaa8] sm:$0xff]
  %v5363 = vld [vmem:[%s5020 + $0xab0] sm:$0xff]
  %v5364 = vld [vmem:[%s5020 + $0xab8] sm:$0xff]
  %v5365 = vld [vmem:[%s5020 + $0xac0] sm:$0xff]
  %v5366 = vld [vmem:[%s5020 + $0xac8] sm:$0xff]
  %v5367 = vld [vmem:[%s5020 + $0xad0] sm:$0xff]
  %v5368 = vld [vmem:[%s5020 + $0xad8] sm:$0xff]
  %v5369 = vld [vmem:[%s5020 + $0xae0] sm:$0xff]
  %v5370 = vld [vmem:[%s5020 + $0xae8] sm:$0xff]
  %v5371 = vld [vmem:[%s5020 + $0xaf0] sm:$0xff]
  %v5372 = vld [vmem:[%s5020 + $0xaf8] sm:$0xff]
  %v5373 = vld [vmem:[%s5020 + $0xb00] sm:$0xff]
  %v5374 = vld [vmem:[%s5020 + $0xb08] sm:$0xff]
  %v5375 = vld [vmem:[%s5020 + $0xb10] sm:$0xff]
  %v5376 = vld [vmem:[%s5020 + $0xb18] sm:$0xff]
  %v5377 = vld [vmem:[%s5020 + $0xb20] sm:$0xff]
  %v5378 = vld [vmem:[%s5020 + $0xb28] sm:$0xff]
  %v5379 = vld [vmem:[%s5020 + $0xb30] sm:$0xff]
  %v5380 = vld [vmem:[%s5020 + $0xb38] sm:$0xff]
  %v5381 = vld [vmem:[%s5020 + $0xb40] sm:$0xff]
  %v5382 = vld [vmem:[%s5020 + $0xb48] sm:$0xff]
  %v5383 = vld [vmem:[%s5020 + $0xb50] sm:$0xff]
  %v5384 = vld [vmem:[%s5020 + $0xb58] sm:$0xff]
  %v5385 = vld [vmem:[%s5020 + $0xb60] sm:$0xff]
  %v5386 = vld [vmem:[%s5020 + $0xb68] sm:$0xff]
  %v5387 = vld [vmem:[%s5020 + $0xb70] sm:$0xff]
  %v5388 = vld [vmem:[%s5020 + $0xb78] sm:$0xff]
  %v5389 = vld [vmem:[%s5020 + $0xb80] sm:$0xff]
  %v5390 = vld [vmem:[%s5020 + $0xb88] sm:$0xff]
  %v5391 = vld [vmem:[%s5020 + $0xb90] sm:$0xff]
  %v5392 = vld [vmem:[%s5020 + $0xb98] sm:$0xff]
  %v5393 = vld [vmem:[%s5020 + $0xba0] sm:$0xff]
  %v5394 = vld [vmem:[%s5020 + $0xba8] sm:$0xff]
  %v5395 = vld [vmem:[%s5020 + $0xbb0] sm:$0xff]
  %v5396 = vld [vmem:[%s5020 + $0xbb8] sm:$0xff]
  %v5397 = vld [vmem:[%s5020 + $0xbc0] sm:$0xff]
  %v5398 = vld [vmem:[%s5020 + $0xbc8] sm:$0xff]
  %v5399 = vld [vmem:[%s5020 + $0xbd0] sm:$0xff]
  %v5400 = vld [vmem:[%s5020 + $0xbd8] sm:$0xff]
  %v5401 = vld [vmem:[%s5020 + $0xbe0] sm:$0xff]
  %v5402 = vld [vmem:[%s5020 + $0xbe8] sm:$0xff]
  %v5403 = vld [vmem:[%s5020 + $0xbf0] sm:$0xff]
  %v5404 = vld [vmem:[%s5020 + $0xbf8] sm:$0xff]
  %v5405 = vld [vmem:[%s5020 + $0xc00] sm:$0xff]
  %v5406 = vld [vmem:[%s5020 + $0xc08] sm:$0xff]
  %v5407 = vld [vmem:[%s5020 + $0xc10] sm:$0xff]
  %v5408 = vld [vmem:[%s5020 + $0xc18] sm:$0xff]
  %v5409 = vld [vmem:[%s5020 + $0xc20] sm:$0xff]
  %v5410 = vld [vmem:[%s5020 + $0xc28] sm:$0xff]
  %v5411 = vld [vmem:[%s5020 + $0xc30] sm:$0xff]
  %v5412 = vld [vmem:[%s5020 + $0xc38] sm:$0xff]
  %v5413 = vld [vmem:[%s5020 + $0xc40] sm:$0xff]
  %v5414 = vld [vmem:[%s5020 + $0xc48] sm:$0xff]
  %v5415 = vld [vmem:[%s5020 + $0xc50] sm:$0xff]
  %v5416 = vld [vmem:[%s5020 + $0xc58] sm:$0xff]
  %v5417 = vld [vmem:[%s5020 + $0xc60] sm:$0xff]
  %v5418 = vld [vmem:[%s5020 + $0xc68] sm:$0xff]
  %v5419 = vld [vmem:[%s5020 + $0xc70] sm:$0xff]
  %v5420 = vld [vmem:[%s5020 + $0xc78] sm:$0xff]
  %v5421 = vld [vmem:[%s5020 + $0xc80] sm:$0xff]
  %v5422 = vld [vmem:[%s5020 + $0xc88] sm:$0xff]
  %v5423 = vld [vmem:[%s5020 + $0xc90] sm:$0xff]
  %v5424 = vld [vmem:[%s5020 + $0xc98] sm:$0xff]
  %v5425 = vld [vmem:[%s5020 + $0xca0] sm:$0xff]
  %v5426 = vld [vmem:[%s5020 + $0xca8] sm:$0xff]
  %v5427 = vld [vmem:[%s5020 + $0xcb0] sm:$0xff]
  %v5428 = vld [vmem:[%s5020 + $0xcb8] sm:$0xff]
  %v5429 = vld [vmem:[%s5020 + $0xcc0] sm:$0xff]
  %v5430 = vld [vmem:[%s5020 + $0xcc8] sm:$0xff]
  %v5431 = vld [vmem:[%s5020 + $0xcd0] sm:$0xff]
  %v5432 = vld [vmem:[%s5020 + $0xcd8] sm:$0xff]
  %v5433 = vld [vmem:[%s5020 + $0xce0] sm:$0xff]
  %v5434 = vld [vmem:[%s5020 + $0xce8] sm:$0xff]
  %v5435 = vld [vmem:[%s5020 + $0xcf0] sm:$0xff]
  %v5436 = vld [vmem:[%s5020 + $0xcf8] sm:$0xff]
  %v5437 = vld [vmem:[%s5020 + $0xd00] sm:$0xff]
  %v5438 = vld [vmem:[%s5020 + $0xd08] sm:$0xff]
  %v5439 = vld [vmem:[%s5020 + $0xd10] sm:$0xff]
  %v5440 = vld [vmem:[%s5020 + $0xd18] sm:$0xff]
  %v5441 = vld [vmem:[%s5020 + $0xd20] sm:$0xff]
  %v5442 = vld [vmem:[%s5020 + $0xd28] sm:$0xff]
  %v5443 = vld [vmem:[%s5020 + $0xd30] sm:$0xff]
  %v5444 = vld [vmem:[%s5020 + $0xd38] sm:$0xff]
  %v5445 = vld [vmem:[%s5020 + $0xd40] sm:$0xff]
  %v5446 = vld [vmem:[%s5020 + $0xd48] sm:$0xff]
  %v5447 = vld [vmem:[%s5020 + $0xd50] sm:$0xff]
  %v5448 = vld [vmem:[%s5020 + $0xd58] sm:$0xff]
  %v5449 = vld [vmem:[%s5020 + $0xd60] sm:$0xff]
  %v5450 = vld [vmem:[%s5020 + $0xd68] sm:$0xff]
  %v5451 = vld [vmem:[%s5020 + $0xd70] sm:$0xff]
  %v5452 = vld [vmem:[%s5020 + $0xd78] sm:$0xff]
  %v5453 = vld [vmem:[%s5020 + $0xd80] sm:$0xff]
  %v5454 = vld [vmem:[%s5020 + $0xd88] sm:$0xff]
  %v5455 = vld [vmem:[%s5020 + $0xd90] sm:$0xff]
  %v5456 = vld [vmem:[%s5020 + $0xd98] sm:$0xff]
  %v5457 = vld [vmem:[%s5020 + $0xda0] sm:$0xff]
  %v5458 = vld [vmem:[%s5020 + $0xda8] sm:$0xff]
  %v5459 = vld [vmem:[%s5020 + $0xdb0] sm:$0xff]
  %v5460 = vld [vmem:[%s5020 + $0xdb8] sm:$0xff]
  %v5461 = vld [vmem:[%s5020 + $0xdc0] sm:$0xff]
  %v5462 = vld [vmem:[%s5020 + $0xdc8] sm:$0xff]
  %v5463 = vld [vmem:[%s5020 + $0xdd0] sm:$0xff]
  %v5464 = vld [vmem:[%s5020 + $0xdd8] sm:$0xff]
  %v5465 = vld [vmem:[%s5020 + $0xde0] sm:$0xff]
  %v5466 = vld [vmem:[%s5020 + $0xde8] sm:$0xff]
  %v5467 = vld [vmem:[%s5020 + $0xdf0] sm:$0xff]
  %v5468 = vld [vmem:[%s5020 + $0xdf8] sm:$0xff]
  %v5469 = vld [vmem:[%s5020 + $0xe00] sm:$0xff]
  %v5470 = vld [vmem:[%s5020 + $0xe08] sm:$0xff]
  %v5471 = vld [vmem:[%s5020 + $0xe10] sm:$0xff]
  %v5472 = vld [vmem:[%s5020 + $0xe18] sm:$0xff]
  %v5473 = vld [vmem:[%s5020 + $0xe20] sm:$0xff]
  %v5474 = vld [vmem:[%s5020 + $0xe28] sm:$0xff]
  %v5475 = vld [vmem:[%s5020 + $0xe30] sm:$0xff]
  %v5476 = vld [vmem:[%s5020 + $0xe38] sm:$0xff]
  %v5477 = vld [vmem:[%s5020 + $0xe40] sm:$0xff]
  %v5478 = vld [vmem:[%s5020 + $0xe48] sm:$0xff]
  %v5479 = vld [vmem:[%s5020 + $0xe50] sm:$0xff]
  %v5480 = vld [vmem:[%s5020 + $0xe58] sm:$0xff]
  %v5481 = vld [vmem:[%s5020 + $0xe60] sm:$0xff]
  %v5482 = vld [vmem:[%s5020 + $0xe68] sm:$0xff]
  %v5483 = vld [vmem:[%s5020 + $0xe70] sm:$0xff]
  %v5484 = vld [vmem:[%s5020 + $0xe78] sm:$0xff]
  %v5485 = vld [vmem:[%s5020 + $0xe80] sm:$0xff]
  %v5486 = vld [vmem:[%s5020 + $0xe88] sm:$0xff]
  %v5487 = vld [vmem:[%s5020 + $0xe90] sm:$0xff]
  %v5488 = vld [vmem:[%s5020 + $0xe98] sm:$0xff]
  %v5489 = vld [vmem:[%s5020 + $0xea0] sm:$0xff]
  %v5490 = vld [vmem:[%s5020 + $0xea8] sm:$0xff]
  %v5491 = vld [vmem:[%s5020 + $0xeb0] sm:$0xff]
  %v5492 = vld [vmem:[%s5020 + $0xeb8] sm:$0xff]
  %v5493 = vld [vmem:[%s5020 + $0xec0] sm:$0xff]
  %v5494 = vld [vmem:[%s5020 + $0xec8] sm:$0xff]
  %v5495 = vld [vmem:[%s5020 + $0xed0] sm:$0xff]
  %5496 = vmatpush.msra.mxu0 %v5396
  %5497 = vmatpush.msra.mxu0 %v5371
  %5498 = vmatpush.msra.mxu0 %v5346
  %5499 = vmatpush.msra.mxu0 %v5321
  %5500 = vmatpush.msra.mxu0 %v5296
  %5501 = vmatpush.msra.mxu0 %v5271
  %5502 = vmatpush.msra.mxu0 %v5246
  %5503 = vmatpush.msra.mxu0 %v5221
  %5504 = vmatpush.msra.mxu0 %v5196
  %5505 = vmatpush.msra.mxu0 %v5171
  %5506 = vmatpush.msra.mxu0 %v5146
  %5507 = vmatpush.msra.mxu0 %v5121
  %5508 = vmatpush.msra.mxu0 %v5096
  %5509 = vmatpush.msra.mxu0 %v5071
  %5510 = vmatpush.msra.mxu0 %v5046
  %5511 = vmatpush.msra.mxu0 %v5021
  %5512 = vmatmul.f32.gmra.mxu0 %v32
  %v5513 = vpop.f32.mrf.mxu0
  %v5514 = vadd.f32 0.0, %v5513
  %5515 = vmatmul.f32.gmra.mxu0 %v34
  %v5516 = vpop.f32.mrf.mxu0
  %v5517 = vadd.f32 0.0, %v5516
  %5518 = vdwg.mxu0
  %5519 = vmatpush.msra.mxu0 0.0
  %5520 = vmatpush.msra.mxu0 0.0
  %5521 = vmatpush.msra.mxu0 0.0
  %5522 = vmatpush.msra.mxu0 0.0
  %5523 = vmatpush.msra.mxu0 0.0
  %5524 = vmatpush.msra.mxu0 0.0
  %5525 = vmatpush.msra.mxu0 0.0
  %5526 = vmatpush.msra.mxu0 0.0
  %5527 = vmatpush.msra.mxu0 0.0
  %5528 = vmatpush.msra.mxu0 0.0
  %5529 = vmatpush.msra.mxu0 0.0
  %5530 = vmatpush.msra.mxu0 0.0
  %5531 = vmatpush.msra.mxu0 0.0
  %5532 = vmatpush.msra.mxu0 %v5471
  %5533 = vmatpush.msra.mxu0 %v5446
  %5534 = vmatpush.msra.mxu0 %v5421
  %5535 = vmatmul.f32.gmra.mxu0 %v513
  %v5536 = vpop.f32.mrf.mxu0
  %v5537 = vadd.f32 %v5514, %v5536
  %5538 = vmatmul.f32.gmra.mxu0 %v516
  %v5539 = vpop.f32.mrf.mxu0
  %v5540 = vadd.f32 %v5517, %v5539
  %5541 = vdwg.mxu0
  %5542 = vmatpush.msra.mxu0 %v5397
  %5543 = vmatpush.msra.mxu0 %v5372
  %5544 = vmatpush.msra.mxu0 %v5347
  %5545 = vmatpush.msra.mxu0 %v5322
  %5546 = vmatpush.msra.mxu0 %v5297
  %5547 = vmatpush.msra.mxu0 %v5272
  %5548 = vmatpush.msra.mxu0 %v5247
  %5549 = vmatpush.msra.mxu0 %v5222
  %5550 = vmatpush.msra.mxu0 %v5197
  %5551 = vmatpush.msra.mxu0 %v5172
  %5552 = vmatpush.msra.mxu0 %v5147
  %5553 = vmatpush.msra.mxu0 %v5122
  %5554 = vmatpush.msra.mxu0 %v5097
  %5555 = vmatpush.msra.mxu0 %v5072
  %5556 = vmatpush.msra.mxu0 %v5047
  %5557 = vmatpush.msra.mxu0 %v5022
  %5558 = vmatmul.f32.gmra.mxu0 %v32
  %v5559 = vpop.f32.mrf.mxu0
  %v5560 = vadd.f32 0.0, %v5559
  %5561 = vmatmul.f32.gmra.mxu0 %v34
  %v5562 = vpop.f32.mrf.mxu0
  %v5563 = vadd.f32 0.0, %v5562
  %5564 = vdwg.mxu0
  %5565 = vmatpush.msra.mxu0 0.0
  %5566 = vmatpush.msra.mxu0 0.0
  %5567 = vmatpush.msra.mxu0 0.0
  %5568 = vmatpush.msra.mxu0 0.0
  %5569 = vmatpush.msra.mxu0 0.0
  %5570 = vmatpush.msra.mxu0 0.0
  %5571 = vmatpush.msra.mxu0 0.0
  %5572 = vmatpush.msra.mxu0 0.0
  %5573 = vmatpush.msra.mxu0 0.0
  %5574 = vmatpush.msra.mxu0 0.0
  %5575 = vmatpush.msra.mxu0 0.0
  %5576 = vmatpush.msra.mxu0 0.0
  %5577 = vmatpush.msra.mxu0 0.0
  %5578 = vmatpush.msra.mxu0 %v5472
  %5579 = vmatpush.msra.mxu0 %v5447
  %5580 = vmatpush.msra.mxu0 %v5422
  %5581 = vmatmul.f32.gmra.mxu0 %v513
  %v5582 = vpop.f32.mrf.mxu0
  %v5583 = vadd.f32 %v5560, %v5582
  %5584 = vmatmul.f32.gmra.mxu0 %v516
  %v5585 = vpop.f32.mrf.mxu0
  %v5586 = vadd.f32 %v5563, %v5585
  %5587 = vdwg.mxu0
  %5588 = vmatpush.msra.mxu0 %v5398
  %5589 = vmatpush.msra.mxu0 %v5373
  %5590 = vmatpush.msra.mxu0 %v5348
  %5591 = vmatpush.msra.mxu0 %v5323
  %5592 = vmatpush.msra.mxu0 %v5298
  %5593 = vmatpush.msra.mxu0 %v5273
  %5594 = vmatpush.msra.mxu0 %v5248
  %5595 = vmatpush.msra.mxu0 %v5223
  %5596 = vmatpush.msra.mxu0 %v5198
  %5597 = vmatpush.msra.mxu0 %v5173
  %5598 = vmatpush.msra.mxu0 %v5148
  %5599 = vmatpush.msra.mxu0 %v5123
  %5600 = vmatpush.msra.mxu0 %v5098
  %5601 = vmatpush.msra.mxu0 %v5073
  %5602 = vmatpush.msra.mxu0 %v5048
  %5603 = vmatpush.msra.mxu0 %v5023
  %5604 = vmatmul.f32.gmra.mxu0 %v32
  %v5605 = vpop.f32.mrf.mxu0
  %v5606 = vadd.f32 0.0, %v5605
  %5607 = vmatmul.f32.gmra.mxu0 %v34
  %v5608 = vpop.f32.mrf.mxu0
  %v5609 = vadd.f32 0.0, %v5608
  %5610 = vdwg.mxu0
  %5611 = vmatpush.msra.mxu0 0.0
  %5612 = vmatpush.msra.mxu0 0.0
  %5613 = vmatpush.msra.mxu0 0.0
  %5614 = vmatpush.msra.mxu0 0.0
  %5615 = vmatpush.msra.mxu0 0.0
  %5616 = vmatpush.msra.mxu0 0.0
  %5617 = vmatpush.msra.mxu0 0.0
  %5618 = vmatpush.msra.mxu0 0.0
  %5619 = vmatpush.msra.mxu0 0.0
  %5620 = vmatpush.msra.mxu0 0.0
  %5621 = vmatpush.msra.mxu0 0.0
  %5622 = vmatpush.msra.mxu0 0.0
  %5623 = vmatpush.msra.mxu0 0.0
  %5624 = vmatpush.msra.mxu0 %v5473
  %5625 = vmatpush.msra.mxu0 %v5448
  %5626 = vmatpush.msra.mxu0 %v5423
  %5627 = vmatmul.f32.gmra.mxu0 %v513
  %v5628 = vpop.f32.mrf.mxu0
  %v5629 = vadd.f32 %v5606, %v5628
  %5630 = vmatmul.f32.gmra.mxu0 %v516
  %v5631 = vpop.f32.mrf.mxu0
  %v5632 = vadd.f32 %v5609, %v5631
  %5633 = vdwg.mxu0
  %5634 = vmatpush.msra.mxu0 %v5399
  %5635 = vmatpush.msra.mxu0 %v5374
  %5636 = vmatpush.msra.mxu0 %v5349
  %5637 = vmatpush.msra.mxu0 %v5324
  %5638 = vmatpush.msra.mxu0 %v5299
  %5639 = vmatpush.msra.mxu0 %v5274
  %5640 = vmatpush.msra.mxu0 %v5249
  %5641 = vmatpush.msra.mxu0 %v5224
  %5642 = vmatpush.msra.mxu0 %v5199
  %5643 = vmatpush.msra.mxu0 %v5174
  %5644 = vmatpush.msra.mxu0 %v5149
  %5645 = vmatpush.msra.mxu0 %v5124
  %5646 = vmatpush.msra.mxu0 %v5099
  %5647 = vmatpush.msra.mxu0 %v5074
  %5648 = vmatpush.msra.mxu0 %v5049
  %5649 = vmatpush.msra.mxu0 %v5024
  %5650 = vmatmul.f32.gmra.mxu0 %v32
  %v5651 = vpop.f32.mrf.mxu0
  %v5652 = vadd.f32 0.0, %v5651
  %5653 = vmatmul.f32.gmra.mxu0 %v34
  %v5654 = vpop.f32.mrf.mxu0
  %v5655 = vadd.f32 0.0, %v5654
  %5656 = vdwg.mxu0
  %5657 = vmatpush.msra.mxu0 0.0
  %5658 = vmatpush.msra.mxu0 0.0
  %5659 = vmatpush.msra.mxu0 0.0
  %5660 = vmatpush.msra.mxu0 0.0
  %5661 = vmatpush.msra.mxu0 0.0
  %5662 = vmatpush.msra.mxu0 0.0
  %5663 = vmatpush.msra.mxu0 0.0
  %5664 = vmatpush.msra.mxu0 0.0
  %5665 = vmatpush.msra.mxu0 0.0
  %5666 = vmatpush.msra.mxu0 0.0
  %5667 = vmatpush.msra.mxu0 0.0
  %5668 = vmatpush.msra.mxu0 0.0
  %5669 = vmatpush.msra.mxu0 0.0
  %5670 = vmatpush.msra.mxu0 %v5474
  %5671 = vmatpush.msra.mxu0 %v5449
  %5672 = vmatpush.msra.mxu0 %v5424
  %5673 = vmatmul.f32.gmra.mxu0 %v513
  %v5674 = vpop.f32.mrf.mxu0
  %v5675 = vadd.f32 %v5652, %v5674
  %5676 = vmatmul.f32.gmra.mxu0 %v516
  %v5677 = vpop.f32.mrf.mxu0
  %v5678 = vadd.f32 %v5655, %v5677
  %5679 = vdwg.mxu0
  %5680 = vmatpush.msra.mxu0 %v5400
  %5681 = vmatpush.msra.mxu0 %v5375
  %5682 = vmatpush.msra.mxu0 %v5350
  %5683 = vmatpush.msra.mxu0 %v5325
  %5684 = vmatpush.msra.mxu0 %v5300
  %5685 = vmatpush.msra.mxu0 %v5275
  %5686 = vmatpush.msra.mxu0 %v5250
  %5687 = vmatpush.msra.mxu0 %v5225
  %5688 = vmatpush.msra.mxu0 %v5200
  %5689 = vmatpush.msra.mxu0 %v5175
  %5690 = vmatpush.msra.mxu0 %v5150
  %5691 = vmatpush.msra.mxu0 %v5125
  %5692 = vmatpush.msra.mxu0 %v5100
  %5693 = vmatpush.msra.mxu0 %v5075
  %5694 = vmatpush.msra.mxu0 %v5050
  %5695 = vmatpush.msra.mxu0 %v5025
  %5696 = vmatmul.f32.gmra.mxu0 %v32
  %v5697 = vpop.f32.mrf.mxu0
  %v5698 = vadd.f32 0.0, %v5697
  %5699 = vmatmul.f32.gmra.mxu0 %v34
  %v5700 = vpop.f32.mrf.mxu0
  %v5701 = vadd.f32 0.0, %v5700
  %5702 = vdwg.mxu0
  %5703 = vmatpush.msra.mxu0 0.0
  %5704 = vmatpush.msra.mxu0 0.0
  %5705 = vmatpush.msra.mxu0 0.0
  %5706 = vmatpush.msra.mxu0 0.0
  %5707 = vmatpush.msra.mxu0 0.0
  %5708 = vmatpush.msra.mxu0 0.0
  %5709 = vmatpush.msra.mxu0 0.0
  %5710 = vmatpush.msra.mxu0 0.0
  %5711 = vmatpush.msra.mxu0 0.0
  %5712 = vmatpush.msra.mxu0 0.0
  %5713 = vmatpush.msra.mxu0 0.0
  %5714 = vmatpush.msra.mxu0 0.0
  %5715 = vmatpush.msra.mxu0 0.0
  %5716 = vmatpush.msra.mxu0 %v5475
  %5717 = vmatpush.msra.mxu0 %v5450
  %5718 = vmatpush.msra.mxu0 %v5425
  %5719 = vmatmul.f32.gmra.mxu0 %v513
  %v5720 = vpop.f32.mrf.mxu0
  %v5721 = vadd.f32 %v5698, %v5720
  %5722 = vmatmul.f32.gmra.mxu0 %v516
  %v5723 = vpop.f32.mrf.mxu0
  %v5724 = vadd.f32 %v5701, %v5723
  %5725 = vdwg.mxu0
  %5726 = vmatpush.msra.mxu0 %v5401
  %5727 = vmatpush.msra.mxu0 %v5376
  %5728 = vmatpush.msra.mxu0 %v5351
  %5729 = vmatpush.msra.mxu0 %v5326
  %5730 = vmatpush.msra.mxu0 %v5301
  %5731 = vmatpush.msra.mxu0 %v5276
  %5732 = vmatpush.msra.mxu0 %v5251
  %5733 = vmatpush.msra.mxu0 %v5226
  %5734 = vmatpush.msra.mxu0 %v5201
  %5735 = vmatpush.msra.mxu0 %v5176
  %5736 = vmatpush.msra.mxu0 %v5151
  %5737 = vmatpush.msra.mxu0 %v5126
  %5738 = vmatpush.msra.mxu0 %v5101
  %5739 = vmatpush.msra.mxu0 %v5076
  %5740 = vmatpush.msra.mxu0 %v5051
  %5741 = vmatpush.msra.mxu0 %v5026
  %5742 = vmatmul.f32.gmra.mxu0 %v32
  %v5743 = vpop.f32.mrf.mxu0
  %v5744 = vadd.f32 0.0, %v5743
  %5745 = vmatmul.f32.gmra.mxu0 %v34
  %v5746 = vpop.f32.mrf.mxu0
  %v5747 = vadd.f32 0.0, %v5746
  %5748 = vdwg.mxu0
  %5749 = vmatpush.msra.mxu0 0.0
  %5750 = vmatpush.msra.mxu0 0.0
  %5751 = vmatpush.msra.mxu0 0.0
  %5752 = vmatpush.msra.mxu0 0.0
  %5753 = vmatpush.msra.mxu0 0.0
  %5754 = vmatpush.msra.mxu0 0.0
  %5755 = vmatpush.msra.mxu0 0.0
  %5756 = vmatpush.msra.mxu0 0.0
  %5757 = vmatpush.msra.mxu0 0.0
  %5758 = vmatpush.msra.mxu0 0.0
  %5759 = vmatpush.msra.mxu0 0.0
  %5760 = vmatpush.msra.mxu0 0.0
  %5761 = vmatpush.msra.mxu0 0.0
  %5762 = vmatpush.msra.mxu0 %v5476
  %5763 = vmatpush.msra.mxu0 %v5451
  %5764 = vmatpush.msra.mxu0 %v5426
  %5765 = vmatmul.f32.gmra.mxu0 %v513
  %v5766 = vpop.f32.mrf.mxu0
  %v5767 = vadd.f32 %v5744, %v5766
  %5768 = vmatmul.f32.gmra.mxu0 %v516
  %v5769 = vpop.f32.mrf.mxu0
  %v5770 = vadd.f32 %v5747, %v5769
  %5771 = vdwg.mxu0
  %5772 = vmatpush.msra.mxu0 %v5402
  %5773 = vmatpush.msra.mxu0 %v5377
  %5774 = vmatpush.msra.mxu0 %v5352
  %5775 = vmatpush.msra.mxu0 %v5327
  %5776 = vmatpush.msra.mxu0 %v5302
  %5777 = vmatpush.msra.mxu0 %v5277
  %5778 = vmatpush.msra.mxu0 %v5252
  %5779 = vmatpush.msra.mxu0 %v5227
  %5780 = vmatpush.msra.mxu0 %v5202
  %5781 = vmatpush.msra.mxu0 %v5177
  %5782 = vmatpush.msra.mxu0 %v5152
  %5783 = vmatpush.msra.mxu0 %v5127
  %5784 = vmatpush.msra.mxu0 %v5102
  %5785 = vmatpush.msra.mxu0 %v5077
  %5786 = vmatpush.msra.mxu0 %v5052
  %5787 = vmatpush.msra.mxu0 %v5027
  %5788 = vmatmul.f32.gmra.mxu0 %v32
  %v5789 = vpop.f32.mrf.mxu0
  %v5790 = vadd.f32 0.0, %v5789
  %5791 = vmatmul.f32.gmra.mxu0 %v34
  %v5792 = vpop.f32.mrf.mxu0
  %v5793 = vadd.f32 0.0, %v5792
  %5794 = vdwg.mxu0
  %5795 = vmatpush.msra.mxu0 0.0
  %5796 = vmatpush.msra.mxu0 0.0
  %5797 = vmatpush.msra.mxu0 0.0
  %5798 = vmatpush.msra.mxu0 0.0
  %5799 = vmatpush.msra.mxu0 0.0
  %5800 = vmatpush.msra.mxu0 0.0
  %5801 = vmatpush.msra.mxu0 0.0
  %5802 = vmatpush.msra.mxu0 0.0
  %5803 = vmatpush.msra.mxu0 0.0
  %5804 = vmatpush.msra.mxu0 0.0
  %5805 = vmatpush.msra.mxu0 0.0
  %5806 = vmatpush.msra.mxu0 0.0
  %5807 = vmatpush.msra.mxu0 0.0
  %5808 = vmatpush.msra.mxu0 %v5477
  %5809 = vmatpush.msra.mxu0 %v5452
  %5810 = vmatpush.msra.mxu0 %v5427
  %5811 = vmatmul.f32.gmra.mxu0 %v513
  %v5812 = vpop.f32.mrf.mxu0
  %v5813 = vadd.f32 %v5790, %v5812
  %5814 = vmatmul.f32.gmra.mxu0 %v516
  %v5815 = vpop.f32.mrf.mxu0
  %v5816 = vadd.f32 %v5793, %v5815
  %5817 = vdwg.mxu0
  %5818 = vmatpush.msra.mxu0 %v5403
  %5819 = vmatpush.msra.mxu0 %v5378
  %5820 = vmatpush.msra.mxu0 %v5353
  %5821 = vmatpush.msra.mxu0 %v5328
  %5822 = vmatpush.msra.mxu0 %v5303
  %5823 = vmatpush.msra.mxu0 %v5278
  %5824 = vmatpush.msra.mxu0 %v5253
  %5825 = vmatpush.msra.mxu0 %v5228
  %5826 = vmatpush.msra.mxu0 %v5203
  %5827 = vmatpush.msra.mxu0 %v5178
  %5828 = vmatpush.msra.mxu0 %v5153
  %5829 = vmatpush.msra.mxu0 %v5128
  %5830 = vmatpush.msra.mxu0 %v5103
  %5831 = vmatpush.msra.mxu0 %v5078
  %5832 = vmatpush.msra.mxu0 %v5053
  %5833 = vmatpush.msra.mxu0 %v5028
  %5834 = vmatmul.f32.gmra.mxu0 %v32
  %v5835 = vpop.f32.mrf.mxu0
  %v5836 = vadd.f32 0.0, %v5835
  %5837 = vmatmul.f32.gmra.mxu0 %v34
  %v5838 = vpop.f32.mrf.mxu0
  %v5839 = vadd.f32 0.0, %v5838
  %5840 = vdwg.mxu0
  %5841 = vmatpush.msra.mxu0 0.0
  %5842 = vmatpush.msra.mxu0 0.0
  %5843 = vmatpush.msra.mxu0 0.0
  %5844 = vmatpush.msra.mxu0 0.0
  %5845 = vmatpush.msra.mxu0 0.0
  %5846 = vmatpush.msra.mxu0 0.0
  %5847 = vmatpush.msra.mxu0 0.0
  %5848 = vmatpush.msra.mxu0 0.0
  %5849 = vmatpush.msra.mxu0 0.0
  %5850 = vmatpush.msra.mxu0 0.0
  %5851 = vmatpush.msra.mxu0 0.0
  %5852 = vmatpush.msra.mxu0 0.0
  %5853 = vmatpush.msra.mxu0 0.0
  %5854 = vmatpush.msra.mxu0 %v5478
  %5855 = vmatpush.msra.mxu0 %v5453
  %5856 = vmatpush.msra.mxu0 %v5428
  %5857 = vmatmul.f32.gmra.mxu0 %v513
  %v5858 = vpop.f32.mrf.mxu0
  %v5859 = vadd.f32 %v5836, %v5858
  %5860 = vmatmul.f32.gmra.mxu0 %v516
  %v5861 = vpop.f32.mrf.mxu0
  %v5862 = vadd.f32 %v5839, %v5861
  %5863 = vdwg.mxu0
  %5864 = vmatpush.msra.mxu0 %v5404
  %5865 = vmatpush.msra.mxu0 %v5379
  %5866 = vmatpush.msra.mxu0 %v5354
  %5867 = vmatpush.msra.mxu0 %v5329
  %5868 = vmatpush.msra.mxu0 %v5304
  %5869 = vmatpush.msra.mxu0 %v5279
  %5870 = vmatpush.msra.mxu0 %v5254
  %5871 = vmatpush.msra.mxu0 %v5229
  %5872 = vmatpush.msra.mxu0 %v5204
  %5873 = vmatpush.msra.mxu0 %v5179
  %5874 = vmatpush.msra.mxu0 %v5154
  %5875 = vmatpush.msra.mxu0 %v5129
  %5876 = vmatpush.msra.mxu0 %v5104
  %5877 = vmatpush.msra.mxu0 %v5079
  %5878 = vmatpush.msra.mxu0 %v5054
  %5879 = vmatpush.msra.mxu0 %v5029
  %5880 = vmatmul.f32.gmra.mxu0 %v32
  %v5881 = vpop.f32.mrf.mxu0
  %v5882 = vadd.f32 0.0, %v5881
  %5883 = vmatmul.f32.gmra.mxu0 %v34
  %v5884 = vpop.f32.mrf.mxu0
  %v5885 = vadd.f32 0.0, %v5884
  %5886 = vdwg.mxu0
  %5887 = vmatpush.msra.mxu0 0.0
  %5888 = vmatpush.msra.mxu0 0.0
  %5889 = vmatpush.msra.mxu0 0.0
  %5890 = vmatpush.msra.mxu0 0.0
  %5891 = vmatpush.msra.mxu0 0.0
  %5892 = vmatpush.msra.mxu0 0.0
  %5893 = vmatpush.msra.mxu0 0.0
  %5894 = vmatpush.msra.mxu0 0.0
  %5895 = vmatpush.msra.mxu0 0.0
  %5896 = vmatpush.msra.mxu0 0.0
  %5897 = vmatpush.msra.mxu0 0.0
  %5898 = vmatpush.msra.mxu0 0.0
  %5899 = vmatpush.msra.mxu0 0.0
  %5900 = vmatpush.msra.mxu0 %v5479
  %5901 = vmatpush.msra.mxu0 %v5454
  %5902 = vmatpush.msra.mxu0 %v5429
  %5903 = vmatmul.f32.gmra.mxu0 %v513
  %v5904 = vpop.f32.mrf.mxu0
  %v5905 = vadd.f32 %v5882, %v5904
  %5906 = vmatmul.f32.gmra.mxu0 %v516
  %v5907 = vpop.f32.mrf.mxu0
  %v5908 = vadd.f32 %v5885, %v5907
  %5909 = vdwg.mxu0
  %5910 = vmatpush.msra.mxu0 %v5405
  %5911 = vmatpush.msra.mxu0 %v5380
  %5912 = vmatpush.msra.mxu0 %v5355
  %5913 = vmatpush.msra.mxu0 %v5330
  %5914 = vmatpush.msra.mxu0 %v5305
  %5915 = vmatpush.msra.mxu0 %v5280
  %5916 = vmatpush.msra.mxu0 %v5255
  %5917 = vmatpush.msra.mxu0 %v5230
  %5918 = vmatpush.msra.mxu0 %v5205
  %5919 = vmatpush.msra.mxu0 %v5180
  %5920 = vmatpush.msra.mxu0 %v5155
  %5921 = vmatpush.msra.mxu0 %v5130
  %5922 = vmatpush.msra.mxu0 %v5105
  %5923 = vmatpush.msra.mxu0 %v5080
  %5924 = vmatpush.msra.mxu0 %v5055
  %5925 = vmatpush.msra.mxu0 %v5030
  %5926 = vmatmul.f32.gmra.mxu0 %v32
  %v5927 = vpop.f32.mrf.mxu0
  %v5928 = vadd.f32 0.0, %v5927
  %5929 = vmatmul.f32.gmra.mxu0 %v34
  %v5930 = vpop.f32.mrf.mxu0
  %v5931 = vadd.f32 0.0, %v5930
  %5932 = vdwg.mxu0
  %5933 = vmatpush.msra.mxu0 0.0
  %5934 = vmatpush.msra.mxu0 0.0
  %5935 = vmatpush.msra.mxu0 0.0
  %5936 = vmatpush.msra.mxu0 0.0
  %5937 = vmatpush.msra.mxu0 0.0
  %5938 = vmatpush.msra.mxu0 0.0
  %5939 = vmatpush.msra.mxu0 0.0
  %5940 = vmatpush.msra.mxu0 0.0
  %5941 = vmatpush.msra.mxu0 0.0
  %5942 = vmatpush.msra.mxu0 0.0
  %5943 = vmatpush.msra.mxu0 0.0
  %5944 = vmatpush.msra.mxu0 0.0
  %5945 = vmatpush.msra.mxu0 0.0
  %5946 = vmatpush.msra.mxu0 %v5480
  %5947 = vmatpush.msra.mxu0 %v5455
  %5948 = vmatpush.msra.mxu0 %v5430
  %5949 = vmatmul.f32.gmra.mxu0 %v513
  %v5950 = vpop.f32.mrf.mxu0
  %v5951 = vadd.f32 %v5928, %v5950
  %5952 = vmatmul.f32.gmra.mxu0 %v516
  %v5953 = vpop.f32.mrf.mxu0
  %v5954 = vadd.f32 %v5931, %v5953
  %5955 = vdwg.mxu0
  %5956 = vmatpush.msra.mxu0 %v5406
  %5957 = vmatpush.msra.mxu0 %v5381
  %5958 = vmatpush.msra.mxu0 %v5356
  %5959 = vmatpush.msra.mxu0 %v5331
  %5960 = vmatpush.msra.mxu0 %v5306
  %5961 = vmatpush.msra.mxu0 %v5281
  %5962 = vmatpush.msra.mxu0 %v5256
  %5963 = vmatpush.msra.mxu0 %v5231
  %5964 = vmatpush.msra.mxu0 %v5206
  %5965 = vmatpush.msra.mxu0 %v5181
  %5966 = vmatpush.msra.mxu0 %v5156
  %5967 = vmatpush.msra.mxu0 %v5131
  %5968 = vmatpush.msra.mxu0 %v5106
  %5969 = vmatpush.msra.mxu0 %v5081
  %5970 = vmatpush.msra.mxu0 %v5056
  %5971 = vmatpush.msra.mxu0 %v5031
  %5972 = vmatmul.f32.gmra.mxu0 %v32
  %v5973 = vpop.f32.mrf.mxu0
  %v5974 = vadd.f32 0.0, %v5973
  %5975 = vmatmul.f32.gmra.mxu0 %v34
  %v5976 = vpop.f32.mrf.mxu0
  %v5977 = vadd.f32 0.0, %v5976
  %5978 = vdwg.mxu0
  %5979 = vmatpush.msra.mxu0 0.0
  %5980 = vmatpush.msra.mxu0 0.0
  %5981 = vmatpush.msra.mxu0 0.0
  %5982 = vmatpush.msra.mxu0 0.0
  %5983 = vmatpush.msra.mxu0 0.0
  %5984 = vmatpush.msra.mxu0 0.0
  %5985 = vmatpush.msra.mxu0 0.0
  %5986 = vmatpush.msra.mxu0 0.0
  %5987 = vmatpush.msra.mxu0 0.0
  %5988 = vmatpush.msra.mxu0 0.0
  %5989 = vmatpush.msra.mxu0 0.0
  %5990 = vmatpush.msra.mxu0 0.0
  %5991 = vmatpush.msra.mxu0 0.0
  %5992 = vmatpush.msra.mxu0 %v5481
  %5993 = vmatpush.msra.mxu0 %v5456
  %5994 = vmatpush.msra.mxu0 %v5431
  %5995 = vmatmul.f32.gmra.mxu0 %v513
  %v5996 = vpop.f32.mrf.mxu0
  %v5997 = vadd.f32 %v5974, %v5996
  %5998 = vmatmul.f32.gmra.mxu0 %v516
  %v5999 = vpop.f32.mrf.mxu0
  %v6000 = vadd.f32 %v5977, %v5999
  %6001 = vdwg.mxu0
  %6002 = vmatpush.msra.mxu0 %v5407
  %6003 = vmatpush.msra.mxu0 %v5382
  %6004 = vmatpush.msra.mxu0 %v5357
  %6005 = vmatpush.msra.mxu0 %v5332
  %6006 = vmatpush.msra.mxu0 %v5307
  %6007 = vmatpush.msra.mxu0 %v5282
  %6008 = vmatpush.msra.mxu0 %v5257
  %6009 = vmatpush.msra.mxu0 %v5232
  %6010 = vmatpush.msra.mxu0 %v5207
  %6011 = vmatpush.msra.mxu0 %v5182
  %6012 = vmatpush.msra.mxu0 %v5157
  %6013 = vmatpush.msra.mxu0 %v5132
  %6014 = vmatpush.msra.mxu0 %v5107
  %6015 = vmatpush.msra.mxu0 %v5082
  %6016 = vmatpush.msra.mxu0 %v5057
  %6017 = vmatpush.msra.mxu0 %v5032
  %6018 = vmatmul.f32.gmra.mxu0 %v32
  %v6019 = vpop.f32.mrf.mxu0
  %v6020 = vadd.f32 0.0, %v6019
  %6021 = vmatmul.f32.gmra.mxu0 %v34
  %v6022 = vpop.f32.mrf.mxu0
  %v6023 = vadd.f32 0.0, %v6022
  %6024 = vdwg.mxu0
  %6025 = vmatpush.msra.mxu0 0.0
  %6026 = vmatpush.msra.mxu0 0.0
  %6027 = vmatpush.msra.mxu0 0.0
  %6028 = vmatpush.msra.mxu0 0.0
  %6029 = vmatpush.msra.mxu0 0.0
  %6030 = vmatpush.msra.mxu0 0.0
  %6031 = vmatpush.msra.mxu0 0.0
  %6032 = vmatpush.msra.mxu0 0.0
  %6033 = vmatpush.msra.mxu0 0.0
  %6034 = vmatpush.msra.mxu0 0.0
  %6035 = vmatpush.msra.mxu0 0.0
  %6036 = vmatpush.msra.mxu0 0.0
  %6037 = vmatpush.msra.mxu0 0.0
  %6038 = vmatpush.msra.mxu0 %v5482
  %6039 = vmatpush.msra.mxu0 %v5457
  %6040 = vmatpush.msra.mxu0 %v5432
  %6041 = vmatmul.f32.gmra.mxu0 %v513
  %v6042 = vpop.f32.mrf.mxu0
  %v6043 = vadd.f32 %v6020, %v6042
  %6044 = vmatmul.f32.gmra.mxu0 %v516
  %v6045 = vpop.f32.mrf.mxu0
  %v6046 = vadd.f32 %v6023, %v6045
  %6047 = vdwg.mxu0
  %6048 = vmatpush.msra.mxu0 %v5408
  %6049 = vmatpush.msra.mxu0 %v5383
  %6050 = vmatpush.msra.mxu0 %v5358
  %6051 = vmatpush.msra.mxu0 %v5333
  %6052 = vmatpush.msra.mxu0 %v5308
  %6053 = vmatpush.msra.mxu0 %v5283
  %6054 = vmatpush.msra.mxu0 %v5258
  %6055 = vmatpush.msra.mxu0 %v5233
  %6056 = vmatpush.msra.mxu0 %v5208
  %6057 = vmatpush.msra.mxu0 %v5183
  %6058 = vmatpush.msra.mxu0 %v5158
  %6059 = vmatpush.msra.mxu0 %v5133
  %6060 = vmatpush.msra.mxu0 %v5108
  %6061 = vmatpush.msra.mxu0 %v5083
  %6062 = vmatpush.msra.mxu0 %v5058
  %6063 = vmatpush.msra.mxu0 %v5033
  %6064 = vmatmul.f32.gmra.mxu0 %v32
  %v6065 = vpop.f32.mrf.mxu0
  %v6066 = vadd.f32 0.0, %v6065
  %6067 = vmatmul.f32.gmra.mxu0 %v34
  %v6068 = vpop.f32.mrf.mxu0
  %v6069 = vadd.f32 0.0, %v6068
  %6070 = vdwg.mxu0
  %6071 = vmatpush.msra.mxu0 0.0
  %6072 = vmatpush.msra.mxu0 0.0
  %6073 = vmatpush.msra.mxu0 0.0
  %6074 = vmatpush.msra.mxu0 0.0
  %6075 = vmatpush.msra.mxu0 0.0
  %6076 = vmatpush.msra.mxu0 0.0
  %6077 = vmatpush.msra.mxu0 0.0
  %6078 = vmatpush.msra.mxu0 0.0
  %6079 = vmatpush.msra.mxu0 0.0
  %6080 = vmatpush.msra.mxu0 0.0
  %6081 = vmatpush.msra.mxu0 0.0
  %6082 = vmatpush.msra.mxu0 0.0
  %6083 = vmatpush.msra.mxu0 0.0
  %6084 = vmatpush.msra.mxu0 %v5483
  %6085 = vmatpush.msra.mxu0 %v5458
  %6086 = vmatpush.msra.mxu0 %v5433
  %6087 = vmatmul.f32.gmra.mxu0 %v513
  %v6088 = vpop.f32.mrf.mxu0
  %v6089 = vadd.f32 %v6066, %v6088
  %6090 = vmatmul.f32.gmra.mxu0 %v516
  %v6091 = vpop.f32.mrf.mxu0
  %v6092 = vadd.f32 %v6069, %v6091
  %6093 = vdwg.mxu0
  %6094 = vmatpush.msra.mxu0 %v5409
  %6095 = vmatpush.msra.mxu0 %v5384
  %6096 = vmatpush.msra.mxu0 %v5359
  %6097 = vmatpush.msra.mxu0 %v5334
  %6098 = vmatpush.msra.mxu0 %v5309
  %6099 = vmatpush.msra.mxu0 %v5284
  %6100 = vmatpush.msra.mxu0 %v5259
  %6101 = vmatpush.msra.mxu0 %v5234
  %6102 = vmatpush.msra.mxu0 %v5209
  %6103 = vmatpush.msra.mxu0 %v5184
  %6104 = vmatpush.msra.mxu0 %v5159
  %6105 = vmatpush.msra.mxu0 %v5134
  %6106 = vmatpush.msra.mxu0 %v5109
  %6107 = vmatpush.msra.mxu0 %v5084
  %6108 = vmatpush.msra.mxu0 %v5059
  %6109 = vmatpush.msra.mxu0 %v5034
  %6110 = vmatmul.f32.gmra.mxu0 %v32
  %v6111 = vpop.f32.mrf.mxu0
  %v6112 = vadd.f32 0.0, %v6111
  %6113 = vmatmul.f32.gmra.mxu0 %v34
  %v6114 = vpop.f32.mrf.mxu0
  %v6115 = vadd.f32 0.0, %v6114
  %6116 = vdwg.mxu0
  %6117 = vmatpush.msra.mxu0 0.0
  %6118 = vmatpush.msra.mxu0 0.0
  %6119 = vmatpush.msra.mxu0 0.0
  %6120 = vmatpush.msra.mxu0 0.0
  %6121 = vmatpush.msra.mxu0 0.0
  %6122 = vmatpush.msra.mxu0 0.0
  %6123 = vmatpush.msra.mxu0 0.0
  %6124 = vmatpush.msra.mxu0 0.0
  %6125 = vmatpush.msra.mxu0 0.0
  %6126 = vmatpush.msra.mxu0 0.0
  %6127 = vmatpush.msra.mxu0 0.0
  %6128 = vmatpush.msra.mxu0 0.0
  %6129 = vmatpush.msra.mxu0 0.0
  %6130 = vmatpush.msra.mxu0 %v5484
  %6131 = vmatpush.msra.mxu0 %v5459
  %6132 = vmatpush.msra.mxu0 %v5434
  %6133 = vmatmul.f32.gmra.mxu0 %v513
  %v6134 = vpop.f32.mrf.mxu0
  %v6135 = vadd.f32 %v6112, %v6134
  %6136 = vmatmul.f32.gmra.mxu0 %v516
  %v6137 = vpop.f32.mrf.mxu0
  %v6138 = vadd.f32 %v6115, %v6137
  %6139 = vdwg.mxu0
  %6140 = vmatpush.msra.mxu0 %v5410
  %6141 = vmatpush.msra.mxu0 %v5385
  %6142 = vmatpush.msra.mxu0 %v5360
  %6143 = vmatpush.msra.mxu0 %v5335
  %6144 = vmatpush.msra.mxu0 %v5310
  %6145 = vmatpush.msra.mxu0 %v5285
  %6146 = vmatpush.msra.mxu0 %v5260
  %6147 = vmatpush.msra.mxu0 %v5235
  %6148 = vmatpush.msra.mxu0 %v5210
  %6149 = vmatpush.msra.mxu0 %v5185
  %6150 = vmatpush.msra.mxu0 %v5160
  %6151 = vmatpush.msra.mxu0 %v5135
  %6152 = vmatpush.msra.mxu0 %v5110
  %6153 = vmatpush.msra.mxu0 %v5085
  %6154 = vmatpush.msra.mxu0 %v5060
  %6155 = vmatpush.msra.mxu0 %v5035
  %6156 = vmatmul.f32.gmra.mxu0 %v32
  %v6157 = vpop.f32.mrf.mxu0
  %v6158 = vadd.f32 0.0, %v6157
  %6159 = vmatmul.f32.gmra.mxu0 %v34
  %v6160 = vpop.f32.mrf.mxu0
  %v6161 = vadd.f32 0.0, %v6160
  %6162 = vdwg.mxu0
  %6163 = vmatpush.msra.mxu0 0.0
  %6164 = vmatpush.msra.mxu0 0.0
  %6165 = vmatpush.msra.mxu0 0.0
  %6166 = vmatpush.msra.mxu0 0.0
  %6167 = vmatpush.msra.mxu0 0.0
  %6168 = vmatpush.msra.mxu0 0.0
  %6169 = vmatpush.msra.mxu0 0.0
  %6170 = vmatpush.msra.mxu0 0.0
  %6171 = vmatpush.msra.mxu0 0.0
  %6172 = vmatpush.msra.mxu0 0.0
  %6173 = vmatpush.msra.mxu0 0.0
  %6174 = vmatpush.msra.mxu0 0.0
  %6175 = vmatpush.msra.mxu0 0.0
  %6176 = vmatpush.msra.mxu0 %v5485
  %6177 = vmatpush.msra.mxu0 %v5460
  %6178 = vmatpush.msra.mxu0 %v5435
  %6179 = vmatmul.f32.gmra.mxu0 %v513
  %v6180 = vpop.f32.mrf.mxu0
  %v6181 = vadd.f32 %v6158, %v6180
  %6182 = vmatmul.f32.gmra.mxu0 %v516
  %v6183 = vpop.f32.mrf.mxu0
  %v6184 = vadd.f32 %v6161, %v6183
  %6185 = vdwg.mxu0
  %6186 = vmatpush.msra.mxu0 %v5411
  %6187 = vmatpush.msra.mxu0 %v5386
  %6188 = vmatpush.msra.mxu0 %v5361
  %6189 = vmatpush.msra.mxu0 %v5336
  %6190 = vmatpush.msra.mxu0 %v5311
  %6191 = vmatpush.msra.mxu0 %v5286
  %6192 = vmatpush.msra.mxu0 %v5261
  %6193 = vmatpush.msra.mxu0 %v5236
  %6194 = vmatpush.msra.mxu0 %v5211
  %6195 = vmatpush.msra.mxu0 %v5186
  %6196 = vmatpush.msra.mxu0 %v5161
  %6197 = vmatpush.msra.mxu0 %v5136
  %6198 = vmatpush.msra.mxu0 %v5111
  %6199 = vmatpush.msra.mxu0 %v5086
  %6200 = vmatpush.msra.mxu0 %v5061
  %6201 = vmatpush.msra.mxu0 %v5036
  %6202 = vmatmul.f32.gmra.mxu0 %v32
  %v6203 = vpop.f32.mrf.mxu0
  %v6204 = vadd.f32 0.0, %v6203
  %6205 = vmatmul.f32.gmra.mxu0 %v34
  %v6206 = vpop.f32.mrf.mxu0
  %v6207 = vadd.f32 0.0, %v6206
  %6208 = vdwg.mxu0
  %6209 = vmatpush.msra.mxu0 0.0
  %6210 = vmatpush.msra.mxu0 0.0
  %6211 = vmatpush.msra.mxu0 0.0
  %6212 = vmatpush.msra.mxu0 0.0
  %6213 = vmatpush.msra.mxu0 0.0
  %6214 = vmatpush.msra.mxu0 0.0
  %6215 = vmatpush.msra.mxu0 0.0
  %6216 = vmatpush.msra.mxu0 0.0
  %6217 = vmatpush.msra.mxu0 0.0
  %6218 = vmatpush.msra.mxu0 0.0
  %6219 = vmatpush.msra.mxu0 0.0
  %6220 = vmatpush.msra.mxu0 0.0
  %6221 = vmatpush.msra.mxu0 0.0
  %6222 = vmatpush.msra.mxu0 %v5486
  %6223 = vmatpush.msra.mxu0 %v5461
  %6224 = vmatpush.msra.mxu0 %v5436
  %6225 = vmatmul.f32.gmra.mxu0 %v513
  %v6226 = vpop.f32.mrf.mxu0
  %v6227 = vadd.f32 %v6204, %v6226
  %6228 = vmatmul.f32.gmra.mxu0 %v516
  %v6229 = vpop.f32.mrf.mxu0
  %v6230 = vadd.f32 %v6207, %v6229
  %6231 = vdwg.mxu0
  %6232 = vmatpush.msra.mxu0 %v5412
  %6233 = vmatpush.msra.mxu0 %v5387
  %6234 = vmatpush.msra.mxu0 %v5362
  %6235 = vmatpush.msra.mxu0 %v5337
  %6236 = vmatpush.msra.mxu0 %v5312
  %6237 = vmatpush.msra.mxu0 %v5287
  %6238 = vmatpush.msra.mxu0 %v5262
  %6239 = vmatpush.msra.mxu0 %v5237
  %6240 = vmatpush.msra.mxu0 %v5212
  %6241 = vmatpush.msra.mxu0 %v5187
  %6242 = vmatpush.msra.mxu0 %v5162
  %6243 = vmatpush.msra.mxu0 %v5137
  %6244 = vmatpush.msra.mxu0 %v5112
  %6245 = vmatpush.msra.mxu0 %v5087
  %6246 = vmatpush.msra.mxu0 %v5062
  %6247 = vmatpush.msra.mxu0 %v5037
  %6248 = vmatmul.f32.gmra.mxu0 %v32
  %v6249 = vpop.f32.mrf.mxu0
  %v6250 = vadd.f32 0.0, %v6249
  %6251 = vmatmul.f32.gmra.mxu0 %v34
  %v6252 = vpop.f32.mrf.mxu0
  %v6253 = vadd.f32 0.0, %v6252
  %6254 = vdwg.mxu0
  %6255 = vmatpush.msra.mxu0 0.0
  %6256 = vmatpush.msra.mxu0 0.0
  %6257 = vmatpush.msra.mxu0 0.0
  %6258 = vmatpush.msra.mxu0 0.0
  %6259 = vmatpush.msra.mxu0 0.0
  %6260 = vmatpush.msra.mxu0 0.0
  %6261 = vmatpush.msra.mxu0 0.0
  %6262 = vmatpush.msra.mxu0 0.0
  %6263 = vmatpush.msra.mxu0 0.0
  %6264 = vmatpush.msra.mxu0 0.0
  %6265 = vmatpush.msra.mxu0 0.0
  %6266 = vmatpush.msra.mxu0 0.0
  %6267 = vmatpush.msra.mxu0 0.0
  %6268 = vmatpush.msra.mxu0 %v5487
  %6269 = vmatpush.msra.mxu0 %v5462
  %6270 = vmatpush.msra.mxu0 %v5437
  %6271 = vmatmul.f32.gmra.mxu0 %v513
  %v6272 = vpop.f32.mrf.mxu0
  %v6273 = vadd.f32 %v6250, %v6272
  %6274 = vmatmul.f32.gmra.mxu0 %v516
  %v6275 = vpop.f32.mrf.mxu0
  %v6276 = vadd.f32 %v6253, %v6275
  %6277 = vdwg.mxu0
  %6278 = vmatpush.msra.mxu0 %v5413
  %6279 = vmatpush.msra.mxu0 %v5388
  %6280 = vmatpush.msra.mxu0 %v5363
  %6281 = vmatpush.msra.mxu0 %v5338
  %6282 = vmatpush.msra.mxu0 %v5313
  %6283 = vmatpush.msra.mxu0 %v5288
  %6284 = vmatpush.msra.mxu0 %v5263
  %6285 = vmatpush.msra.mxu0 %v5238
  %6286 = vmatpush.msra.mxu0 %v5213
  %6287 = vmatpush.msra.mxu0 %v5188
  %6288 = vmatpush.msra.mxu0 %v5163
  %6289 = vmatpush.msra.mxu0 %v5138
  %6290 = vmatpush.msra.mxu0 %v5113
  %6291 = vmatpush.msra.mxu0 %v5088
  %6292 = vmatpush.msra.mxu0 %v5063
  %6293 = vmatpush.msra.mxu0 %v5038
  %6294 = vmatmul.f32.gmra.mxu0 %v32
  %v6295 = vpop.f32.mrf.mxu0
  %v6296 = vadd.f32 0.0, %v6295
  %6297 = vmatmul.f32.gmra.mxu0 %v34
  %v6298 = vpop.f32.mrf.mxu0
  %v6299 = vadd.f32 0.0, %v6298
  %6300 = vdwg.mxu0
  %6301 = vmatpush.msra.mxu0 0.0
  %6302 = vmatpush.msra.mxu0 0.0
  %6303 = vmatpush.msra.mxu0 0.0
  %6304 = vmatpush.msra.mxu0 0.0
  %6305 = vmatpush.msra.mxu0 0.0
  %6306 = vmatpush.msra.mxu0 0.0
  %6307 = vmatpush.msra.mxu0 0.0
  %6308 = vmatpush.msra.mxu0 0.0
  %6309 = vmatpush.msra.mxu0 0.0
  %6310 = vmatpush.msra.mxu0 0.0
  %6311 = vmatpush.msra.mxu0 0.0
  %6312 = vmatpush.msra.mxu0 0.0
  %6313 = vmatpush.msra.mxu0 0.0
  %6314 = vmatpush.msra.mxu0 %v5488
  %6315 = vmatpush.msra.mxu0 %v5463
  %6316 = vmatpush.msra.mxu0 %v5438
  %6317 = vmatmul.f32.gmra.mxu0 %v513
  %v6318 = vpop.f32.mrf.mxu0
  %v6319 = vadd.f32 %v6296, %v6318
  %6320 = vmatmul.f32.gmra.mxu0 %v516
  %v6321 = vpop.f32.mrf.mxu0
  %v6322 = vadd.f32 %v6299, %v6321
  %6323 = vdwg.mxu0
  %6324 = vmatpush.msra.mxu0 %v5414
  %6325 = vmatpush.msra.mxu0 %v5389
  %6326 = vmatpush.msra.mxu0 %v5364
  %6327 = vmatpush.msra.mxu0 %v5339
  %6328 = vmatpush.msra.mxu0 %v5314
  %6329 = vmatpush.msra.mxu0 %v5289
  %6330 = vmatpush.msra.mxu0 %v5264
  %6331 = vmatpush.msra.mxu0 %v5239
  %6332 = vmatpush.msra.mxu0 %v5214
  %6333 = vmatpush.msra.mxu0 %v5189
  %6334 = vmatpush.msra.mxu0 %v5164
  %6335 = vmatpush.msra.mxu0 %v5139
  %6336 = vmatpush.msra.mxu0 %v5114
  %6337 = vmatpush.msra.mxu0 %v5089
  %6338 = vmatpush.msra.mxu0 %v5064
  %6339 = vmatpush.msra.mxu0 %v5039
  %6340 = vmatmul.f32.gmra.mxu0 %v32
  %v6341 = vpop.f32.mrf.mxu0
  %v6342 = vadd.f32 0.0, %v6341
  %6343 = vmatmul.f32.gmra.mxu0 %v34
  %v6344 = vpop.f32.mrf.mxu0
  %v6345 = vadd.f32 0.0, %v6344
  %6346 = vdwg.mxu0
  %6347 = vmatpush.msra.mxu0 0.0
  %6348 = vmatpush.msra.mxu0 0.0
  %6349 = vmatpush.msra.mxu0 0.0
  %6350 = vmatpush.msra.mxu0 0.0
  %6351 = vmatpush.msra.mxu0 0.0
  %6352 = vmatpush.msra.mxu0 0.0
  %6353 = vmatpush.msra.mxu0 0.0
  %6354 = vmatpush.msra.mxu0 0.0
  %6355 = vmatpush.msra.mxu0 0.0
  %6356 = vmatpush.msra.mxu0 0.0
  %6357 = vmatpush.msra.mxu0 0.0
  %6358 = vmatpush.msra.mxu0 0.0
  %6359 = vmatpush.msra.mxu0 0.0
  %6360 = vmatpush.msra.mxu0 %v5489
  %6361 = vmatpush.msra.mxu0 %v5464
  %6362 = vmatpush.msra.mxu0 %v5439
  %6363 = vmatmul.f32.gmra.mxu0 %v513
  %v6364 = vpop.f32.mrf.mxu0
  %v6365 = vadd.f32 %v6342, %v6364
  %6366 = vmatmul.f32.gmra.mxu0 %v516
  %v6367 = vpop.f32.mrf.mxu0
  %v6368 = vadd.f32 %v6345, %v6367
  %6369 = vdwg.mxu0
  %6370 = vmatpush.msra.mxu0 %v5415
  %6371 = vmatpush.msra.mxu0 %v5390
  %6372 = vmatpush.msra.mxu0 %v5365
  %6373 = vmatpush.msra.mxu0 %v5340
  %6374 = vmatpush.msra.mxu0 %v5315
  %6375 = vmatpush.msra.mxu0 %v5290
  %6376 = vmatpush.msra.mxu0 %v5265
  %6377 = vmatpush.msra.mxu0 %v5240
  %6378 = vmatpush.msra.mxu0 %v5215
  %6379 = vmatpush.msra.mxu0 %v5190
  %6380 = vmatpush.msra.mxu0 %v5165
  %6381 = vmatpush.msra.mxu0 %v5140
  %6382 = vmatpush.msra.mxu0 %v5115
  %6383 = vmatpush.msra.mxu0 %v5090
  %6384 = vmatpush.msra.mxu0 %v5065
  %6385 = vmatpush.msra.mxu0 %v5040
  %6386 = vmatmul.f32.gmra.mxu0 %v32
  %v6387 = vpop.f32.mrf.mxu0
  %v6388 = vadd.f32 0.0, %v6387
  %6389 = vmatmul.f32.gmra.mxu0 %v34
  %v6390 = vpop.f32.mrf.mxu0
  %v6391 = vadd.f32 0.0, %v6390
  %6392 = vdwg.mxu0
  %6393 = vmatpush.msra.mxu0 0.0
  %6394 = vmatpush.msra.mxu0 0.0
  %6395 = vmatpush.msra.mxu0 0.0
  %6396 = vmatpush.msra.mxu0 0.0
  %6397 = vmatpush.msra.mxu0 0.0
  %6398 = vmatpush.msra.mxu0 0.0
  %6399 = vmatpush.msra.mxu0 0.0
  %6400 = vmatpush.msra.mxu0 0.0
  %6401 = vmatpush.msra.mxu0 0.0
  %6402 = vmatpush.msra.mxu0 0.0
  %6403 = vmatpush.msra.mxu0 0.0
  %6404 = vmatpush.msra.mxu0 0.0
  %6405 = vmatpush.msra.mxu0 0.0
  %6406 = vmatpush.msra.mxu0 %v5490
  %6407 = vmatpush.msra.mxu0 %v5465
  %6408 = vmatpush.msra.mxu0 %v5440
  %6409 = vmatmul.f32.gmra.mxu0 %v513
  %v6410 = vpop.f32.mrf.mxu0
  %v6411 = vadd.f32 %v6388, %v6410
  %6412 = vmatmul.f32.gmra.mxu0 %v516
  %v6413 = vpop.f32.mrf.mxu0
  %v6414 = vadd.f32 %v6391, %v6413
  %6415 = vdwg.mxu0
  %6416 = vmatpush.msra.mxu0 %v5416
  %6417 = vmatpush.msra.mxu0 %v5391
  %6418 = vmatpush.msra.mxu0 %v5366
  %6419 = vmatpush.msra.mxu0 %v5341
  %6420 = vmatpush.msra.mxu0 %v5316
  %6421 = vmatpush.msra.mxu0 %v5291
  %6422 = vmatpush.msra.mxu0 %v5266
  %6423 = vmatpush.msra.mxu0 %v5241
  %6424 = vmatpush.msra.mxu0 %v5216
  %6425 = vmatpush.msra.mxu0 %v5191
  %6426 = vmatpush.msra.mxu0 %v5166
  %6427 = vmatpush.msra.mxu0 %v5141
  %6428 = vmatpush.msra.mxu0 %v5116
  %6429 = vmatpush.msra.mxu0 %v5091
  %6430 = vmatpush.msra.mxu0 %v5066
  %6431 = vmatpush.msra.mxu0 %v5041
  %6432 = vmatmul.f32.gmra.mxu0 %v32
  %v6433 = vpop.f32.mrf.mxu0
  %v6434 = vadd.f32 0.0, %v6433
  %6435 = vmatmul.f32.gmra.mxu0 %v34
  %v6436 = vpop.f32.mrf.mxu0
  %v6437 = vadd.f32 0.0, %v6436
  %6438 = vdwg.mxu0
  %6439 = vmatpush.msra.mxu0 0.0
  %6440 = vmatpush.msra.mxu0 0.0
  %6441 = vmatpush.msra.mxu0 0.0
  %6442 = vmatpush.msra.mxu0 0.0
  %6443 = vmatpush.msra.mxu0 0.0
  %6444 = vmatpush.msra.mxu0 0.0
  %6445 = vmatpush.msra.mxu0 0.0
  %6446 = vmatpush.msra.mxu0 0.0
  %6447 = vmatpush.msra.mxu0 0.0
  %6448 = vmatpush.msra.mxu0 0.0
  %6449 = vmatpush.msra.mxu0 0.0
  %6450 = vmatpush.msra.mxu0 0.0
  %6451 = vmatpush.msra.mxu0 0.0
  %6452 = vmatpush.msra.mxu0 %v5491
  %6453 = vmatpush.msra.mxu0 %v5466
  %6454 = vmatpush.msra.mxu0 %v5441
  %6455 = vmatmul.f32.gmra.mxu0 %v513
  %v6456 = vpop.f32.mrf.mxu0
  %v6457 = vadd.f32 %v6434, %v6456
  %6458 = vmatmul.f32.gmra.mxu0 %v516
  %v6459 = vpop.f32.mrf.mxu0
  %v6460 = vadd.f32 %v6437, %v6459
  %6461 = vdwg.mxu0
  %6462 = vmatpush.msra.mxu0 %v5417
  %6463 = vmatpush.msra.mxu0 %v5392
  %6464 = vmatpush.msra.mxu0 %v5367
  %6465 = vmatpush.msra.mxu0 %v5342
  %6466 = vmatpush.msra.mxu0 %v5317
  %6467 = vmatpush.msra.mxu0 %v5292
  %6468 = vmatpush.msra.mxu0 %v5267
  %6469 = vmatpush.msra.mxu0 %v5242
  %6470 = vmatpush.msra.mxu0 %v5217
  %6471 = vmatpush.msra.mxu0 %v5192
  %6472 = vmatpush.msra.mxu0 %v5167
  %6473 = vmatpush.msra.mxu0 %v5142
  %6474 = vmatpush.msra.mxu0 %v5117
  %6475 = vmatpush.msra.mxu0 %v5092
  %6476 = vmatpush.msra.mxu0 %v5067
  %6477 = vmatpush.msra.mxu0 %v5042
  %6478 = vmatmul.f32.gmra.mxu0 %v32
  %v6479 = vpop.f32.mrf.mxu0
  %v6480 = vadd.f32 0.0, %v6479
  %6481 = vmatmul.f32.gmra.mxu0 %v34
  %v6482 = vpop.f32.mrf.mxu0
  %v6483 = vadd.f32 0.0, %v6482
  %6484 = vdwg.mxu0
  %6485 = vmatpush.msra.mxu0 0.0
  %6486 = vmatpush.msra.mxu0 0.0
  %6487 = vmatpush.msra.mxu0 0.0
  %6488 = vmatpush.msra.mxu0 0.0
  %6489 = vmatpush.msra.mxu0 0.0
  %6490 = vmatpush.msra.mxu0 0.0
  %6491 = vmatpush.msra.mxu0 0.0
  %6492 = vmatpush.msra.mxu0 0.0
  %6493 = vmatpush.msra.mxu0 0.0
  %6494 = vmatpush.msra.mxu0 0.0
  %6495 = vmatpush.msra.mxu0 0.0
  %6496 = vmatpush.msra.mxu0 0.0
  %6497 = vmatpush.msra.mxu0 0.0
  %6498 = vmatpush.msra.mxu0 %v5492
  %6499 = vmatpush.msra.mxu0 %v5467
  %6500 = vmatpush.msra.mxu0 %v5442
  %6501 = vmatmul.f32.gmra.mxu0 %v513
  %v6502 = vpop.f32.mrf.mxu0
  %v6503 = vadd.f32 %v6480, %v6502
  %6504 = vmatmul.f32.gmra.mxu0 %v516
  %v6505 = vpop.f32.mrf.mxu0
  %v6506 = vadd.f32 %v6483, %v6505
  %6507 = vdwg.mxu0
  %6508 = vmatpush.msra.mxu0 %v5418
  %6509 = vmatpush.msra.mxu0 %v5393
  %6510 = vmatpush.msra.mxu0 %v5368
  %6511 = vmatpush.msra.mxu0 %v5343
  %6512 = vmatpush.msra.mxu0 %v5318
  %6513 = vmatpush.msra.mxu0 %v5293
  %6514 = vmatpush.msra.mxu0 %v5268
  %6515 = vmatpush.msra.mxu0 %v5243
  %6516 = vmatpush.msra.mxu0 %v5218
  %6517 = vmatpush.msra.mxu0 %v5193
  %6518 = vmatpush.msra.mxu0 %v5168
  %6519 = vmatpush.msra.mxu0 %v5143
  %6520 = vmatpush.msra.mxu0 %v5118
  %6521 = vmatpush.msra.mxu0 %v5093
  %6522 = vmatpush.msra.mxu0 %v5068
  %6523 = vmatpush.msra.mxu0 %v5043
  %6524 = vmatmul.f32.gmra.mxu0 %v32
  %v6525 = vpop.f32.mrf.mxu0
  %v6526 = vadd.f32 0.0, %v6525
  %6527 = vmatmul.f32.gmra.mxu0 %v34
  %v6528 = vpop.f32.mrf.mxu0
  %v6529 = vadd.f32 0.0, %v6528
  %6530 = vdwg.mxu0
  %6531 = vmatpush.msra.mxu0 0.0
  %6532 = vmatpush.msra.mxu0 0.0
  %6533 = vmatpush.msra.mxu0 0.0
  %6534 = vmatpush.msra.mxu0 0.0
  %6535 = vmatpush.msra.mxu0 0.0
  %6536 = vmatpush.msra.mxu0 0.0
  %6537 = vmatpush.msra.mxu0 0.0
  %6538 = vmatpush.msra.mxu0 0.0
  %6539 = vmatpush.msra.mxu0 0.0
  %6540 = vmatpush.msra.mxu0 0.0
  %6541 = vmatpush.msra.mxu0 0.0
  %6542 = vmatpush.msra.mxu0 0.0
  %6543 = vmatpush.msra.mxu0 0.0
  %6544 = vmatpush.msra.mxu0 %v5493
  %6545 = vmatpush.msra.mxu0 %v5468
  %6546 = vmatpush.msra.mxu0 %v5443
  %6547 = vmatmul.f32.gmra.mxu0 %v513
  %v6548 = vpop.f32.mrf.mxu0
  %v6549 = vadd.f32 %v6526, %v6548
  %6550 = vmatmul.f32.gmra.mxu0 %v516
  %v6551 = vpop.f32.mrf.mxu0
  %v6552 = vadd.f32 %v6529, %v6551
  %6553 = vdwg.mxu0
  %6554 = vmatpush.msra.mxu0 %v5419
  %6555 = vmatpush.msra.mxu0 %v5394
  %6556 = vmatpush.msra.mxu0 %v5369
  %6557 = vmatpush.msra.mxu0 %v5344
  %6558 = vmatpush.msra.mxu0 %v5319
  %6559 = vmatpush.msra.mxu0 %v5294
  %6560 = vmatpush.msra.mxu0 %v5269
  %6561 = vmatpush.msra.mxu0 %v5244
  %6562 = vmatpush.msra.mxu0 %v5219
  %6563 = vmatpush.msra.mxu0 %v5194
  %6564 = vmatpush.msra.mxu0 %v5169
  %6565 = vmatpush.msra.mxu0 %v5144
  %6566 = vmatpush.msra.mxu0 %v5119
  %6567 = vmatpush.msra.mxu0 %v5094
  %6568 = vmatpush.msra.mxu0 %v5069
  %6569 = vmatpush.msra.mxu0 %v5044
  %6570 = vmatmul.f32.gmra.mxu0 %v32
  %v6571 = vpop.f32.mrf.mxu0
  %v6572 = vadd.f32 0.0, %v6571
  %6573 = vmatmul.f32.gmra.mxu0 %v34
  %v6574 = vpop.f32.mrf.mxu0
  %v6575 = vadd.f32 0.0, %v6574
  %6576 = vdwg.mxu0
  %6577 = vmatpush.msra.mxu0 0.0
  %6578 = vmatpush.msra.mxu0 0.0
  %6579 = vmatpush.msra.mxu0 0.0
  %6580 = vmatpush.msra.mxu0 0.0
  %6581 = vmatpush.msra.mxu0 0.0
  %6582 = vmatpush.msra.mxu0 0.0
  %6583 = vmatpush.msra.mxu0 0.0
  %6584 = vmatpush.msra.mxu0 0.0
  %6585 = vmatpush.msra.mxu0 0.0
  %6586 = vmatpush.msra.mxu0 0.0
  %6587 = vmatpush.msra.mxu0 0.0
  %6588 = vmatpush.msra.mxu0 0.0
  %6589 = vmatpush.msra.mxu0 0.0
  %6590 = vmatpush.msra.mxu0 %v5494
  %6591 = vmatpush.msra.mxu0 %v5469
  %6592 = vmatpush.msra.mxu0 %v5444
  %6593 = vmatmul.f32.gmra.mxu0 %v513
  %v6594 = vpop.f32.mrf.mxu0
  %v6595 = vadd.f32 %v6572, %v6594
  %6596 = vmatmul.f32.gmra.mxu0 %v516
  %v6597 = vpop.f32.mrf.mxu0
  %v6598 = vadd.f32 %v6575, %v6597
  %6599 = vdwg.mxu0
  %6600 = vmatpush.msra.mxu0 %v5420
  %6601 = vmatpush.msra.mxu0 %v5395
  %6602 = vmatpush.msra.mxu0 %v5370
  %6603 = vmatpush.msra.mxu0 %v5345
  %6604 = vmatpush.msra.mxu0 %v5320
  %6605 = vmatpush.msra.mxu0 %v5295
  %6606 = vmatpush.msra.mxu0 %v5270
  %6607 = vmatpush.msra.mxu0 %v5245
  %6608 = vmatpush.msra.mxu0 %v5220
  %6609 = vmatpush.msra.mxu0 %v5195
  %6610 = vmatpush.msra.mxu0 %v5170
  %6611 = vmatpush.msra.mxu0 %v5145
  %6612 = vmatpush.msra.mxu0 %v5120
  %6613 = vmatpush.msra.mxu0 %v5095
  %6614 = vmatpush.msra.mxu0 %v5070
  %6615 = vmatpush.msra.mxu0 %v5045
  %6616 = vmatmul.f32.gmra.mxu0 %v32
  %v6617 = vpop.f32.mrf.mxu0
  %v6618 = vadd.f32 0.0, %v6617
  %6619 = vmatmul.f32.gmra.mxu0 %v34
  %v6620 = vpop.f32.mrf.mxu0
  %v6621 = vadd.f32 0.0, %v6620
  %6622 = vdwg.mxu0
  %6623 = vmatpush.msra.mxu0 0.0
  %6624 = vmatpush.msra.mxu0 0.0
  %6625 = vmatpush.msra.mxu0 0.0
  %6626 = vmatpush.msra.mxu0 0.0
  %6627 = vmatpush.msra.mxu0 0.0
  %6628 = vmatpush.msra.mxu0 0.0
  %6629 = vmatpush.msra.mxu0 0.0
  %6630 = vmatpush.msra.mxu0 0.0
  %6631 = vmatpush.msra.mxu0 0.0
  %6632 = vmatpush.msra.mxu0 0.0
  %6633 = vmatpush.msra.mxu0 0.0
  %6634 = vmatpush.msra.mxu0 0.0
  %6635 = vmatpush.msra.mxu0 0.0
  %6636 = vmatpush.msra.mxu0 %v5495
  %6637 = vmatpush.msra.mxu0 %v5470
  %6638 = vmatpush.msra.mxu0 %v5445
  %6639 = vmatmul.f32.gmra.mxu0 %v513
  %v6640 = vpop.f32.mrf.mxu0
  %v6641 = vadd.f32 %v6618, %v6640
  %6642 = vmatmul.f32.gmra.mxu0 %v516
  %v6643 = vpop.f32.mrf.mxu0
  %v6644 = vadd.f32 %v6621, %v6643
  %6645 = vdwg.mxu0
  %v6646 = vmax.f32 %v4970, %v5537
  %v6647 = vmax.f32 %v4971, %v5583
  %v6648 = vmax.f32 %v4972, %v5629
  %v6649 = vmax.f32 %v4973, %v5675
  %v6650 = vmax.f32 %v4974, %v5721
  %v6651 = vmax.f32 %v4975, %v5767
  %v6652 = vmax.f32 %v4976, %v5813
  %v6653 = vmax.f32 %v4977, %v5859
  %v6654 = vmax.f32 %v4978, %v5905
  %v6655 = vmax.f32 %v4979, %v5951
  %v6656 = vmax.f32 %v4980, %v5997
  %v6657 = vmax.f32 %v4981, %v6043
  %v6658 = vmax.f32 %v4982, %v6089
  %v6659 = vmax.f32 %v4983, %v6135
  %v6660 = vmax.f32 %v4984, %v6181
  %v6661 = vmax.f32 %v4985, %v6227
  %v6662 = vmax.f32 %v4986, %v6273
  %v6663 = vmax.f32 %v4987, %v6319
  %v6664 = vmax.f32 %v4988, %v6365
  %v6665 = vmax.f32 %v4989, %v6411
  %v6666 = vmax.f32 %v4990, %v6457
  %v6667 = vmax.f32 %v4991, %v6503
  %v6668 = vmax.f32 %v4992, %v6549
  %v6669 = vmax.f32 %v4993, %v6595
  %v6670 = vmax.f32 %v4994, %v6641
  %v6671 = vmax.f32 %v4995, %v5540
  %v6672 = vmax.f32 %v4996, %v5586
  %v6673 = vmax.f32 %v4997, %v5632
  %v6674 = vmax.f32 %v4998, %v5678
  %v6675 = vmax.f32 %v4999, %v5724
  %v6676 = vmax.f32 %v5000, %v5770
  %v6677 = vmax.f32 %v5001, %v5816
  %v6678 = vmax.f32 %v5002, %v5862
  %v6679 = vmax.f32 %v5003, %v5908
  %v6680 = vmax.f32 %v5004, %v5954
  %v6681 = vmax.f32 %v5005, %v6000
  %v6682 = vmax.f32 %v5006, %v6046
  %v6683 = vmax.f32 %v5007, %v6092
  %v6684 = vmax.f32 %v5008, %v6138
  %v6685 = vmax.f32 %v5009, %v6184
  %v6686 = vmax.f32 %v5010, %v6230
  %v6687 = vmax.f32 %v5011, %v6276
  %v6688 = vmax.f32 %v5012, %v6322
  %v6689 = vmax.f32 %v5013, %v6368
  %v6690 = vmax.f32 %v5014, %v6414
  %v6691 = vmax.f32 %v5015, %v6460
  %v6692 = vmax.f32 %v5016, %v6506
  %v6693 = vmax.f32 %v5017, %v6552
  %v6694 = vmax.f32 %v5018, %v6598
  %v6695 = vmax.f32 %v5019, %v6644
  %v6696 = vld [vmem:[%s2] sm:$0xff]
  %v6697 = vld [vmem:[%s2 + $0x8] sm:$0xff]
  %6699 = vset.pattern.permute.xlu0 0
  %6700 = vperm.xlu0 %6699, %v6696
  %v6701 = vpop.permute.xlu0 %6700
  %6704 = vset.pattern.permute.xlu0 0
  %6705 = vperm.xlu0 %6704, %v6697
  %v6706 = vpop.permute.xlu0 %6705
  %v6708 = vadd.f32 %v6646, %v6701
  %v6709 = vadd.f32 %v6647, %v6701
  %v6710 = vadd.f32 %v6648, %v6701
  %v6711 = vadd.f32 %v6649, %v6701
  %v6712 = vadd.f32 %v6650, %v6701
  %v6713 = vadd.f32 %v6651, %v6701
  %v6714 = vadd.f32 %v6652, %v6701
  %v6715 = vadd.f32 %v6653, %v6701
  %v6716 = vadd.f32 %v6654, %v6701
  %v6717 = vadd.f32 %v6655, %v6701
  %v6718 = vadd.f32 %v6656, %v6701
  %v6719 = vadd.f32 %v6657, %v6701
  %v6720 = vadd.f32 %v6658, %v6701
  %v6721 = vadd.f32 %v6659, %v6701
  %v6722 = vadd.f32 %v6660, %v6701
  %v6723 = vadd.f32 %v6661, %v6701
  %v6724 = vadd.f32 %v6662, %v6701
  %v6725 = vadd.f32 %v6663, %v6701
  %v6726 = vadd.f32 %v6664, %v6701
  %v6727 = vadd.f32 %v6665, %v6701
  %v6728 = vadd.f32 %v6666, %v6701
  %v6729 = vadd.f32 %v6667, %v6701
  %v6730 = vadd.f32 %v6668, %v6701
  %v6731 = vadd.f32 %v6669, %v6701
  %v6732 = vadd.f32 %v6670, %v6701
  %v6733 = vadd.f32 %v6671, %v6706
  %v6734 = vadd.f32 %v6672, %v6706
  %v6735 = vadd.f32 %v6673, %v6706
  %v6736 = vadd.f32 %v6674, %v6706
  %v6737 = vadd.f32 %v6675, %v6706
  %v6738 = vadd.f32 %v6676, %v6706
  %v6739 = vadd.f32 %v6677, %v6706
  %v6740 = vadd.f32 %v6678, %v6706
  %v6741 = vadd.f32 %v6679, %v6706
  %v6742 = vadd.f32 %v6680, %v6706
  %v6743 = vadd.f32 %v6681, %v6706
  %v6744 = vadd.f32 %v6682, %v6706
  %v6745 = vadd.f32 %v6683, %v6706
  %v6746 = vadd.f32 %v6684, %v6706
  %v6747 = vadd.f32 %v6685, %v6706
  %v6748 = vadd.f32 %v6686, %v6706
  %v6749 = vadd.f32 %v6687, %v6706
  %v6750 = vadd.f32 %v6688, %v6706
  %v6751 = vadd.f32 %v6689, %v6706
  %v6752 = vadd.f32 %v6690, %v6706
  %v6753 = vadd.f32 %v6691, %v6706
  %v6754 = vadd.f32 %v6692, %v6706
  %v6755 = vadd.f32 %v6693, %v6706
  %v6756 = vadd.f32 %v6694, %v6706
  %v6757 = vadd.f32 %v6695, %v6706
  %v6758 = vmax.f32 %v6708, 0.0
  %v6759 = vmax.f32 %v6709, 0.0
  %v6760 = vmax.f32 %v6710, 0.0
  %v6761 = vmax.f32 %v6711, 0.0
  %v6762 = vmax.f32 %v6712, 0.0
  %v6763 = vmax.f32 %v6713, 0.0
  %v6764 = vmax.f32 %v6714, 0.0
  %v6765 = vmax.f32 %v6715, 0.0
  %v6766 = vmax.f32 %v6716, 0.0
  %v6767 = vmax.f32 %v6717, 0.0
  %v6768 = vmax.f32 %v6718, 0.0
  %v6769 = vmax.f32 %v6719, 0.0
  %v6770 = vmax.f32 %v6720, 0.0
  %v6771 = vmax.f32 %v6721, 0.0
  %v6772 = vmax.f32 %v6722, 0.0
  %v6773 = vmax.f32 %v6723, 0.0
  %v6774 = vmax.f32 %v6724, 0.0
  %v6775 = vmax.f32 %v6725, 0.0
  %v6776 = vmax.f32 %v6726, 0.0
  %v6777 = vmax.f32 %v6727, 0.0
  %v6778 = vmax.f32 %v6728, 0.0
  %v6779 = vmax.f32 %v6729, 0.0
  %v6780 = vmax.f32 %v6730, 0.0
  %v6781 = vmax.f32 %v6731, 0.0
  %v6782 = vmax.f32 %v6732, 0.0
  %v6783 = vmax.f32 %v6733, 0.0
  %v6784 = vmax.f32 %v6734, 0.0
  %v6785 = vmax.f32 %v6735, 0.0
  %v6786 = vmax.f32 %v6736, 0.0
  %v6787 = vmax.f32 %v6737, 0.0
  %v6788 = vmax.f32 %v6738, 0.0
  %v6789 = vmax.f32 %v6739, 0.0
  %v6790 = vmax.f32 %v6740, 0.0
  %v6791 = vmax.f32 %v6741, 0.0
  %v6792 = vmax.f32 %v6742, 0.0
  %v6793 = vmax.f32 %v6743, 0.0
  %v6794 = vmax.f32 %v6744, 0.0
  %v6795 = vmax.f32 %v6745, 0.0
  %v6796 = vmax.f32 %v6746, 0.0
  %v6797 = vmax.f32 %v6747, 0.0
  %v6798 = vmax.f32 %v6748, 0.0
  %v6799 = vmax.f32 %v6749, 0.0
  %v6800 = vmax.f32 %v6750, 0.0
  %v6801 = vmax.f32 %v6751, 0.0
  %v6802 = vmax.f32 %v6752, 0.0
  %v6803 = vmax.f32 %v6753, 0.0
  %v6804 = vmax.f32 %v6754, 0.0
  %v6805 = vmax.f32 %v6755, 0.0
  %v6806 = vmax.f32 %v6756, 0.0
  %v6807 = vmax.f32 %v6757, 0.0
  %v6808 = vld [vmem:[%s3] sm:$0xff]
  %v6809 = vld [vmem:[%s3 + $0x8] sm:$0xff]
  %v6810 = vld [vmem:[%s3 + $0x10] sm:$0xff]
  %v6811 = vld [vmem:[%s3 + $0x18] sm:$0xff]
  %v6812 = vld [vmem:[%s3 + $0x20] sm:$0xff]
  %v6813 = vld [vmem:[%s3 + $0x28] sm:$0xff]
  %v6814 = vld [vmem:[%s3 + $0x30] sm:$0xff]
  %v6815 = vld [vmem:[%s3 + $0x38] sm:$0xff]
  %v6816 = vld [vmem:[%s3 + $0x40] sm:$0xff]
  %v6817 = vld [vmem:[%s3 + $0x48] sm:$0xff]
  %v6818 = vld [vmem:[%s3 + $0x50] sm:$0xff]
  %v6819 = vld [vmem:[%s3 + $0x58] sm:$0xff]
  %v6820 = vld [vmem:[%s3 + $0x60] sm:$0xff]
  %v6821 = vld [vmem:[%s3 + $0x68] sm:$0xff]
  %v6822 = vld [vmem:[%s3 + $0x70] sm:$0xff]
  %s6823 = scalar_lea.vmem %s3, 120
  %v6824 = vld [vmem:[%s6823] sm:$0xff]
  %v6825 = vld [vmem:[%s6823 + $0x8] sm:$0xff]
  %v6826 = vld [vmem:[%s6823 + $0x10] sm:$0xff]
  %v6827 = vld [vmem:[%s6823 + $0x18] sm:$0xff]
  %v6828 = vld [vmem:[%s6823 + $0x20] sm:$0xff]
  %v6829 = vld [vmem:[%s6823 + $0x28] sm:$0xff]
  %v6830 = vld [vmem:[%s6823 + $0x30] sm:$0xff]
  %v6831 = vld [vmem:[%s6823 + $0x38] sm:$0xff]
  %v6832 = vld [vmem:[%s6823 + $0x40] sm:$0xff]
  %v6833 = vld [vmem:[%s6823 + $0x48] sm:$0xff]
  %v6834 = vld [vmem:[%s6823 + $0x50] sm:$0xff]
  %v6835 = vld [vmem:[%s6823 + $0x58] sm:$0xff]
  %v6836 = vld [vmem:[%s6823 + $0x60] sm:$0xff]
  %v6837 = vld [vmem:[%s6823 + $0x68] sm:$0xff]
  %v6838 = vld [vmem:[%s6823 + $0x70] sm:$0xff]
  %vm6839 = vcmask 130048
  %v6841 = vsel %vm6839, %v6824, 0
  %v6844 = vsel %vm6839, %v6825, 0
  %v6847 = vsel %vm6839, %v6826, 0
  %v6850 = vsel %vm6839, %v6827, 0
  %v6853 = vsel %vm6839, %v6828, 0
  %v6856 = vsel %vm6839, %v6829, 0
  %v6859 = vsel %vm6839, %v6830, 0
  %v6862 = vsel %vm6839, %v6831, 0
  %v6865 = vsel %vm6839, %v6832, 0
  %v6868 = vsel %vm6839, %v6833, 0
  %v6871 = vsel %vm6839, %v6834, 0
  %v6874 = vsel %vm6839, %v6835, 0
  %v6877 = vsel %vm6839, %v6836, 0
  %v6880 = vsel %vm6839, %v6837, 0
  %v6883 = vsel %vm6839, %v6838, 0
  %6885 = vmatpush.msra.mxu0 0.0
  %6886 = vmatpush.msra.mxu0 0.0
  %6887 = vmatpush.msra.mxu0 0.0
  %6888 = vmatpush.msra.mxu0 0.0
  %6889 = vmatpush.msra.mxu0 0.0
  %6890 = vmatpush.msra.mxu0 0.0
  %6891 = vmatpush.msra.mxu0 0.0
  %6892 = vmatpush.msra.mxu0 0.0
  %6893 = vmatpush.msra.mxu0 0.0
  %6894 = vmatpush.msra.mxu0 0.0
  %6895 = vmatpush.msra.mxu0 0.0
  %6896 = vmatpush.msra.mxu0 0.0
  %6897 = vmatpush.msra.mxu0 0.0
  %6898 = vmatpush.msra.mxu0 0.0
  %6899 = vmatpush.msra.mxu0 %v6784
  %6900 = vmatpush.msra.mxu0 %v6759
  %6901 = vmatmul.f32.gmra.mxu0 %v6841
  %v6902 = vpop.f32.mrf.mxu0
  %v6903 = vadd.f32 0.0, %v6902
  %6904 = vmatmul.f32.gmra.mxu0 %v6844
  %v6905 = vpop.f32.mrf.mxu0
  %v6906 = vadd.f32 0.0, %v6905
  %6907 = vmatmul.f32.gmra.mxu0 %v6847
  %v6908 = vpop.f32.mrf.mxu0
  %v6909 = vadd.f32 0.0, %v6908
  %6910 = vmatmul.f32.gmra.mxu0 %v6850
  %v6911 = vpop.f32.mrf.mxu0
  %v6912 = vadd.f32 0.0, %v6911
  %6913 = vmatmul.f32.gmra.mxu0 %v6853
  %v6914 = vpop.f32.mrf.mxu0
  %v6915 = vadd.f32 0.0, %v6914
  %6916 = vmatmul.f32.gmra.mxu0 %v6856
  %v6917 = vpop.f32.mrf.mxu0
  %v6918 = vadd.f32 0.0, %v6917
  %6919 = vmatmul.f32.gmra.mxu0 %v6859
  %v6920 = vpop.f32.mrf.mxu0
  %v6921 = vadd.f32 0.0, %v6920
  %6922 = vmatmul.f32.gmra.mxu0 %v6862
  %v6923 = vpop.f32.mrf.mxu0
  %v6924 = vadd.f32 0.0, %v6923
  %6925 = vmatmul.f32.gmra.mxu0 %v6865
  %v6926 = vpop.f32.mrf.mxu0
  %v6927 = vadd.f32 0.0, %v6926
  %6928 = vmatmul.f32.gmra.mxu0 %v6868
  %v6929 = vpop.f32.mrf.mxu0
  %v6930 = vadd.f32 0.0, %v6929
  %6931 = vmatmul.f32.gmra.mxu0 %v6871
  %v6932 = vpop.f32.mrf.mxu0
  %v6933 = vadd.f32 0.0, %v6932
  %6934 = vmatmul.f32.gmra.mxu0 %v6874
  %v6935 = vpop.f32.mrf.mxu0
  %v6936 = vadd.f32 0.0, %v6935
  %6937 = vmatmul.f32.gmra.mxu0 %v6877
  %v6938 = vpop.f32.mrf.mxu0
  %v6939 = vadd.f32 0.0, %v6938
  %6940 = vmatmul.f32.gmra.mxu0 %v6880
  %v6941 = vpop.f32.mrf.mxu0
  %v6942 = vadd.f32 0.0, %v6941
  %6943 = vmatmul.f32.gmra.mxu0 %v6883
  %v6944 = vpop.f32.mrf.mxu0
  %v6945 = vadd.f32 0.0, %v6944
  %6946 = vdwg.mxu0
  %v6948 = vsel %vm6839, %v6808, 0
  %v6951 = vsel %vm6839, %v6809, 0
  %v6954 = vsel %vm6839, %v6810, 0
  %v6957 = vsel %vm6839, %v6811, 0
  %v6960 = vsel %vm6839, %v6812, 0
  %v6963 = vsel %vm6839, %v6813, 0
  %v6966 = vsel %vm6839, %v6814, 0
  %v6969 = vsel %vm6839, %v6815, 0
  %v6972 = vsel %vm6839, %v6816, 0
  %v6975 = vsel %vm6839, %v6817, 0
  %v6978 = vsel %vm6839, %v6818, 0
  %v6981 = vsel %vm6839, %v6819, 0
  %v6984 = vsel %vm6839, %v6820, 0
  %v6987 = vsel %vm6839, %v6821, 0
  %v6990 = vsel %vm6839, %v6822, 0
  %6992 = vmatpush.msra.mxu0 0.0
  %6993 = vmatpush.msra.mxu0 0.0
  %6994 = vmatpush.msra.mxu0 0.0
  %6995 = vmatpush.msra.mxu0 0.0
  %6996 = vmatpush.msra.mxu0 0.0
  %6997 = vmatpush.msra.mxu0 0.0
  %6998 = vmatpush.msra.mxu0 0.0
  %6999 = vmatpush.msra.mxu0 0.0
  %7000 = vmatpush.msra.mxu0 0.0
  %7001 = vmatpush.msra.mxu0 0.0
  %7002 = vmatpush.msra.mxu0 0.0
  %7003 = vmatpush.msra.mxu0 0.0
  %7004 = vmatpush.msra.mxu0 0.0
  %7005 = vmatpush.msra.mxu0 0.0
  %7006 = vmatpush.msra.mxu0 %v6783
  %7007 = vmatpush.msra.mxu0 %v6758
  %7008 = vmatmul.f32.gmra.mxu0 %v6948
  %v7009 = vpop.f32.mrf.mxu0
  %v7010 = vadd.f32 %v6903, %v7009
  %7011 = vmatmul.f32.gmra.mxu0 %v6951
  %v7012 = vpop.f32.mrf.mxu0
  %v7013 = vadd.f32 %v6906, %v7012
  %7014 = vmatmul.f32.gmra.mxu0 %v6954
  %v7015 = vpop.f32.mrf.mxu0
  %v7016 = vadd.f32 %v6909, %v7015
  %7017 = vmatmul.f32.gmra.mxu0 %v6957
  %v7018 = vpop.f32.mrf.mxu0
  %v7019 = vadd.f32 %v6912, %v7018
  %7020 = vmatmul.f32.gmra.mxu0 %v6960
  %v7021 = vpop.f32.mrf.mxu0
  %v7022 = vadd.f32 %v6915, %v7021
  %7023 = vmatmul.f32.gmra.mxu0 %v6963
  %v7024 = vpop.f32.mrf.mxu0
  %v7025 = vadd.f32 %v6918, %v7024
  %7026 = vmatmul.f32.gmra.mxu0 %v6966
  %v7027 = vpop.f32.mrf.mxu0
  %v7028 = vadd.f32 %v6921, %v7027
  %7029 = vmatmul.f32.gmra.mxu0 %v6969
  %v7030 = vpop.f32.mrf.mxu0
  %v7031 = vadd.f32 %v6924, %v7030
  %7032 = vmatmul.f32.gmra.mxu0 %v6972
  %v7033 = vpop.f32.mrf.mxu0
  %v7034 = vadd.f32 %v6927, %v7033
  %7035 = vmatmul.f32.gmra.mxu0 %v6975
  %v7036 = vpop.f32.mrf.mxu0
  %v7037 = vadd.f32 %v6930, %v7036
  %7038 = vmatmul.f32.gmra.mxu0 %v6978
  %v7039 = vpop.f32.mrf.mxu0
  %v7040 = vadd.f32 %v6933, %v7039
  %7041 = vmatmul.f32.gmra.mxu0 %v6981
  %v7042 = vpop.f32.mrf.mxu0
  %v7043 = vadd.f32 %v6936, %v7042
  %7044 = vmatmul.f32.gmra.mxu0 %v6984
  %v7045 = vpop.f32.mrf.mxu0
  %v7046 = vadd.f32 %v6939, %v7045
  %7047 = vmatmul.f32.gmra.mxu0 %v6987
  %v7048 = vpop.f32.mrf.mxu0
  %v7049 = vadd.f32 %v6942, %v7048
  %7050 = vmatmul.f32.gmra.mxu0 %v6990
  %v7051 = vpop.f32.mrf.mxu0
  %v7052 = vadd.f32 %v6945, %v7051
  %7053 = vdwg.mxu0
  %s7054 = scalar_lea.vmem %s3, 240
  %v7055 = vld [vmem:[%s7054] sm:$0xff]
  %v7056 = vld [vmem:[%s7054 + $0x8] sm:$0xff]
  %v7057 = vld [vmem:[%s7054 + $0x10] sm:$0xff]
  %v7058 = vld [vmem:[%s7054 + $0x18] sm:$0xff]
  %v7059 = vld [vmem:[%s7054 + $0x20] sm:$0xff]
  %v7060 = vld [vmem:[%s7054 + $0x28] sm:$0xff]
  %v7061 = vld [vmem:[%s7054 + $0x30] sm:$0xff]
  %v7062 = vld [vmem:[%s7054 + $0x38] sm:$0xff]
  %v7063 = vld [vmem:[%s7054 + $0x40] sm:$0xff]
  %v7064 = vld [vmem:[%s7054 + $0x48] sm:$0xff]
  %v7065 = vld [vmem:[%s7054 + $0x50] sm:$0xff]
  %v7066 = vld [vmem:[%s7054 + $0x58] sm:$0xff]
  %v7067 = vld [vmem:[%s7054 + $0x60] sm:$0xff]
  %v7068 = vld [vmem:[%s7054 + $0x68] sm:$0xff]
  %v7069 = vld [vmem:[%s7054 + $0x70] sm:$0xff]
  %v7071 = vsel %vm6839, %v7055, 0
  %v7074 = vsel %vm6839, %v7056, 0
  %v7077 = vsel %vm6839, %v7057, 0
  %v7080 = vsel %vm6839, %v7058, 0
  %v7083 = vsel %vm6839, %v7059, 0
  %v7086 = vsel %vm6839, %v7060, 0
  %v7089 = vsel %vm6839, %v7061, 0
  %v7092 = vsel %vm6839, %v7062, 0
  %v7095 = vsel %vm6839, %v7063, 0
  %v7098 = vsel %vm6839, %v7064, 0
  %v7101 = vsel %vm6839, %v7065, 0
  %v7104 = vsel %vm6839, %v7066, 0
  %v7107 = vsel %vm6839, %v7067, 0
  %v7110 = vsel %vm6839, %v7068, 0
  %v7113 = vsel %vm6839, %v7069, 0
  %7115 = vmatpush.msra.mxu0 0.0
  %7116 = vmatpush.msra.mxu0 0.0
  %7117 = vmatpush.msra.mxu0 0.0
  %7118 = vmatpush.msra.mxu0 0.0
  %7119 = vmatpush.msra.mxu0 0.0
  %7120 = vmatpush.msra.mxu0 0.0
  %7121 = vmatpush.msra.mxu0 0.0
  %7122 = vmatpush.msra.mxu0 0.0
  %7123 = vmatpush.msra.mxu0 0.0
  %7124 = vmatpush.msra.mxu0 0.0
  %7125 = vmatpush.msra.mxu0 0.0
  %7126 = vmatpush.msra.mxu0 0.0
  %7127 = vmatpush.msra.mxu0 0.0
  %7128 = vmatpush.msra.mxu0 0.0
  %7129 = vmatpush.msra.mxu0 %v6785
  %7130 = vmatpush.msra.mxu0 %v6760
  %7131 = vmatmul.f32.gmra.mxu0 %v7071
  %v7132 = vpop.f32.mrf.mxu0
  %v7133 = vadd.f32 0.0, %v7132
  %7134 = vmatmul.f32.gmra.mxu0 %v7074
  %v7135 = vpop.f32.mrf.mxu0
  %v7136 = vadd.f32 0.0, %v7135
  %7137 = vmatmul.f32.gmra.mxu0 %v7077
  %v7138 = vpop.f32.mrf.mxu0
  %v7139 = vadd.f32 0.0, %v7138
  %7140 = vmatmul.f32.gmra.mxu0 %v7080
  %v7141 = vpop.f32.mrf.mxu0
  %v7142 = vadd.f32 0.0, %v7141
  %7143 = vmatmul.f32.gmra.mxu0 %v7083
  %v7144 = vpop.f32.mrf.mxu0
  %v7145 = vadd.f32 0.0, %v7144
  %7146 = vmatmul.f32.gmra.mxu0 %v7086
  %v7147 = vpop.f32.mrf.mxu0
  %v7148 = vadd.f32 0.0, %v7147
  %7149 = vmatmul.f32.gmra.mxu0 %v7089
  %v7150 = vpop.f32.mrf.mxu0
  %v7151 = vadd.f32 0.0, %v7150
  %7152 = vmatmul.f32.gmra.mxu0 %v7092
  %v7153 = vpop.f32.mrf.mxu0
  %v7154 = vadd.f32 0.0, %v7153
  %7155 = vmatmul.f32.gmra.mxu0 %v7095
  %v7156 = vpop.f32.mrf.mxu0
  %v7157 = vadd.f32 0.0, %v7156
  %7158 = vmatmul.f32.gmra.mxu0 %v7098
  %v7159 = vpop.f32.mrf.mxu0
  %v7160 = vadd.f32 0.0, %v7159
  %7161 = vmatmul.f32.gmra.mxu0 %v7101
  %v7162 = vpop.f32.mrf.mxu0
  %v7163 = vadd.f32 0.0, %v7162
  %7164 = vmatmul.f32.gmra.mxu0 %v7104
  %v7165 = vpop.f32.mrf.mxu0
  %v7166 = vadd.f32 0.0, %v7165
  %7167 = vmatmul.f32.gmra.mxu0 %v7107
  %v7168 = vpop.f32.mrf.mxu0
  %v7169 = vadd.f32 0.0, %v7168
  %7170 = vmatmul.f32.gmra.mxu0 %v7110
  %v7171 = vpop.f32.mrf.mxu0
  %v7172 = vadd.f32 0.0, %v7171
  %7173 = vmatmul.f32.gmra.mxu0 %v7113
  %v7174 = vpop.f32.mrf.mxu0
  %v7175 = vadd.f32 0.0, %v7174
  %7176 = vdwg.mxu0
  %v7177 = vadd.f32 %v7010, %v7133
  %v7178 = vadd.f32 %v7013, %v7136
  %v7179 = vadd.f32 %v7016, %v7139
  %v7180 = vadd.f32 %v7019, %v7142
  %v7181 = vadd.f32 %v7022, %v7145
  %v7182 = vadd.f32 %v7025, %v7148
  %v7183 = vadd.f32 %v7028, %v7151
  %v7184 = vadd.f32 %v7031, %v7154
  %v7185 = vadd.f32 %v7034, %v7157
  %v7186 = vadd.f32 %v7037, %v7160
  %v7187 = vadd.f32 %v7040, %v7163
  %v7188 = vadd.f32 %v7043, %v7166
  %v7189 = vadd.f32 %v7046, %v7169
  %v7190 = vadd.f32 %v7049, %v7172
  %v7191 = vadd.f32 %v7052, %v7175
  %s7192 = scalar_lea.vmem %s3, 360
  %v7193 = vld [vmem:[%s7192] sm:$0xff]
  %v7194 = vld [vmem:[%s7192 + $0x8] sm:$0xff]
  %v7195 = vld [vmem:[%s7192 + $0x10] sm:$0xff]
  %v7196 = vld [vmem:[%s7192 + $0x18] sm:$0xff]
  %v7197 = vld [vmem:[%s7192 + $0x20] sm:$0xff]
  %v7198 = vld [vmem:[%s7192 + $0x28] sm:$0xff]
  %v7199 = vld [vmem:[%s7192 + $0x30] sm:$0xff]
  %v7200 = vld [vmem:[%s7192 + $0x38] sm:$0xff]
  %v7201 = vld [vmem:[%s7192 + $0x40] sm:$0xff]
  %v7202 = vld [vmem:[%s7192 + $0x48] sm:$0xff]
  %v7203 = vld [vmem:[%s7192 + $0x50] sm:$0xff]
  %v7204 = vld [vmem:[%s7192 + $0x58] sm:$0xff]
  %v7205 = vld [vmem:[%s7192 + $0x60] sm:$0xff]
  %v7206 = vld [vmem:[%s7192 + $0x68] sm:$0xff]
  %v7207 = vld [vmem:[%s7192 + $0x70] sm:$0xff]
  %v7209 = vsel %vm6839, %v7193, 0
  %v7212 = vsel %vm6839, %v7194, 0
  %v7215 = vsel %vm6839, %v7195, 0
  %v7218 = vsel %vm6839, %v7196, 0
  %v7221 = vsel %vm6839, %v7197, 0
  %v7224 = vsel %vm6839, %v7198, 0
  %v7227 = vsel %vm6839, %v7199, 0
  %v7230 = vsel %vm6839, %v7200, 0
  %v7233 = vsel %vm6839, %v7201, 0
  %v7236 = vsel %vm6839, %v7202, 0
  %v7239 = vsel %vm6839, %v7203, 0
  %v7242 = vsel %vm6839, %v7204, 0
  %v7245 = vsel %vm6839, %v7205, 0
  %v7248 = vsel %vm6839, %v7206, 0
  %v7251 = vsel %vm6839, %v7207, 0
  %7253 = vmatpush.msra.mxu0 0.0
  %7254 = vmatpush.msra.mxu0 0.0
  %7255 = vmatpush.msra.mxu0 0.0
  %7256 = vmatpush.msra.mxu0 0.0
  %7257 = vmatpush.msra.mxu0 0.0
  %7258 = vmatpush.msra.mxu0 0.0
  %7259 = vmatpush.msra.mxu0 0.0
  %7260 = vmatpush.msra.mxu0 0.0
  %7261 = vmatpush.msra.mxu0 0.0
  %7262 = vmatpush.msra.mxu0 0.0
  %7263 = vmatpush.msra.mxu0 0.0
  %7264 = vmatpush.msra.mxu0 0.0
  %7265 = vmatpush.msra.mxu0 0.0
  %7266 = vmatpush.msra.mxu0 0.0
  %7267 = vmatpush.msra.mxu0 %v6786
  %7268 = vmatpush.msra.mxu0 %v6761
  %7269 = vmatmul.f32.gmra.mxu0 %v7209
  %v7270 = vpop.f32.mrf.mxu0
  %v7271 = vadd.f32 0.0, %v7270
  %7272 = vmatmul.f32.gmra.mxu0 %v7212
  %v7273 = vpop.f32.mrf.mxu0
  %v7274 = vadd.f32 0.0, %v7273
  %7275 = vmatmul.f32.gmra.mxu0 %v7215
  %v7276 = vpop.f32.mrf.mxu0
  %v7277 = vadd.f32 0.0, %v7276
  %7278 = vmatmul.f32.gmra.mxu0 %v7218
  %v7279 = vpop.f32.mrf.mxu0
  %v7280 = vadd.f32 0.0, %v7279
  %7281 = vmatmul.f32.gmra.mxu0 %v7221
  %v7282 = vpop.f32.mrf.mxu0
  %v7283 = vadd.f32 0.0, %v7282
  %7284 = vmatmul.f32.gmra.mxu0 %v7224
  %v7285 = vpop.f32.mrf.mxu0
  %v7286 = vadd.f32 0.0, %v7285
  %7287 = vmatmul.f32.gmra.mxu0 %v7227
  %v7288 = vpop.f32.mrf.mxu0
  %v7289 = vadd.f32 0.0, %v7288
  %7290 = vmatmul.f32.gmra.mxu0 %v7230
  %v7291 = vpop.f32.mrf.mxu0
  %v7292 = vadd.f32 0.0, %v7291
  %7293 = vmatmul.f32.gmra.mxu0 %v7233
  %v7294 = vpop.f32.mrf.mxu0
  %v7295 = vadd.f32 0.0, %v7294
  %7296 = vmatmul.f32.gmra.mxu0 %v7236
  %v7297 = vpop.f32.mrf.mxu0
  %v7298 = vadd.f32 0.0, %v7297
  %7299 = vmatmul.f32.gmra.mxu0 %v7239
  %v7300 = vpop.f32.mrf.mxu0
  %v7301 = vadd.f32 0.0, %v7300
  %7302 = vmatmul.f32.gmra.mxu0 %v7242
  %v7303 = vpop.f32.mrf.mxu0
  %v7304 = vadd.f32 0.0, %v7303
  %7305 = vmatmul.f32.gmra.mxu0 %v7245
  %v7306 = vpop.f32.mrf.mxu0
  %v7307 = vadd.f32 0.0, %v7306
  %7308 = vmatmul.f32.gmra.mxu0 %v7248
  %v7309 = vpop.f32.mrf.mxu0
  %v7310 = vadd.f32 0.0, %v7309
  %7311 = vmatmul.f32.gmra.mxu0 %v7251
  %v7312 = vpop.f32.mrf.mxu0
  %v7313 = vadd.f32 0.0, %v7312
  %7314 = vdwg.mxu0
  %v7315 = vadd.f32 %v7177, %v7271
  %v7316 = vadd.f32 %v7178, %v7274
  %v7317 = vadd.f32 %v7179, %v7277
  %v7318 = vadd.f32 %v7180, %v7280
  %v7319 = vadd.f32 %v7181, %v7283
  %v7320 = vadd.f32 %v7182, %v7286
  %v7321 = vadd.f32 %v7183, %v7289
  %v7322 = vadd.f32 %v7184, %v7292
  %v7323 = vadd.f32 %v7185, %v7295
  %v7324 = vadd.f32 %v7186, %v7298
  %v7325 = vadd.f32 %v7187, %v7301
  %v7326 = vadd.f32 %v7188, %v7304
  %v7327 = vadd.f32 %v7189, %v7307
  %v7328 = vadd.f32 %v7190, %v7310
  %v7329 = vadd.f32 %v7191, %v7313
  %s7330 = scalar_lea.vmem %s3, 480
  %v7331 = vld [vmem:[%s7330] sm:$0xff]
  %v7332 = vld [vmem:[%s7330 + $0x8] sm:$0xff]
  %v7333 = vld [vmem:[%s7330 + $0x10] sm:$0xff]
  %v7334 = vld [vmem:[%s7330 + $0x18] sm:$0xff]
  %v7335 = vld [vmem:[%s7330 + $0x20] sm:$0xff]
  %v7336 = vld [vmem:[%s7330 + $0x28] sm:$0xff]
  %v7337 = vld [vmem:[%s7330 + $0x30] sm:$0xff]
  %v7338 = vld [vmem:[%s7330 + $0x38] sm:$0xff]
  %v7339 = vld [vmem:[%s7330 + $0x40] sm:$0xff]
  %v7340 = vld [vmem:[%s7330 + $0x48] sm:$0xff]
  %v7341 = vld [vmem:[%s7330 + $0x50] sm:$0xff]
  %v7342 = vld [vmem:[%s7330 + $0x58] sm:$0xff]
  %v7343 = vld [vmem:[%s7330 + $0x60] sm:$0xff]
  %v7344 = vld [vmem:[%s7330 + $0x68] sm:$0xff]
  %v7345 = vld [vmem:[%s7330 + $0x70] sm:$0xff]
  %v7347 = vsel %vm6839, %v7331, 0
  %v7350 = vsel %vm6839, %v7332, 0
  %v7353 = vsel %vm6839, %v7333, 0
  %v7356 = vsel %vm6839, %v7334, 0
  %v7359 = vsel %vm6839, %v7335, 0
  %v7362 = vsel %vm6839, %v7336, 0
  %v7365 = vsel %vm6839, %v7337, 0
  %v7368 = vsel %vm6839, %v7338, 0
  %v7371 = vsel %vm6839, %v7339, 0
  %v7374 = vsel %vm6839, %v7340, 0
  %v7377 = vsel %vm6839, %v7341, 0
  %v7380 = vsel %vm6839, %v7342, 0
  %v7383 = vsel %vm6839, %v7343, 0
  %v7386 = vsel %vm6839, %v7344, 0
  %v7389 = vsel %vm6839, %v7345, 0
  %7391 = vmatpush.msra.mxu0 0.0
  %7392 = vmatpush.msra.mxu0 0.0
  %7393 = vmatpush.msra.mxu0 0.0
  %7394 = vmatpush.msra.mxu0 0.0
  %7395 = vmatpush.msra.mxu0 0.0
  %7396 = vmatpush.msra.mxu0 0.0
  %7397 = vmatpush.msra.mxu0 0.0
  %7398 = vmatpush.msra.mxu0 0.0
  %7399 = vmatpush.msra.mxu0 0.0
  %7400 = vmatpush.msra.mxu0 0.0
  %7401 = vmatpush.msra.mxu0 0.0
  %7402 = vmatpush.msra.mxu0 0.0
  %7403 = vmatpush.msra.mxu0 0.0
  %7404 = vmatpush.msra.mxu0 0.0
  %7405 = vmatpush.msra.mxu0 %v6787
  %7406 = vmatpush.msra.mxu0 %v6762
  %7407 = vmatmul.f32.gmra.mxu0 %v7347
  %v7408 = vpop.f32.mrf.mxu0
  %v7409 = vadd.f32 0.0, %v7408
  %7410 = vmatmul.f32.gmra.mxu0 %v7350
  %v7411 = vpop.f32.mrf.mxu0
  %v7412 = vadd.f32 0.0, %v7411
  %7413 = vmatmul.f32.gmra.mxu0 %v7353
  %v7414 = vpop.f32.mrf.mxu0
  %v7415 = vadd.f32 0.0, %v7414
  %7416 = vmatmul.f32.gmra.mxu0 %v7356
  %v7417 = vpop.f32.mrf.mxu0
  %v7418 = vadd.f32 0.0, %v7417
  %7419 = vmatmul.f32.gmra.mxu0 %v7359
  %v7420 = vpop.f32.mrf.mxu0
  %v7421 = vadd.f32 0.0, %v7420
  %7422 = vmatmul.f32.gmra.mxu0 %v7362
  %v7423 = vpop.f32.mrf.mxu0
  %v7424 = vadd.f32 0.0, %v7423
  %7425 = vmatmul.f32.gmra.mxu0 %v7365
  %v7426 = vpop.f32.mrf.mxu0
  %v7427 = vadd.f32 0.0, %v7426
  %7428 = vmatmul.f32.gmra.mxu0 %v7368
  %v7429 = vpop.f32.mrf.mxu0
  %v7430 = vadd.f32 0.0, %v7429
  %7431 = vmatmul.f32.gmra.mxu0 %v7371
  %v7432 = vpop.f32.mrf.mxu0
  %v7433 = vadd.f32 0.0, %v7432
  %7434 = vmatmul.f32.gmra.mxu0 %v7374
  %v7435 = vpop.f32.mrf.mxu0
  %v7436 = vadd.f32 0.0, %v7435
  %7437 = vmatmul.f32.gmra.mxu0 %v7377
  %v7438 = vpop.f32.mrf.mxu0
  %v7439 = vadd.f32 0.0, %v7438
  %7440 = vmatmul.f32.gmra.mxu0 %v7380
  %v7441 = vpop.f32.mrf.mxu0
  %v7442 = vadd.f32 0.0, %v7441
  %7443 = vmatmul.f32.gmra.mxu0 %v7383
  %v7444 = vpop.f32.mrf.mxu0
  %v7445 = vadd.f32 0.0, %v7444
  %7446 = vmatmul.f32.gmra.mxu0 %v7386
  %v7447 = vpop.f32.mrf.mxu0
  %v7448 = vadd.f32 0.0, %v7447
  %7449 = vmatmul.f32.gmra.mxu0 %v7389
  %v7450 = vpop.f32.mrf.mxu0
  %v7451 = vadd.f32 0.0, %v7450
  %7452 = vdwg.mxu0
  %v7453 = vadd.f32 %v7315, %v7409
  %v7454 = vadd.f32 %v7316, %v7412
  %v7455 = vadd.f32 %v7317, %v7415
  %v7456 = vadd.f32 %v7318, %v7418
  %v7457 = vadd.f32 %v7319, %v7421
  %v7458 = vadd.f32 %v7320, %v7424
  %v7459 = vadd.f32 %v7321, %v7427
  %v7460 = vadd.f32 %v7322, %v7430
  %v7461 = vadd.f32 %v7323, %v7433
  %v7462 = vadd.f32 %v7324, %v7436
  %v7463 = vadd.f32 %v7325, %v7439
  %v7464 = vadd.f32 %v7326, %v7442
  %v7465 = vadd.f32 %v7327, %v7445
  %v7466 = vadd.f32 %v7328, %v7448
  %v7467 = vadd.f32 %v7329, %v7451
  %s7468 = scalar_lea.vmem %s3, 600
  %v7469 = vld [vmem:[%s7468] sm:$0xff]
  %v7470 = vld [vmem:[%s7468 + $0x8] sm:$0xff]
  %v7471 = vld [vmem:[%s7468 + $0x10] sm:$0xff]
  %v7472 = vld [vmem:[%s7468 + $0x18] sm:$0xff]
  %v7473 = vld [vmem:[%s7468 + $0x20] sm:$0xff]
  %v7474 = vld [vmem:[%s7468 + $0x28] sm:$0xff]
  %v7475 = vld [vmem:[%s7468 + $0x30] sm:$0xff]
  %v7476 = vld [vmem:[%s7468 + $0x38] sm:$0xff]
  %v7477 = vld [vmem:[%s7468 + $0x40] sm:$0xff]
  %v7478 = vld [vmem:[%s7468 + $0x48] sm:$0xff]
  %v7479 = vld [vmem:[%s7468 + $0x50] sm:$0xff]
  %v7480 = vld [vmem:[%s7468 + $0x58] sm:$0xff]
  %v7481 = vld [vmem:[%s7468 + $0x60] sm:$0xff]
  %v7482 = vld [vmem:[%s7468 + $0x68] sm:$0xff]
  %v7483 = vld [vmem:[%s7468 + $0x70] sm:$0xff]
  %v7485 = vsel %vm6839, %v7469, 0
  %v7488 = vsel %vm6839, %v7470, 0
  %v7491 = vsel %vm6839, %v7471, 0
  %v7494 = vsel %vm6839, %v7472, 0
  %v7497 = vsel %vm6839, %v7473, 0
  %v7500 = vsel %vm6839, %v7474, 0
  %v7503 = vsel %vm6839, %v7475, 0
  %v7506 = vsel %vm6839, %v7476, 0
  %v7509 = vsel %vm6839, %v7477, 0
  %v7512 = vsel %vm6839, %v7478, 0
  %v7515 = vsel %vm6839, %v7479, 0
  %v7518 = vsel %vm6839, %v7480, 0
  %v7521 = vsel %vm6839, %v7481, 0
  %v7524 = vsel %vm6839, %v7482, 0
  %v7527 = vsel %vm6839, %v7483, 0
  %7529 = vmatpush.msra.mxu0 0.0
  %7530 = vmatpush.msra.mxu0 0.0
  %7531 = vmatpush.msra.mxu0 0.0
  %7532 = vmatpush.msra.mxu0 0.0
  %7533 = vmatpush.msra.mxu0 0.0
  %7534 = vmatpush.msra.mxu0 0.0
  %7535 = vmatpush.msra.mxu0 0.0
  %7536 = vmatpush.msra.mxu0 0.0
  %7537 = vmatpush.msra.mxu0 0.0
  %7538 = vmatpush.msra.mxu0 0.0
  %7539 = vmatpush.msra.mxu0 0.0
  %7540 = vmatpush.msra.mxu0 0.0
  %7541 = vmatpush.msra.mxu0 0.0
  %7542 = vmatpush.msra.mxu0 0.0
  %7543 = vmatpush.msra.mxu0 %v6788
  %7544 = vmatpush.msra.mxu0 %v6763
  %7545 = vmatmul.f32.gmra.mxu0 %v7485
  %v7546 = vpop.f32.mrf.mxu0
  %v7547 = vadd.f32 0.0, %v7546
  %7548 = vmatmul.f32.gmra.mxu0 %v7488
  %v7549 = vpop.f32.mrf.mxu0
  %v7550 = vadd.f32 0.0, %v7549
  %7551 = vmatmul.f32.gmra.mxu0 %v7491
  %v7552 = vpop.f32.mrf.mxu0
  %v7553 = vadd.f32 0.0, %v7552
  %7554 = vmatmul.f32.gmra.mxu0 %v7494
  %v7555 = vpop.f32.mrf.mxu0
  %v7556 = vadd.f32 0.0, %v7555
  %7557 = vmatmul.f32.gmra.mxu0 %v7497
  %v7558 = vpop.f32.mrf.mxu0
  %v7559 = vadd.f32 0.0, %v7558
  %7560 = vmatmul.f32.gmra.mxu0 %v7500
  %v7561 = vpop.f32.mrf.mxu0
  %v7562 = vadd.f32 0.0, %v7561
  %7563 = vmatmul.f32.gmra.mxu0 %v7503
  %v7564 = vpop.f32.mrf.mxu0
  %v7565 = vadd.f32 0.0, %v7564
  %7566 = vmatmul.f32.gmra.mxu0 %v7506
  %v7567 = vpop.f32.mrf.mxu0
  %v7568 = vadd.f32 0.0, %v7567
  %7569 = vmatmul.f32.gmra.mxu0 %v7509
  %v7570 = vpop.f32.mrf.mxu0
  %v7571 = vadd.f32 0.0, %v7570
  %7572 = vmatmul.f32.gmra.mxu0 %v7512
  %v7573 = vpop.f32.mrf.mxu0
  %v7574 = vadd.f32 0.0, %v7573
  %7575 = vmatmul.f32.gmra.mxu0 %v7515
  %v7576 = vpop.f32.mrf.mxu0
  %v7577 = vadd.f32 0.0, %v7576
  %7578 = vmatmul.f32.gmra.mxu0 %v7518
  %v7579 = vpop.f32.mrf.mxu0
  %v7580 = vadd.f32 0.0, %v7579
  %7581 = vmatmul.f32.gmra.mxu0 %v7521
  %v7582 = vpop.f32.mrf.mxu0
  %v7583 = vadd.f32 0.0, %v7582
  %7584 = vmatmul.f32.gmra.mxu0 %v7524
  %v7585 = vpop.f32.mrf.mxu0
  %v7586 = vadd.f32 0.0, %v7585
  %7587 = vmatmul.f32.gmra.mxu0 %v7527
  %v7588 = vpop.f32.mrf.mxu0
  %v7589 = vadd.f32 0.0, %v7588
  %7590 = vdwg.mxu0
  %v7591 = vadd.f32 %v7453, %v7547
  %v7592 = vadd.f32 %v7454, %v7550
  %v7593 = vadd.f32 %v7455, %v7553
  %v7594 = vadd.f32 %v7456, %v7556
  %v7595 = vadd.f32 %v7457, %v7559
  %v7596 = vadd.f32 %v7458, %v7562
  %v7597 = vadd.f32 %v7459, %v7565
  %v7598 = vadd.f32 %v7460, %v7568
  %v7599 = vadd.f32 %v7461, %v7571
  %v7600 = vadd.f32 %v7462, %v7574
  %v7601 = vadd.f32 %v7463, %v7577
  %v7602 = vadd.f32 %v7464, %v7580
  %v7603 = vadd.f32 %v7465, %v7583
  %v7604 = vadd.f32 %v7466, %v7586
  %v7605 = vadd.f32 %v7467, %v7589
  %s7606 = scalar_lea.vmem %s3, 720
  %v7607 = vld [vmem:[%s7606] sm:$0xff]
  %v7608 = vld [vmem:[%s7606 + $0x8] sm:$0xff]
  %v7609 = vld [vmem:[%s7606 + $0x10] sm:$0xff]
  %v7610 = vld [vmem:[%s7606 + $0x18] sm:$0xff]
  %v7611 = vld [vmem:[%s7606 + $0x20] sm:$0xff]
  %v7612 = vld [vmem:[%s7606 + $0x28] sm:$0xff]
  %v7613 = vld [vmem:[%s7606 + $0x30] sm:$0xff]
  %v7614 = vld [vmem:[%s7606 + $0x38] sm:$0xff]
  %v7615 = vld [vmem:[%s7606 + $0x40] sm:$0xff]
  %v7616 = vld [vmem:[%s7606 + $0x48] sm:$0xff]
  %v7617 = vld [vmem:[%s7606 + $0x50] sm:$0xff]
  %v7618 = vld [vmem:[%s7606 + $0x58] sm:$0xff]
  %v7619 = vld [vmem:[%s7606 + $0x60] sm:$0xff]
  %v7620 = vld [vmem:[%s7606 + $0x68] sm:$0xff]
  %v7621 = vld [vmem:[%s7606 + $0x70] sm:$0xff]
  %v7623 = vsel %vm6839, %v7607, 0
  %v7626 = vsel %vm6839, %v7608, 0
  %v7629 = vsel %vm6839, %v7609, 0
  %v7632 = vsel %vm6839, %v7610, 0
  %v7635 = vsel %vm6839, %v7611, 0
  %v7638 = vsel %vm6839, %v7612, 0
  %v7641 = vsel %vm6839, %v7613, 0
  %v7644 = vsel %vm6839, %v7614, 0
  %v7647 = vsel %vm6839, %v7615, 0
  %v7650 = vsel %vm6839, %v7616, 0
  %v7653 = vsel %vm6839, %v7617, 0
  %v7656 = vsel %vm6839, %v7618, 0
  %v7659 = vsel %vm6839, %v7619, 0
  %v7662 = vsel %vm6839, %v7620, 0
  %v7665 = vsel %vm6839, %v7621, 0
  %7667 = vmatpush.msra.mxu0 0.0
  %7668 = vmatpush.msra.mxu0 0.0
  %7669 = vmatpush.msra.mxu0 0.0
  %7670 = vmatpush.msra.mxu0 0.0
  %7671 = vmatpush.msra.mxu0 0.0
  %7672 = vmatpush.msra.mxu0 0.0
  %7673 = vmatpush.msra.mxu0 0.0
  %7674 = vmatpush.msra.mxu0 0.0
  %7675 = vmatpush.msra.mxu0 0.0
  %7676 = vmatpush.msra.mxu0 0.0
  %7677 = vmatpush.msra.mxu0 0.0
  %7678 = vmatpush.msra.mxu0 0.0
  %7679 = vmatpush.msra.mxu0 0.0
  %7680 = vmatpush.msra.mxu0 0.0
  %7681 = vmatpush.msra.mxu0 %v6789
  %7682 = vmatpush.msra.mxu0 %v6764
  %7683 = vmatmul.f32.gmra.mxu0 %v7623
  %v7684 = vpop.f32.mrf.mxu0
  %v7685 = vadd.f32 0.0, %v7684
  %7686 = vmatmul.f32.gmra.mxu0 %v7626
  %v7687 = vpop.f32.mrf.mxu0
  %v7688 = vadd.f32 0.0, %v7687
  %7689 = vmatmul.f32.gmra.mxu0 %v7629
  %v7690 = vpop.f32.mrf.mxu0
  %v7691 = vadd.f32 0.0, %v7690
  %7692 = vmatmul.f32.gmra.mxu0 %v7632
  %v7693 = vpop.f32.mrf.mxu0
  %v7694 = vadd.f32 0.0, %v7693
  %7695 = vmatmul.f32.gmra.mxu0 %v7635
  %v7696 = vpop.f32.mrf.mxu0
  %v7697 = vadd.f32 0.0, %v7696
  %7698 = vmatmul.f32.gmra.mxu0 %v7638
  %v7699 = vpop.f32.mrf.mxu0
  %v7700 = vadd.f32 0.0, %v7699
  %7701 = vmatmul.f32.gmra.mxu0 %v7641
  %v7702 = vpop.f32.mrf.mxu0
  %v7703 = vadd.f32 0.0, %v7702
  %7704 = vmatmul.f32.gmra.mxu0 %v7644
  %v7705 = vpop.f32.mrf.mxu0
  %v7706 = vadd.f32 0.0, %v7705
  %7707 = vmatmul.f32.gmra.mxu0 %v7647
  %v7708 = vpop.f32.mrf.mxu0
  %v7709 = vadd.f32 0.0, %v7708
  %7710 = vmatmul.f32.gmra.mxu0 %v7650
  %v7711 = vpop.f32.mrf.mxu0
  %v7712 = vadd.f32 0.0, %v7711
  %7713 = vmatmul.f32.gmra.mxu0 %v7653
  %v7714 = vpop.f32.mrf.mxu0
  %v7715 = vadd.f32 0.0, %v7714
  %7716 = vmatmul.f32.gmra.mxu0 %v7656
  %v7717 = vpop.f32.mrf.mxu0
  %v7718 = vadd.f32 0.0, %v7717
  %7719 = vmatmul.f32.gmra.mxu0 %v7659
  %v7720 = vpop.f32.mrf.mxu0
  %v7721 = vadd.f32 0.0, %v7720
  %7722 = vmatmul.f32.gmra.mxu0 %v7662
  %v7723 = vpop.f32.mrf.mxu0
  %v7724 = vadd.f32 0.0, %v7723
  %7725 = vmatmul.f32.gmra.mxu0 %v7665
  %v7726 = vpop.f32.mrf.mxu0
  %v7727 = vadd.f32 0.0, %v7726
  %7728 = vdwg.mxu0
  %v7729 = vadd.f32 %v7591, %v7685
  %v7730 = vadd.f32 %v7592, %v7688
  %v7731 = vadd.f32 %v7593, %v7691
  %v7732 = vadd.f32 %v7594, %v7694
  %v7733 = vadd.f32 %v7595, %v7697
  %v7734 = vadd.f32 %v7596, %v7700
  %v7735 = vadd.f32 %v7597, %v7703
  %v7736 = vadd.f32 %v7598, %v7706
  %v7737 = vadd.f32 %v7599, %v7709
  %v7738 = vadd.f32 %v7600, %v7712
  %v7739 = vadd.f32 %v7601, %v7715
  %v7740 = vadd.f32 %v7602, %v7718
  %v7741 = vadd.f32 %v7603, %v7721
  %v7742 = vadd.f32 %v7604, %v7724
  %v7743 = vadd.f32 %v7605, %v7727
  %s7744 = scalar_lea.vmem %s3, 840
  %v7745 = vld [vmem:[%s7744] sm:$0xff]
  %v7746 = vld [vmem:[%s7744 + $0x8] sm:$0xff]
  %v7747 = vld [vmem:[%s7744 + $0x10] sm:$0xff]
  %v7748 = vld [vmem:[%s7744 + $0x18] sm:$0xff]
  %v7749 = vld [vmem:[%s7744 + $0x20] sm:$0xff]
  %v7750 = vld [vmem:[%s7744 + $0x28] sm:$0xff]
  %v7751 = vld [vmem:[%s7744 + $0x30] sm:$0xff]
  %v7752 = vld [vmem:[%s7744 + $0x38] sm:$0xff]
  %v7753 = vld [vmem:[%s7744 + $0x40] sm:$0xff]
  %v7754 = vld [vmem:[%s7744 + $0x48] sm:$0xff]
  %v7755 = vld [vmem:[%s7744 + $0x50] sm:$0xff]
  %v7756 = vld [vmem:[%s7744 + $0x58] sm:$0xff]
  %v7757 = vld [vmem:[%s7744 + $0x60] sm:$0xff]
  %v7758 = vld [vmem:[%s7744 + $0x68] sm:$0xff]
  %v7759 = vld [vmem:[%s7744 + $0x70] sm:$0xff]
  %v7761 = vsel %vm6839, %v7745, 0
  %v7764 = vsel %vm6839, %v7746, 0
  %v7767 = vsel %vm6839, %v7747, 0
  %v7770 = vsel %vm6839, %v7748, 0
  %v7773 = vsel %vm6839, %v7749, 0
  %v7776 = vsel %vm6839, %v7750, 0
  %v7779 = vsel %vm6839, %v7751, 0
  %v7782 = vsel %vm6839, %v7752, 0
  %v7785 = vsel %vm6839, %v7753, 0
  %v7788 = vsel %vm6839, %v7754, 0
  %v7791 = vsel %vm6839, %v7755, 0
  %v7794 = vsel %vm6839, %v7756, 0
  %v7797 = vsel %vm6839, %v7757, 0
  %v7800 = vsel %vm6839, %v7758, 0
  %v7803 = vsel %vm6839, %v7759, 0
  %7805 = vmatpush.msra.mxu0 0.0
  %7806 = vmatpush.msra.mxu0 0.0
  %7807 = vmatpush.msra.mxu0 0.0
  %7808 = vmatpush.msra.mxu0 0.0
  %7809 = vmatpush.msra.mxu0 0.0
  %7810 = vmatpush.msra.mxu0 0.0
  %7811 = vmatpush.msra.mxu0 0.0
  %7812 = vmatpush.msra.mxu0 0.0
  %7813 = vmatpush.msra.mxu0 0.0
  %7814 = vmatpush.msra.mxu0 0.0
  %7815 = vmatpush.msra.mxu0 0.0
  %7816 = vmatpush.msra.mxu0 0.0
  %7817 = vmatpush.msra.mxu0 0.0
  %7818 = vmatpush.msra.mxu0 0.0
  %7819 = vmatpush.msra.mxu0 %v6790
  %7820 = vmatpush.msra.mxu0 %v6765
  %7821 = vmatmul.f32.gmra.mxu0 %v7761
  %v7822 = vpop.f32.mrf.mxu0
  %v7823 = vadd.f32 0.0, %v7822
  %7824 = vmatmul.f32.gmra.mxu0 %v7764
  %v7825 = vpop.f32.mrf.mxu0
  %v7826 = vadd.f32 0.0, %v7825
  %7827 = vmatmul.f32.gmra.mxu0 %v7767
  %v7828 = vpop.f32.mrf.mxu0
  %v7829 = vadd.f32 0.0, %v7828
  %7830 = vmatmul.f32.gmra.mxu0 %v7770
  %v7831 = vpop.f32.mrf.mxu0
  %v7832 = vadd.f32 0.0, %v7831
  %7833 = vmatmul.f32.gmra.mxu0 %v7773
  %v7834 = vpop.f32.mrf.mxu0
  %v7835 = vadd.f32 0.0, %v7834
  %7836 = vmatmul.f32.gmra.mxu0 %v7776
  %v7837 = vpop.f32.mrf.mxu0
  %v7838 = vadd.f32 0.0, %v7837
  %7839 = vmatmul.f32.gmra.mxu0 %v7779
  %v7840 = vpop.f32.mrf.mxu0
  %v7841 = vadd.f32 0.0, %v7840
  %7842 = vmatmul.f32.gmra.mxu0 %v7782
  %v7843 = vpop.f32.mrf.mxu0
  %v7844 = vadd.f32 0.0, %v7843
  %7845 = vmatmul.f32.gmra.mxu0 %v7785
  %v7846 = vpop.f32.mrf.mxu0
  %v7847 = vadd.f32 0.0, %v7846
  %7848 = vmatmul.f32.gmra.mxu0 %v7788
  %v7849 = vpop.f32.mrf.mxu0
  %v7850 = vadd.f32 0.0, %v7849
  %7851 = vmatmul.f32.gmra.mxu0 %v7791
  %v7852 = vpop.f32.mrf.mxu0
  %v7853 = vadd.f32 0.0, %v7852
  %7854 = vmatmul.f32.gmra.mxu0 %v7794
  %v7855 = vpop.f32.mrf.mxu0
  %v7856 = vadd.f32 0.0, %v7855
  %7857 = vmatmul.f32.gmra.mxu0 %v7797
  %v7858 = vpop.f32.mrf.mxu0
  %v7859 = vadd.f32 0.0, %v7858
  %7860 = vmatmul.f32.gmra.mxu0 %v7800
  %v7861 = vpop.f32.mrf.mxu0
  %v7862 = vadd.f32 0.0, %v7861
  %7863 = vmatmul.f32.gmra.mxu0 %v7803
  %v7864 = vpop.f32.mrf.mxu0
  %v7865 = vadd.f32 0.0, %v7864
  %7866 = vdwg.mxu0
  %v7867 = vadd.f32 %v7729, %v7823
  %v7868 = vadd.f32 %v7730, %v7826
  %v7869 = vadd.f32 %v7731, %v7829
  %v7870 = vadd.f32 %v7732, %v7832
  %v7871 = vadd.f32 %v7733, %v7835
  %v7872 = vadd.f32 %v7734, %v7838
  %v7873 = vadd.f32 %v7735, %v7841
  %v7874 = vadd.f32 %v7736, %v7844
  %v7875 = vadd.f32 %v7737, %v7847
  %v7876 = vadd.f32 %v7738, %v7850
  %v7877 = vadd.f32 %v7739, %v7853
  %v7878 = vadd.f32 %v7740, %v7856
  %v7879 = vadd.f32 %v7741, %v7859
  %v7880 = vadd.f32 %v7742, %v7862
  %v7881 = vadd.f32 %v7743, %v7865
  %s7882 = scalar_lea.vmem %s3, 960
  %v7883 = vld [vmem:[%s7882] sm:$0xff]
  %v7884 = vld [vmem:[%s7882 + $0x8] sm:$0xff]
  %v7885 = vld [vmem:[%s7882 + $0x10] sm:$0xff]
  %v7886 = vld [vmem:[%s7882 + $0x18] sm:$0xff]
  %v7887 = vld [vmem:[%s7882 + $0x20] sm:$0xff]
  %v7888 = vld [vmem:[%s7882 + $0x28] sm:$0xff]
  %v7889 = vld [vmem:[%s7882 + $0x30] sm:$0xff]
  %v7890 = vld [vmem:[%s7882 + $0x38] sm:$0xff]
  %v7891 = vld [vmem:[%s7882 + $0x40] sm:$0xff]
  %v7892 = vld [vmem:[%s7882 + $0x48] sm:$0xff]
  %v7893 = vld [vmem:[%s7882 + $0x50] sm:$0xff]
  %v7894 = vld [vmem:[%s7882 + $0x58] sm:$0xff]
  %v7895 = vld [vmem:[%s7882 + $0x60] sm:$0xff]
  %v7896 = vld [vmem:[%s7882 + $0x68] sm:$0xff]
  %v7897 = vld [vmem:[%s7882 + $0x70] sm:$0xff]
  %v7899 = vsel %vm6839, %v7883, 0
  %v7902 = vsel %vm6839, %v7884, 0
  %v7905 = vsel %vm6839, %v7885, 0
  %v7908 = vsel %vm6839, %v7886, 0
  %v7911 = vsel %vm6839, %v7887, 0
  %v7914 = vsel %vm6839, %v7888, 0
  %v7917 = vsel %vm6839, %v7889, 0
  %v7920 = vsel %vm6839, %v7890, 0
  %v7923 = vsel %vm6839, %v7891, 0
  %v7926 = vsel %vm6839, %v7892, 0
  %v7929 = vsel %vm6839, %v7893, 0
  %v7932 = vsel %vm6839, %v7894, 0
  %v7935 = vsel %vm6839, %v7895, 0
  %v7938 = vsel %vm6839, %v7896, 0
  %v7941 = vsel %vm6839, %v7897, 0
  %7943 = vmatpush.msra.mxu0 0.0
  %7944 = vmatpush.msra.mxu0 0.0
  %7945 = vmatpush.msra.mxu0 0.0
  %7946 = vmatpush.msra.mxu0 0.0
  %7947 = vmatpush.msra.mxu0 0.0
  %7948 = vmatpush.msra.mxu0 0.0
  %7949 = vmatpush.msra.mxu0 0.0
  %7950 = vmatpush.msra.mxu0 0.0
  %7951 = vmatpush.msra.mxu0 0.0
  %7952 = vmatpush.msra.mxu0 0.0
  %7953 = vmatpush.msra.mxu0 0.0
  %7954 = vmatpush.msra.mxu0 0.0
  %7955 = vmatpush.msra.mxu0 0.0
  %7956 = vmatpush.msra.mxu0 0.0
  %7957 = vmatpush.msra.mxu0 %v6791
  %7958 = vmatpush.msra.mxu0 %v6766
  %7959 = vmatmul.f32.gmra.mxu0 %v7899
  %v7960 = vpop.f32.mrf.mxu0
  %v7961 = vadd.f32 0.0, %v7960
  %7962 = vmatmul.f32.gmra.mxu0 %v7902
  %v7963 = vpop.f32.mrf.mxu0
  %v7964 = vadd.f32 0.0, %v7963
  %7965 = vmatmul.f32.gmra.mxu0 %v7905
  %v7966 = vpop.f32.mrf.mxu0
  %v7967 = vadd.f32 0.0, %v7966
  %7968 = vmatmul.f32.gmra.mxu0 %v7908
  %v7969 = vpop.f32.mrf.mxu0
  %v7970 = vadd.f32 0.0, %v7969
  %7971 = vmatmul.f32.gmra.mxu0 %v7911
  %v7972 = vpop.f32.mrf.mxu0
  %v7973 = vadd.f32 0.0, %v7972
  %7974 = vmatmul.f32.gmra.mxu0 %v7914
  %v7975 = vpop.f32.mrf.mxu0
  %v7976 = vadd.f32 0.0, %v7975
  %7977 = vmatmul.f32.gmra.mxu0 %v7917
  %v7978 = vpop.f32.mrf.mxu0
  %v7979 = vadd.f32 0.0, %v7978
  %7980 = vmatmul.f32.gmra.mxu0 %v7920
  %v7981 = vpop.f32.mrf.mxu0
  %v7982 = vadd.f32 0.0, %v7981
  %7983 = vmatmul.f32.gmra.mxu0 %v7923
  %v7984 = vpop.f32.mrf.mxu0
  %v7985 = vadd.f32 0.0, %v7984
  %7986 = vmatmul.f32.gmra.mxu0 %v7926
  %v7987 = vpop.f32.mrf.mxu0
  %v7988 = vadd.f32 0.0, %v7987
  %7989 = vmatmul.f32.gmra.mxu0 %v7929
  %v7990 = vpop.f32.mrf.mxu0
  %v7991 = vadd.f32 0.0, %v7990
  %7992 = vmatmul.f32.gmra.mxu0 %v7932
  %v7993 = vpop.f32.mrf.mxu0
  %v7994 = vadd.f32 0.0, %v7993
  %7995 = vmatmul.f32.gmra.mxu0 %v7935
  %v7996 = vpop.f32.mrf.mxu0
  %v7997 = vadd.f32 0.0, %v7996
  %7998 = vmatmul.f32.gmra.mxu0 %v7938
  %v7999 = vpop.f32.mrf.mxu0
  %v8000 = vadd.f32 0.0, %v7999
  %8001 = vmatmul.f32.gmra.mxu0 %v7941
  %v8002 = vpop.f32.mrf.mxu0
  %v8003 = vadd.f32 0.0, %v8002
  %8004 = vdwg.mxu0
  %v8005 = vadd.f32 %v7867, %v7961
  %v8006 = vadd.f32 %v7868, %v7964
  %v8007 = vadd.f32 %v7869, %v7967
  %v8008 = vadd.f32 %v7870, %v7970
  %v8009 = vadd.f32 %v7871, %v7973
  %v8010 = vadd.f32 %v7872, %v7976
  %v8011 = vadd.f32 %v7873, %v7979
  %v8012 = vadd.f32 %v7874, %v7982
  %v8013 = vadd.f32 %v7875, %v7985
  %v8014 = vadd.f32 %v7876, %v7988
  %v8015 = vadd.f32 %v7877, %v7991
  %v8016 = vadd.f32 %v7878, %v7994
  %v8017 = vadd.f32 %v7879, %v7997
  %v8018 = vadd.f32 %v7880, %v8000
  %v8019 = vadd.f32 %v7881, %v8003
  %s8020 = scalar_lea.vmem %s3, 1080
  %v8021 = vld [vmem:[%s8020] sm:$0xff]
  %v8022 = vld [vmem:[%s8020 + $0x8] sm:$0xff]
  %v8023 = vld [vmem:[%s8020 + $0x10] sm:$0xff]
  %v8024 = vld [vmem:[%s8020 + $0x18] sm:$0xff]
  %v8025 = vld [vmem:[%s8020 + $0x20] sm:$0xff]
  %v8026 = vld [vmem:[%s8020 + $0x28] sm:$0xff]
  %v8027 = vld [vmem:[%s8020 + $0x30] sm:$0xff]
  %v8028 = vld [vmem:[%s8020 + $0x38] sm:$0xff]
  %v8029 = vld [vmem:[%s8020 + $0x40] sm:$0xff]
  %v8030 = vld [vmem:[%s8020 + $0x48] sm:$0xff]
  %v8031 = vld [vmem:[%s8020 + $0x50] sm:$0xff]
  %v8032 = vld [vmem:[%s8020 + $0x58] sm:$0xff]
  %v8033 = vld [vmem:[%s8020 + $0x60] sm:$0xff]
  %v8034 = vld [vmem:[%s8020 + $0x68] sm:$0xff]
  %v8035 = vld [vmem:[%s8020 + $0x70] sm:$0xff]
  %v8037 = vsel %vm6839, %v8021, 0
  %v8040 = vsel %vm6839, %v8022, 0
  %v8043 = vsel %vm6839, %v8023, 0
  %v8046 = vsel %vm6839, %v8024, 0
  %v8049 = vsel %vm6839, %v8025, 0
  %v8052 = vsel %vm6839, %v8026, 0
  %v8055 = vsel %vm6839, %v8027, 0
  %v8058 = vsel %vm6839, %v8028, 0
  %v8061 = vsel %vm6839, %v8029, 0
  %v8064 = vsel %vm6839, %v8030, 0
  %v8067 = vsel %vm6839, %v8031, 0
  %v8070 = vsel %vm6839, %v8032, 0
  %v8073 = vsel %vm6839, %v8033, 0
  %v8076 = vsel %vm6839, %v8034, 0
  %v8079 = vsel %vm6839, %v8035, 0
  %8081 = vmatpush.msra.mxu0 0.0
  %8082 = vmatpush.msra.mxu0 0.0
  %8083 = vmatpush.msra.mxu0 0.0
  %8084 = vmatpush.msra.mxu0 0.0
  %8085 = vmatpush.msra.mxu0 0.0
  %8086 = vmatpush.msra.mxu0 0.0
  %8087 = vmatpush.msra.mxu0 0.0
  %8088 = vmatpush.msra.mxu0 0.0
  %8089 = vmatpush.msra.mxu0 0.0
  %8090 = vmatpush.msra.mxu0 0.0
  %8091 = vmatpush.msra.mxu0 0.0
  %8092 = vmatpush.msra.mxu0 0.0
  %8093 = vmatpush.msra.mxu0 0.0
  %8094 = vmatpush.msra.mxu0 0.0
  %8095 = vmatpush.msra.mxu0 %v6792
  %8096 = vmatpush.msra.mxu0 %v6767
  %8097 = vmatmul.f32.gmra.mxu0 %v8037
  %v8098 = vpop.f32.mrf.mxu0
  %v8099 = vadd.f32 0.0, %v8098
  %8100 = vmatmul.f32.gmra.mxu0 %v8040
  %v8101 = vpop.f32.mrf.mxu0
  %v8102 = vadd.f32 0.0, %v8101
  %8103 = vmatmul.f32.gmra.mxu0 %v8043
  %v8104 = vpop.f32.mrf.mxu0
  %v8105 = vadd.f32 0.0, %v8104
  %8106 = vmatmul.f32.gmra.mxu0 %v8046
  %v8107 = vpop.f32.mrf.mxu0
  %v8108 = vadd.f32 0.0, %v8107
  %8109 = vmatmul.f32.gmra.mxu0 %v8049
  %v8110 = vpop.f32.mrf.mxu0
  %v8111 = vadd.f32 0.0, %v8110
  %8112 = vmatmul.f32.gmra.mxu0 %v8052
  %v8113 = vpop.f32.mrf.mxu0
  %v8114 = vadd.f32 0.0, %v8113
  %8115 = vmatmul.f32.gmra.mxu0 %v8055
  %v8116 = vpop.f32.mrf.mxu0
  %v8117 = vadd.f32 0.0, %v8116
  %8118 = vmatmul.f32.gmra.mxu0 %v8058
  %v8119 = vpop.f32.mrf.mxu0
  %v8120 = vadd.f32 0.0, %v8119
  %8121 = vmatmul.f32.gmra.mxu0 %v8061
  %v8122 = vpop.f32.mrf.mxu0
  %v8123 = vadd.f32 0.0, %v8122
  %8124 = vmatmul.f32.gmra.mxu0 %v8064
  %v8125 = vpop.f32.mrf.mxu0
  %v8126 = vadd.f32 0.0, %v8125
  %8127 = vmatmul.f32.gmra.mxu0 %v8067
  %v8128 = vpop.f32.mrf.mxu0
  %v8129 = vadd.f32 0.0, %v8128
  %8130 = vmatmul.f32.gmra.mxu0 %v8070
  %v8131 = vpop.f32.mrf.mxu0
  %v8132 = vadd.f32 0.0, %v8131
  %8133 = vmatmul.f32.gmra.mxu0 %v8073
  %v8134 = vpop.f32.mrf.mxu0
  %v8135 = vadd.f32 0.0, %v8134
  %8136 = vmatmul.f32.gmra.mxu0 %v8076
  %v8137 = vpop.f32.mrf.mxu0
  %v8138 = vadd.f32 0.0, %v8137
  %8139 = vmatmul.f32.gmra.mxu0 %v8079
  %v8140 = vpop.f32.mrf.mxu0
  %v8141 = vadd.f32 0.0, %v8140
  %8142 = vdwg.mxu0
  %v8143 = vadd.f32 %v8005, %v8099
  %v8144 = vadd.f32 %v8006, %v8102
  %v8145 = vadd.f32 %v8007, %v8105
  %v8146 = vadd.f32 %v8008, %v8108
  %v8147 = vadd.f32 %v8009, %v8111
  %v8148 = vadd.f32 %v8010, %v8114
  %v8149 = vadd.f32 %v8011, %v8117
  %v8150 = vadd.f32 %v8012, %v8120
  %v8151 = vadd.f32 %v8013, %v8123
  %v8152 = vadd.f32 %v8014, %v8126
  %v8153 = vadd.f32 %v8015, %v8129
  %v8154 = vadd.f32 %v8016, %v8132
  %v8155 = vadd.f32 %v8017, %v8135
  %v8156 = vadd.f32 %v8018, %v8138
  %v8157 = vadd.f32 %v8019, %v8141
  %s8158 = scalar_lea.vmem %s3, 1200
  %v8159 = vld [vmem:[%s8158] sm:$0xff]
  %v8160 = vld [vmem:[%s8158 + $0x8] sm:$0xff]
  %v8161 = vld [vmem:[%s8158 + $0x10] sm:$0xff]
  %v8162 = vld [vmem:[%s8158 + $0x18] sm:$0xff]
  %v8163 = vld [vmem:[%s8158 + $0x20] sm:$0xff]
  %v8164 = vld [vmem:[%s8158 + $0x28] sm:$0xff]
  %v8165 = vld [vmem:[%s8158 + $0x30] sm:$0xff]
  %v8166 = vld [vmem:[%s8158 + $0x38] sm:$0xff]
  %v8167 = vld [vmem:[%s8158 + $0x40] sm:$0xff]
  %v8168 = vld [vmem:[%s8158 + $0x48] sm:$0xff]
  %v8169 = vld [vmem:[%s8158 + $0x50] sm:$0xff]
  %v8170 = vld [vmem:[%s8158 + $0x58] sm:$0xff]
  %v8171 = vld [vmem:[%s8158 + $0x60] sm:$0xff]
  %v8172 = vld [vmem:[%s8158 + $0x68] sm:$0xff]
  %v8173 = vld [vmem:[%s8158 + $0x70] sm:$0xff]
  %v8175 = vsel %vm6839, %v8159, 0
  %v8178 = vsel %vm6839, %v8160, 0
  %v8181 = vsel %vm6839, %v8161, 0
  %v8184 = vsel %vm6839, %v8162, 0
  %v8187 = vsel %vm6839, %v8163, 0
  %v8190 = vsel %vm6839, %v8164, 0
  %v8193 = vsel %vm6839, %v8165, 0
  %v8196 = vsel %vm6839, %v8166, 0
  %v8199 = vsel %vm6839, %v8167, 0
  %v8202 = vsel %vm6839, %v8168, 0
  %v8205 = vsel %vm6839, %v8169, 0
  %v8208 = vsel %vm6839, %v8170, 0
  %v8211 = vsel %vm6839, %v8171, 0
  %v8214 = vsel %vm6839, %v8172, 0
  %v8217 = vsel %vm6839, %v8173, 0
  %8219 = vmatpush.msra.mxu0 0.0
  %8220 = vmatpush.msra.mxu0 0.0
  %8221 = vmatpush.msra.mxu0 0.0
  %8222 = vmatpush.msra.mxu0 0.0
  %8223 = vmatpush.msra.mxu0 0.0
  %8224 = vmatpush.msra.mxu0 0.0
  %8225 = vmatpush.msra.mxu0 0.0
  %8226 = vmatpush.msra.mxu0 0.0
  %8227 = vmatpush.msra.mxu0 0.0
  %8228 = vmatpush.msra.mxu0 0.0
  %8229 = vmatpush.msra.mxu0 0.0
  %8230 = vmatpush.msra.mxu0 0.0
  %8231 = vmatpush.msra.mxu0 0.0
  %8232 = vmatpush.msra.mxu0 0.0
  %8233 = vmatpush.msra.mxu0 %v6793
  %8234 = vmatpush.msra.mxu0 %v6768
  %8235 = vmatmul.f32.gmra.mxu0 %v8175
  %v8236 = vpop.f32.mrf.mxu0
  %v8237 = vadd.f32 0.0, %v8236
  %8238 = vmatmul.f32.gmra.mxu0 %v8178
  %v8239 = vpop.f32.mrf.mxu0
  %v8240 = vadd.f32 0.0, %v8239
  %8241 = vmatmul.f32.gmra.mxu0 %v8181
  %v8242 = vpop.f32.mrf.mxu0
  %v8243 = vadd.f32 0.0, %v8242
  %8244 = vmatmul.f32.gmra.mxu0 %v8184
  %v8245 = vpop.f32.mrf.mxu0
  %v8246 = vadd.f32 0.0, %v8245
  %8247 = vmatmul.f32.gmra.mxu0 %v8187
  %v8248 = vpop.f32.mrf.mxu0
  %v8249 = vadd.f32 0.0, %v8248
  %8250 = vmatmul.f32.gmra.mxu0 %v8190
  %v8251 = vpop.f32.mrf.mxu0
  %v8252 = vadd.f32 0.0, %v8251
  %8253 = vmatmul.f32.gmra.mxu0 %v8193
  %v8254 = vpop.f32.mrf.mxu0
  %v8255 = vadd.f32 0.0, %v8254
  %8256 = vmatmul.f32.gmra.mxu0 %v8196
  %v8257 = vpop.f32.mrf.mxu0
  %v8258 = vadd.f32 0.0, %v8257
  %8259 = vmatmul.f32.gmra.mxu0 %v8199
  %v8260 = vpop.f32.mrf.mxu0
  %v8261 = vadd.f32 0.0, %v8260
  %8262 = vmatmul.f32.gmra.mxu0 %v8202
  %v8263 = vpop.f32.mrf.mxu0
  %v8264 = vadd.f32 0.0, %v8263
  %8265 = vmatmul.f32.gmra.mxu0 %v8205
  %v8266 = vpop.f32.mrf.mxu0
  %v8267 = vadd.f32 0.0, %v8266
  %8268 = vmatmul.f32.gmra.mxu0 %v8208
  %v8269 = vpop.f32.mrf.mxu0
  %v8270 = vadd.f32 0.0, %v8269
  %8271 = vmatmul.f32.gmra.mxu0 %v8211
  %v8272 = vpop.f32.mrf.mxu0
  %v8273 = vadd.f32 0.0, %v8272
  %8274 = vmatmul.f32.gmra.mxu0 %v8214
  %v8275 = vpop.f32.mrf.mxu0
  %v8276 = vadd.f32 0.0, %v8275
  %8277 = vmatmul.f32.gmra.mxu0 %v8217
  %v8278 = vpop.f32.mrf.mxu0
  %v8279 = vadd.f32 0.0, %v8278
  %8280 = vdwg.mxu0
  %v8281 = vadd.f32 %v8143, %v8237
  %v8282 = vadd.f32 %v8144, %v8240
  %v8283 = vadd.f32 %v8145, %v8243
  %v8284 = vadd.f32 %v8146, %v8246
  %v8285 = vadd.f32 %v8147, %v8249
  %v8286 = vadd.f32 %v8148, %v8252
  %v8287 = vadd.f32 %v8149, %v8255
  %v8288 = vadd.f32 %v8150, %v8258
  %v8289 = vadd.f32 %v8151, %v8261
  %v8290 = vadd.f32 %v8152, %v8264
  %v8291 = vadd.f32 %v8153, %v8267
  %v8292 = vadd.f32 %v8154, %v8270
  %v8293 = vadd.f32 %v8155, %v8273
  %v8294 = vadd.f32 %v8156, %v8276
  %v8295 = vadd.f32 %v8157, %v8279
  %s8296 = scalar_lea.vmem %s3, 1320
  %v8297 = vld [vmem:[%s8296] sm:$0xff]
  %v8298 = vld [vmem:[%s8296 + $0x8] sm:$0xff]
  %v8299 = vld [vmem:[%s8296 + $0x10] sm:$0xff]
  %v8300 = vld [vmem:[%s8296 + $0x18] sm:$0xff]
  %v8301 = vld [vmem:[%s8296 + $0x20] sm:$0xff]
  %v8302 = vld [vmem:[%s8296 + $0x28] sm:$0xff]
  %v8303 = vld [vmem:[%s8296 + $0x30] sm:$0xff]
  %v8304 = vld [vmem:[%s8296 + $0x38] sm:$0xff]
  %v8305 = vld [vmem:[%s8296 + $0x40] sm:$0xff]
  %v8306 = vld [vmem:[%s8296 + $0x48] sm:$0xff]
  %v8307 = vld [vmem:[%s8296 + $0x50] sm:$0xff]
  %v8308 = vld [vmem:[%s8296 + $0x58] sm:$0xff]
  %v8309 = vld [vmem:[%s8296 + $0x60] sm:$0xff]
  %v8310 = vld [vmem:[%s8296 + $0x68] sm:$0xff]
  %v8311 = vld [vmem:[%s8296 + $0x70] sm:$0xff]
  %v8313 = vsel %vm6839, %v8297, 0
  %v8316 = vsel %vm6839, %v8298, 0
  %v8319 = vsel %vm6839, %v8299, 0
  %v8322 = vsel %vm6839, %v8300, 0
  %v8325 = vsel %vm6839, %v8301, 0
  %v8328 = vsel %vm6839, %v8302, 0
  %v8331 = vsel %vm6839, %v8303, 0
  %v8334 = vsel %vm6839, %v8304, 0
  %v8337 = vsel %vm6839, %v8305, 0
  %v8340 = vsel %vm6839, %v8306, 0
  %v8343 = vsel %vm6839, %v8307, 0
  %v8346 = vsel %vm6839, %v8308, 0
  %v8349 = vsel %vm6839, %v8309, 0
  %v8352 = vsel %vm6839, %v8310, 0
  %v8355 = vsel %vm6839, %v8311, 0
  %8357 = vmatpush.msra.mxu0 0.0
  %8358 = vmatpush.msra.mxu0 0.0
  %8359 = vmatpush.msra.mxu0 0.0
  %8360 = vmatpush.msra.mxu0 0.0
  %8361 = vmatpush.msra.mxu0 0.0
  %8362 = vmatpush.msra.mxu0 0.0
  %8363 = vmatpush.msra.mxu0 0.0
  %8364 = vmatpush.msra.mxu0 0.0
  %8365 = vmatpush.msra.mxu0 0.0
  %8366 = vmatpush.msra.mxu0 0.0
  %8367 = vmatpush.msra.mxu0 0.0
  %8368 = vmatpush.msra.mxu0 0.0
  %8369 = vmatpush.msra.mxu0 0.0
  %8370 = vmatpush.msra.mxu0 0.0
  %8371 = vmatpush.msra.mxu0 %v6794
  %8372 = vmatpush.msra.mxu0 %v6769
  %8373 = vmatmul.f32.gmra.mxu0 %v8313
  %v8374 = vpop.f32.mrf.mxu0
  %v8375 = vadd.f32 0.0, %v8374
  %8376 = vmatmul.f32.gmra.mxu0 %v8316
  %v8377 = vpop.f32.mrf.mxu0
  %v8378 = vadd.f32 0.0, %v8377
  %8379 = vmatmul.f32.gmra.mxu0 %v8319
  %v8380 = vpop.f32.mrf.mxu0
  %v8381 = vadd.f32 0.0, %v8380
  %8382 = vmatmul.f32.gmra.mxu0 %v8322
  %v8383 = vpop.f32.mrf.mxu0
  %v8384 = vadd.f32 0.0, %v8383
  %8385 = vmatmul.f32.gmra.mxu0 %v8325
  %v8386 = vpop.f32.mrf.mxu0
  %v8387 = vadd.f32 0.0, %v8386
  %8388 = vmatmul.f32.gmra.mxu0 %v8328
  %v8389 = vpop.f32.mrf.mxu0
  %v8390 = vadd.f32 0.0, %v8389
  %8391 = vmatmul.f32.gmra.mxu0 %v8331
  %v8392 = vpop.f32.mrf.mxu0
  %v8393 = vadd.f32 0.0, %v8392
  %8394 = vmatmul.f32.gmra.mxu0 %v8334
  %v8395 = vpop.f32.mrf.mxu0
  %v8396 = vadd.f32 0.0, %v8395
  %8397 = vmatmul.f32.gmra.mxu0 %v8337
  %v8398 = vpop.f32.mrf.mxu0
  %v8399 = vadd.f32 0.0, %v8398
  %8400 = vmatmul.f32.gmra.mxu0 %v8340
  %v8401 = vpop.f32.mrf.mxu0
  %v8402 = vadd.f32 0.0, %v8401
  %8403 = vmatmul.f32.gmra.mxu0 %v8343
  %v8404 = vpop.f32.mrf.mxu0
  %v8405 = vadd.f32 0.0, %v8404
  %8406 = vmatmul.f32.gmra.mxu0 %v8346
  %v8407 = vpop.f32.mrf.mxu0
  %v8408 = vadd.f32 0.0, %v8407
  %8409 = vmatmul.f32.gmra.mxu0 %v8349
  %v8410 = vpop.f32.mrf.mxu0
  %v8411 = vadd.f32 0.0, %v8410
  %8412 = vmatmul.f32.gmra.mxu0 %v8352
  %v8413 = vpop.f32.mrf.mxu0
  %v8414 = vadd.f32 0.0, %v8413
  %8415 = vmatmul.f32.gmra.mxu0 %v8355
  %v8416 = vpop.f32.mrf.mxu0
  %v8417 = vadd.f32 0.0, %v8416
  %8418 = vdwg.mxu0
  %v8419 = vadd.f32 %v8281, %v8375
  %v8420 = vadd.f32 %v8282, %v8378
  %v8421 = vadd.f32 %v8283, %v8381
  %v8422 = vadd.f32 %v8284, %v8384
  %v8423 = vadd.f32 %v8285, %v8387
  %v8424 = vadd.f32 %v8286, %v8390
  %v8425 = vadd.f32 %v8287, %v8393
  %v8426 = vadd.f32 %v8288, %v8396
  %v8427 = vadd.f32 %v8289, %v8399
  %v8428 = vadd.f32 %v8290, %v8402
  %v8429 = vadd.f32 %v8291, %v8405
  %v8430 = vadd.f32 %v8292, %v8408
  %v8431 = vadd.f32 %v8293, %v8411
  %v8432 = vadd.f32 %v8294, %v8414
  %v8433 = vadd.f32 %v8295, %v8417
  %s8434 = scalar_lea.vmem %s3, 1440
  %v8435 = vld [vmem:[%s8434] sm:$0xff]
  %v8436 = vld [vmem:[%s8434 + $0x8] sm:$0xff]
  %v8437 = vld [vmem:[%s8434 + $0x10] sm:$0xff]
  %v8438 = vld [vmem:[%s8434 + $0x18] sm:$0xff]
  %v8439 = vld [vmem:[%s8434 + $0x20] sm:$0xff]
  %v8440 = vld [vmem:[%s8434 + $0x28] sm:$0xff]
  %v8441 = vld [vmem:[%s8434 + $0x30] sm:$0xff]
  %v8442 = vld [vmem:[%s8434 + $0x38] sm:$0xff]
  %v8443 = vld [vmem:[%s8434 + $0x40] sm:$0xff]
  %v8444 = vld [vmem:[%s8434 + $0x48] sm:$0xff]
  %v8445 = vld [vmem:[%s8434 + $0x50] sm:$0xff]
  %v8446 = vld [vmem:[%s8434 + $0x58] sm:$0xff]
  %v8447 = vld [vmem:[%s8434 + $0x60] sm:$0xff]
  %v8448 = vld [vmem:[%s8434 + $0x68] sm:$0xff]
  %v8449 = vld [vmem:[%s8434 + $0x70] sm:$0xff]
  %v8451 = vsel %vm6839, %v8435, 0
  %v8454 = vsel %vm6839, %v8436, 0
  %v8457 = vsel %vm6839, %v8437, 0
  %v8460 = vsel %vm6839, %v8438, 0
  %v8463 = vsel %vm6839, %v8439, 0
  %v8466 = vsel %vm6839, %v8440, 0
  %v8469 = vsel %vm6839, %v8441, 0
  %v8472 = vsel %vm6839, %v8442, 0
  %v8475 = vsel %vm6839, %v8443, 0
  %v8478 = vsel %vm6839, %v8444, 0
  %v8481 = vsel %vm6839, %v8445, 0
  %v8484 = vsel %vm6839, %v8446, 0
  %v8487 = vsel %vm6839, %v8447, 0
  %v8490 = vsel %vm6839, %v8448, 0
  %v8493 = vsel %vm6839, %v8449, 0
  %8495 = vmatpush.msra.mxu0 0.0
  %8496 = vmatpush.msra.mxu0 0.0
  %8497 = vmatpush.msra.mxu0 0.0
  %8498 = vmatpush.msra.mxu0 0.0
  %8499 = vmatpush.msra.mxu0 0.0
  %8500 = vmatpush.msra.mxu0 0.0
  %8501 = vmatpush.msra.mxu0 0.0
  %8502 = vmatpush.msra.mxu0 0.0
  %8503 = vmatpush.msra.mxu0 0.0
  %8504 = vmatpush.msra.mxu0 0.0
  %8505 = vmatpush.msra.mxu0 0.0
  %8506 = vmatpush.msra.mxu0 0.0
  %8507 = vmatpush.msra.mxu0 0.0
  %8508 = vmatpush.msra.mxu0 0.0
  %8509 = vmatpush.msra.mxu0 %v6795
  %8510 = vmatpush.msra.mxu0 %v6770
  %8511 = vmatmul.f32.gmra.mxu0 %v8451
  %v8512 = vpop.f32.mrf.mxu0
  %v8513 = vadd.f32 0.0, %v8512
  %8514 = vmatmul.f32.gmra.mxu0 %v8454
  %v8515 = vpop.f32.mrf.mxu0
  %v8516 = vadd.f32 0.0, %v8515
  %8517 = vmatmul.f32.gmra.mxu0 %v8457
  %v8518 = vpop.f32.mrf.mxu0
  %v8519 = vadd.f32 0.0, %v8518
  %8520 = vmatmul.f32.gmra.mxu0 %v8460
  %v8521 = vpop.f32.mrf.mxu0
  %v8522 = vadd.f32 0.0, %v8521
  %8523 = vmatmul.f32.gmra.mxu0 %v8463
  %v8524 = vpop.f32.mrf.mxu0
  %v8525 = vadd.f32 0.0, %v8524
  %8526 = vmatmul.f32.gmra.mxu0 %v8466
  %v8527 = vpop.f32.mrf.mxu0
  %v8528 = vadd.f32 0.0, %v8527
  %8529 = vmatmul.f32.gmra.mxu0 %v8469
  %v8530 = vpop.f32.mrf.mxu0
  %v8531 = vadd.f32 0.0, %v8530
  %8532 = vmatmul.f32.gmra.mxu0 %v8472
  %v8533 = vpop.f32.mrf.mxu0
  %v8534 = vadd.f32 0.0, %v8533
  %8535 = vmatmul.f32.gmra.mxu0 %v8475
  %v8536 = vpop.f32.mrf.mxu0
  %v8537 = vadd.f32 0.0, %v8536
  %8538 = vmatmul.f32.gmra.mxu0 %v8478
  %v8539 = vpop.f32.mrf.mxu0
  %v8540 = vadd.f32 0.0, %v8539
  %8541 = vmatmul.f32.gmra.mxu0 %v8481
  %v8542 = vpop.f32.mrf.mxu0
  %v8543 = vadd.f32 0.0, %v8542
  %8544 = vmatmul.f32.gmra.mxu0 %v8484
  %v8545 = vpop.f32.mrf.mxu0
  %v8546 = vadd.f32 0.0, %v8545
  %8547 = vmatmul.f32.gmra.mxu0 %v8487
  %v8548 = vpop.f32.mrf.mxu0
  %v8549 = vadd.f32 0.0, %v8548
  %8550 = vmatmul.f32.gmra.mxu0 %v8490
  %v8551 = vpop.f32.mrf.mxu0
  %v8552 = vadd.f32 0.0, %v8551
  %8553 = vmatmul.f32.gmra.mxu0 %v8493
  %v8554 = vpop.f32.mrf.mxu0
  %v8555 = vadd.f32 0.0, %v8554
  %8556 = vdwg.mxu0
  %v8557 = vadd.f32 %v8419, %v8513
  %v8558 = vadd.f32 %v8420, %v8516
  %v8559 = vadd.f32 %v8421, %v8519
  %v8560 = vadd.f32 %v8422, %v8522
  %v8561 = vadd.f32 %v8423, %v8525
  %v8562 = vadd.f32 %v8424, %v8528
  %v8563 = vadd.f32 %v8425, %v8531
  %v8564 = vadd.f32 %v8426, %v8534
  %v8565 = vadd.f32 %v8427, %v8537
  %v8566 = vadd.f32 %v8428, %v8540
  %v8567 = vadd.f32 %v8429, %v8543
  %v8568 = vadd.f32 %v8430, %v8546
  %v8569 = vadd.f32 %v8431, %v8549
  %v8570 = vadd.f32 %v8432, %v8552
  %v8571 = vadd.f32 %v8433, %v8555
  %s8572 = scalar_lea.vmem %s3, 1560
  %v8573 = vld [vmem:[%s8572] sm:$0xff]
  %v8574 = vld [vmem:[%s8572 + $0x8] sm:$0xff]
  %v8575 = vld [vmem:[%s8572 + $0x10] sm:$0xff]
  %v8576 = vld [vmem:[%s8572 + $0x18] sm:$0xff]
  %v8577 = vld [vmem:[%s8572 + $0x20] sm:$0xff]
  %v8578 = vld [vmem:[%s8572 + $0x28] sm:$0xff]
  %v8579 = vld [vmem:[%s8572 + $0x30] sm:$0xff]
  %v8580 = vld [vmem:[%s8572 + $0x38] sm:$0xff]
  %v8581 = vld [vmem:[%s8572 + $0x40] sm:$0xff]
  %v8582 = vld [vmem:[%s8572 + $0x48] sm:$0xff]
  %v8583 = vld [vmem:[%s8572 + $0x50] sm:$0xff]
  %v8584 = vld [vmem:[%s8572 + $0x58] sm:$0xff]
  %v8585 = vld [vmem:[%s8572 + $0x60] sm:$0xff]
  %v8586 = vld [vmem:[%s8572 + $0x68] sm:$0xff]
  %v8587 = vld [vmem:[%s8572 + $0x70] sm:$0xff]
  %v8589 = vsel %vm6839, %v8573, 0
  %v8592 = vsel %vm6839, %v8574, 0
  %v8595 = vsel %vm6839, %v8575, 0
  %v8598 = vsel %vm6839, %v8576, 0
  %v8601 = vsel %vm6839, %v8577, 0
  %v8604 = vsel %vm6839, %v8578, 0
  %v8607 = vsel %vm6839, %v8579, 0
  %v8610 = vsel %vm6839, %v8580, 0
  %v8613 = vsel %vm6839, %v8581, 0
  %v8616 = vsel %vm6839, %v8582, 0
  %v8619 = vsel %vm6839, %v8583, 0
  %v8622 = vsel %vm6839, %v8584, 0
  %v8625 = vsel %vm6839, %v8585, 0
  %v8628 = vsel %vm6839, %v8586, 0
  %v8631 = vsel %vm6839, %v8587, 0
  %8633 = vmatpush.msra.mxu0 0.0
  %8634 = vmatpush.msra.mxu0 0.0
  %8635 = vmatpush.msra.mxu0 0.0
  %8636 = vmatpush.msra.mxu0 0.0
  %8637 = vmatpush.msra.mxu0 0.0
  %8638 = vmatpush.msra.mxu0 0.0
  %8639 = vmatpush.msra.mxu0 0.0
  %8640 = vmatpush.msra.mxu0 0.0
  %8641 = vmatpush.msra.mxu0 0.0
  %8642 = vmatpush.msra.mxu0 0.0
  %8643 = vmatpush.msra.mxu0 0.0
  %8644 = vmatpush.msra.mxu0 0.0
  %8645 = vmatpush.msra.mxu0 0.0
  %8646 = vmatpush.msra.mxu0 0.0
  %8647 = vmatpush.msra.mxu0 %v6796
  %8648 = vmatpush.msra.mxu0 %v6771
  %8649 = vmatmul.f32.gmra.mxu0 %v8589
  %v8650 = vpop.f32.mrf.mxu0
  %v8651 = vadd.f32 0.0, %v8650
  %8652 = vmatmul.f32.gmra.mxu0 %v8592
  %v8653 = vpop.f32.mrf.mxu0
  %v8654 = vadd.f32 0.0, %v8653
  %8655 = vmatmul.f32.gmra.mxu0 %v8595
  %v8656 = vpop.f32.mrf.mxu0
  %v8657 = vadd.f32 0.0, %v8656
  %8658 = vmatmul.f32.gmra.mxu0 %v8598
  %v8659 = vpop.f32.mrf.mxu0
  %v8660 = vadd.f32 0.0, %v8659
  %8661 = vmatmul.f32.gmra.mxu0 %v8601
  %v8662 = vpop.f32.mrf.mxu0
  %v8663 = vadd.f32 0.0, %v8662
  %8664 = vmatmul.f32.gmra.mxu0 %v8604
  %v8665 = vpop.f32.mrf.mxu0
  %v8666 = vadd.f32 0.0, %v8665
  %8667 = vmatmul.f32.gmra.mxu0 %v8607
  %v8668 = vpop.f32.mrf.mxu0
  %v8669 = vadd.f32 0.0, %v8668
  %8670 = vmatmul.f32.gmra.mxu0 %v8610
  %v8671 = vpop.f32.mrf.mxu0
  %v8672 = vadd.f32 0.0, %v8671
  %8673 = vmatmul.f32.gmra.mxu0 %v8613
  %v8674 = vpop.f32.mrf.mxu0
  %v8675 = vadd.f32 0.0, %v8674
  %8676 = vmatmul.f32.gmra.mxu0 %v8616
  %v8677 = vpop.f32.mrf.mxu0
  %v8678 = vadd.f32 0.0, %v8677
  %8679 = vmatmul.f32.gmra.mxu0 %v8619
  %v8680 = vpop.f32.mrf.mxu0
  %v8681 = vadd.f32 0.0, %v8680
  %8682 = vmatmul.f32.gmra.mxu0 %v8622
  %v8683 = vpop.f32.mrf.mxu0
  %v8684 = vadd.f32 0.0, %v8683
  %8685 = vmatmul.f32.gmra.mxu0 %v8625
  %v8686 = vpop.f32.mrf.mxu0
  %v8687 = vadd.f32 0.0, %v8686
  %8688 = vmatmul.f32.gmra.mxu0 %v8628
  %v8689 = vpop.f32.mrf.mxu0
  %v8690 = vadd.f32 0.0, %v8689
  %8691 = vmatmul.f32.gmra.mxu0 %v8631
  %v8692 = vpop.f32.mrf.mxu0
  %v8693 = vadd.f32 0.0, %v8692
  %8694 = vdwg.mxu0
  %v8695 = vadd.f32 %v8557, %v8651
  %v8696 = vadd.f32 %v8558, %v8654
  %v8697 = vadd.f32 %v8559, %v8657
  %v8698 = vadd.f32 %v8560, %v8660
  %v8699 = vadd.f32 %v8561, %v8663
  %v8700 = vadd.f32 %v8562, %v8666
  %v8701 = vadd.f32 %v8563, %v8669
  %v8702 = vadd.f32 %v8564, %v8672
  %v8703 = vadd.f32 %v8565, %v8675
  %v8704 = vadd.f32 %v8566, %v8678
  %v8705 = vadd.f32 %v8567, %v8681
  %v8706 = vadd.f32 %v8568, %v8684
  %v8707 = vadd.f32 %v8569, %v8687
  %v8708 = vadd.f32 %v8570, %v8690
  %v8709 = vadd.f32 %v8571, %v8693
  %s8710 = scalar_lea.vmem %s3, 1680
  %v8711 = vld [vmem:[%s8710] sm:$0xff]
  %v8712 = vld [vmem:[%s8710 + $0x8] sm:$0xff]
  %v8713 = vld [vmem:[%s8710 + $0x10] sm:$0xff]
  %v8714 = vld [vmem:[%s8710 + $0x18] sm:$0xff]
  %v8715 = vld [vmem:[%s8710 + $0x20] sm:$0xff]
  %v8716 = vld [vmem:[%s8710 + $0x28] sm:$0xff]
  %v8717 = vld [vmem:[%s8710 + $0x30] sm:$0xff]
  %v8718 = vld [vmem:[%s8710 + $0x38] sm:$0xff]
  %v8719 = vld [vmem:[%s8710 + $0x40] sm:$0xff]
  %v8720 = vld [vmem:[%s8710 + $0x48] sm:$0xff]
  %v8721 = vld [vmem:[%s8710 + $0x50] sm:$0xff]
  %v8722 = vld [vmem:[%s8710 + $0x58] sm:$0xff]
  %v8723 = vld [vmem:[%s8710 + $0x60] sm:$0xff]
  %v8724 = vld [vmem:[%s8710 + $0x68] sm:$0xff]
  %v8725 = vld [vmem:[%s8710 + $0x70] sm:$0xff]
  %v8727 = vsel %vm6839, %v8711, 0
  %v8730 = vsel %vm6839, %v8712, 0
  %v8733 = vsel %vm6839, %v8713, 0
  %v8736 = vsel %vm6839, %v8714, 0
  %v8739 = vsel %vm6839, %v8715, 0
  %v8742 = vsel %vm6839, %v8716, 0
  %v8745 = vsel %vm6839, %v8717, 0
  %v8748 = vsel %vm6839, %v8718, 0
  %v8751 = vsel %vm6839, %v8719, 0
  %v8754 = vsel %vm6839, %v8720, 0
  %v8757 = vsel %vm6839, %v8721, 0
  %v8760 = vsel %vm6839, %v8722, 0
  %v8763 = vsel %vm6839, %v8723, 0
  %v8766 = vsel %vm6839, %v8724, 0
  %v8769 = vsel %vm6839, %v8725, 0
  %8771 = vmatpush.msra.mxu0 0.0
  %8772 = vmatpush.msra.mxu0 0.0
  %8773 = vmatpush.msra.mxu0 0.0
  %8774 = vmatpush.msra.mxu0 0.0
  %8775 = vmatpush.msra.mxu0 0.0
  %8776 = vmatpush.msra.mxu0 0.0
  %8777 = vmatpush.msra.mxu0 0.0
  %8778 = vmatpush.msra.mxu0 0.0
  %8779 = vmatpush.msra.mxu0 0.0
  %8780 = vmatpush.msra.mxu0 0.0
  %8781 = vmatpush.msra.mxu0 0.0
  %8782 = vmatpush.msra.mxu0 0.0
  %8783 = vmatpush.msra.mxu0 0.0
  %8784 = vmatpush.msra.mxu0 0.0
  %8785 = vmatpush.msra.mxu0 %v6797
  %8786 = vmatpush.msra.mxu0 %v6772
  %8787 = vmatmul.f32.gmra.mxu0 %v8727
  %v8788 = vpop.f32.mrf.mxu0
  %v8789 = vadd.f32 0.0, %v8788
  %8790 = vmatmul.f32.gmra.mxu0 %v8730
  %v8791 = vpop.f32.mrf.mxu0
  %v8792 = vadd.f32 0.0, %v8791
  %8793 = vmatmul.f32.gmra.mxu0 %v8733
  %v8794 = vpop.f32.mrf.mxu0
  %v8795 = vadd.f32 0.0, %v8794
  %8796 = vmatmul.f32.gmra.mxu0 %v8736
  %v8797 = vpop.f32.mrf.mxu0
  %v8798 = vadd.f32 0.0, %v8797
  %8799 = vmatmul.f32.gmra.mxu0 %v8739
  %v8800 = vpop.f32.mrf.mxu0
  %v8801 = vadd.f32 0.0, %v8800
  %8802 = vmatmul.f32.gmra.mxu0 %v8742
  %v8803 = vpop.f32.mrf.mxu0
  %v8804 = vadd.f32 0.0, %v8803
  %8805 = vmatmul.f32.gmra.mxu0 %v8745
  %v8806 = vpop.f32.mrf.mxu0
  %v8807 = vadd.f32 0.0, %v8806
  %8808 = vmatmul.f32.gmra.mxu0 %v8748
  %v8809 = vpop.f32.mrf.mxu0
  %v8810 = vadd.f32 0.0, %v8809
  %8811 = vmatmul.f32.gmra.mxu0 %v8751
  %v8812 = vpop.f32.mrf.mxu0
  %v8813 = vadd.f32 0.0, %v8812
  %8814 = vmatmul.f32.gmra.mxu0 %v8754
  %v8815 = vpop.f32.mrf.mxu0
  %v8816 = vadd.f32 0.0, %v8815
  %8817 = vmatmul.f32.gmra.mxu0 %v8757
  %v8818 = vpop.f32.mrf.mxu0
  %v8819 = vadd.f32 0.0, %v8818
  %8820 = vmatmul.f32.gmra.mxu0 %v8760
  %v8821 = vpop.f32.mrf.mxu0
  %v8822 = vadd.f32 0.0, %v8821
  %8823 = vmatmul.f32.gmra.mxu0 %v8763
  %v8824 = vpop.f32.mrf.mxu0
  %v8825 = vadd.f32 0.0, %v8824
  %8826 = vmatmul.f32.gmra.mxu0 %v8766
  %v8827 = vpop.f32.mrf.mxu0
  %v8828 = vadd.f32 0.0, %v8827
  %8829 = vmatmul.f32.gmra.mxu0 %v8769
  %v8830 = vpop.f32.mrf.mxu0
  %v8831 = vadd.f32 0.0, %v8830
  %8832 = vdwg.mxu0
  %v8833 = vadd.f32 %v8695, %v8789
  %v8834 = vadd.f32 %v8696, %v8792
  %v8835 = vadd.f32 %v8697, %v8795
  %v8836 = vadd.f32 %v8698, %v8798
  %v8837 = vadd.f32 %v8699, %v8801
  %v8838 = vadd.f32 %v8700, %v8804
  %v8839 = vadd.f32 %v8701, %v8807
  %v8840 = vadd.f32 %v8702, %v8810
  %v8841 = vadd.f32 %v8703, %v8813
  %v8842 = vadd.f32 %v8704, %v8816
  %v8843 = vadd.f32 %v8705, %v8819
  %v8844 = vadd.f32 %v8706, %v8822
  %v8845 = vadd.f32 %v8707, %v8825
  %v8846 = vadd.f32 %v8708, %v8828
  %v8847 = vadd.f32 %v8709, %v8831
  %s8848 = scalar_lea.vmem %s3, 1800
  %v8849 = vld [vmem:[%s8848] sm:$0xff]
  %v8850 = vld [vmem:[%s8848 + $0x8] sm:$0xff]
  %v8851 = vld [vmem:[%s8848 + $0x10] sm:$0xff]
  %v8852 = vld [vmem:[%s8848 + $0x18] sm:$0xff]
  %v8853 = vld [vmem:[%s8848 + $0x20] sm:$0xff]
  %v8854 = vld [vmem:[%s8848 + $0x28] sm:$0xff]
  %v8855 = vld [vmem:[%s8848 + $0x30] sm:$0xff]
  %v8856 = vld [vmem:[%s8848 + $0x38] sm:$0xff]
  %v8857 = vld [vmem:[%s8848 + $0x40] sm:$0xff]
  %v8858 = vld [vmem:[%s8848 + $0x48] sm:$0xff]
  %v8859 = vld [vmem:[%s8848 + $0x50] sm:$0xff]
  %v8860 = vld [vmem:[%s8848 + $0x58] sm:$0xff]
  %v8861 = vld [vmem:[%s8848 + $0x60] sm:$0xff]
  %v8862 = vld [vmem:[%s8848 + $0x68] sm:$0xff]
  %v8863 = vld [vmem:[%s8848 + $0x70] sm:$0xff]
  %v8865 = vsel %vm6839, %v8849, 0
  %v8868 = vsel %vm6839, %v8850, 0
  %v8871 = vsel %vm6839, %v8851, 0
  %v8874 = vsel %vm6839, %v8852, 0
  %v8877 = vsel %vm6839, %v8853, 0
  %v8880 = vsel %vm6839, %v8854, 0
  %v8883 = vsel %vm6839, %v8855, 0
  %v8886 = vsel %vm6839, %v8856, 0
  %v8889 = vsel %vm6839, %v8857, 0
  %v8892 = vsel %vm6839, %v8858, 0
  %v8895 = vsel %vm6839, %v8859, 0
  %v8898 = vsel %vm6839, %v8860, 0
  %v8901 = vsel %vm6839, %v8861, 0
  %v8904 = vsel %vm6839, %v8862, 0
  %v8907 = vsel %vm6839, %v8863, 0
  %8909 = vmatpush.msra.mxu0 0.0
  %8910 = vmatpush.msra.mxu0 0.0
  %8911 = vmatpush.msra.mxu0 0.0
  %8912 = vmatpush.msra.mxu0 0.0
  %8913 = vmatpush.msra.mxu0 0.0
  %8914 = vmatpush.msra.mxu0 0.0
  %8915 = vmatpush.msra.mxu0 0.0
  %8916 = vmatpush.msra.mxu0 0.0
  %8917 = vmatpush.msra.mxu0 0.0
  %8918 = vmatpush.msra.mxu0 0.0
  %8919 = vmatpush.msra.mxu0 0.0
  %8920 = vmatpush.msra.mxu0 0.0
  %8921 = vmatpush.msra.mxu0 0.0
  %8922 = vmatpush.msra.mxu0 0.0
  %8923 = vmatpush.msra.mxu0 %v6798
  %8924 = vmatpush.msra.mxu0 %v6773
  %8925 = vmatmul.f32.gmra.mxu0 %v8865
  %v8926 = vpop.f32.mrf.mxu0
  %v8927 = vadd.f32 0.0, %v8926
  %8928 = vmatmul.f32.gmra.mxu0 %v8868
  %v8929 = vpop.f32.mrf.mxu0
  %v8930 = vadd.f32 0.0, %v8929
  %8931 = vmatmul.f32.gmra.mxu0 %v8871
  %v8932 = vpop.f32.mrf.mxu0
  %v8933 = vadd.f32 0.0, %v8932
  %8934 = vmatmul.f32.gmra.mxu0 %v8874
  %v8935 = vpop.f32.mrf.mxu0
  %v8936 = vadd.f32 0.0, %v8935
  %8937 = vmatmul.f32.gmra.mxu0 %v8877
  %v8938 = vpop.f32.mrf.mxu0
  %v8939 = vadd.f32 0.0, %v8938
  %8940 = vmatmul.f32.gmra.mxu0 %v8880
  %v8941 = vpop.f32.mrf.mxu0
  %v8942 = vadd.f32 0.0, %v8941
  %8943 = vmatmul.f32.gmra.mxu0 %v8883
  %v8944 = vpop.f32.mrf.mxu0
  %v8945 = vadd.f32 0.0, %v8944
  %8946 = vmatmul.f32.gmra.mxu0 %v8886
  %v8947 = vpop.f32.mrf.mxu0
  %v8948 = vadd.f32 0.0, %v8947
  %8949 = vmatmul.f32.gmra.mxu0 %v8889
  %v8950 = vpop.f32.mrf.mxu0
  %v8951 = vadd.f32 0.0, %v8950
  %8952 = vmatmul.f32.gmra.mxu0 %v8892
  %v8953 = vpop.f32.mrf.mxu0
  %v8954 = vadd.f32 0.0, %v8953
  %8955 = vmatmul.f32.gmra.mxu0 %v8895
  %v8956 = vpop.f32.mrf.mxu0
  %v8957 = vadd.f32 0.0, %v8956
  %8958 = vmatmul.f32.gmra.mxu0 %v8898
  %v8959 = vpop.f32.mrf.mxu0
  %v8960 = vadd.f32 0.0, %v8959
  %8961 = vmatmul.f32.gmra.mxu0 %v8901
  %v8962 = vpop.f32.mrf.mxu0
  %v8963 = vadd.f32 0.0, %v8962
  %8964 = vmatmul.f32.gmra.mxu0 %v8904
  %v8965 = vpop.f32.mrf.mxu0
  %v8966 = vadd.f32 0.0, %v8965
  %8967 = vmatmul.f32.gmra.mxu0 %v8907
  %v8968 = vpop.f32.mrf.mxu0
  %v8969 = vadd.f32 0.0, %v8968
  %8970 = vdwg.mxu0
  %v8971 = vadd.f32 %v8833, %v8927
  %v8972 = vadd.f32 %v8834, %v8930
  %v8973 = vadd.f32 %v8835, %v8933
  %v8974 = vadd.f32 %v8836, %v8936
  %v8975 = vadd.f32 %v8837, %v8939
  %v8976 = vadd.f32 %v8838, %v8942
  %v8977 = vadd.f32 %v8839, %v8945
  %v8978 = vadd.f32 %v8840, %v8948
  %v8979 = vadd.f32 %v8841, %v8951
  %v8980 = vadd.f32 %v8842, %v8954
  %v8981 = vadd.f32 %v8843, %v8957
  %v8982 = vadd.f32 %v8844, %v8960
  %v8983 = vadd.f32 %v8845, %v8963
  %v8984 = vadd.f32 %v8846, %v8966
  %v8985 = vadd.f32 %v8847, %v8969
  %s8986 = scalar_lea.vmem %s3, 1920
  %v8987 = vld [vmem:[%s8986] sm:$0xff]
  %v8988 = vld [vmem:[%s8986 + $0x8] sm:$0xff]
  %v8989 = vld [vmem:[%s8986 + $0x10] sm:$0xff]
  %v8990 = vld [vmem:[%s8986 + $0x18] sm:$0xff]
  %v8991 = vld [vmem:[%s8986 + $0x20] sm:$0xff]
  %v8992 = vld [vmem:[%s8986 + $0x28] sm:$0xff]
  %v8993 = vld [vmem:[%s8986 + $0x30] sm:$0xff]
  %v8994 = vld [vmem:[%s8986 + $0x38] sm:$0xff]
  %v8995 = vld [vmem:[%s8986 + $0x40] sm:$0xff]
  %v8996 = vld [vmem:[%s8986 + $0x48] sm:$0xff]
  %v8997 = vld [vmem:[%s8986 + $0x50] sm:$0xff]
  %v8998 = vld [vmem:[%s8986 + $0x58] sm:$0xff]
  %v8999 = vld [vmem:[%s8986 + $0x60] sm:$0xff]
  %v9000 = vld [vmem:[%s8986 + $0x68] sm:$0xff]
  %v9001 = vld [vmem:[%s8986 + $0x70] sm:$0xff]
  %v9003 = vsel %vm6839, %v8987, 0
  %v9006 = vsel %vm6839, %v8988, 0
  %v9009 = vsel %vm6839, %v8989, 0
  %v9012 = vsel %vm6839, %v8990, 0
  %v9015 = vsel %vm6839, %v8991, 0
  %v9018 = vsel %vm6839, %v8992, 0
  %v9021 = vsel %vm6839, %v8993, 0
  %v9024 = vsel %vm6839, %v8994, 0
  %v9027 = vsel %vm6839, %v8995, 0
  %v9030 = vsel %vm6839, %v8996, 0
  %v9033 = vsel %vm6839, %v8997, 0
  %v9036 = vsel %vm6839, %v8998, 0
  %v9039 = vsel %vm6839, %v8999, 0
  %v9042 = vsel %vm6839, %v9000, 0
  %v9045 = vsel %vm6839, %v9001, 0
  %9047 = vmatpush.msra.mxu0 0.0
  %9048 = vmatpush.msra.mxu0 0.0
  %9049 = vmatpush.msra.mxu0 0.0
  %9050 = vmatpush.msra.mxu0 0.0
  %9051 = vmatpush.msra.mxu0 0.0
  %9052 = vmatpush.msra.mxu0 0.0
  %9053 = vmatpush.msra.mxu0 0.0
  %9054 = vmatpush.msra.mxu0 0.0
  %9055 = vmatpush.msra.mxu0 0.0
  %9056 = vmatpush.msra.mxu0 0.0
  %9057 = vmatpush.msra.mxu0 0.0
  %9058 = vmatpush.msra.mxu0 0.0
  %9059 = vmatpush.msra.mxu0 0.0
  %9060 = vmatpush.msra.mxu0 0.0
  %9061 = vmatpush.msra.mxu0 %v6799
  %9062 = vmatpush.msra.mxu0 %v6774
  %9063 = vmatmul.f32.gmra.mxu0 %v9003
  %v9064 = vpop.f32.mrf.mxu0
  %v9065 = vadd.f32 0.0, %v9064
  %9066 = vmatmul.f32.gmra.mxu0 %v9006
  %v9067 = vpop.f32.mrf.mxu0
  %v9068 = vadd.f32 0.0, %v9067
  %9069 = vmatmul.f32.gmra.mxu0 %v9009
  %v9070 = vpop.f32.mrf.mxu0
  %v9071 = vadd.f32 0.0, %v9070
  %9072 = vmatmul.f32.gmra.mxu0 %v9012
  %v9073 = vpop.f32.mrf.mxu0
  %v9074 = vadd.f32 0.0, %v9073
  %9075 = vmatmul.f32.gmra.mxu0 %v9015
  %v9076 = vpop.f32.mrf.mxu0
  %v9077 = vadd.f32 0.0, %v9076
  %9078 = vmatmul.f32.gmra.mxu0 %v9018
  %v9079 = vpop.f32.mrf.mxu0
  %v9080 = vadd.f32 0.0, %v9079
  %9081 = vmatmul.f32.gmra.mxu0 %v9021
  %v9082 = vpop.f32.mrf.mxu0
  %v9083 = vadd.f32 0.0, %v9082
  %9084 = vmatmul.f32.gmra.mxu0 %v9024
  %v9085 = vpop.f32.mrf.mxu0
  %v9086 = vadd.f32 0.0, %v9085
  %9087 = vmatmul.f32.gmra.mxu0 %v9027
  %v9088 = vpop.f32.mrf.mxu0
  %v9089 = vadd.f32 0.0, %v9088
  %9090 = vmatmul.f32.gmra.mxu0 %v9030
  %v9091 = vpop.f32.mrf.mxu0
  %v9092 = vadd.f32 0.0, %v9091
  %9093 = vmatmul.f32.gmra.mxu0 %v9033
  %v9094 = vpop.f32.mrf.mxu0
  %v9095 = vadd.f32 0.0, %v9094
  %9096 = vmatmul.f32.gmra.mxu0 %v9036
  %v9097 = vpop.f32.mrf.mxu0
  %v9098 = vadd.f32 0.0, %v9097
  %9099 = vmatmul.f32.gmra.mxu0 %v9039
  %v9100 = vpop.f32.mrf.mxu0
  %v9101 = vadd.f32 0.0, %v9100
  %9102 = vmatmul.f32.gmra.mxu0 %v9042
  %v9103 = vpop.f32.mrf.mxu0
  %v9104 = vadd.f32 0.0, %v9103
  %9105 = vmatmul.f32.gmra.mxu0 %v9045
  %v9106 = vpop.f32.mrf.mxu0
  %v9107 = vadd.f32 0.0, %v9106
  %9108 = vdwg.mxu0
  %v9109 = vadd.f32 %v8971, %v9065
  %v9110 = vadd.f32 %v8972, %v9068
  %v9111 = vadd.f32 %v8973, %v9071
  %v9112 = vadd.f32 %v8974, %v9074
  %v9113 = vadd.f32 %v8975, %v9077
  %v9114 = vadd.f32 %v8976, %v9080
  %v9115 = vadd.f32 %v8977, %v9083
  %v9116 = vadd.f32 %v8978, %v9086
  %v9117 = vadd.f32 %v8979, %v9089
  %v9118 = vadd.f32 %v8980, %v9092
  %v9119 = vadd.f32 %v8981, %v9095
  %v9120 = vadd.f32 %v8982, %v9098
  %v9121 = vadd.f32 %v8983, %v9101
  %v9122 = vadd.f32 %v8984, %v9104
  %v9123 = vadd.f32 %v8985, %v9107
  %s9124 = scalar_lea.vmem %s3, 2040
  %v9125 = vld [vmem:[%s9124] sm:$0xff]
  %v9126 = vld [vmem:[%s9124 + $0x8] sm:$0xff]
  %v9127 = vld [vmem:[%s9124 + $0x10] sm:$0xff]
  %v9128 = vld [vmem:[%s9124 + $0x18] sm:$0xff]
  %v9129 = vld [vmem:[%s9124 + $0x20] sm:$0xff]
  %v9130 = vld [vmem:[%s9124 + $0x28] sm:$0xff]
  %v9131 = vld [vmem:[%s9124 + $0x30] sm:$0xff]
  %v9132 = vld [vmem:[%s9124 + $0x38] sm:$0xff]
  %v9133 = vld [vmem:[%s9124 + $0x40] sm:$0xff]
  %v9134 = vld [vmem:[%s9124 + $0x48] sm:$0xff]
  %v9135 = vld [vmem:[%s9124 + $0x50] sm:$0xff]
  %v9136 = vld [vmem:[%s9124 + $0x58] sm:$0xff]
  %v9137 = vld [vmem:[%s9124 + $0x60] sm:$0xff]
  %v9138 = vld [vmem:[%s9124 + $0x68] sm:$0xff]
  %v9139 = vld [vmem:[%s9124 + $0x70] sm:$0xff]
  %v9141 = vsel %vm6839, %v9125, 0
  %v9144 = vsel %vm6839, %v9126, 0
  %v9147 = vsel %vm6839, %v9127, 0
  %v9150 = vsel %vm6839, %v9128, 0
  %v9153 = vsel %vm6839, %v9129, 0
  %v9156 = vsel %vm6839, %v9130, 0
  %v9159 = vsel %vm6839, %v9131, 0
  %v9162 = vsel %vm6839, %v9132, 0
  %v9165 = vsel %vm6839, %v9133, 0
  %v9168 = vsel %vm6839, %v9134, 0
  %v9171 = vsel %vm6839, %v9135, 0
  %v9174 = vsel %vm6839, %v9136, 0
  %v9177 = vsel %vm6839, %v9137, 0
  %v9180 = vsel %vm6839, %v9138, 0
  %v9183 = vsel %vm6839, %v9139, 0
  %9185 = vmatpush.msra.mxu0 0.0
  %9186 = vmatpush.msra.mxu0 0.0
  %9187 = vmatpush.msra.mxu0 0.0
  %9188 = vmatpush.msra.mxu0 0.0
  %9189 = vmatpush.msra.mxu0 0.0
  %9190 = vmatpush.msra.mxu0 0.0
  %9191 = vmatpush.msra.mxu0 0.0
  %9192 = vmatpush.msra.mxu0 0.0
  %9193 = vmatpush.msra.mxu0 0.0
  %9194 = vmatpush.msra.mxu0 0.0
  %9195 = vmatpush.msra.mxu0 0.0
  %9196 = vmatpush.msra.mxu0 0.0
  %9197 = vmatpush.msra.mxu0 0.0
  %9198 = vmatpush.msra.mxu0 0.0
  %9199 = vmatpush.msra.mxu0 %v6800
  %9200 = vmatpush.msra.mxu0 %v6775
  %9201 = vmatmul.f32.gmra.mxu0 %v9141
  %v9202 = vpop.f32.mrf.mxu0
  %v9203 = vadd.f32 0.0, %v9202
  %9204 = vmatmul.f32.gmra.mxu0 %v9144
  %v9205 = vpop.f32.mrf.mxu0
  %v9206 = vadd.f32 0.0, %v9205
  %9207 = vmatmul.f32.gmra.mxu0 %v9147
  %v9208 = vpop.f32.mrf.mxu0
  %v9209 = vadd.f32 0.0, %v9208
  %9210 = vmatmul.f32.gmra.mxu0 %v9150
  %v9211 = vpop.f32.mrf.mxu0
  %v9212 = vadd.f32 0.0, %v9211
  %9213 = vmatmul.f32.gmra.mxu0 %v9153
  %v9214 = vpop.f32.mrf.mxu0
  %v9215 = vadd.f32 0.0, %v9214
  %9216 = vmatmul.f32.gmra.mxu0 %v9156
  %v9217 = vpop.f32.mrf.mxu0
  %v9218 = vadd.f32 0.0, %v9217
  %9219 = vmatmul.f32.gmra.mxu0 %v9159
  %v9220 = vpop.f32.mrf.mxu0
  %v9221 = vadd.f32 0.0, %v9220
  %9222 = vmatmul.f32.gmra.mxu0 %v9162
  %v9223 = vpop.f32.mrf.mxu0
  %v9224 = vadd.f32 0.0, %v9223
  %9225 = vmatmul.f32.gmra.mxu0 %v9165
  %v9226 = vpop.f32.mrf.mxu0
  %v9227 = vadd.f32 0.0, %v9226
  %9228 = vmatmul.f32.gmra.mxu0 %v9168
  %v9229 = vpop.f32.mrf.mxu0
  %v9230 = vadd.f32 0.0, %v9229
  %9231 = vmatmul.f32.gmra.mxu0 %v9171
  %v9232 = vpop.f32.mrf.mxu0
  %v9233 = vadd.f32 0.0, %v9232
  %9234 = vmatmul.f32.gmra.mxu0 %v9174
  %v9235 = vpop.f32.mrf.mxu0
  %v9236 = vadd.f32 0.0, %v9235
  %9237 = vmatmul.f32.gmra.mxu0 %v9177
  %v9238 = vpop.f32.mrf.mxu0
  %v9239 = vadd.f32 0.0, %v9238
  %9240 = vmatmul.f32.gmra.mxu0 %v9180
  %v9241 = vpop.f32.mrf.mxu0
  %v9242 = vadd.f32 0.0, %v9241
  %9243 = vmatmul.f32.gmra.mxu0 %v9183
  %v9244 = vpop.f32.mrf.mxu0
  %v9245 = vadd.f32 0.0, %v9244
  %9246 = vdwg.mxu0
  %v9247 = vadd.f32 %v9109, %v9203
  %v9248 = vadd.f32 %v9110, %v9206
  %v9249 = vadd.f32 %v9111, %v9209
  %v9250 = vadd.f32 %v9112, %v9212
  %v9251 = vadd.f32 %v9113, %v9215
  %v9252 = vadd.f32 %v9114, %v9218
  %v9253 = vadd.f32 %v9115, %v9221
  %v9254 = vadd.f32 %v9116, %v9224
  %v9255 = vadd.f32 %v9117, %v9227
  %v9256 = vadd.f32 %v9118, %v9230
  %v9257 = vadd.f32 %v9119, %v9233
  %v9258 = vadd.f32 %v9120, %v9236
  %v9259 = vadd.f32 %v9121, %v9239
  %v9260 = vadd.f32 %v9122, %v9242
  %v9261 = vadd.f32 %v9123, %v9245
  %s9262 = scalar_lea.vmem %s3, 2160
  %v9263 = vld [vmem:[%s9262] sm:$0xff]
  %v9264 = vld [vmem:[%s9262 + $0x8] sm:$0xff]
  %v9265 = vld [vmem:[%s9262 + $0x10] sm:$0xff]
  %v9266 = vld [vmem:[%s9262 + $0x18] sm:$0xff]
  %v9267 = vld [vmem:[%s9262 + $0x20] sm:$0xff]
  %v9268 = vld [vmem:[%s9262 + $0x28] sm:$0xff]
  %v9269 = vld [vmem:[%s9262 + $0x30] sm:$0xff]
  %v9270 = vld [vmem:[%s9262 + $0x38] sm:$0xff]
  %v9271 = vld [vmem:[%s9262 + $0x40] sm:$0xff]
  %v9272 = vld [vmem:[%s9262 + $0x48] sm:$0xff]
  %v9273 = vld [vmem:[%s9262 + $0x50] sm:$0xff]
  %v9274 = vld [vmem:[%s9262 + $0x58] sm:$0xff]
  %v9275 = vld [vmem:[%s9262 + $0x60] sm:$0xff]
  %v9276 = vld [vmem:[%s9262 + $0x68] sm:$0xff]
  %v9277 = vld [vmem:[%s9262 + $0x70] sm:$0xff]
  %v9279 = vsel %vm6839, %v9263, 0
  %v9282 = vsel %vm6839, %v9264, 0
  %v9285 = vsel %vm6839, %v9265, 0
  %v9288 = vsel %vm6839, %v9266, 0
  %v9291 = vsel %vm6839, %v9267, 0
  %v9294 = vsel %vm6839, %v9268, 0
  %v9297 = vsel %vm6839, %v9269, 0
  %v9300 = vsel %vm6839, %v9270, 0
  %v9303 = vsel %vm6839, %v9271, 0
  %v9306 = vsel %vm6839, %v9272, 0
  %v9309 = vsel %vm6839, %v9273, 0
  %v9312 = vsel %vm6839, %v9274, 0
  %v9315 = vsel %vm6839, %v9275, 0
  %v9318 = vsel %vm6839, %v9276, 0
  %v9321 = vsel %vm6839, %v9277, 0
  %9323 = vmatpush.msra.mxu0 0.0
  %9324 = vmatpush.msra.mxu0 0.0
  %9325 = vmatpush.msra.mxu0 0.0
  %9326 = vmatpush.msra.mxu0 0.0
  %9327 = vmatpush.msra.mxu0 0.0
  %9328 = vmatpush.msra.mxu0 0.0
  %9329 = vmatpush.msra.mxu0 0.0
  %9330 = vmatpush.msra.mxu0 0.0
  %9331 = vmatpush.msra.mxu0 0.0
  %9332 = vmatpush.msra.mxu0 0.0
  %9333 = vmatpush.msra.mxu0 0.0
  %9334 = vmatpush.msra.mxu0 0.0
  %9335 = vmatpush.msra.mxu0 0.0
  %9336 = vmatpush.msra.mxu0 0.0
  %9337 = vmatpush.msra.mxu0 %v6801
  %9338 = vmatpush.msra.mxu0 %v6776
  %9339 = vmatmul.f32.gmra.mxu0 %v9279
  %v9340 = vpop.f32.mrf.mxu0
  %v9341 = vadd.f32 0.0, %v9340
  %9342 = vmatmul.f32.gmra.mxu0 %v9282
  %v9343 = vpop.f32.mrf.mxu0
  %v9344 = vadd.f32 0.0, %v9343
  %9345 = vmatmul.f32.gmra.mxu0 %v9285
  %v9346 = vpop.f32.mrf.mxu0
  %v9347 = vadd.f32 0.0, %v9346
  %9348 = vmatmul.f32.gmra.mxu0 %v9288
  %v9349 = vpop.f32.mrf.mxu0
  %v9350 = vadd.f32 0.0, %v9349
  %9351 = vmatmul.f32.gmra.mxu0 %v9291
  %v9352 = vpop.f32.mrf.mxu0
  %v9353 = vadd.f32 0.0, %v9352
  %9354 = vmatmul.f32.gmra.mxu0 %v9294
  %v9355 = vpop.f32.mrf.mxu0
  %v9356 = vadd.f32 0.0, %v9355
  %9357 = vmatmul.f32.gmra.mxu0 %v9297
  %v9358 = vpop.f32.mrf.mxu0
  %v9359 = vadd.f32 0.0, %v9358
  %9360 = vmatmul.f32.gmra.mxu0 %v9300
  %v9361 = vpop.f32.mrf.mxu0
  %v9362 = vadd.f32 0.0, %v9361
  %9363 = vmatmul.f32.gmra.mxu0 %v9303
  %v9364 = vpop.f32.mrf.mxu0
  %v9365 = vadd.f32 0.0, %v9364
  %9366 = vmatmul.f32.gmra.mxu0 %v9306
  %v9367 = vpop.f32.mrf.mxu0
  %v9368 = vadd.f32 0.0, %v9367
  %9369 = vmatmul.f32.gmra.mxu0 %v9309
  %v9370 = vpop.f32.mrf.mxu0
  %v9371 = vadd.f32 0.0, %v9370
  %9372 = vmatmul.f32.gmra.mxu0 %v9312
  %v9373 = vpop.f32.mrf.mxu0
  %v9374 = vadd.f32 0.0, %v9373
  %9375 = vmatmul.f32.gmra.mxu0 %v9315
  %v9376 = vpop.f32.mrf.mxu0
  %v9377 = vadd.f32 0.0, %v9376
  %9378 = vmatmul.f32.gmra.mxu0 %v9318
  %v9379 = vpop.f32.mrf.mxu0
  %v9380 = vadd.f32 0.0, %v9379
  %9381 = vmatmul.f32.gmra.mxu0 %v9321
  %v9382 = vpop.f32.mrf.mxu0
  %v9383 = vadd.f32 0.0, %v9382
  %9384 = vdwg.mxu0
  %v9385 = vadd.f32 %v9247, %v9341
  %v9386 = vadd.f32 %v9248, %v9344
  %v9387 = vadd.f32 %v9249, %v9347
  %v9388 = vadd.f32 %v9250, %v9350
  %v9389 = vadd.f32 %v9251, %v9353
  %v9390 = vadd.f32 %v9252, %v9356
  %v9391 = vadd.f32 %v9253, %v9359
  %v9392 = vadd.f32 %v9254, %v9362
  %v9393 = vadd.f32 %v9255, %v9365
  %v9394 = vadd.f32 %v9256, %v9368
  %v9395 = vadd.f32 %v9257, %v9371
  %v9396 = vadd.f32 %v9258, %v9374
  %v9397 = vadd.f32 %v9259, %v9377
  %v9398 = vadd.f32 %v9260, %v9380
  %v9399 = vadd.f32 %v9261, %v9383
  %s9400 = scalar_lea.vmem %s3, 2280
  %v9401 = vld [vmem:[%s9400] sm:$0xff]
  %v9402 = vld [vmem:[%s9400 + $0x8] sm:$0xff]
  %v9403 = vld [vmem:[%s9400 + $0x10] sm:$0xff]
  %v9404 = vld [vmem:[%s9400 + $0x18] sm:$0xff]
  %v9405 = vld [vmem:[%s9400 + $0x20] sm:$0xff]
  %v9406 = vld [vmem:[%s9400 + $0x28] sm:$0xff]
  %v9407 = vld [vmem:[%s9400 + $0x30] sm:$0xff]
  %v9408 = vld [vmem:[%s9400 + $0x38] sm:$0xff]
  %v9409 = vld [vmem:[%s9400 + $0x40] sm:$0xff]
  %v9410 = vld [vmem:[%s9400 + $0x48] sm:$0xff]
  %v9411 = vld [vmem:[%s9400 + $0x50] sm:$0xff]
  %v9412 = vld [vmem:[%s9400 + $0x58] sm:$0xff]
  %v9413 = vld [vmem:[%s9400 + $0x60] sm:$0xff]
  %v9414 = vld [vmem:[%s9400 + $0x68] sm:$0xff]
  %v9415 = vld [vmem:[%s9400 + $0x70] sm:$0xff]
  %v9417 = vsel %vm6839, %v9401, 0
  %v9420 = vsel %vm6839, %v9402, 0
  %v9423 = vsel %vm6839, %v9403, 0
  %v9426 = vsel %vm6839, %v9404, 0
  %v9429 = vsel %vm6839, %v9405, 0
  %v9432 = vsel %vm6839, %v9406, 0
  %v9435 = vsel %vm6839, %v9407, 0
  %v9438 = vsel %vm6839, %v9408, 0
  %v9441 = vsel %vm6839, %v9409, 0
  %v9444 = vsel %vm6839, %v9410, 0
  %v9447 = vsel %vm6839, %v9411, 0
  %v9450 = vsel %vm6839, %v9412, 0
  %v9453 = vsel %vm6839, %v9413, 0
  %v9456 = vsel %vm6839, %v9414, 0
  %v9459 = vsel %vm6839, %v9415, 0
  %9461 = vmatpush.msra.mxu0 0.0
  %9462 = vmatpush.msra.mxu0 0.0
  %9463 = vmatpush.msra.mxu0 0.0
  %9464 = vmatpush.msra.mxu0 0.0
  %9465 = vmatpush.msra.mxu0 0.0
  %9466 = vmatpush.msra.mxu0 0.0
  %9467 = vmatpush.msra.mxu0 0.0
  %9468 = vmatpush.msra.mxu0 0.0
  %9469 = vmatpush.msra.mxu0 0.0
  %9470 = vmatpush.msra.mxu0 0.0
  %9471 = vmatpush.msra.mxu0 0.0
  %9472 = vmatpush.msra.mxu0 0.0
  %9473 = vmatpush.msra.mxu0 0.0
  %9474 = vmatpush.msra.mxu0 0.0
  %9475 = vmatpush.msra.mxu0 %v6802
  %9476 = vmatpush.msra.mxu0 %v6777
  %9477 = vmatmul.f32.gmra.mxu0 %v9417
  %v9478 = vpop.f32.mrf.mxu0
  %v9479 = vadd.f32 0.0, %v9478
  %9480 = vmatmul.f32.gmra.mxu0 %v9420
  %v9481 = vpop.f32.mrf.mxu0
  %v9482 = vadd.f32 0.0, %v9481
  %9483 = vmatmul.f32.gmra.mxu0 %v9423
  %v9484 = vpop.f32.mrf.mxu0
  %v9485 = vadd.f32 0.0, %v9484
  %9486 = vmatmul.f32.gmra.mxu0 %v9426
  %v9487 = vpop.f32.mrf.mxu0
  %v9488 = vadd.f32 0.0, %v9487
  %9489 = vmatmul.f32.gmra.mxu0 %v9429
  %v9490 = vpop.f32.mrf.mxu0
  %v9491 = vadd.f32 0.0, %v9490
  %9492 = vmatmul.f32.gmra.mxu0 %v9432
  %v9493 = vpop.f32.mrf.mxu0
  %v9494 = vadd.f32 0.0, %v9493
  %9495 = vmatmul.f32.gmra.mxu0 %v9435
  %v9496 = vpop.f32.mrf.mxu0
  %v9497 = vadd.f32 0.0, %v9496
  %9498 = vmatmul.f32.gmra.mxu0 %v9438
  %v9499 = vpop.f32.mrf.mxu0
  %v9500 = vadd.f32 0.0, %v9499
  %9501 = vmatmul.f32.gmra.mxu0 %v9441
  %v9502 = vpop.f32.mrf.mxu0
  %v9503 = vadd.f32 0.0, %v9502
  %9504 = vmatmul.f32.gmra.mxu0 %v9444
  %v9505 = vpop.f32.mrf.mxu0
  %v9506 = vadd.f32 0.0, %v9505
  %9507 = vmatmul.f32.gmra.mxu0 %v9447
  %v9508 = vpop.f32.mrf.mxu0
  %v9509 = vadd.f32 0.0, %v9508
  %9510 = vmatmul.f32.gmra.mxu0 %v9450
  %v9511 = vpop.f32.mrf.mxu0
  %v9512 = vadd.f32 0.0, %v9511
  %9513 = vmatmul.f32.gmra.mxu0 %v9453
  %v9514 = vpop.f32.mrf.mxu0
  %v9515 = vadd.f32 0.0, %v9514
  %9516 = vmatmul.f32.gmra.mxu0 %v9456
  %v9517 = vpop.f32.mrf.mxu0
  %v9518 = vadd.f32 0.0, %v9517
  %9519 = vmatmul.f32.gmra.mxu0 %v9459
  %v9520 = vpop.f32.mrf.mxu0
  %v9521 = vadd.f32 0.0, %v9520
  %9522 = vdwg.mxu0
  %v9523 = vadd.f32 %v9385, %v9479
  %v9524 = vadd.f32 %v9386, %v9482
  %v9525 = vadd.f32 %v9387, %v9485
  %v9526 = vadd.f32 %v9388, %v9488
  %v9527 = vadd.f32 %v9389, %v9491
  %v9528 = vadd.f32 %v9390, %v9494
  %v9529 = vadd.f32 %v9391, %v9497
  %v9530 = vadd.f32 %v9392, %v9500
  %v9531 = vadd.f32 %v9393, %v9503
  %v9532 = vadd.f32 %v9394, %v9506
  %v9533 = vadd.f32 %v9395, %v9509
  %v9534 = vadd.f32 %v9396, %v9512
  %v9535 = vadd.f32 %v9397, %v9515
  %v9536 = vadd.f32 %v9398, %v9518
  %v9537 = vadd.f32 %v9399, %v9521
  %s9538 = scalar_lea.vmem %s3, 2400
  %v9539 = vld [vmem:[%s9538] sm:$0xff]
  %v9540 = vld [vmem:[%s9538 + $0x8] sm:$0xff]
  %v9541 = vld [vmem:[%s9538 + $0x10] sm:$0xff]
  %v9542 = vld [vmem:[%s9538 + $0x18] sm:$0xff]
  %v9543 = vld [vmem:[%s9538 + $0x20] sm:$0xff]
  %v9544 = vld [vmem:[%s9538 + $0x28] sm:$0xff]
  %v9545 = vld [vmem:[%s9538 + $0x30] sm:$0xff]
  %v9546 = vld [vmem:[%s9538 + $0x38] sm:$0xff]
  %v9547 = vld [vmem:[%s9538 + $0x40] sm:$0xff]
  %v9548 = vld [vmem:[%s9538 + $0x48] sm:$0xff]
  %v9549 = vld [vmem:[%s9538 + $0x50] sm:$0xff]
  %v9550 = vld [vmem:[%s9538 + $0x58] sm:$0xff]
  %v9551 = vld [vmem:[%s9538 + $0x60] sm:$0xff]
  %v9552 = vld [vmem:[%s9538 + $0x68] sm:$0xff]
  %v9553 = vld [vmem:[%s9538 + $0x70] sm:$0xff]
  %v9555 = vsel %vm6839, %v9539, 0
  %v9558 = vsel %vm6839, %v9540, 0
  %v9561 = vsel %vm6839, %v9541, 0
  %v9564 = vsel %vm6839, %v9542, 0
  %v9567 = vsel %vm6839, %v9543, 0
  %v9570 = vsel %vm6839, %v9544, 0
  %v9573 = vsel %vm6839, %v9545, 0
  %v9576 = vsel %vm6839, %v9546, 0
  %v9579 = vsel %vm6839, %v9547, 0
  %v9582 = vsel %vm6839, %v9548, 0
  %v9585 = vsel %vm6839, %v9549, 0
  %v9588 = vsel %vm6839, %v9550, 0
  %v9591 = vsel %vm6839, %v9551, 0
  %v9594 = vsel %vm6839, %v9552, 0
  %v9597 = vsel %vm6839, %v9553, 0
  %9599 = vmatpush.msra.mxu0 0.0
  %9600 = vmatpush.msra.mxu0 0.0
  %9601 = vmatpush.msra.mxu0 0.0
  %9602 = vmatpush.msra.mxu0 0.0
  %9603 = vmatpush.msra.mxu0 0.0
  %9604 = vmatpush.msra.mxu0 0.0
  %9605 = vmatpush.msra.mxu0 0.0
  %9606 = vmatpush.msra.mxu0 0.0
  %9607 = vmatpush.msra.mxu0 0.0
  %9608 = vmatpush.msra.mxu0 0.0
  %9609 = vmatpush.msra.mxu0 0.0
  %9610 = vmatpush.msra.mxu0 0.0
  %9611 = vmatpush.msra.mxu0 0.0
  %9612 = vmatpush.msra.mxu0 0.0
  %9613 = vmatpush.msra.mxu0 %v6803
  %9614 = vmatpush.msra.mxu0 %v6778
  %9615 = vmatmul.f32.gmra.mxu0 %v9555
  %v9616 = vpop.f32.mrf.mxu0
  %v9617 = vadd.f32 0.0, %v9616
  %9618 = vmatmul.f32.gmra.mxu0 %v9558
  %v9619 = vpop.f32.mrf.mxu0
  %v9620 = vadd.f32 0.0, %v9619
  %9621 = vmatmul.f32.gmra.mxu0 %v9561
  %v9622 = vpop.f32.mrf.mxu0
  %v9623 = vadd.f32 0.0, %v9622
  %9624 = vmatmul.f32.gmra.mxu0 %v9564
  %v9625 = vpop.f32.mrf.mxu0
  %v9626 = vadd.f32 0.0, %v9625
  %9627 = vmatmul.f32.gmra.mxu0 %v9567
  %v9628 = vpop.f32.mrf.mxu0
  %v9629 = vadd.f32 0.0, %v9628
  %9630 = vmatmul.f32.gmra.mxu0 %v9570
  %v9631 = vpop.f32.mrf.mxu0
  %v9632 = vadd.f32 0.0, %v9631
  %9633 = vmatmul.f32.gmra.mxu0 %v9573
  %v9634 = vpop.f32.mrf.mxu0
  %v9635 = vadd.f32 0.0, %v9634
  %9636 = vmatmul.f32.gmra.mxu0 %v9576
  %v9637 = vpop.f32.mrf.mxu0
  %v9638 = vadd.f32 0.0, %v9637
  %9639 = vmatmul.f32.gmra.mxu0 %v9579
  %v9640 = vpop.f32.mrf.mxu0
  %v9641 = vadd.f32 0.0, %v9640
  %9642 = vmatmul.f32.gmra.mxu0 %v9582
  %v9643 = vpop.f32.mrf.mxu0
  %v9644 = vadd.f32 0.0, %v9643
  %9645 = vmatmul.f32.gmra.mxu0 %v9585
  %v9646 = vpop.f32.mrf.mxu0
  %v9647 = vadd.f32 0.0, %v9646
  %9648 = vmatmul.f32.gmra.mxu0 %v9588
  %v9649 = vpop.f32.mrf.mxu0
  %v9650 = vadd.f32 0.0, %v9649
  %9651 = vmatmul.f32.gmra.mxu0 %v9591
  %v9652 = vpop.f32.mrf.mxu0
  %v9653 = vadd.f32 0.0, %v9652
  %9654 = vmatmul.f32.gmra.mxu0 %v9594
  %v9655 = vpop.f32.mrf.mxu0
  %v9656 = vadd.f32 0.0, %v9655
  %9657 = vmatmul.f32.gmra.mxu0 %v9597
  %v9658 = vpop.f32.mrf.mxu0
  %v9659 = vadd.f32 0.0, %v9658
  %9660 = vdwg.mxu0
  %v9661 = vadd.f32 %v9523, %v9617
  %v9662 = vadd.f32 %v9524, %v9620
  %v9663 = vadd.f32 %v9525, %v9623
  %v9664 = vadd.f32 %v9526, %v9626
  %v9665 = vadd.f32 %v9527, %v9629
  %v9666 = vadd.f32 %v9528, %v9632
  %v9667 = vadd.f32 %v9529, %v9635
  %v9668 = vadd.f32 %v9530, %v9638
  %v9669 = vadd.f32 %v9531, %v9641
  %v9670 = vadd.f32 %v9532, %v9644
  %v9671 = vadd.f32 %v9533, %v9647
  %v9672 = vadd.f32 %v9534, %v9650
  %v9673 = vadd.f32 %v9535, %v9653
  %v9674 = vadd.f32 %v9536, %v9656
  %v9675 = vadd.f32 %v9537, %v9659
  %s9676 = scalar_lea.vmem %s3, 2520
  %v9677 = vld [vmem:[%s9676] sm:$0xff]
  %v9678 = vld [vmem:[%s9676 + $0x8] sm:$0xff]
  %v9679 = vld [vmem:[%s9676 + $0x10] sm:$0xff]
  %v9680 = vld [vmem:[%s9676 + $0x18] sm:$0xff]
  %v9681 = vld [vmem:[%s9676 + $0x20] sm:$0xff]
  %v9682 = vld [vmem:[%s9676 + $0x28] sm:$0xff]
  %v9683 = vld [vmem:[%s9676 + $0x30] sm:$0xff]
  %v9684 = vld [vmem:[%s9676 + $0x38] sm:$0xff]
  %v9685 = vld [vmem:[%s9676 + $0x40] sm:$0xff]
  %v9686 = vld [vmem:[%s9676 + $0x48] sm:$0xff]
  %v9687 = vld [vmem:[%s9676 + $0x50] sm:$0xff]
  %v9688 = vld [vmem:[%s9676 + $0x58] sm:$0xff]
  %v9689 = vld [vmem:[%s9676 + $0x60] sm:$0xff]
  %v9690 = vld [vmem:[%s9676 + $0x68] sm:$0xff]
  %v9691 = vld [vmem:[%s9676 + $0x70] sm:$0xff]
  %v9693 = vsel %vm6839, %v9677, 0
  %v9696 = vsel %vm6839, %v9678, 0
  %v9699 = vsel %vm6839, %v9679, 0
  %v9702 = vsel %vm6839, %v9680, 0
  %v9705 = vsel %vm6839, %v9681, 0
  %v9708 = vsel %vm6839, %v9682, 0
  %v9711 = vsel %vm6839, %v9683, 0
  %v9714 = vsel %vm6839, %v9684, 0
  %v9717 = vsel %vm6839, %v9685, 0
  %v9720 = vsel %vm6839, %v9686, 0
  %v9723 = vsel %vm6839, %v9687, 0
  %v9726 = vsel %vm6839, %v9688, 0
  %v9729 = vsel %vm6839, %v9689, 0
  %v9732 = vsel %vm6839, %v9690, 0
  %v9735 = vsel %vm6839, %v9691, 0
  %9737 = vmatpush.msra.mxu0 0.0
  %9738 = vmatpush.msra.mxu0 0.0
  %9739 = vmatpush.msra.mxu0 0.0
  %9740 = vmatpush.msra.mxu0 0.0
  %9741 = vmatpush.msra.mxu0 0.0
  %9742 = vmatpush.msra.mxu0 0.0
  %9743 = vmatpush.msra.mxu0 0.0
  %9744 = vmatpush.msra.mxu0 0.0
  %9745 = vmatpush.msra.mxu0 0.0
  %9746 = vmatpush.msra.mxu0 0.0
  %9747 = vmatpush.msra.mxu0 0.0
  %9748 = vmatpush.msra.mxu0 0.0
  %9749 = vmatpush.msra.mxu0 0.0
  %9750 = vmatpush.msra.mxu0 0.0
  %9751 = vmatpush.msra.mxu0 %v6804
  %9752 = vmatpush.msra.mxu0 %v6779
  %9753 = vmatmul.f32.gmra.mxu0 %v9693
  %v9754 = vpop.f32.mrf.mxu0
  %v9755 = vadd.f32 0.0, %v9754
  %9756 = vmatmul.f32.gmra.mxu0 %v9696
  %v9757 = vpop.f32.mrf.mxu0
  %v9758 = vadd.f32 0.0, %v9757
  %9759 = vmatmul.f32.gmra.mxu0 %v9699
  %v9760 = vpop.f32.mrf.mxu0
  %v9761 = vadd.f32 0.0, %v9760
  %9762 = vmatmul.f32.gmra.mxu0 %v9702
  %v9763 = vpop.f32.mrf.mxu0
  %v9764 = vadd.f32 0.0, %v9763
  %9765 = vmatmul.f32.gmra.mxu0 %v9705
  %v9766 = vpop.f32.mrf.mxu0
  %v9767 = vadd.f32 0.0, %v9766
  %9768 = vmatmul.f32.gmra.mxu0 %v9708
  %v9769 = vpop.f32.mrf.mxu0
  %v9770 = vadd.f32 0.0, %v9769
  %9771 = vmatmul.f32.gmra.mxu0 %v9711
  %v9772 = vpop.f32.mrf.mxu0
  %v9773 = vadd.f32 0.0, %v9772
  %9774 = vmatmul.f32.gmra.mxu0 %v9714
  %v9775 = vpop.f32.mrf.mxu0
  %v9776 = vadd.f32 0.0, %v9775
  %9777 = vmatmul.f32.gmra.mxu0 %v9717
  %v9778 = vpop.f32.mrf.mxu0
  %v9779 = vadd.f32 0.0, %v9778
  %9780 = vmatmul.f32.gmra.mxu0 %v9720
  %v9781 = vpop.f32.mrf.mxu0
  %v9782 = vadd.f32 0.0, %v9781
  %9783 = vmatmul.f32.gmra.mxu0 %v9723
  %v9784 = vpop.f32.mrf.mxu0
  %v9785 = vadd.f32 0.0, %v9784
  %9786 = vmatmul.f32.gmra.mxu0 %v9726
  %v9787 = vpop.f32.mrf.mxu0
  %v9788 = vadd.f32 0.0, %v9787
  %9789 = vmatmul.f32.gmra.mxu0 %v9729
  %v9790 = vpop.f32.mrf.mxu0
  %v9791 = vadd.f32 0.0, %v9790
  %9792 = vmatmul.f32.gmra.mxu0 %v9732
  %v9793 = vpop.f32.mrf.mxu0
  %v9794 = vadd.f32 0.0, %v9793
  %9795 = vmatmul.f32.gmra.mxu0 %v9735
  %v9796 = vpop.f32.mrf.mxu0
  %v9797 = vadd.f32 0.0, %v9796
  %9798 = vdwg.mxu0
  %v9799 = vadd.f32 %v9661, %v9755
  %v9800 = vadd.f32 %v9662, %v9758
  %v9801 = vadd.f32 %v9663, %v9761
  %v9802 = vadd.f32 %v9664, %v9764
  %v9803 = vadd.f32 %v9665, %v9767
  %v9804 = vadd.f32 %v9666, %v9770
  %v9805 = vadd.f32 %v9667, %v9773
  %v9806 = vadd.f32 %v9668, %v9776
  %v9807 = vadd.f32 %v9669, %v9779
  %v9808 = vadd.f32 %v9670, %v9782
  %v9809 = vadd.f32 %v9671, %v9785
  %v9810 = vadd.f32 %v9672, %v9788
  %v9811 = vadd.f32 %v9673, %v9791
  %v9812 = vadd.f32 %v9674, %v9794
  %v9813 = vadd.f32 %v9675, %v9797
  %s9814 = scalar_lea.vmem %s3, 2640
  %v9815 = vld [vmem:[%s9814] sm:$0xff]
  %v9816 = vld [vmem:[%s9814 + $0x8] sm:$0xff]
  %v9817 = vld [vmem:[%s9814 + $0x10] sm:$0xff]
  %v9818 = vld [vmem:[%s9814 + $0x18] sm:$0xff]
  %v9819 = vld [vmem:[%s9814 + $0x20] sm:$0xff]
  %v9820 = vld [vmem:[%s9814 + $0x28] sm:$0xff]
  %v9821 = vld [vmem:[%s9814 + $0x30] sm:$0xff]
  %v9822 = vld [vmem:[%s9814 + $0x38] sm:$0xff]
  %v9823 = vld [vmem:[%s9814 + $0x40] sm:$0xff]
  %v9824 = vld [vmem:[%s9814 + $0x48] sm:$0xff]
  %v9825 = vld [vmem:[%s9814 + $0x50] sm:$0xff]
  %v9826 = vld [vmem:[%s9814 + $0x58] sm:$0xff]
  %v9827 = vld [vmem:[%s9814 + $0x60] sm:$0xff]
  %v9828 = vld [vmem:[%s9814 + $0x68] sm:$0xff]
  %v9829 = vld [vmem:[%s9814 + $0x70] sm:$0xff]
  %v9831 = vsel %vm6839, %v9815, 0
  %v9834 = vsel %vm6839, %v9816, 0
  %v9837 = vsel %vm6839, %v9817, 0
  %v9840 = vsel %vm6839, %v9818, 0
  %v9843 = vsel %vm6839, %v9819, 0
  %v9846 = vsel %vm6839, %v9820, 0
  %v9849 = vsel %vm6839, %v9821, 0
  %v9852 = vsel %vm6839, %v9822, 0
  %v9855 = vsel %vm6839, %v9823, 0
  %v9858 = vsel %vm6839, %v9824, 0
  %v9861 = vsel %vm6839, %v9825, 0
  %v9864 = vsel %vm6839, %v9826, 0
  %v9867 = vsel %vm6839, %v9827, 0
  %v9870 = vsel %vm6839, %v9828, 0
  %v9873 = vsel %vm6839, %v9829, 0
  %9875 = vmatpush.msra.mxu0 0.0
  %9876 = vmatpush.msra.mxu0 0.0
  %9877 = vmatpush.msra.mxu0 0.0
  %9878 = vmatpush.msra.mxu0 0.0
  %9879 = vmatpush.msra.mxu0 0.0
  %9880 = vmatpush.msra.mxu0 0.0
  %9881 = vmatpush.msra.mxu0 0.0
  %9882 = vmatpush.msra.mxu0 0.0
  %9883 = vmatpush.msra.mxu0 0.0
  %9884 = vmatpush.msra.mxu0 0.0
  %9885 = vmatpush.msra.mxu0 0.0
  %9886 = vmatpush.msra.mxu0 0.0
  %9887 = vmatpush.msra.mxu0 0.0
  %9888 = vmatpush.msra.mxu0 0.0
  %9889 = vmatpush.msra.mxu0 %v6805
  %9890 = vmatpush.msra.mxu0 %v6780
  %9891 = vmatmul.f32.gmra.mxu0 %v9831
  %v9892 = vpop.f32.mrf.mxu0
  %v9893 = vadd.f32 0.0, %v9892
  %9894 = vmatmul.f32.gmra.mxu0 %v9834
  %v9895 = vpop.f32.mrf.mxu0
  %v9896 = vadd.f32 0.0, %v9895
  %9897 = vmatmul.f32.gmra.mxu0 %v9837
  %v9898 = vpop.f32.mrf.mxu0
  %v9899 = vadd.f32 0.0, %v9898
  %9900 = vmatmul.f32.gmra.mxu0 %v9840
  %v9901 = vpop.f32.mrf.mxu0
  %v9902 = vadd.f32 0.0, %v9901
  %9903 = vmatmul.f32.gmra.mxu0 %v9843
  %v9904 = vpop.f32.mrf.mxu0
  %v9905 = vadd.f32 0.0, %v9904
  %9906 = vmatmul.f32.gmra.mxu0 %v9846
  %v9907 = vpop.f32.mrf.mxu0
  %v9908 = vadd.f32 0.0, %v9907
  %9909 = vmatmul.f32.gmra.mxu0 %v9849
  %v9910 = vpop.f32.mrf.mxu0
  %v9911 = vadd.f32 0.0, %v9910
  %9912 = vmatmul.f32.gmra.mxu0 %v9852
  %v9913 = vpop.f32.mrf.mxu0
  %v9914 = vadd.f32 0.0, %v9913
  %9915 = vmatmul.f32.gmra.mxu0 %v9855
  %v9916 = vpop.f32.mrf.mxu0
  %v9917 = vadd.f32 0.0, %v9916
  %9918 = vmatmul.f32.gmra.mxu0 %v9858
  %v9919 = vpop.f32.mrf.mxu0
  %v9920 = vadd.f32 0.0, %v9919
  %9921 = vmatmul.f32.gmra.mxu0 %v9861
  %v9922 = vpop.f32.mrf.mxu0
  %v9923 = vadd.f32 0.0, %v9922
  %9924 = vmatmul.f32.gmra.mxu0 %v9864
  %v9925 = vpop.f32.mrf.mxu0
  %v9926 = vadd.f32 0.0, %v9925
  %9927 = vmatmul.f32.gmra.mxu0 %v9867
  %v9928 = vpop.f32.mrf.mxu0
  %v9929 = vadd.f32 0.0, %v9928
  %9930 = vmatmul.f32.gmra.mxu0 %v9870
  %v9931 = vpop.f32.mrf.mxu0
  %v9932 = vadd.f32 0.0, %v9931
  %9933 = vmatmul.f32.gmra.mxu0 %v9873
  %v9934 = vpop.f32.mrf.mxu0
  %v9935 = vadd.f32 0.0, %v9934
  %9936 = vdwg.mxu0
  %v9937 = vadd.f32 %v9799, %v9893
  %v9938 = vadd.f32 %v9800, %v9896
  %v9939 = vadd.f32 %v9801, %v9899
  %v9940 = vadd.f32 %v9802, %v9902
  %v9941 = vadd.f32 %v9803, %v9905
  %v9942 = vadd.f32 %v9804, %v9908
  %v9943 = vadd.f32 %v9805, %v9911
  %v9944 = vadd.f32 %v9806, %v9914
  %v9945 = vadd.f32 %v9807, %v9917
  %v9946 = vadd.f32 %v9808, %v9920
  %v9947 = vadd.f32 %v9809, %v9923
  %v9948 = vadd.f32 %v9810, %v9926
  %v9949 = vadd.f32 %v9811, %v9929
  %v9950 = vadd.f32 %v9812, %v9932
  %v9951 = vadd.f32 %v9813, %v9935
  %s9952 = scalar_lea.vmem %s3, 2760
  %v9953 = vld [vmem:[%s9952] sm:$0xff]
  %v9954 = vld [vmem:[%s9952 + $0x8] sm:$0xff]
  %v9955 = vld [vmem:[%s9952 + $0x10] sm:$0xff]
  %v9956 = vld [vmem:[%s9952 + $0x18] sm:$0xff]
  %v9957 = vld [vmem:[%s9952 + $0x20] sm:$0xff]
  %v9958 = vld [vmem:[%s9952 + $0x28] sm:$0xff]
  %v9959 = vld [vmem:[%s9952 + $0x30] sm:$0xff]
  %v9960 = vld [vmem:[%s9952 + $0x38] sm:$0xff]
  %v9961 = vld [vmem:[%s9952 + $0x40] sm:$0xff]
  %v9962 = vld [vmem:[%s9952 + $0x48] sm:$0xff]
  %v9963 = vld [vmem:[%s9952 + $0x50] sm:$0xff]
  %v9964 = vld [vmem:[%s9952 + $0x58] sm:$0xff]
  %v9965 = vld [vmem:[%s9952 + $0x60] sm:$0xff]
  %v9966 = vld [vmem:[%s9952 + $0x68] sm:$0xff]
  %v9967 = vld [vmem:[%s9952 + $0x70] sm:$0xff]
  %v9969 = vsel %vm6839, %v9953, 0
  %v9972 = vsel %vm6839, %v9954, 0
  %v9975 = vsel %vm6839, %v9955, 0
  %v9978 = vsel %vm6839, %v9956, 0
  %v9981 = vsel %vm6839, %v9957, 0
  %v9984 = vsel %vm6839, %v9958, 0
  %v9987 = vsel %vm6839, %v9959, 0
  %v9990 = vsel %vm6839, %v9960, 0
  %v9993 = vsel %vm6839, %v9961, 0
  %v9996 = vsel %vm6839, %v9962, 0
  %v9999 = vsel %vm6839, %v9963, 0
  %v10002 = vsel %vm6839, %v9964, 0
  %v10005 = vsel %vm6839, %v9965, 0
  %v10008 = vsel %vm6839, %v9966, 0
  %v10011 = vsel %vm6839, %v9967, 0
  %10013 = vmatpush.msra.mxu0 0.0
  %10014 = vmatpush.msra.mxu0 0.0
  %10015 = vmatpush.msra.mxu0 0.0
  %10016 = vmatpush.msra.mxu0 0.0
  %10017 = vmatpush.msra.mxu0 0.0
  %10018 = vmatpush.msra.mxu0 0.0
  %10019 = vmatpush.msra.mxu0 0.0
  %10020 = vmatpush.msra.mxu0 0.0
  %10021 = vmatpush.msra.mxu0 0.0
  %10022 = vmatpush.msra.mxu0 0.0
  %10023 = vmatpush.msra.mxu0 0.0
  %10024 = vmatpush.msra.mxu0 0.0
  %10025 = vmatpush.msra.mxu0 0.0
  %10026 = vmatpush.msra.mxu0 0.0
  %10027 = vmatpush.msra.mxu0 %v6806
  %10028 = vmatpush.msra.mxu0 %v6781
  %10029 = vmatmul.f32.gmra.mxu0 %v9969
  %v10030 = vpop.f32.mrf.mxu0
  %v10031 = vadd.f32 0.0, %v10030
  %10032 = vmatmul.f32.gmra.mxu0 %v9972
  %v10033 = vpop.f32.mrf.mxu0
  %v10034 = vadd.f32 0.0, %v10033
  %10035 = vmatmul.f32.gmra.mxu0 %v9975
  %v10036 = vpop.f32.mrf.mxu0
  %v10037 = vadd.f32 0.0, %v10036
  %10038 = vmatmul.f32.gmra.mxu0 %v9978
  %v10039 = vpop.f32.mrf.mxu0
  %v10040 = vadd.f32 0.0, %v10039
  %10041 = vmatmul.f32.gmra.mxu0 %v9981
  %v10042 = vpop.f32.mrf.mxu0
  %v10043 = vadd.f32 0.0, %v10042
  %10044 = vmatmul.f32.gmra.mxu0 %v9984
  %v10045 = vpop.f32.mrf.mxu0
  %v10046 = vadd.f32 0.0, %v10045
  %10047 = vmatmul.f32.gmra.mxu0 %v9987
  %v10048 = vpop.f32.mrf.mxu0
  %v10049 = vadd.f32 0.0, %v10048
  %10050 = vmatmul.f32.gmra.mxu0 %v9990
  %v10051 = vpop.f32.mrf.mxu0
  %v10052 = vadd.f32 0.0, %v10051
  %10053 = vmatmul.f32.gmra.mxu0 %v9993
  %v10054 = vpop.f32.mrf.mxu0
  %v10055 = vadd.f32 0.0, %v10054
  %10056 = vmatmul.f32.gmra.mxu0 %v9996
  %v10057 = vpop.f32.mrf.mxu0
  %v10058 = vadd.f32 0.0, %v10057
  %10059 = vmatmul.f32.gmra.mxu0 %v9999
  %v10060 = vpop.f32.mrf.mxu0
  %v10061 = vadd.f32 0.0, %v10060
  %10062 = vmatmul.f32.gmra.mxu0 %v10002
  %v10063 = vpop.f32.mrf.mxu0
  %v10064 = vadd.f32 0.0, %v10063
  %10065 = vmatmul.f32.gmra.mxu0 %v10005
  %v10066 = vpop.f32.mrf.mxu0
  %v10067 = vadd.f32 0.0, %v10066
  %10068 = vmatmul.f32.gmra.mxu0 %v10008
  %v10069 = vpop.f32.mrf.mxu0
  %v10070 = vadd.f32 0.0, %v10069
  %10071 = vmatmul.f32.gmra.mxu0 %v10011
  %v10072 = vpop.f32.mrf.mxu0
  %v10073 = vadd.f32 0.0, %v10072
  %10074 = vdwg.mxu0
  %v10075 = vadd.f32 %v9937, %v10031
  %v10076 = vadd.f32 %v9938, %v10034
  %v10077 = vadd.f32 %v9939, %v10037
  %v10078 = vadd.f32 %v9940, %v10040
  %v10079 = vadd.f32 %v9941, %v10043
  %v10080 = vadd.f32 %v9942, %v10046
  %v10081 = vadd.f32 %v9943, %v10049
  %v10082 = vadd.f32 %v9944, %v10052
  %v10083 = vadd.f32 %v9945, %v10055
  %v10084 = vadd.f32 %v9946, %v10058
  %v10085 = vadd.f32 %v9947, %v10061
  %v10086 = vadd.f32 %v9948, %v10064
  %v10087 = vadd.f32 %v9949, %v10067
  %v10088 = vadd.f32 %v9950, %v10070
  %v10089 = vadd.f32 %v9951, %v10073
  %s10090 = scalar_lea.vmem %s3, 2880
  %v10091 = vld [vmem:[%s10090] sm:$0xff]
  %v10092 = vld [vmem:[%s10090 + $0x8] sm:$0xff]
  %v10093 = vld [vmem:[%s10090 + $0x10] sm:$0xff]
  %v10094 = vld [vmem:[%s10090 + $0x18] sm:$0xff]
  %v10095 = vld [vmem:[%s10090 + $0x20] sm:$0xff]
  %v10096 = vld [vmem:[%s10090 + $0x28] sm:$0xff]
  %v10097 = vld [vmem:[%s10090 + $0x30] sm:$0xff]
  %v10098 = vld [vmem:[%s10090 + $0x38] sm:$0xff]
  %v10099 = vld [vmem:[%s10090 + $0x40] sm:$0xff]
  %v10100 = vld [vmem:[%s10090 + $0x48] sm:$0xff]
  %v10101 = vld [vmem:[%s10090 + $0x50] sm:$0xff]
  %v10102 = vld [vmem:[%s10090 + $0x58] sm:$0xff]
  %v10103 = vld [vmem:[%s10090 + $0x60] sm:$0xff]
  %v10104 = vld [vmem:[%s10090 + $0x68] sm:$0xff]
  %v10105 = vld [vmem:[%s10090 + $0x70] sm:$0xff]
  %v10107 = vsel %vm6839, %v10091, 0
  %v10110 = vsel %vm6839, %v10092, 0
  %v10113 = vsel %vm6839, %v10093, 0
  %v10116 = vsel %vm6839, %v10094, 0
  %v10119 = vsel %vm6839, %v10095, 0
  %v10122 = vsel %vm6839, %v10096, 0
  %v10125 = vsel %vm6839, %v10097, 0
  %v10128 = vsel %vm6839, %v10098, 0
  %v10131 = vsel %vm6839, %v10099, 0
  %v10134 = vsel %vm6839, %v10100, 0
  %v10137 = vsel %vm6839, %v10101, 0
  %v10140 = vsel %vm6839, %v10102, 0
  %v10143 = vsel %vm6839, %v10103, 0
  %v10146 = vsel %vm6839, %v10104, 0
  %v10149 = vsel %vm6839, %v10105, 0
  %10151 = vmatpush.msra.mxu0 0.0
  %10152 = vmatpush.msra.mxu0 0.0
  %10153 = vmatpush.msra.mxu0 0.0
  %10154 = vmatpush.msra.mxu0 0.0
  %10155 = vmatpush.msra.mxu0 0.0
  %10156 = vmatpush.msra.mxu0 0.0
  %10157 = vmatpush.msra.mxu0 0.0
  %10158 = vmatpush.msra.mxu0 0.0
  %10159 = vmatpush.msra.mxu0 0.0
  %10160 = vmatpush.msra.mxu0 0.0
  %10161 = vmatpush.msra.mxu0 0.0
  %10162 = vmatpush.msra.mxu0 0.0
  %10163 = vmatpush.msra.mxu0 0.0
  %10164 = vmatpush.msra.mxu0 0.0
  %10165 = vmatpush.msra.mxu0 %v6807
  %10166 = vmatpush.msra.mxu0 %v6782
  %10167 = vmatmul.f32.gmra.mxu0 %v10107
  %v10168 = vpop.f32.mrf.mxu0
  %v10169 = vadd.f32 0.0, %v10168
  %10170 = vmatmul.f32.gmra.mxu0 %v10110
  %v10171 = vpop.f32.mrf.mxu0
  %v10172 = vadd.f32 0.0, %v10171
  %10173 = vmatmul.f32.gmra.mxu0 %v10113
  %v10174 = vpop.f32.mrf.mxu0
  %v10175 = vadd.f32 0.0, %v10174
  %10176 = vmatmul.f32.gmra.mxu0 %v10116
  %v10177 = vpop.f32.mrf.mxu0
  %v10178 = vadd.f32 0.0, %v10177
  %10179 = vmatmul.f32.gmra.mxu0 %v10119
  %v10180 = vpop.f32.mrf.mxu0
  %v10181 = vadd.f32 0.0, %v10180
  %10182 = vmatmul.f32.gmra.mxu0 %v10122
  %v10183 = vpop.f32.mrf.mxu0
  %v10184 = vadd.f32 0.0, %v10183
  %10185 = vmatmul.f32.gmra.mxu0 %v10125
  %v10186 = vpop.f32.mrf.mxu0
  %v10187 = vadd.f32 0.0, %v10186
  %10188 = vmatmul.f32.gmra.mxu0 %v10128
  %v10189 = vpop.f32.mrf.mxu0
  %v10190 = vadd.f32 0.0, %v10189
  %10191 = vmatmul.f32.gmra.mxu0 %v10131
  %v10192 = vpop.f32.mrf.mxu0
  %v10193 = vadd.f32 0.0, %v10192
  %10194 = vmatmul.f32.gmra.mxu0 %v10134
  %v10195 = vpop.f32.mrf.mxu0
  %v10196 = vadd.f32 0.0, %v10195
  %10197 = vmatmul.f32.gmra.mxu0 %v10137
  %v10198 = vpop.f32.mrf.mxu0
  %v10199 = vadd.f32 0.0, %v10198
  %10200 = vmatmul.f32.gmra.mxu0 %v10140
  %v10201 = vpop.f32.mrf.mxu0
  %v10202 = vadd.f32 0.0, %v10201
  %10203 = vmatmul.f32.gmra.mxu0 %v10143
  %v10204 = vpop.f32.mrf.mxu0
  %v10205 = vadd.f32 0.0, %v10204
  %10206 = vmatmul.f32.gmra.mxu0 %v10146
  %v10207 = vpop.f32.mrf.mxu0
  %v10208 = vadd.f32 0.0, %v10207
  %10209 = vmatmul.f32.gmra.mxu0 %v10149
  %v10210 = vpop.f32.mrf.mxu0
  %v10211 = vadd.f32 0.0, %v10210
  %10212 = vdwg.mxu0
  %v10213 = vadd.f32 %v10075, %v10169
  %v10214 = vadd.f32 %v10076, %v10172
  %v10215 = vadd.f32 %v10077, %v10175
  %v10216 = vadd.f32 %v10078, %v10178
  %v10217 = vadd.f32 %v10079, %v10181
  %v10218 = vadd.f32 %v10080, %v10184
  %v10219 = vadd.f32 %v10081, %v10187
  %v10220 = vadd.f32 %v10082, %v10190
  %v10221 = vadd.f32 %v10083, %v10193
  %v10222 = vadd.f32 %v10084, %v10196
  %v10223 = vadd.f32 %v10085, %v10199
  %v10224 = vadd.f32 %v10086, %v10202
  %v10225 = vadd.f32 %v10087, %v10205
  %v10226 = vadd.f32 %v10088, %v10208
  %v10227 = vadd.f32 %v10089, %v10211
  %v10228 = vld [vmem:[%s4] sm:$0xff]
  %v10229 = vld [vmem:[%s4 + $0x8] sm:$0xff]
  %v10230 = vld [vmem:[%s4 + $0x10] sm:$0xff]
  %v10231 = vld [vmem:[%s4 + $0x18] sm:$0xff]
  %v10232 = vld [vmem:[%s4 + $0x20] sm:$0xff]
  %v10233 = vld [vmem:[%s4 + $0x28] sm:$0xff]
  %v10234 = vld [vmem:[%s4 + $0x30] sm:$0xff]
  %v10235 = vld [vmem:[%s4 + $0x38] sm:$0xff]
  %v10236 = vld [vmem:[%s4 + $0x40] sm:$0xff]
  %v10237 = vld [vmem:[%s4 + $0x48] sm:$0xff]
  %v10238 = vld [vmem:[%s4 + $0x50] sm:$0xff]
  %v10239 = vld [vmem:[%s4 + $0x58] sm:$0xff]
  %v10240 = vld [vmem:[%s4 + $0x60] sm:$0xff]
  %v10241 = vld [vmem:[%s4 + $0x68] sm:$0xff]
  %v10242 = vld [vmem:[%s4 + $0x70] sm:$0xff]
  %10244 = vset.pattern.permute.xlu0 0
  %10245 = vperm.xlu0 %10244, %v10228
  %v10246 = vpop.permute.xlu0 %10245
  %10249 = vset.pattern.permute.xlu0 0
  %10250 = vperm.xlu0 %10249, %v10229
  %v10251 = vpop.permute.xlu0 %10250
  %10254 = vset.pattern.permute.xlu0 0
  %10255 = vperm.xlu0 %10254, %v10230
  %v10256 = vpop.permute.xlu0 %10255
  %10259 = vset.pattern.permute.xlu0 0
  %10260 = vperm.xlu0 %10259, %v10231
  %v10261 = vpop.permute.xlu0 %10260
  %10264 = vset.pattern.permute.xlu0 0
  %10265 = vperm.xlu0 %10264, %v10232
  %v10266 = vpop.permute.xlu0 %10265
  %10269 = vset.pattern.permute.xlu0 0
  %10270 = vperm.xlu0 %10269, %v10233
  %v10271 = vpop.permute.xlu0 %10270
  %10274 = vset.pattern.permute.xlu0 0
  %10275 = vperm.xlu0 %10274, %v10234
  %v10276 = vpop.permute.xlu0 %10275
  %10279 = vset.pattern.permute.xlu0 0
  %10280 = vperm.xlu0 %10279, %v10235
  %v10281 = vpop.permute.xlu0 %10280
  %10284 = vset.pattern.permute.xlu0 0
  %10285 = vperm.xlu0 %10284, %v10236
  %v10286 = vpop.permute.xlu0 %10285
  %10289 = vset.pattern.permute.xlu0 0
  %10290 = vperm.xlu0 %10289, %v10237
  %v10291 = vpop.permute.xlu0 %10290
  %10294 = vset.pattern.permute.xlu0 0
  %10295 = vperm.xlu0 %10294, %v10238
  %v10296 = vpop.permute.xlu0 %10295
  %10299 = vset.pattern.permute.xlu0 0
  %10300 = vperm.xlu0 %10299, %v10239
  %v10301 = vpop.permute.xlu0 %10300
  %10304 = vset.pattern.permute.xlu0 0
  %10305 = vperm.xlu0 %10304, %v10240
  %v10306 = vpop.permute.xlu0 %10305
  %10309 = vset.pattern.permute.xlu0 0
  %10310 = vperm.xlu0 %10309, %v10241
  %v10311 = vpop.permute.xlu0 %10310
  %10314 = vset.pattern.permute.xlu0 0
  %10315 = vperm.xlu0 %10314, %v10242
  %v10316 = vpop.permute.xlu0 %10315
  %v10318 = vadd.f32 %v10213, %v10246
  %v10319 = vadd.f32 %v10214, %v10251
  %v10320 = vadd.f32 %v10215, %v10256
  %v10321 = vadd.f32 %v10216, %v10261
  %v10322 = vadd.f32 %v10217, %v10266
  %v10323 = vadd.f32 %v10218, %v10271
  %v10324 = vadd.f32 %v10219, %v10276
  %v10325 = vadd.f32 %v10220, %v10281
  %v10326 = vadd.f32 %v10221, %v10286
  %v10327 = vadd.f32 %v10222, %v10291
  %v10328 = vadd.f32 %v10223, %v10296
  %v10329 = vadd.f32 %v10224, %v10301
  %v10330 = vadd.f32 %v10225, %v10306
  %v10331 = vadd.f32 %v10226, %v10311
  %v10332 = vadd.f32 %v10227, %v10316
  %v10333 = vmax.f32 %v10318, 0.0
  %v10334 = vmax.f32 %v10319, 0.0
  %v10335 = vmax.f32 %v10320, 0.0
  %v10336 = vmax.f32 %v10321, 0.0
  %v10337 = vmax.f32 %v10322, 0.0
  %v10338 = vmax.f32 %v10323, 0.0
  %v10339 = vmax.f32 %v10324, 0.0
  %v10340 = vmax.f32 %v10325, 0.0
  %v10341 = vmax.f32 %v10326, 0.0
  %v10342 = vmax.f32 %v10327, 0.0
  %v10343 = vmax.f32 %v10328, 0.0
  %v10344 = vmax.f32 %v10329, 0.0
  %v10345 = vmax.f32 %v10330, 0.0
  %v10346 = vmax.f32 %v10331, 0.0
  %v10347 = vmax.f32 %v10332, 0.0
  %v10348 = vld [vmem:[%s5] sm:$0xff]
  %v10349 = vld [vmem:[%s5 + $0x8] sm:$0xff]
  %v10350 = vld [vmem:[%s5 + $0x10] sm:$0xff]
  %v10351 = vld [vmem:[%s5 + $0x18] sm:$0xff]
  %v10352 = vld [vmem:[%s5 + $0x20] sm:$0xff]
  %v10353 = vld [vmem:[%s5 + $0x28] sm:$0xff]
  %v10354 = vld [vmem:[%s5 + $0x30] sm:$0xff]
  %v10355 = vld [vmem:[%s5 + $0x38] sm:$0xff]
  %v10356 = vld [vmem:[%s5 + $0x40] sm:$0xff]
  %v10357 = vld [vmem:[%s5 + $0x48] sm:$0xff]
  %v10358 = vld [vmem:[%s5 + $0x50] sm:$0xf]
  %v10359 = vld [vmem:[%s6] sm:$0xff]
  %v10360 = vld [vmem:[%s6 + $0x8] sm:$0xff]
  %v10361 = vld [vmem:[%s6 + $0x10] sm:$0xff]
  %v10362 = vld [vmem:[%s6 + $0x18] sm:$0xff]
  %v10363 = vld [vmem:[%s6 + $0x20] sm:$0xff]
  %v10364 = vld [vmem:[%s6 + $0x28] sm:$0xff]
  %v10365 = vld [vmem:[%s6 + $0x30] sm:$0xff]
  %v10366 = vld [vmem:[%s6 + $0x38] sm:$0xff]
  %v10367 = vld [vmem:[%s6 + $0x40] sm:$0xff]
  %v10368 = vld [vmem:[%s6 + $0x48] sm:$0xff]
  %v10369 = vld [vmem:[%s6 + $0x50] sm:$0xf]
  %10371 = vset.pattern.permute.xlu0 0
  %10372 = vperm.xlu0 %10371, %v10359
  %v10373 = vpop.permute.xlu0 %10372
  %10376 = vset.pattern.permute.xlu0 0
  %10377 = vperm.xlu0 %10376, %v10360
  %v10378 = vpop.permute.xlu0 %10377
  %10381 = vset.pattern.permute.xlu0 0
  %10382 = vperm.xlu0 %10381, %v10361
  %v10383 = vpop.permute.xlu0 %10382
  %10386 = vset.pattern.permute.xlu0 0
  %10387 = vperm.xlu0 %10386, %v10362
  %v10388 = vpop.permute.xlu0 %10387
  %10391 = vset.pattern.permute.xlu0 0
  %10392 = vperm.xlu0 %10391, %v10363
  %v10393 = vpop.permute.xlu0 %10392
  %10396 = vset.pattern.permute.xlu0 0
  %10397 = vperm.xlu0 %10396, %v10364
  %v10398 = vpop.permute.xlu0 %10397
  %10401 = vset.pattern.permute.xlu0 0
  %10402 = vperm.xlu0 %10401, %v10365
  %v10403 = vpop.permute.xlu0 %10402
  %10406 = vset.pattern.permute.xlu0 0
  %10407 = vperm.xlu0 %10406, %v10366
  %v10408 = vpop.permute.xlu0 %10407
  %10411 = vset.pattern.permute.xlu0 0
  %10412 = vperm.xlu0 %10411, %v10367
  %v10413 = vpop.permute.xlu0 %10412
  %10416 = vset.pattern.permute.xlu0 0
  %10417 = vperm.xlu0 %10416, %v10368
  %v10418 = vpop.permute.xlu0 %10417
  %10421 = vset.pattern.permute.xlu0 0
  %10422 = vperm.xlu0 %10421, %v10369
  %v10423 = vpop.permute.xlu0 %10422
  %vm10425 = vcmask 982016
  %v10427 = vsel %vm10425, %v10348, 0
  %v10430 = vsel %vm10425, %v10349, 0
  %v10433 = vsel %vm10425, %v10350, 0
  %v10436 = vsel %vm10425, %v10351, 0
  %v10439 = vsel %vm10425, %v10352, 0
  %v10442 = vsel %vm10425, %v10353, 0
  %v10445 = vsel %vm10425, %v10354, 0
  %v10448 = vsel %vm10425, %v10355, 0
  %v10451 = vsel %vm10425, %v10356, 0
  %v10454 = vsel %vm10425, %v10357, 0
  %v10457 = vsel %vm10425, %v10358, 0
  %10459 = vmatpush.msra.mxu0 0.0
  %10460 = vmatpush.msra.mxu0 %v10347
  %10461 = vmatpush.msra.mxu0 %v10346
  %10462 = vmatpush.msra.mxu0 %v10345
  %10463 = vmatpush.msra.mxu0 %v10344
  %10464 = vmatpush.msra.mxu0 %v10343
  %10465 = vmatpush.msra.mxu0 %v10342
  %10466 = vmatpush.msra.mxu0 %v10341
  %10467 = vmatpush.msra.mxu0 %v10340
  %10468 = vmatpush.msra.mxu0 %v10339
  %10469 = vmatpush.msra.mxu0 %v10338
  %10470 = vmatpush.msra.mxu0 %v10337
  %10471 = vmatpush.msra.mxu0 %v10336
  %10472 = vmatpush.msra.mxu0 %v10335
  %10473 = vmatpush.msra.mxu0 %v10334
  %10474 = vmatpush.msra.mxu0 %v10333
  %10475 = vmatmul.f32.gmra.mxu0 %v10427
  %v10476 = vpop.f32.mrf.mxu0
  %v10477 = vadd.f32 %v10373, %v10476
  %10478 = vmatmul.f32.gmra.mxu0 %v10430
  %v10479 = vpop.f32.mrf.mxu0
  %v10480 = vadd.f32 %v10378, %v10479
  %10481 = vmatmul.f32.gmra.mxu0 %v10433
  %v10482 = vpop.f32.mrf.mxu0
  %v10483 = vadd.f32 %v10383, %v10482
  %10484 = vmatmul.f32.gmra.mxu0 %v10436
  %v10485 = vpop.f32.mrf.mxu0
  %v10486 = vadd.f32 %v10388, %v10485
  %10487 = vmatmul.f32.gmra.mxu0 %v10439
  %v10488 = vpop.f32.mrf.mxu0
  %v10489 = vadd.f32 %v10393, %v10488
  %10490 = vmatmul.f32.gmra.mxu0 %v10442
  %v10491 = vpop.f32.mrf.mxu0
  %v10492 = vadd.f32 %v10398, %v10491
  %10493 = vmatmul.f32.gmra.mxu0 %v10445
  %v10494 = vpop.f32.mrf.mxu0
  %v10495 = vadd.f32 %v10403, %v10494
  %10496 = vmatmul.f32.gmra.mxu0 %v10448
  %v10497 = vpop.f32.mrf.mxu0
  %v10498 = vadd.f32 %v10408, %v10497
  %10499 = vmatmul.f32.gmra.mxu0 %v10451
  %v10500 = vpop.f32.mrf.mxu0
  %v10501 = vadd.f32 %v10413, %v10500
  %10502 = vmatmul.f32.gmra.mxu0 %v10454
  %v10503 = vpop.f32.mrf.mxu0
  %v10504 = vadd.f32 %v10418, %v10503
  %10505 = vmatmul.f32.gmra.mxu0 %v10457
  %v10506 = vpop.f32.mrf.mxu0
  %v10507 = vadd.f32 %v10423, %v10506
  %10508 = vdwg.mxu0
  %v10509 = vtanh.pop %v10477
  %v10510 = vtanh.pop %v10480
  %v10511 = vtanh.pop %v10483
  %v10512 = vtanh.pop %v10486
  %v10513 = vtanh.pop %v10489
  %v10514 = vtanh.pop %v10492
  %v10515 = vtanh.pop %v10495
  %v10516 = vtanh.pop %v10498
  %v10517 = vtanh.pop %v10501
  %v10518 = vtanh.pop %v10504
  %v10519 = vtanh.pop %v10507
  %v10520 = vld [vmem:[%s7] sm:$0xff]
  %v10521 = vld [vmem:[%s7 + $0x8] sm:$0x3]
  %v10522 = vld [vmem:[%s8] sm:$0xff]
  %v10523 = vld [vmem:[%s8 + $0x8] sm:$0x3]
  %10525 = vset.pattern.permute.xlu0 0
  %10526 = vperm.xlu0 %10525, %v10522
  %v10527 = vpop.permute.xlu0 %10526
  %10530 = vset.pattern.permute.xlu0 0
  %10531 = vperm.xlu0 %10530, %v10523
  %v10532 = vpop.permute.xlu0 %10531
  %vm10534 = vcmask 687104
  %v10536 = vsel %vm10534, %v10520, 0
  %v10539 = vsel %vm10534, %v10521, 0
  %vm10541 = vcmask 1043456
  %v10543 = vsel %vm10541, %v10519, 0
  %10545 = vmatpush.msra.mxu0 0.0
  %10546 = vmatpush.msra.mxu0 0.0
  %10547 = vmatpush.msra.mxu0 0.0
  %10548 = vmatpush.msra.mxu0 0.0
  %10549 = vmatpush.msra.mxu0 0.0
  %10550 = vmatpush.msra.mxu0 %v10543
  %10551 = vmatpush.msra.mxu0 %v10518
  %10552 = vmatpush.msra.mxu0 %v10517
  %10553 = vmatpush.msra.mxu0 %v10516
  %10554 = vmatpush.msra.mxu0 %v10515
  %10555 = vmatpush.msra.mxu0 %v10514
  %10556 = vmatpush.msra.mxu0 %v10513
  %10557 = vmatpush.msra.mxu0 %v10512
  %10558 = vmatpush.msra.mxu0 %v10511
  %10559 = vmatpush.msra.mxu0 %v10510
  %10560 = vmatpush.msra.mxu0 %v10509
  %10561 = vmatmul.f32.gmra.mxu0 %v10536
  %v10562 = vpop.f32.mrf.mxu0
  %v10563 = vadd.f32 %v10527, %v10562
  %10564 = vmatmul.f32.gmra.mxu0 %v10539
  %v10565 = vpop.f32.mrf.mxu0
  %v10566 = vadd.f32 %v10532, %v10565
  %10567 = vdwg.mxu0
  %10568 = vst [vmem:[%s9] sm:$0xff] %v10563
  %10569 = vst [vmem:[%s9 + $0x8] sm:$0x3] %v10566
  // Predicated region
  $region38: #{lenet5_forward.3} parent=0 // pred_check
    _
  $region39: #{lenet5_forward.3} parent=0 // pred_check_branch
    %10571 = sbr.rel (0) target = $region41
  $region40: #{lenet5_forward.3} parent=0 // pred_region
    _
  $region41: #{lenet5_forward.3} parent=0 // pred_fallthru
    _
  // Predicated region
  $region42: #{lenet5_forward.3} parent=0 // pred_check
    _
  $region43: #{lenet5_forward.3} parent=0 // pred_check_branch
    %10573 = sbr.rel (0) target = $region45
  $region44: #{lenet5_forward.3} parent=0 // pred_region
    _
  $region45: #{lenet5_forward.3} parent=0 // pred_fallthru
    _

</llo_original>
